<compile_context>
chip_gen: v7x
topology: tpu7x:2x2x1
jax: 0.10.0
libtpu: 0.0.40
codegen_flags: <defaults>
</compile_context>

<pallas_src>
import functools
import numpy as np
import jax
import jax.numpy as jnp
from jax import lax
from jax.experimental import pallas as pl
from jax.experimental.pallas import tpu as pltpu


# ----------------------- deterministic Gray-coded QAM constellation ------------------
def _pam_gray(b):
    if len(b) > 1:
        return (1 - 2 * b[0]) * (2 ** len(b[1:]) - _pam_gray(b[1:]))
    return 1 - 2 * b[0]


def qam_constellation(num_bits_per_symbol):
    n_pts = 2 ** num_bits_per_symbol
    c = np.zeros(n_pts, dtype=np.complex64)
    for i in range(n_pts):
        b = np.array(list(np.binary_repr(i, num_bits_per_symbol)), dtype=np.int16)
        c[i] = _pam_gray(b[0::2]) + 1j * _pam_gray(b[1::2])
    n = num_bits_per_symbol // 2
    qam_var = 1.0 / (2 ** (n - 2)) * np.sum(np.linspace(1, 2 ** n - 1, 2 ** (n - 1)) ** 2)
    return (c / np.sqrt(qam_var)).astype(np.complex64)


# ------------------------------- Pallas K-best kernel --------------------------------
def _make_kbest_kernel(S, Q, K, TB):
    """K-best tree search; batch on lanes, candidates as [P(parents), Q(symbols), TB]."""
    f32 = jnp.float32
    SS = S * S

    def kernel(yri_ref, rri_ref, tbl_ref, o_ref):
        # constellation table, [Q, 1]; used via implicit lane-broadcast (never [C, TB])
        tre = tbl_ref[0:Q, :]
        tim = tbl_ref[Q:2 * Q, :]

        dists = jnp.zeros((1, TB), dtype=f32)      # [P, TB] surviving path distances
        cols_re, cols_im = [], []                  # detected-symbol columns, each [P, TB]
        P = 1

        for stream in range(S):                    # static loop over streams
            si = S - 1 - stream                    # sorted column detected this step
            C = P * Q

            # --- parent-level residual: y[si] - sum_{j<stream} r[si, S-1-j] * sym_j ---
            # (hoisted out of the candidate dimension: identical across the Q replicas)
            pre_re = jnp.broadcast_to(yri_ref[si:si + 1, :], (P, TB))
            pre_im = jnp.broadcast_to(yri_ref[S + si:S + si + 1, :], (P, TB))
            for j in range(stream):
                col = S - 1 - j
                rre = rri_ref[si * S + col:si * S + col + 1, :]              # [1, TB]
                rim = rri_ref[SS + si * S + col:SS + si * S + col + 1, :]
                pre_re = pre_re - (rre * cols_re[j] - rim * cols_im[j])
                pre_im = pre_im - (rre * cols_im[j] + rim * cols_re[j])

            # --- per-candidate distance, [P, Q, TB]: parent axis 0, new-symbol axis 1 ---
            rss_re = rri_ref[si * S + si:si * S + si + 1, :]                 # [1, TB]
            rss_im = rri_ref[SS + si * S + si:SS + si * S + si + 1, :]
            t_re = rss_re * tre - rss_im * tim                               # [Q, TB]
            t_im = rss_re * tim + rss_im * tre
            dre = pre_re[:, None, :] - t_re[None, :, :]                      # [P, Q, TB]
            dim_ = pre_im[:, None, :] - t_im[None, :, :]
            cand_d = dists[:, None, :] + dre * dre + dim_ * dim_             # [P, Q, TB]

            # --- iterative K-best extraction (k_sel masked argmins, ties by index) ---
            k_sel = min(C, K) if stream < S - 1 else 1     # last stream: best path only
            ii_p = lax.broadcasted_iota(jnp.int32, (P, Q, TB), 0)
            ii_q = lax.broadcasted_iota(jnp.int32, (P, Q, TB), 1)
            cand_iota = (ii_p * Q + ii_q).astype(f32)      # unique candidate id

            work_d = cand_d
            d_rows = []
            re_rows = [[] for _ in range(stream + 1)]
            im_rows = [[] for _ in range(stream + 1)]
            for k in range(k_sel):
                d_min = jnp.min(jnp.min(work_d, axis=0, keepdims=True),
                                axis=1, keepdims=True)                       # [1, 1, TB]
                masked = jnp.where(work_d == d_min, cand_iota, float(C))
                first = jnp.min(jnp.min(masked, axis=0, keepdims=True),
                                axis=1, keepdims=True)                       # [1, 1, TB]
                onehot = (cand_iota == first).astype(f32)                    # [P, Q, TB]
                parent_oh = jnp.sum(onehot, axis=1)                          # [P, TB]
                sym_oh = jnp.sum(onehot, axis=0)                             # [Q, TB]

                d_rows.append(d_min[0])                                      # [1, TB]
                for j in range(stream):          # old columns: parent-granularity gather
                    re_rows[j].append(
                        jnp.sum(parent_oh * cols_re[j], axis=0, keepdims=True))
                    im_rows[j].append(
                        jnp.sum(parent_oh * cols_im[j], axis=0, keepdims=True))
                # new symbol: symbol-granularity gather against the [Q, 1] table
                re_rows[stream].append(jnp.sum(sym_oh * tre, axis=0, keepdims=True))
                im_rows[stream].append(jnp.sum(sym_oh * tim, axis=0, keepdims=True))

                if k < k_sel - 1:
                    work_d = jnp.where(onehot > 0.0, jnp.inf, work_d)

            if stream < S - 1:
                dists = jnp.concatenate(d_rows, axis=0)                      # [k_sel, TB]
                cols_re = [jnp.concatenate(r, axis=0) for r in re_rows]
                cols_im = [jnp.concatenate(r, axis=0) for r in im_rows]
                P = k_sel
            else:
                # single lane-dense [2S, TB] store: re rows then im rows, detection order
                out = jnp.concatenate([r[0] for r in re_rows]
                                      + [r[0] for r in im_rows], axis=0)
                o_ref[...] = out

    return kernel


def kbest_core(y_r, r, constellation, K, *, tb=128):
    """Run the K-best tree search on whitened/QR-reduced inputs (Pallas kernel).

    Batch is padded to a multiple of `tb` lanes and carried on the lane axis; the grid
    is 'parallel' over batch tiles.  Intermediates are O(K*Q*tb) floats per tile, well
    inside the scoped-VMEM defaults on v5e/v6e/v7x.  For large batches on v5e/v6e,
    tb=256..512 amortizes per-grid-step overhead; keep tb<=256 on v7x (64 MiB VMEM).
    """
    B, S = y_r.shape
    Q = constellation.shape[0]
    f32 = jnp.float32

    TB = tb
    Bp = max(TB, ((B + TB - 1) // TB) * TB)      # NOTE: tiny batches under-fill one tile

    def pad_b(x):                                # zero-pad batch (last axis) to Bp
        pad = Bp - x.shape[-1]
        if pad == 0:
            return x
        cfg = [(0, 0)] * (x.ndim - 1) + [(0, pad)]
        return jnp.pad(x, cfg)

    # merged / flattened real-imag inputs (second-minor dims are multiples of 8)
    yri = pad_b(jnp.concatenate([jnp.real(y_r).astype(f32).T,
                                 jnp.imag(y_r).astype(f32).T], axis=0))      # [2S, Bp]
    r_t = jnp.transpose(r, (1, 2, 0))                                        # [S, S, B]
    rri = pad_b(jnp.concatenate([jnp.real(r_t).astype(f32).reshape(S * S, B),
                                 jnp.imag(r_t).astype(f32).reshape(S * S, B)],
                                axis=0))                                     # [2*S*S, Bp]
    tbl = jnp.concatenate([jnp.real(constellation).astype(f32),
                           jnp.imag(constellation).astype(f32)]).reshape(2 * Q, 1)

    kern = _make_kbest_kernel(S, Q, K, TB)
    out = pl.pallas_call(
        kern,
        out_shape=jax.ShapeDtypeStruct((2 * S, Bp), f32),
        grid=(Bp // TB,),
        in_specs=[
            pl.BlockSpec((2 * S, TB), lambda i: (0, i)),
            pl.BlockSpec((2 * S * S, TB), lambda i: (0, i)),
            pl.BlockSpec((2 * Q, 1), lambda i: (0, 0)),
        ],
        out_specs=pl.BlockSpec((2 * S, TB), lambda i: (0, i)),
        compiler_params=pltpu.CompilerParams(dimension_semantics=("parallel",)),
    )(yri, rri, tbl)

    out = out[:, :B]                                     # drop lane padding
    best_re = out[0:S].T                                 # [B, S] detection order
    best_im = out[S:2 * S].T
    best_syms = (best_re + 1j * best_im).astype(jnp.complex64)
    # recover integer symbol indices by exact nearest-constellation match
    best_ind = jnp.argmin(
        jnp.abs(best_syms[:, :, None] - constellation[None, None, :]), axis=-1
    ).astype(jnp.int32)
    return best_syms, best_ind


# ------------------------------- full forward (glue + kernel) ------------------------
def kbest_detector_forward(y, h, s, constellation, k):
    B, M = y.shape
    S = h.shape[-1]
    Q = constellation.shape[0]
    K = min(k, Q ** S)

    # --- preprocessing (glue, plain JAX) ---
    # TODO(synk): comcloak's whiten_channel / Constellation helpers are not provided;
    # whitening uses the inverse Cholesky factor of s (valid whitener, unitary-equivalent).
    L = jnp.linalg.cholesky(s)
    y_w = jax.scipy.linalg.solve_triangular(L, y[..., None], lower=True)[..., 0]
    h_w = jax.scipy.linalg.solve_triangular(L, h, lower=True)
    h_norm = jnp.sum(jnp.abs(h_w) ** 2, axis=1)                    # [B, S]
    column_order = jnp.argsort(-h_norm, axis=-1)                   # descending
    h_sorted = jnp.take_along_axis(h_w, column_order[:, None, :], axis=-1)
    q_mat, r_mat = jnp.linalg.qr(h_sorted)
    y_r = jnp.einsum('bji,bj->bi', jnp.conj(q_mat), y_w)           # Q^H y

    # --- K-best tree search (Pallas kernel hot path) ---
    best_syms, best_ind = kbest_core(y_r, r_mat, constellation, K)  # detection order

    # reference formula: logits = sum over detected streams of best_sym * constellation
    logits = jnp.sum(best_syms[:, :, None] * constellation[None, None, :], axis=-2)

    # detection step l corresponds to sorted column S-1-l; undo the column sort
    # TODO(synk): reference `_unsort` is shape-broken for these shapes; intended unsort used.
    sorted_ind = best_ind[:, ::-1]
    sorted_syms = best_syms[:, ::-1]
    unsort = jnp.argsort(column_order, axis=-1)
    hard_ind = jnp.take_along_axis(sorted_ind, unsort, axis=-1)
    hard_syms = jnp.take_along_axis(sorted_syms, unsort, axis=-1)
    return hard_ind, hard_syms, logits


if __name__ == "__main__":
    B, M, S, NBPS, K_PARAM = 2, 4, 4, 2, 8
    const = jnp.asarray(qam_constellation(NBPS))      # [4] complex64 (QPSK)
    Q = const.shape[0]

    key = jax.random.PRNGKey(0)
    k1, k2, k3, k4, k5 = jax.random.split(key, 5)
    tx_ind = jax.random.randint(k1, (B, S), 0, Q)
    x = const[tx_ind]
    h = ((jax.random.normal(k2, (B, M, S)) + 1j * jax.random.normal(k3, (B, M, S)))
         / jnp.sqrt(2.0 * S)).astype(jnp.complex64)
    n0 = 0.05
    noise = (jnp.sqrt(n0 / 2.0)
             * (jax.random.normal(k4, (B, M)) + 1j * jax.random.normal(k5, (B, M)))
             ).astype(jnp.complex64)
    y = jnp.einsum('bms,bs->bm', h, x) + noise
    s = jnp.broadcast_to(n0 * jnp.eye(M, dtype=jnp.complex64), (B, M, M))

    fwd = jax.jit(functools.partial(kbest_detector_forward, k=K_PARAM))
    hard_ind, hard_syms, logits = fwd(y, h, s, const)
    jax.block_until_ready((hard_ind, hard_syms, logits))
    assert hard_ind.shape == (B, S) and hard_ind.dtype == jnp.int32
    assert hard_syms.shape == (B, S)
    assert logits.shape == (B, Q)
    print("KERNEL_OK")
</pallas_src>

<mosaic_0001>
module attributes {stable_mosaic.version = 11 : i64} {
  func.func @kernel(%arg0: i32, %arg1: memref<8x128xf32, #tpu.memory_space<vmem>>, %arg2: memref<32x128xf32, #tpu.memory_space<vmem>>, %arg3: memref<8x1xf32, #tpu.memory_space<vmem>>, %arg4: memref<8x128xf32, #tpu.memory_space<vmem>>) attributes {dimension_semantics = [#tpu.dimension_semantics<parallel>], iteration_bounds = array<i64: 1>, scalar_prefetch = 0 : i64, scratch_operands = 0 : i64, tpu.core_type = #tpu.core_type<tc>, window_params = [{transform_indices = @transform_0, window_bounds = array<i64: 8, 128>}, {transform_indices = @transform_1, window_bounds = array<i64: 32, 128>}, {pipeline_mode = #tpu.pipeline_mode<synchronous>, transform_indices = @transform_2, window_bounds = array<i64: 8, 1>}, {transform_indices = @transform_3, window_bounds = array<i64: 8, 128>}]} {
    %c0 = arith.constant 0 : index
    %c0_0 = arith.constant 0 : index
    %0 = vector.load %arg3[%c0, %c0_0] : memref<8x1xf32, #tpu.memory_space<vmem>>, vector<4x1xf32>
    %c4 = arith.constant 4 : index
    %c0_1 = arith.constant 0 : index
    %1 = vector.load %arg3[%c4, %c0_1] : memref<8x1xf32, #tpu.memory_space<vmem>>, vector<4x1xf32>
    %cst = arith.constant 0.000000e+00 : f32
    %2 = vector.broadcast %cst : f32 to vector<1x128xf32>
    %c3 = arith.constant 3 : index
    %c0_2 = arith.constant 0 : index
    %3 = vector.load %arg1[%c3, %c0_2] : memref<8x128xf32, #tpu.memory_space<vmem>>, vector<1x128xf32>
    %c7 = arith.constant 7 : index
    %c0_3 = arith.constant 0 : index
    %4 = vector.load %arg1[%c7, %c0_3] : memref<8x128xf32, #tpu.memory_space<vmem>>, vector<1x128xf32>
    %c15 = arith.constant 15 : index
    %c0_4 = arith.constant 0 : index
    %5 = vector.load %arg2[%c15, %c0_4] : memref<32x128xf32, #tpu.memory_space<vmem>>, vector<1x128xf32>
    %c31 = arith.constant 31 : index
    %c0_5 = arith.constant 0 : index
    %6 = vector.load %arg2[%c31, %c0_5] : memref<32x128xf32, #tpu.memory_space<vmem>>, vector<1x128xf32>
    %7 = vector.broadcast %5 : vector<1x128xf32> to vector<4x128xf32>
    %8 = vector.broadcast %0 : vector<4x1xf32> to vector<4x128xf32>
    %9 = arith.mulf %7, %8 : vector<4x128xf32>
    %10 = vector.broadcast %6 : vector<1x128xf32> to vector<4x128xf32>
    %11 = vector.broadcast %1 : vector<4x1xf32> to vector<4x128xf32>
    %12 = arith.mulf %10, %11 : vector<4x128xf32>
    %13 = arith.subf %9, %12 : vector<4x128xf32>
    %14 = vector.broadcast %5 : vector<1x128xf32> to vector<4x128xf32>
    %15 = vector.broadcast %1 : vector<4x1xf32> to vector<4x128xf32>
    %16 = arith.mulf %14, %15 : vector<4x128xf32>
    %17 = vector.broadcast %6 : vector<1x128xf32> to vector<4x128xf32>
    %18 = vector.broadcast %0 : vector<4x1xf32> to vector<4x128xf32>
    %19 = arith.mulf %17, %18 : vector<4x128xf32>
    %20 = arith.addf %16, %19 : vector<4x128xf32>
    %21 = vector.shape_cast %3 : vector<1x128xf32> to vector<1x1x128xf32>
    %22 = vector.shape_cast %13 : vector<4x128xf32> to vector<1x4x128xf32>
    %23 = vector.broadcast %21 : vector<1x1x128xf32> to vector<1x4x128xf32>
    %24 = arith.subf %23, %22 : vector<1x4x128xf32>
    %25 = vector.shape_cast %4 : vector<1x128xf32> to vector<1x1x128xf32>
    %26 = vector.shape_cast %20 : vector<4x128xf32> to vector<1x4x128xf32>
    %27 = vector.broadcast %25 : vector<1x1x128xf32> to vector<1x4x128xf32>
    %28 = arith.subf %27, %26 : vector<1x4x128xf32>
    %29 = vector.shape_cast %2 : vector<1x128xf32> to vector<1x1x128xf32>
    %30 = arith.mulf %24, %24 : vector<1x4x128xf32>
    %31 = vector.broadcast %29 : vector<1x1x128xf32> to vector<1x4x128xf32>
    %32 = arith.addf %31, %30 : vector<1x4x128xf32>
    %33 = arith.mulf %28, %28 : vector<1x4x128xf32>
    %34 = arith.addf %32, %33 : vector<1x4x128xf32>
    %35 = tpu.iota {dimensions = array<i32: 0>} : vector<1x4x128xi32>
    %36 = tpu.iota {dimensions = array<i32: 1>} : vector<1x4x128xi32>
    %c4_i32 = arith.constant 4 : i32
    %37 = vector.broadcast %c4_i32 : i32 to vector<1x4x128xi32>
    %38 = arith.muli %35, %37 : vector<1x4x128xi32>
    %39 = arith.addi %38, %36 : vector<1x4x128xi32>
    %40 = arith.sitofp %39 : vector<1x4x128xi32> to vector<1x4x128xf32>
    %cst_6 = arith.constant dense<0x7F800000> : vector<4x128xf32>
    %41 = vector.multi_reduction <minimumf>, %34, %cst_6 [0] : vector<1x4x128xf32> to vector<4x128xf32>
    %42 = vector.shape_cast %41 : vector<4x128xf32> to vector<1x4x128xf32>
    %cst_7 = arith.constant dense<0x7F800000> : vector<1x128xf32>
    %43 = vector.multi_reduction <minimumf>, %42, %cst_7 [1] : vector<1x4x128xf32> to vector<1x128xf32>
    %44 = vector.shape_cast %43 : vector<1x128xf32> to vector<1x1x128xf32>
    %45 = vector.broadcast %44 : vector<1x1x128xf32> to vector<1x4x128xf32>
    %46 = arith.cmpf oeq, %34, %45 : vector<1x4x128xf32>
    %cst_8 = arith.constant 4.000000e+00 : f32
    %47 = vector.broadcast %cst_8 : f32 to vector<1x4x128xf32>
    %48 = arith.select %46, %40, %47 : vector<1x4x128xi1>, vector<1x4x128xf32>
    %cst_9 = arith.constant dense<0x7F800000> : vector<4x128xf32>
    %49 = vector.multi_reduction <minimumf>, %48, %cst_9 [0] : vector<1x4x128xf32> to vector<4x128xf32>
    %50 = vector.shape_cast %49 : vector<4x128xf32> to vector<1x4x128xf32>
    %cst_10 = arith.constant dense<0x7F800000> : vector<1x128xf32>
    %51 = vector.multi_reduction <minimumf>, %50, %cst_10 [1] : vector<1x4x128xf32> to vector<1x128xf32>
    %52 = vector.shape_cast %51 : vector<1x128xf32> to vector<1x1x128xf32>
    %53 = vector.broadcast %52 : vector<1x1x128xf32> to vector<1x4x128xf32>
    %54 = arith.cmpf oeq, %40, %53 : vector<1x4x128xf32>
    %55 = arith.extui %54 : vector<1x4x128xi1> to vector<1x4x128xi32>
    %56 = arith.sitofp %55 : vector<1x4x128xi32> to vector<1x4x128xf32>
    %cst_11 = arith.constant dense<0.000000e+00> : vector<4x128xf32>
    %57 = vector.multi_reduction <add>, %56, %cst_11 [0] : vector<1x4x128xf32> to vector<4x128xf32>
    %58 = vector.shape_cast %44 : vector<1x1x128xf32> to vector<1x128xf32>
    %59 = vector.broadcast %0 : vector<4x1xf32> to vector<4x128xf32>
    %60 = arith.mulf %57, %59 : vector<4x128xf32>
    %cst_12 = arith.constant dense<0.000000e+00> : vector<128xf32>
    %61 = vector.multi_reduction <add>, %60, %cst_12 [0] : vector<4x128xf32> to vector<128xf32>
    %62 = vector.shape_cast %61 : vector<128xf32> to vector<1x128xf32>
    %63 = vector.broadcast %1 : vector<4x1xf32> to vector<4x128xf32>
    %64 = arith.mulf %57, %63 : vector<4x128xf32>
    %cst_13 = arith.constant dense<0.000000e+00> : vector<128xf32>
    %65 = vector.multi_reduction <add>, %64, %cst_13 [0] : vector<4x128xf32> to vector<128xf32>
    %66 = vector.shape_cast %65 : vector<128xf32> to vector<1x128xf32>
    %cst_14 = arith.constant 0.000000e+00 : f32
    %67 = vector.broadcast %cst_14 : f32 to vector<1x4x128xf32>
    %68 = arith.cmpf ogt, %56, %67 : vector<1x4x128xf32>
    %cst_15 = arith.constant 0x7F800000 : f32
    %69 = vector.broadcast %cst_15 : f32 to vector<1x4x128xf32>
    %70 = arith.select %68, %69, %34 : vector<1x4x128xi1>, vector<1x4x128xf32>
    %cst_16 = arith.constant dense<0x7F800000> : vector<4x128xf32>
    %71 = vector.multi_reduction <minimumf>, %70, %cst_16 [0] : vector<1x4x128xf32> to vector<4x128xf32>
    %72 = vector.shape_cast %71 : vector<4x128xf32> to vector<1x4x128xf32>
    %cst_17 = arith.constant dense<0x7F800000> : vector<1x128xf32>
    %73 = vector.multi_reduction <minimumf>, %72, %cst_17 [1] : vector<1x4x128xf32> to vector<1x128xf32>
    %74 = vector.shape_cast %73 : vector<1x128xf32> to vector<1x1x128xf32>
    %75 = vector.broadcast %74 : vector<1x1x128xf32> to vector<1x4x128xf32>
    %76 = arith.cmpf oeq, %70, %75 : vector<1x4x128xf32>
    %cst_18 = arith.constant 4.000000e+00 : f32
    %77 = vector.broadcast %cst_18 : f32 to vector<1x4x128xf32>
    %78 = arith.select %76, %40, %77 : vector<1x4x128xi1>, vector<1x4x128xf32>
    %cst_19 = arith.constant dense<0x7F800000> : vector<4x128xf32>
    %79 = vector.multi_reduction <minimumf>, %78, %cst_19 [0] : vector<1x4x128xf32> to vector<4x128xf32>
    %80 = vector.shape_cast %79 : vector<4x128xf32> to vector<1x4x128xf32>
    %cst_20 = arith.constant dense<0x7F800000> : vector<1x128xf32>
    %81 = vector.multi_reduction <minimumf>, %80, %cst_20 [1] : vector<1x4x128xf32> to vector<1x128xf32>
    %82 = vector.shape_cast %81 : vector<1x128xf32> to vector<1x1x128xf32>
    %83 = vector.broadcast %82 : vector<1x1x128xf32> to vector<1x4x128xf32>
    %84 = arith.cmpf oeq, %40, %83 : vector<1x4x128xf32>
    %85 = arith.extui %84 : vector<1x4x128xi1> to vector<1x4x128xi32>
    %86 = arith.sitofp %85 : vector<1x4x128xi32> to vector<1x4x128xf32>
    %cst_21 = arith.constant dense<0.000000e+00> : vector<4x128xf32>
    %87 = vector.multi_reduction <add>, %86, %cst_21 [0] : vector<1x4x128xf32> to vector<4x128xf32>
    %88 = vector.shape_cast %74 : vector<1x1x128xf32> to vector<1x128xf32>
    %89 = vector.broadcast %0 : vector<4x1xf32> to vector<4x128xf32>
    %90 = arith.mulf %87, %89 : vector<4x128xf32>
    %cst_22 = arith.constant dense<0.000000e+00> : vector<128xf32>
    %91 = vector.multi_reduction <add>, %90, %cst_22 [0] : vector<4x128xf32> to vector<128xf32>
    %92 = vector.shape_cast %91 : vector<128xf32> to vector<1x128xf32>
    %93 = vector.broadcast %1 : vector<4x1xf32> to vector<4x128xf32>
    %94 = arith.mulf %87, %93 : vector<4x128xf32>
    %cst_23 = arith.constant dense<0.000000e+00> : vector<128xf32>
    %95 = vector.multi_reduction <add>, %94, %cst_23 [0] : vector<4x128xf32> to vector<128xf32>
    %96 = vector.shape_cast %95 : vector<128xf32> to vector<1x128xf32>
    %cst_24 = arith.constant 0.000000e+00 : f32
    %97 = vector.broadcast %cst_24 : f32 to vector<1x4x128xf32>
    %98 = arith.cmpf ogt, %86, %97 : vector<1x4x128xf32>
    %cst_25 = arith.constant 0x7F800000 : f32
    %99 = vector.broadcast %cst_25 : f32 to vector<1x4x128xf32>
    %100 = arith.select %98, %99, %70 : vector<1x4x128xi1>, vector<1x4x128xf32>
    %cst_26 = arith.constant dense<0x7F800000> : vector<4x128xf32>
    %101 = vector.multi_reduction <minimumf>, %100, %cst_26 [0] : vector<1x4x128xf32> to vector<4x128xf32>
    %102 = vector.shape_cast %101 : vector<4x128xf32> to vector<1x4x128xf32>
    %cst_27 = arith.constant dense<0x7F800000> : vector<1x128xf32>
    %103 = vector.multi_reduction <minimumf>, %102, %cst_27 [1] : vector<1x4x128xf32> to vector<1x128xf32>
    %104 = vector.shape_cast %103 : vector<1x128xf32> to vector<1x1x128xf32>
    %105 = vector.broadcast %104 : vector<1x1x128xf32> to vector<1x4x128xf32>
    %106 = arith.cmpf oeq, %100, %105 : vector<1x4x128xf32>
    %cst_28 = arith.constant 4.000000e+00 : f32
    %107 = vector.broadcast %cst_28 : f32 to vector<1x4x128xf32>
    %108 = arith.select %106, %40, %107 : vector<1x4x128xi1>, vector<1x4x128xf32>
    %cst_29 = arith.constant dense<0x7F800000> : vector<4x128xf32>
    %109 = vector.multi_reduction <minimumf>, %108, %cst_29 [0] : vector<1x4x128xf32> to vector<4x128xf32>
    %110 = vector.shape_cast %109 : vector<4x128xf32> to vector<1x4x128xf32>
    %cst_30 = arith.constant dense<0x7F800000> : vector<1x128xf32>
    %111 = vector.multi_reduction <minimumf>, %110, %cst_30 [1] : vector<1x4x128xf32> to vector<1x128xf32>
    %112 = vector.shape_cast %111 : vector<1x128xf32> to vector<1x1x128xf32>
    %113 = vector.broadcast %112 : vector<1x1x128xf32> to vector<1x4x128xf32>
    %114 = arith.cmpf oeq, %40, %113 : vector<1x4x128xf32>
    %115 = arith.extui %114 : vector<1x4x128xi1> to vector<1x4x128xi32>
    %116 = arith.sitofp %115 : vector<1x4x128xi32> to vector<1x4x128xf32>
    %cst_31 = arith.constant dense<0.000000e+00> : vector<4x128xf32>
    %117 = vector.multi_reduction <add>, %116, %cst_31 [0] : vector<1x4x128xf32> to vector<4x128xf32>
    %118 = vector.shape_cast %104 : vector<1x1x128xf32> to vector<1x128xf32>
    %119 = vector.broadcast %0 : vector<4x1xf32> to vector<4x128xf32>
    %120 = arith.mulf %117, %119 : vector<4x128xf32>
    %cst_32 = arith.constant dense<0.000000e+00> : vector<128xf32>
    %121 = vector.multi_reduction <add>, %120, %cst_32 [0] : vector<4x128xf32> to vector<128xf32>
    %122 = vector.shape_cast %121 : vector<128xf32> to vector<1x128xf32>
    %123 = vector.broadcast %1 : vector<4x1xf32> to vector<4x128xf32>
    %124 = arith.mulf %117, %123 : vector<4x128xf32>
    %cst_33 = arith.constant dense<0.000000e+00> : vector<128xf32>
    %125 = vector.multi_reduction <add>, %124, %cst_33 [0] : vector<4x128xf32> to vector<128xf32>
    %126 = vector.shape_cast %125 : vector<128xf32> to vector<1x128xf32>
    %cst_34 = arith.constant 0.000000e+00 : f32
    %127 = vector.broadcast %cst_34 : f32 to vector<1x4x128xf32>
    %128 = arith.cmpf ogt, %116, %127 : vector<1x4x128xf32>
    %cst_35 = arith.constant 0x7F800000 : f32
    %129 = vector.broadcast %cst_35 : f32 to vector<1x4x128xf32>
    %130 = arith.select %128, %129, %100 : vector<1x4x128xi1>, vector<1x4x128xf32>
    %cst_36 = arith.constant dense<0x7F800000> : vector<4x128xf32>
    %131 = vector.multi_reduction <minimumf>, %130, %cst_36 [0] : vector<1x4x128xf32> to vector<4x128xf32>
    %132 = vector.shape_cast %131 : vector<4x128xf32> to vector<1x4x128xf32>
    %cst_37 = arith.constant dense<0x7F800000> : vector<1x128xf32>
    %133 = vector.multi_reduction <minimumf>, %132, %cst_37 [1] : vector<1x4x128xf32> to vector<1x128xf32>
    %134 = vector.shape_cast %133 : vector<1x128xf32> to vector<1x1x128xf32>
    %135 = vector.broadcast %134 : vector<1x1x128xf32> to vector<1x4x128xf32>
    %136 = arith.cmpf oeq, %130, %135 : vector<1x4x128xf32>
    %cst_38 = arith.constant 4.000000e+00 : f32
    %137 = vector.broadcast %cst_38 : f32 to vector<1x4x128xf32>
    %138 = arith.select %136, %40, %137 : vector<1x4x128xi1>, vector<1x4x128xf32>
    %cst_39 = arith.constant dense<0x7F800000> : vector<4x128xf32>
    %139 = vector.multi_reduction <minimumf>, %138, %cst_39 [0] : vector<1x4x128xf32> to vector<4x128xf32>
    %140 = vector.shape_cast %139 : vector<4x128xf32> to vector<1x4x128xf32>
    %cst_40 = arith.constant dense<0x7F800000> : vector<1x128xf32>
    %141 = vector.multi_reduction <minimumf>, %140, %cst_40 [1] : vector<1x4x128xf32> to vector<1x128xf32>
    %142 = vector.shape_cast %141 : vector<1x128xf32> to vector<1x1x128xf32>
    %143 = vector.broadcast %142 : vector<1x1x128xf32> to vector<1x4x128xf32>
    %144 = arith.cmpf oeq, %40, %143 : vector<1x4x128xf32>
    %145 = arith.extui %144 : vector<1x4x128xi1> to vector<1x4x128xi32>
    %146 = arith.sitofp %145 : vector<1x4x128xi32> to vector<1x4x128xf32>
    %cst_41 = arith.constant dense<0.000000e+00> : vector<4x128xf32>
    %147 = vector.multi_reduction <add>, %146, %cst_41 [0] : vector<1x4x128xf32> to vector<4x128xf32>
    %148 = vector.shape_cast %134 : vector<1x1x128xf32> to vector<1x128xf32>
    %149 = vector.broadcast %0 : vector<4x1xf32> to vector<4x128xf32>
    %150 = arith.mulf %147, %149 : vector<4x128xf32>
    %cst_42 = arith.constant dense<0.000000e+00> : vector<128xf32>
    %151 = vector.multi_reduction <add>, %150, %cst_42 [0] : vector<4x128xf32> to vector<128xf32>
    %152 = vector.shape_cast %151 : vector<128xf32> to vector<1x128xf32>
    %153 = vector.broadcast %1 : vector<4x1xf32> to vector<4x128xf32>
    %154 = arith.mulf %147, %153 : vector<4x128xf32>
    %cst_43 = arith.constant dense<0.000000e+00> : vector<128xf32>
    %155 = vector.multi_reduction <add>, %154, %cst_43 [0] : vector<4x128xf32> to vector<128xf32>
    %156 = vector.shape_cast %155 : vector<128xf32> to vector<1x128xf32>
    %157 = tpu.concatenate %58, %88, %118, %148 in 0 : vector<1x128xf32>, vector<1x128xf32>, vector<1x128xf32>, vector<1x128xf32> -> vector<4x128xf32>
    %158 = tpu.concatenate %62, %92, %122, %152 in 0 : vector<1x128xf32>, vector<1x128xf32>, vector<1x128xf32>, vector<1x128xf32> -> vector<4x128xf32>
    %159 = tpu.concatenate %66, %96, %126, %156 in 0 : vector<1x128xf32>, vector<1x128xf32>, vector<1x128xf32>, vector<1x128xf32> -> vector<4x128xf32>
    %c2 = arith.constant 2 : index
    %c0_44 = arith.constant 0 : index
    %160 = vector.load %arg1[%c2, %c0_44] : memref<8x128xf32, #tpu.memory_space<vmem>>, vector<1x128xf32>
    %161 = vector.shape_cast %160 : vector<1x128xf32> to vector<1x128xf32>
    %162 = vector.broadcast %161 : vector<1x128xf32> to vector<4x128xf32>
    %c6 = arith.constant 6 : index
    %c0_45 = arith.constant 0 : index
    %163 = vector.load %arg1[%c6, %c0_45] : memref<8x128xf32, #tpu.memory_space<vmem>>, vector<1x128xf32>
    %164 = vector.shape_cast %163 : vector<1x128xf32> to vector<1x128xf32>
    %165 = vector.broadcast %164 : vector<1x128xf32> to vector<4x128xf32>
    %c11 = arith.constant 11 : index
    %c0_46 = arith.constant 0 : index
    %166 = vector.load %arg2[%c11, %c0_46] : memref<32x128xf32, #tpu.memory_space<vmem>>, vector<1x128xf32>
    %c27 = arith.constant 27 : index
    %c0_47 = arith.constant 0 : index
    %167 = vector.load %arg2[%c27, %c0_47] : memref<32x128xf32, #tpu.memory_space<vmem>>, vector<1x128xf32>
    %168 = vector.broadcast %166 : vector<1x128xf32> to vector<4x128xf32>
    %169 = arith.mulf %168, %158 : vector<4x128xf32>
    %170 = vector.broadcast %167 : vector<1x128xf32> to vector<4x128xf32>
    %171 = arith.mulf %170, %159 : vector<4x128xf32>
    %172 = arith.subf %169, %171 : vector<4x128xf32>
    %173 = arith.subf %162, %172 : vector<4x128xf32>
    %174 = vector.broadcast %166 : vector<1x128xf32> to vector<4x128xf32>
    %175 = arith.mulf %174, %159 : vector<4x128xf32>
    %176 = vector.broadcast %167 : vector<1x128xf32> to vector<4x128xf32>
    %177 = arith.mulf %176, %158 : vector<4x128xf32>
    %178 = arith.addf %175, %177 : vector<4x128xf32>
    %179 = arith.subf %165, %178 : vector<4x128xf32>
    %c10 = arith.constant 10 : index
    %c0_48 = arith.constant 0 : index
    %180 = vector.load %arg2[%c10, %c0_48] : memref<32x128xf32, #tpu.memory_space<vmem>>, vector<1x128xf32>
    %c26 = arith.constant 26 : index
    %c0_49 = arith.constant 0 : index
    %181 = vector.load %arg2[%c26, %c0_49] : memref<32x128xf32, #tpu.memory_space<vmem>>, vector<1x128xf32>
    %182 = vector.broadcast %180 : vector<1x128xf32> to vector<4x128xf32>
    %183 = vector.broadcast %0 : vector<4x1xf32> to vector<4x128xf32>
    %184 = arith.mulf %182, %183 : vector<4x128xf32>
    %185 = vector.broadcast %181 : vector<1x128xf32> to vector<4x128xf32>
    %186 = vector.broadcast %1 : vector<4x1xf32> to vector<4x128xf32>
    %187 = arith.mulf %185, %186 : vector<4x128xf32>
    %188 = arith.subf %184, %187 : vector<4x128xf32>
    %189 = vector.broadcast %180 : vector<1x128xf32> to vector<4x128xf32>
    %190 = vector.broadcast %1 : vector<4x1xf32> to vector<4x128xf32>
    %191 = arith.mulf %189, %190 : vector<4x128xf32>
    %192 = vector.broadcast %181 : vector<1x128xf32> to vector<4x128xf32>
    %193 = vector.broadcast %0 : vector<4x1xf32> to vector<4x128xf32>
    %194 = arith.mulf %192, %193 : vector<4x128xf32>
    %195 = arith.addf %191, %194 : vector<4x128xf32>
    %196 = vector.shape_cast %173 : vector<4x128xf32> to vector<4x1x128xf32>
    %197 = vector.shape_cast %188 : vector<4x128xf32> to vector<1x4x128xf32>
    %198 = vector.broadcast %196 : vector<4x1x128xf32> to vector<4x4x128xf32>
    %199 = vector.broadcast %197 : vector<1x4x128xf32> to vector<4x4x128xf32>
    %200 = arith.subf %198, %199 : vector<4x4x128xf32>
    %201 = vector.shape_cast %179 : vector<4x128xf32> to vector<4x1x128xf32>
    %202 = vector.shape_cast %195 : vector<4x128xf32> to vector<1x4x128xf32>
    %203 = vector.broadcast %201 : vector<4x1x128xf32> to vector<4x4x128xf32>
    %204 = vector.broadcast %202 : vector<1x4x128xf32> to vector<4x4x128xf32>
    %205 = arith.subf %203, %204 : vector<4x4x128xf32>
    %206 = vector.shape_cast %157 : vector<4x128xf32> to vector<4x1x128xf32>
    %207 = arith.mulf %200, %200 : vector<4x4x128xf32>
    %208 = vector.broadcast %206 : vector<4x1x128xf32> to vector<4x4x128xf32>
    %209 = arith.addf %208, %207 : vector<4x4x128xf32>
    %210 = arith.mulf %205, %205 : vector<4x4x128xf32>
    %211 = arith.addf %209, %210 : vector<4x4x128xf32>
    %212 = tpu.iota {dimensions = array<i32: 0>} : vector<4x4x128xi32>
    %213 = tpu.iota {dimensions = array<i32: 1>} : vector<4x4x128xi32>
    %c4_i32_50 = arith.constant 4 : i32
    %214 = vector.broadcast %c4_i32_50 : i32 to vector<4x4x128xi32>
    %215 = arith.muli %212, %214 : vector<4x4x128xi32>
    %216 = arith.addi %215, %213 : vector<4x4x128xi32>
    %217 = arith.sitofp %216 : vector<4x4x128xi32> to vector<4x4x128xf32>
    %cst_51 = arith.constant dense<0x7F800000> : vector<4x128xf32>
    %218 = vector.multi_reduction <minimumf>, %211, %cst_51 [0] : vector<4x4x128xf32> to vector<4x128xf32>
    %219 = vector.shape_cast %218 : vector<4x128xf32> to vector<1x4x128xf32>
    %cst_52 = arith.constant dense<0x7F800000> : vector<1x128xf32>
    %220 = vector.multi_reduction <minimumf>, %219, %cst_52 [1] : vector<1x4x128xf32> to vector<1x128xf32>
    %221 = vector.shape_cast %220 : vector<1x128xf32> to vector<1x1x128xf32>
    %222 = vector.broadcast %221 : vector<1x1x128xf32> to vector<4x4x128xf32>
    %223 = arith.cmpf oeq, %211, %222 : vector<4x4x128xf32>
    %cst_53 = arith.constant 1.600000e+01 : f32
    %224 = vector.broadcast %cst_53 : f32 to vector<4x4x128xf32>
    %225 = arith.select %223, %217, %224 : vector<4x4x128xi1>, vector<4x4x128xf32>
    %cst_54 = arith.constant dense<0x7F800000> : vector<4x128xf32>
    %226 = vector.multi_reduction <minimumf>, %225, %cst_54 [0] : vector<4x4x128xf32> to vector<4x128xf32>
    %227 = vector.shape_cast %226 : vector<4x128xf32> to vector<1x4x128xf32>
    %cst_55 = arith.constant dense<0x7F800000> : vector<1x128xf32>
    %228 = vector.multi_reduction <minimumf>, %227, %cst_55 [1] : vector<1x4x128xf32> to vector<1x128xf32>
    %229 = vector.shape_cast %228 : vector<1x128xf32> to vector<1x1x128xf32>
    %230 = vector.broadcast %229 : vector<1x1x128xf32> to vector<4x4x128xf32>
    %231 = arith.cmpf oeq, %217, %230 : vector<4x4x128xf32>
    %232 = arith.extui %231 : vector<4x4x128xi1> to vector<4x4x128xi32>
    %233 = arith.sitofp %232 : vector<4x4x128xi32> to vector<4x4x128xf32>
    %cst_56 = arith.constant dense<0.000000e+00> : vector<4x128xf32>
    %234 = vector.multi_reduction <add>, %233, %cst_56 [1] : vector<4x4x128xf32> to vector<4x128xf32>
    %cst_57 = arith.constant dense<0.000000e+00> : vector<4x128xf32>
    %235 = vector.multi_reduction <add>, %233, %cst_57 [0] : vector<4x4x128xf32> to vector<4x128xf32>
    %236 = vector.shape_cast %221 : vector<1x1x128xf32> to vector<1x128xf32>
    %237 = arith.mulf %234, %158 : vector<4x128xf32>
    %cst_58 = arith.constant dense<0.000000e+00> : vector<128xf32>
    %238 = vector.multi_reduction <add>, %237, %cst_58 [0] : vector<4x128xf32> to vector<128xf32>
    %239 = vector.shape_cast %238 : vector<128xf32> to vector<1x128xf32>
    %240 = arith.mulf %234, %159 : vector<4x128xf32>
    %cst_59 = arith.constant dense<0.000000e+00> : vector<128xf32>
    %241 = vector.multi_reduction <add>, %240, %cst_59 [0] : vector<4x128xf32> to vector<128xf32>
    %242 = vector.shape_cast %241 : vector<128xf32> to vector<1x128xf32>
    %243 = vector.broadcast %0 : vector<4x1xf32> to vector<4x128xf32>
    %244 = arith.mulf %235, %243 : vector<4x128xf32>
    %cst_60 = arith.constant dense<0.000000e+00> : vector<128xf32>
    %245 = vector.multi_reduction <add>, %244, %cst_60 [0] : vector<4x128xf32> to vector<128xf32>
    %246 = vector.shape_cast %245 : vector<128xf32> to vector<1x128xf32>
    %247 = vector.broadcast %1 : vector<4x1xf32> to vector<4x128xf32>
    %248 = arith.mulf %235, %247 : vector<4x128xf32>
    %cst_61 = arith.constant dense<0.000000e+00> : vector<128xf32>
    %249 = vector.multi_reduction <add>, %248, %cst_61 [0] : vector<4x128xf32> to vector<128xf32>
    %250 = vector.shape_cast %249 : vector<128xf32> to vector<1x128xf32>
    %cst_62 = arith.constant 0.000000e+00 : f32
    %251 = vector.broadcast %cst_62 : f32 to vector<4x4x128xf32>
    %252 = arith.cmpf ogt, %233, %251 : vector<4x4x128xf32>
    %cst_63 = arith.constant 0x7F800000 : f32
    %253 = vector.broadcast %cst_63 : f32 to vector<4x4x128xf32>
    %254 = arith.select %252, %253, %211 : vector<4x4x128xi1>, vector<4x4x128xf32>
    %cst_64 = arith.constant dense<0x7F800000> : vector<4x128xf32>
    %255 = vector.multi_reduction <minimumf>, %254, %cst_64 [0] : vector<4x4x128xf32> to vector<4x128xf32>
    %256 = vector.shape_cast %255 : vector<4x128xf32> to vector<1x4x128xf32>
    %cst_65 = arith.constant dense<0x7F800000> : vector<1x128xf32>
    %257 = vector.multi_reduction <minimumf>, %256, %cst_65 [1] : vector<1x4x128xf32> to vector<1x128xf32>
    %258 = vector.shape_cast %257 : vector<1x128xf32> to vector<1x1x128xf32>
    %259 = vector.broadcast %258 : vector<1x1x128xf32> to vector<4x4x128xf32>
    %260 = arith.cmpf oeq, %254, %259 : vector<4x4x128xf32>
    %cst_66 = arith.constant 1.600000e+01 : f32
    %261 = vector.broadcast %cst_66 : f32 to vector<4x4x128xf32>
    %262 = arith.select %260, %217, %261 : vector<4x4x128xi1>, vector<4x4x128xf32>
    %cst_67 = arith.constant dense<0x7F800000> : vector<4x128xf32>
    %263 = vector.multi_reduction <minimumf>, %262, %cst_67 [0] : vector<4x4x128xf32> to vector<4x128xf32>
    %264 = vector.shape_cast %263 : vector<4x128xf32> to vector<1x4x128xf32>
    %cst_68 = arith.constant dense<0x7F800000> : vector<1x128xf32>
    %265 = vector.multi_reduction <minimumf>, %264, %cst_68 [1] : vector<1x4x128xf32> to vector<1x128xf32>
    %266 = vector.shape_cast %265 : vector<1x128xf32> to vector<1x1x128xf32>
    %267 = vector.broadcast %266 : vector<1x1x128xf32> to vector<4x4x128xf32>
    %268 = arith.cmpf oeq, %217, %267 : vector<4x4x128xf32>
    %269 = arith.extui %268 : vector<4x4x128xi1> to vector<4x4x128xi32>
    %270 = arith.sitofp %269 : vector<4x4x128xi32> to vector<4x4x128xf32>
    %cst_69 = arith.constant dense<0.000000e+00> : vector<4x128xf32>
    %271 = vector.multi_reduction <add>, %270, %cst_69 [1] : vector<4x4x128xf32> to vector<4x128xf32>
    %cst_70 = arith.constant dense<0.000000e+00> : vector<4x128xf32>
    %272 = vector.multi_reduction <add>, %270, %cst_70 [0] : vector<4x4x128xf32> to vector<4x128xf32>
    %273 = vector.shape_cast %258 : vector<1x1x128xf32> to vector<1x128xf32>
    %274 = arith.mulf %271, %158 : vector<4x128xf32>
    %cst_71 = arith.constant dense<0.000000e+00> : vector<128xf32>
    %275 = vector.multi_reduction <add>, %274, %cst_71 [0] : vector<4x128xf32> to vector<128xf32>
    %276 = vector.shape_cast %275 : vector<128xf32> to vector<1x128xf32>
    %277 = arith.mulf %271, %159 : vector<4x128xf32>
    %cst_72 = arith.constant dense<0.000000e+00> : vector<128xf32>
    %278 = vector.multi_reduction <add>, %277, %cst_72 [0] : vector<4x128xf32> to vector<128xf32>
    %279 = vector.shape_cast %278 : vector<128xf32> to vector<1x128xf32>
    %280 = vector.broadcast %0 : vector<4x1xf32> to vector<4x128xf32>
    %281 = arith.mulf %272, %280 : vector<4x128xf32>
    %cst_73 = arith.constant dense<0.000000e+00> : vector<128xf32>
    %282 = vector.multi_reduction <add>, %281, %cst_73 [0] : vector<4x128xf32> to vector<128xf32>
    %283 = vector.shape_cast %282 : vector<128xf32> to vector<1x128xf32>
    %284 = vector.broadcast %1 : vector<4x1xf32> to vector<4x128xf32>
    %285 = arith.mulf %272, %284 : vector<4x128xf32>
    %cst_74 = arith.constant dense<0.000000e+00> : vector<128xf32>
    %286 = vector.multi_reduction <add>, %285, %cst_74 [0] : vector<4x128xf32> to vector<128xf32>
    %287 = vector.shape_cast %286 : vector<128xf32> to vector<1x128xf32>
    %cst_75 = arith.constant 0.000000e+00 : f32
    %288 = vector.broadcast %cst_75 : f32 to vector<4x4x128xf32>
    %289 = arith.cmpf ogt, %270, %288 : vector<4x4x128xf32>
    %cst_76 = arith.constant 0x7F800000 : f32
    %290 = vector.broadcast %cst_76 : f32 to vector<4x4x128xf32>
    %291 = arith.select %289, %290, %254 : vector<4x4x128xi1>, vector<4x4x128xf32>
    %cst_77 = arith.constant dense<0x7F800000> : vector<4x128xf32>
    %292 = vector.multi_reduction <minimumf>, %291, %cst_77 [0] : vector<4x4x128xf32> to vector<4x128xf32>
    %293 = vector.shape_cast %292 : vector<4x128xf32> to vector<1x4x128xf32>
    %cst_78 = arith.constant dense<0x7F800000> : vector<1x128xf32>
    %294 = vector.multi_reduction <minimumf>, %293, %cst_78 [1] : vector<1x4x128xf32> to vector<1x128xf32>
    %295 = vector.shape_cast %294 : vector<1x128xf32> to vector<1x1x128xf32>
    %296 = vector.broadcast %295 : vector<1x1x128xf32> to vector<4x4x128xf32>
    %297 = arith.cmpf oeq, %291, %296 : vector<4x4x128xf32>
    %cst_79 = arith.constant 1.600000e+01 : f32
    %298 = vector.broadcast %cst_79 : f32 to vector<4x4x128xf32>
    %299 = arith.select %297, %217, %298 : vector<4x4x128xi1>, vector<4x4x128xf32>
    %cst_80 = arith.constant dense<0x7F800000> : vector<4x128xf32>
    %300 = vector.multi_reduction <minimumf>, %299, %cst_80 [0] : vector<4x4x128xf32> to vector<4x128xf32>
    %301 = vector.shape_cast %300 : vector<4x128xf32> to vector<1x4x128xf32>
    %cst_81 = arith.constant dense<0x7F800000> : vector<1x128xf32>
    %302 = vector.multi_reduction <minimumf>, %301, %cst_81 [1] : vector<1x4x128xf32> to vector<1x128xf32>
    %303 = vector.shape_cast %302 : vector<1x128xf32> to vector<1x1x128xf32>
    %304 = vector.broadcast %303 : vector<1x1x128xf32> to vector<4x4x128xf32>
    %305 = arith.cmpf oeq, %217, %304 : vector<4x4x128xf32>
    %306 = arith.extui %305 : vector<4x4x128xi1> to vector<4x4x128xi32>
    %307 = arith.sitofp %306 : vector<4x4x128xi32> to vector<4x4x128xf32>
    %cst_82 = arith.constant dense<0.000000e+00> : vector<4x128xf32>
    %308 = vector.multi_reduction <add>, %307, %cst_82 [1] : vector<4x4x128xf32> to vector<4x128xf32>
    %cst_83 = arith.constant dense<0.000000e+00> : vector<4x128xf32>
    %309 = vector.multi_reduction <add>, %307, %cst_83 [0] : vector<4x4x128xf32> to vector<4x128xf32>
    %310 = vector.shape_cast %295 : vector<1x1x128xf32> to vector<1x128xf32>
    %311 = arith.mulf %308, %158 : vector<4x128xf32>
    %cst_84 = arith.constant dense<0.000000e+00> : vector<128xf32>
    %312 = vector.multi_reduction <add>, %311, %cst_84 [0] : vector<4x128xf32> to vector<128xf32>
    %313 = vector.shape_cast %312 : vector<128xf32> to vector<1x128xf32>
    %314 = arith.mulf %308, %159 : vector<4x128xf32>
    %cst_85 = arith.constant dense<0.000000e+00> : vector<128xf32>
    %315 = vector.multi_reduction <add>, %314, %cst_85 [0] : vector<4x128xf32> to vector<128xf32>
    %316 = vector.shape_cast %315 : vector<128xf32> to vector<1x128xf32>
    %317 = vector.broadcast %0 : vector<4x1xf32> to vector<4x128xf32>
    %318 = arith.mulf %309, %317 : vector<4x128xf32>
    %cst_86 = arith.constant dense<0.000000e+00> : vector<128xf32>
    %319 = vector.multi_reduction <add>, %318, %cst_86 [0] : vector<4x128xf32> to vector<128xf32>
    %320 = vector.shape_cast %319 : vector<128xf32> to vector<1x128xf32>
    %321 = vector.broadcast %1 : vector<4x1xf32> to vector<4x128xf32>
    %322 = arith.mulf %309, %321 : vector<4x128xf32>
    %cst_87 = arith.constant dense<0.000000e+00> : vector<128xf32>
    %323 = vector.multi_reduction <add>, %322, %cst_87 [0] : vector<4x128xf32> to vector<128xf32>
    %324 = vector.shape_cast %323 : vector<128xf32> to vector<1x128xf32>
    %cst_88 = arith.constant 0.000000e+00 : f32
    %325 = vector.broadcast %cst_88 : f32 to vector<4x4x128xf32>
    %326 = arith.cmpf ogt, %307, %325 : vector<4x4x128xf32>
    %cst_89 = arith.constant 0x7F800000 : f32
    %327 = vector.broadcast %cst_89 : f32 to vector<4x4x128xf32>
    %328 = arith.select %326, %327, %291 : vector<4x4x128xi1>, vector<4x4x128xf32>
    %cst_90 = arith.constant dense<0x7F800000> : vector<4x128xf32>
    %329 = vector.multi_reduction <minimumf>, %328, %cst_90 [0] : vector<4x4x128xf32> to vector<4x128xf32>
    %330 = vector.shape_cast %329 : vector<4x128xf32> to vector<1x4x128xf32>
    %cst_91 = arith.constant dense<0x7F800000> : vector<1x128xf32>
    %331 = vector.multi_reduction <minimumf>, %330, %cst_91 [1] : vector<1x4x128xf32> to vector<1x128xf32>
    %332 = vector.shape_cast %331 : vector<1x128xf32> to vector<1x1x128xf32>
    %333 = vector.broadcast %332 : vector<1x1x128xf32> to vector<4x4x128xf32>
    %334 = arith.cmpf oeq, %328, %333 : vector<4x4x128xf32>
    %cst_92 = arith.constant 1.600000e+01 : f32
    %335 = vector.broadcast %cst_92 : f32 to vector<4x4x128xf32>
    %336 = arith.select %334, %217, %335 : vector<4x4x128xi1>, vector<4x4x128xf32>
    %cst_93 = arith.constant dense<0x7F800000> : vector<4x128xf32>
    %337 = vector.multi_reduction <minimumf>, %336, %cst_93 [0] : vector<4x4x128xf32> to vector<4x128xf32>
    %338 = vector.shape_cast %337 : vector<4x128xf32> to vector<1x4x128xf32>
    %cst_94 = arith.constant dense<0x7F800000> : vector<1x128xf32>
    %339 = vector.multi_reduction <minimumf>, %338, %cst_94 [1] : vector<1x4x128xf32> to vector<1x128xf32>
    %340 = vector.shape_cast %339 : vector<1x128xf32> to vector<1x1x128xf32>
    %341 = vector.broadcast %340 : vector<1x1x128xf32> to vector<4x4x128xf32>
    %342 = arith.cmpf oeq, %217, %341 : vector<4x4x128xf32>
    %343 = arith.extui %342 : vector<4x4x128xi1> to vector<4x4x128xi32>
    %344 = arith.sitofp %343 : vector<4x4x128xi32> to vector<4x4x128xf32>
    %cst_95 = arith.constant dense<0.000000e+00> : vector<4x128xf32>
    %345 = vector.multi_reduction <add>, %344, %cst_95 [1] : vector<4x4x128xf32> to vector<4x128xf32>
    %cst_96 = arith.constant dense<0.000000e+00> : vector<4x128xf32>
    %346 = vector.multi_reduction <add>, %344, %cst_96 [0] : vector<4x4x128xf32> to vector<4x128xf32>
    %347 = vector.shape_cast %332 : vector<1x1x128xf32> to vector<1x128xf32>
    %348 = arith.mulf %345, %158 : vector<4x128xf32>
    %cst_97 = arith.constant dense<0.000000e+00> : vector<128xf32>
    %349 = vector.multi_reduction <add>, %348, %cst_97 [0] : vector<4x128xf32> to vector<128xf32>
    %350 = vector.shape_cast %349 : vector<128xf32> to vector<1x128xf32>
    %351 = arith.mulf %345, %159 : vector<4x128xf32>
    %cst_98 = arith.constant dense<0.000000e+00> : vector<128xf32>
    %352 = vector.multi_reduction <add>, %351, %cst_98 [0] : vector<4x128xf32> to vector<128xf32>
    %353 = vector.shape_cast %352 : vector<128xf32> to vector<1x128xf32>
    %354 = vector.broadcast %0 : vector<4x1xf32> to vector<4x128xf32>
    %355 = arith.mulf %346, %354 : vector<4x128xf32>
    %cst_99 = arith.constant dense<0.000000e+00> : vector<128xf32>
    %356 = vector.multi_reduction <add>, %355, %cst_99 [0] : vector<4x128xf32> to vector<128xf32>
    %357 = vector.shape_cast %356 : vector<128xf32> to vector<1x128xf32>
    %358 = vector.broadcast %1 : vector<4x1xf32> to vector<4x128xf32>
    %359 = arith.mulf %346, %358 : vector<4x128xf32>
    %cst_100 = arith.constant dense<0.000000e+00> : vector<128xf32>
    %360 = vector.multi_reduction <add>, %359, %cst_100 [0] : vector<4x128xf32> to vector<128xf32>
    %361 = vector.shape_cast %360 : vector<128xf32> to vector<1x128xf32>
    %cst_101 = arith.constant 0.000000e+00 : f32
    %362 = vector.broadcast %cst_101 : f32 to vector<4x4x128xf32>
    %363 = arith.cmpf ogt, %344, %362 : vector<4x4x128xf32>
    %cst_102 = arith.constant 0x7F800000 : f32
    %364 = vector.broadcast %cst_102 : f32 to vector<4x4x128xf32>
    %365 = arith.select %363, %364, %328 : vector<4x4x128xi1>, vector<4x4x128xf32>
    %cst_103 = arith.constant dense<0x7F800000> : vector<4x128xf32>
    %366 = vector.multi_reduction <minimumf>, %365, %cst_103 [0] : vector<4x4x128xf32> to vector<4x128xf32>
    %367 = vector.shape_cast %366 : vector<4x128xf32> to vector<1x4x128xf32>
    %cst_104 = arith.constant dense<0x7F800000> : vector<1x128xf32>
    %368 = vector.multi_reduction <minimumf>, %367, %cst_104 [1] : vector<1x4x128xf32> to vector<1x128xf32>
    %369 = vector.shape_cast %368 : vector<1x128xf32> to vector<1x1x128xf32>
    %370 = vector.broadcast %369 : vector<1x1x128xf32> to vector<4x4x128xf32>
    %371 = arith.cmpf oeq, %365, %370 : vector<4x4x128xf32>
    %cst_105 = arith.constant 1.600000e+01 : f32
    %372 = vector.broadcast %cst_105 : f32 to vector<4x4x128xf32>
    %373 = arith.select %371, %217, %372 : vector<4x4x128xi1>, vector<4x4x128xf32>
    %cst_106 = arith.constant dense<0x7F800000> : vector<4x128xf32>
    %374 = vector.multi_reduction <minimumf>, %373, %cst_106 [0] : vector<4x4x128xf32> to vector<4x128xf32>
    %375 = vector.shape_cast %374 : vector<4x128xf32> to vector<1x4x128xf32>
    %cst_107 = arith.constant dense<0x7F800000> : vector<1x128xf32>
    %376 = vector.multi_reduction <minimumf>, %375, %cst_107 [1] : vector<1x4x128xf32> to vector<1x128xf32>
    %377 = vector.shape_cast %376 : vector<1x128xf32> to vector<1x1x128xf32>
    %378 = vector.broadcast %377 : vector<1x1x128xf32> to vector<4x4x128xf32>
    %379 = arith.cmpf oeq, %217, %378 : vector<4x4x128xf32>
    %380 = arith.extui %379 : vector<4x4x128xi1> to vector<4x4x128xi32>
    %381 = arith.sitofp %380 : vector<4x4x128xi32> to vector<4x4x128xf32>
    %cst_108 = arith.constant dense<0.000000e+00> : vector<4x128xf32>
    %382 = vector.multi_reduction <add>, %381, %cst_108 [1] : vector<4x4x128xf32> to vector<4x128xf32>
    %cst_109 = arith.constant dense<0.000000e+00> : vector<4x128xf32>
    %383 = vector.multi_reduction <add>, %381, %cst_109 [0] : vector<4x4x128xf32> to vector<4x128xf32>
    %384 = vector.shape_cast %369 : vector<1x1x128xf32> to vector<1x128xf32>
    %385 = arith.mulf %382, %158 : vector<4x128xf32>
    %cst_110 = arith.constant dense<0.000000e+00> : vector<128xf32>
    %386 = vector.multi_reduction <add>, %385, %cst_110 [0] : vector<4x128xf32> to vector<128xf32>
    %387 = vector.shape_cast %386 : vector<128xf32> to vector<1x128xf32>
    %388 = arith.mulf %382, %159 : vector<4x128xf32>
    %cst_111 = arith.constant dense<0.000000e+00> : vector<128xf32>
    %389 = vector.multi_reduction <add>, %388, %cst_111 [0] : vector<4x128xf32> to vector<128xf32>
    %390 = vector.shape_cast %389 : vector<128xf32> to vector<1x128xf32>
    %391 = vector.broadcast %0 : vector<4x1xf32> to vector<4x128xf32>
    %392 = arith.mulf %383, %391 : vector<4x128xf32>
    %cst_112 = arith.constant dense<0.000000e+00> : vector<128xf32>
    %393 = vector.multi_reduction <add>, %392, %cst_112 [0] : vector<4x128xf32> to vector<128xf32>
    %394 = vector.shape_cast %393 : vector<128xf32> to vector<1x128xf32>
    %395 = vector.broadcast %1 : vector<4x1xf32> to vector<4x128xf32>
    %396 = arith.mulf %383, %395 : vector<4x128xf32>
    %cst_113 = arith.constant dense<0.000000e+00> : vector<128xf32>
    %397 = vector.multi_reduction <add>, %396, %cst_113 [0] : vector<4x128xf32> to vector<128xf32>
    %398 = vector.shape_cast %397 : vector<128xf32> to vector<1x128xf32>
    %cst_114 = arith.constant 0.000000e+00 : f32
    %399 = vector.broadcast %cst_114 : f32 to vector<4x4x128xf32>
    %400 = arith.cmpf ogt, %381, %399 : vector<4x4x128xf32>
    %cst_115 = arith.constant 0x7F800000 : f32
    %401 = vector.broadcast %cst_115 : f32 to vector<4x4x128xf32>
    %402 = arith.select %400, %401, %365 : vector<4x4x128xi1>, vector<4x4x128xf32>
    %cst_116 = arith.constant dense<0x7F800000> : vector<4x128xf32>
    %403 = vector.multi_reduction <minimumf>, %402, %cst_116 [0] : vector<4x4x128xf32> to vector<4x128xf32>
    %404 = vector.shape_cast %403 : vector<4x128xf32> to vector<1x4x128xf32>
    %cst_117 = arith.constant dense<0x7F800000> : vector<1x128xf32>
    %405 = vector.multi_reduction <minimumf>, %404, %cst_117 [1] : vector<1x4x128xf32> to vector<1x128xf32>
    %406 = vector.shape_cast %405 : vector<1x128xf32> to vector<1x1x128xf32>
    %407 = vector.broadcast %406 : vector<1x1x128xf32> to vector<4x4x128xf32>
    %408 = arith.cmpf oeq, %402, %407 : vector<4x4x128xf32>
    %cst_118 = arith.constant 1.600000e+01 : f32
    %409 = vector.broadcast %cst_118 : f32 to vector<4x4x128xf32>
    %410 = arith.select %408, %217, %409 : vector<4x4x128xi1>, vector<4x4x128xf32>
    %cst_119 = arith.constant dense<0x7F800000> : vector<4x128xf32>
    %411 = vector.multi_reduction <minimumf>, %410, %cst_119 [0] : vector<4x4x128xf32> to vector<4x128xf32>
    %412 = vector.shape_cast %411 : vector<4x128xf32> to vector<1x4x128xf32>
    %cst_120 = arith.constant dense<0x7F800000> : vector<1x128xf32>
    %413 = vector.multi_reduction <minimumf>, %412, %cst_120 [1] : vector<1x4x128xf32> to vector<1x128xf32>
    %414 = vector.shape_cast %413 : vector<1x128xf32> to vector<1x1x128xf32>
    %415 = vector.broadcast %414 : vector<1x1x128xf32> to vector<4x4x128xf32>
    %416 = arith.cmpf oeq, %217, %415 : vector<4x4x128xf32>
    %417 = arith.extui %416 : vector<4x4x128xi1> to vector<4x4x128xi32>
    %418 = arith.sitofp %417 : vector<4x4x128xi32> to vector<4x4x128xf32>
    %cst_121 = arith.constant dense<0.000000e+00> : vector<4x128xf32>
    %419 = vector.multi_reduction <add>, %418, %cst_121 [1] : vector<4x4x128xf32> to vector<4x128xf32>
    %cst_122 = arith.constant dense<0.000000e+00> : vector<4x128xf32>
    %420 = vector.multi_reduction <add>, %418, %cst_122 [0] : vector<4x4x128xf32> to vector<4x128xf32>
    %421 = vector.shape_cast %406 : vector<1x1x128xf32> to vector<1x128xf32>
    %422 = arith.mulf %419, %158 : vector<4x128xf32>
    %cst_123 = arith.constant dense<0.000000e+00> : vector<128xf32>
    %423 = vector.multi_reduction <add>, %422, %cst_123 [0] : vector<4x128xf32> to vector<128xf32>
    %424 = vector.shape_cast %423 : vector<128xf32> to vector<1x128xf32>
    %425 = arith.mulf %419, %159 : vector<4x128xf32>
    %cst_124 = arith.constant dense<0.000000e+00> : vector<128xf32>
    %426 = vector.multi_reduction <add>, %425, %cst_124 [0] : vector<4x128xf32> to vector<128xf32>
    %427 = vector.shape_cast %426 : vector<128xf32> to vector<1x128xf32>
    %428 = vector.broadcast %0 : vector<4x1xf32> to vector<4x128xf32>
    %429 = arith.mulf %420, %428 : vector<4x128xf32>
    %cst_125 = arith.constant dense<0.000000e+00> : vector<128xf32>
    %430 = vector.multi_reduction <add>, %429, %cst_125 [0] : vector<4x128xf32> to vector<128xf32>
    %431 = vector.shape_cast %430 : vector<128xf32> to vector<1x128xf32>
    %432 = vector.broadcast %1 : vector<4x1xf32> to vector<4x128xf32>
    %433 = arith.mulf %420, %432 : vector<4x128xf32>
    %cst_126 = arith.constant dense<0.000000e+00> : vector<128xf32>
    %434 = vector.multi_reduction <add>, %433, %cst_126 [0] : vector<4x128xf32> to vector<128xf32>
    %435 = vector.shape_cast %434 : vector<128xf32> to vector<1x128xf32>
    %cst_127 = arith.constant 0.000000e+00 : f32
    %436 = vector.broadcast %cst_127 : f32 to vector<4x4x128xf32>
    %437 = arith.cmpf ogt, %418, %436 : vector<4x4x128xf32>
    %cst_128 = arith.constant 0x7F800000 : f32
    %438 = vector.broadcast %cst_128 : f32 to vector<4x4x128xf32>
    %439 = arith.select %437, %438, %402 : vector<4x4x128xi1>, vector<4x4x128xf32>
    %cst_129 = arith.constant dense<0x7F800000> : vector<4x128xf32>
    %440 = vector.multi_reduction <minimumf>, %439, %cst_129 [0] : vector<4x4x128xf32> to vector<4x128xf32>
    %441 = vector.shape_cast %440 : vector<4x128xf32> to vector<1x4x128xf32>
    %cst_130 = arith.constant dense<0x7F800000> : vector<1x128xf32>
    %442 = vector.multi_reduction <minimumf>, %441, %cst_130 [1] : vector<1x4x128xf32> to vector<1x128xf32>
    %443 = vector.shape_cast %442 : vector<1x128xf32> to vector<1x1x128xf32>
    %444 = vector.broadcast %443 : vector<1x1x128xf32> to vector<4x4x128xf32>
    %445 = arith.cmpf oeq, %439, %444 : vector<4x4x128xf32>
    %cst_131 = arith.constant 1.600000e+01 : f32
    %446 = vector.broadcast %cst_131 : f32 to vector<4x4x128xf32>
    %447 = arith.select %445, %217, %446 : vector<4x4x128xi1>, vector<4x4x128xf32>
    %cst_132 = arith.constant dense<0x7F800000> : vector<4x128xf32>
    %448 = vector.multi_reduction <minimumf>, %447, %cst_132 [0] : vector<4x4x128xf32> to vector<4x128xf32>
    %449 = vector.shape_cast %448 : vector<4x128xf32> to vector<1x4x128xf32>
    %cst_133 = arith.constant dense<0x7F800000> : vector<1x128xf32>
    %450 = vector.multi_reduction <minimumf>, %449, %cst_133 [1] : vector<1x4x128xf32> to vector<1x128xf32>
    %451 = vector.shape_cast %450 : vector<1x128xf32> to vector<1x1x128xf32>
    %452 = vector.broadcast %451 : vector<1x1x128xf32> to vector<4x4x128xf32>
    %453 = arith.cmpf oeq, %217, %452 : vector<4x4x128xf32>
    %454 = arith.extui %453 : vector<4x4x128xi1> to vector<4x4x128xi32>
    %455 = arith.sitofp %454 : vector<4x4x128xi32> to vector<4x4x128xf32>
    %cst_134 = arith.constant dense<0.000000e+00> : vector<4x128xf32>
    %456 = vector.multi_reduction <add>, %455, %cst_134 [1] : vector<4x4x128xf32> to vector<4x128xf32>
    %cst_135 = arith.constant dense<0.000000e+00> : vector<4x128xf32>
    %457 = vector.multi_reduction <add>, %455, %cst_135 [0] : vector<4x4x128xf32> to vector<4x128xf32>
    %458 = vector.shape_cast %443 : vector<1x1x128xf32> to vector<1x128xf32>
    %459 = arith.mulf %456, %158 : vector<4x128xf32>
    %cst_136 = arith.constant dense<0.000000e+00> : vector<128xf32>
    %460 = vector.multi_reduction <add>, %459, %cst_136 [0] : vector<4x128xf32> to vector<128xf32>
    %461 = vector.shape_cast %460 : vector<128xf32> to vector<1x128xf32>
    %462 = arith.mulf %456, %159 : vector<4x128xf32>
    %cst_137 = arith.constant dense<0.000000e+00> : vector<128xf32>
    %463 = vector.multi_reduction <add>, %462, %cst_137 [0] : vector<4x128xf32> to vector<128xf32>
    %464 = vector.shape_cast %463 : vector<128xf32> to vector<1x128xf32>
    %465 = vector.broadcast %0 : vector<4x1xf32> to vector<4x128xf32>
    %466 = arith.mulf %457, %465 : vector<4x128xf32>
    %cst_138 = arith.constant dense<0.000000e+00> : vector<128xf32>
    %467 = vector.multi_reduction <add>, %466, %cst_138 [0] : vector<4x128xf32> to vector<128xf32>
    %468 = vector.shape_cast %467 : vector<128xf32> to vector<1x128xf32>
    %469 = vector.broadcast %1 : vector<4x1xf32> to vector<4x128xf32>
    %470 = arith.mulf %457, %469 : vector<4x128xf32>
    %cst_139 = arith.constant dense<0.000000e+00> : vector<128xf32>
    %471 = vector.multi_reduction <add>, %470, %cst_139 [0] : vector<4x128xf32> to vector<128xf32>
    %472 = vector.shape_cast %471 : vector<128xf32> to vector<1x128xf32>
    %cst_140 = arith.constant 0.000000e+00 : f32
    %473 = vector.broadcast %cst_140 : f32 to vector<4x4x128xf32>
    %474 = arith.cmpf ogt, %455, %473 : vector<4x4x128xf32>
    %cst_141 = arith.constant 0x7F800000 : f32
    %475 = vector.broadcast %cst_141 : f32 to vector<4x4x128xf32>
    %476 = arith.select %474, %475, %439 : vector<4x4x128xi1>, vector<4x4x128xf32>
    %cst_142 = arith.constant dense<0x7F800000> : vector<4x128xf32>
    %477 = vector.multi_reduction <minimumf>, %476, %cst_142 [0] : vector<4x4x128xf32> to vector<4x128xf32>
    %478 = vector.shape_cast %477 : vector<4x128xf32> to vector<1x4x128xf32>
    %cst_143 = arith.constant dense<0x7F800000> : vector<1x128xf32>
    %479 = vector.multi_reduction <minimumf>, %478, %cst_143 [1] : vector<1x4x128xf32> to vector<1x128xf32>
    %480 = vector.shape_cast %479 : vector<1x128xf32> to vector<1x1x128xf32>
    %481 = vector.broadcast %480 : vector<1x1x128xf32> to vector<4x4x128xf32>
    %482 = arith.cmpf oeq, %476, %481 : vector<4x4x128xf32>
    %cst_144 = arith.constant 1.600000e+01 : f32
    %483 = vector.broadcast %cst_144 : f32 to vector<4x4x128xf32>
    %484 = arith.select %482, %217, %483 : vector<4x4x128xi1>, vector<4x4x128xf32>
    %cst_145 = arith.constant dense<0x7F800000> : vector<4x128xf32>
    %485 = vector.multi_reduction <minimumf>, %484, %cst_145 [0] : vector<4x4x128xf32> to vector<4x128xf32>
    %486 = vector.shape_cast %485 : vector<4x128xf32> to vector<1x4x128xf32>
    %cst_146 = arith.constant dense<0x7F800000> : vector<1x128xf32>
    %487 = vector.multi_reduction <minimumf>, %486, %cst_146 [1] : vector<1x4x128xf32> to vector<1x128xf32>
    %488 = vector.shape_cast %487 : vector<1x128xf32> to vector<1x1x128xf32>
    %489 = vector.broadcast %488 : vector<1x1x128xf32> to vector<4x4x128xf32>
    %490 = arith.cmpf oeq, %217, %489 : vector<4x4x128xf32>
    %491 = arith.extui %490 : vector<4x4x128xi1> to vector<4x4x128xi32>
    %492 = arith.sitofp %491 : vector<4x4x128xi32> to vector<4x4x128xf32>
    %cst_147 = arith.constant dense<0.000000e+00> : vector<4x128xf32>
    %493 = vector.multi_reduction <add>, %492, %cst_147 [1] : vector<4x4x128xf32> to vector<4x128xf32>
    %cst_148 = arith.constant dense<0.000000e+00> : vector<4x128xf32>
    %494 = vector.multi_reduction <add>, %492, %cst_148 [0] : vector<4x4x128xf32> to vector<4x128xf32>
    %495 = vector.shape_cast %480 : vector<1x1x128xf32> to vector<1x128xf32>
    %496 = arith.mulf %493, %158 : vector<4x128xf32>
    %cst_149 = arith.constant dense<0.000000e+00> : vector<128xf32>
    %497 = vector.multi_reduction <add>, %496, %cst_149 [0] : vector<4x128xf32> to vector<128xf32>
    %498 = vector.shape_cast %497 : vector<128xf32> to vector<1x128xf32>
    %499 = arith.mulf %493, %159 : vector<4x128xf32>
    %cst_150 = arith.constant dense<0.000000e+00> : vector<128xf32>
    %500 = vector.multi_reduction <add>, %499, %cst_150 [0] : vector<4x128xf32> to vector<128xf32>
    %501 = vector.shape_cast %500 : vector<128xf32> to vector<1x128xf32>
    %502 = vector.broadcast %0 : vector<4x1xf32> to vector<4x128xf32>
    %503 = arith.mulf %494, %502 : vector<4x128xf32>
    %cst_151 = arith.constant dense<0.000000e+00> : vector<128xf32>
    %504 = vector.multi_reduction <add>, %503, %cst_151 [0] : vector<4x128xf32> to vector<128xf32>
    %505 = vector.shape_cast %504 : vector<128xf32> to vector<1x128xf32>
    %506 = vector.broadcast %1 : vector<4x1xf32> to vector<4x128xf32>
    %507 = arith.mulf %494, %506 : vector<4x128xf32>
    %cst_152 = arith.constant dense<0.000000e+00> : vector<128xf32>
    %508 = vector.multi_reduction <add>, %507, %cst_152 [0] : vector<4x128xf32> to vector<128xf32>
    %509 = vector.shape_cast %508 : vector<128xf32> to vector<1x128xf32>
    %510 = tpu.concatenate %236, %273, %310, %347, %384, %421, %458, %495 in 0 : vector<1x128xf32>, vector<1x128xf32>, vector<1x128xf32>, vector<1x128xf32>, vector<1x128xf32>, vector<1x128xf32>, vector<1x128xf32>, vector<1x128xf32> -> vector<8x128xf32>
    %511 = tpu.concatenate %239, %276, %313, %350, %387, %424, %461, %498 in 0 : vector<1x128xf32>, vector<1x128xf32>, vector<1x128xf32>, vector<1x128xf32>, vector<1x128xf32>, vector<1x128xf32>, vector<1x128xf32>, vector<1x128xf32> -> vector<8x128xf32>
    %512 = tpu.concatenate %246, %283, %320, %357, %394, %431, %468, %505 in 0 : vector<1x128xf32>, vector<1x128xf32>, vector<1x128xf32>, vector<1x128xf32>, vector<1x128xf32>, vector<1x128xf32>, vector<1x128xf32>, vector<1x128xf32> -> vector<8x128xf32>
    %513 = tpu.concatenate %242, %279, %316, %353, %390, %427, %464, %501 in 0 : vector<1x128xf32>, vector<1x128xf32>, vector<1x128xf32>, vector<1x128xf32>, vector<1x128xf32>, vector<1x128xf32>, vector<1x128xf32>, vector<1x128xf32> -> vector<8x128xf32>
    %514 = tpu.concatenate %250, %287, %324, %361, %398, %435, %472, %509 in 0 : vector<1x128xf32>, vector<1x128xf32>, vector<1x128xf32>, vector<1x128xf32>, vector<1x128xf32>, vector<1x128xf32>, vector<1x128xf32>, vector<1x128xf32> -> vector<8x128xf32>
    %c1 = arith.constant 1 : index
    %c0_153 = arith.constant 0 : index
    %515 = vector.load %arg1[%c1, %c0_153] : memref<8x128xf32, #tpu.memory_space<vmem>>, vector<1x128xf32>
    %516 = vector.shape_cast %515 : vector<1x128xf32> to vector<1x128xf32>
    %517 = vector.broadcast %516 : vector<1x128xf32> to vector<8x128xf32>
    %c5 = arith.constant 5 : index
    %c0_154 = arith.constant 0 : index
    %518 = vector.load %arg1[%c5, %c0_154] : memref<8x128xf32, #tpu.memory_space<vmem>>, vector<1x128xf32>
    %519 = vector.shape_cast %518 : vector<1x128xf32> to vector<1x128xf32>
    %520 = vector.broadcast %519 : vector<1x128xf32> to vector<8x128xf32>
    %c7_155 = arith.constant 7 : index
    %c0_156 = arith.constant 0 : index
    %521 = vector.load %arg2[%c7_155, %c0_156] : memref<32x128xf32, #tpu.memory_space<vmem>>, vector<1x128xf32>
    %c23 = arith.constant 23 : index
    %c0_157 = arith.constant 0 : index
    %522 = vector.load %arg2[%c23, %c0_157] : memref<32x128xf32, #tpu.memory_space<vmem>>, vector<1x128xf32>
    %523 = vector.broadcast %521 : vector<1x128xf32> to vector<8x128xf32>
    %524 = arith.mulf %523, %511 : vector<8x128xf32>
    %525 = vector.broadcast %522 : vector<1x128xf32> to vector<8x128xf32>
    %526 = arith.mulf %525, %513 : vector<8x128xf32>
    %527 = arith.subf %524, %526 : vector<8x128xf32>
    %528 = arith.subf %517, %527 : vector<8x128xf32>
    %529 = vector.broadcast %521 : vector<1x128xf32> to vector<8x128xf32>
    %530 = arith.mulf %529, %513 : vector<8x128xf32>
    %531 = vector.broadcast %522 : vector<1x128xf32> to vector<8x128xf32>
    %532 = arith.mulf %531, %511 : vector<8x128xf32>
    %533 = arith.addf %530, %532 : vector<8x128xf32>
    %534 = arith.subf %520, %533 : vector<8x128xf32>
    %c6_158 = arith.constant 6 : index
    %c0_159 = arith.constant 0 : index
    %535 = vector.load %arg2[%c6_158, %c0_159] : memref<32x128xf32, #tpu.memory_space<vmem>>, vector<1x128xf32>
    %c22 = arith.constant 22 : index
    %c0_160 = arith.constant 0 : index
    %536 = vector.load %arg2[%c22, %c0_160] : memref<32x128xf32, #tpu.memory_space<vmem>>, vector<1x128xf32>
    %537 = vector.broadcast %535 : vector<1x128xf32> to vector<8x128xf32>
    %538 = arith.mulf %537, %512 : vector<8x128xf32>
    %539 = vector.broadcast %536 : vector<1x128xf32> to vector<8x128xf32>
    %540 = arith.mulf %539, %514 : vector<8x128xf32>
    %541 = arith.subf %538, %540 : vector<8x128xf32>
    %542 = arith.subf %528, %541 : vector<8x128xf32>
    %543 = vector.broadcast %535 : vector<1x128xf32> to vector<8x128xf32>
    %544 = arith.mulf %543, %514 : vector<8x128xf32>
    %545 = vector.broadcast %536 : vector<1x128xf32> to vector<8x128xf32>
    %546 = arith.mulf %545, %512 : vector<8x128xf32>
    %547 = arith.addf %544, %546 : vector<8x128xf32>
    %548 = arith.subf %534, %547 : vector<8x128xf32>
    %c5_161 = arith.constant 5 : index
    %c0_162 = arith.constant 0 : index
    %549 = vector.load %arg2[%c5_161, %c0_162] : memref<32x128xf32, #tpu.memory_space<vmem>>, vector<1x128xf32>
    %c21 = arith.constant 21 : index
    %c0_163 = arith.constant 0 : index
    %550 = vector.load %arg2[%c21, %c0_163] : memref<32x128xf32, #tpu.memory_space<vmem>>, vector<1x128xf32>
    %551 = vector.broadcast %549 : vector<1x128xf32> to vector<4x128xf32>
    %552 = vector.broadcast %0 : vector<4x1xf32> to vector<4x128xf32>
    %553 = arith.mulf %551, %552 : vector<4x128xf32>
    %554 = vector.broadcast %550 : vector<1x128xf32> to vector<4x128xf32>
    %555 = vector.broadcast %1 : vector<4x1xf32> to vector<4x128xf32>
    %556 = arith.mulf %554, %555 : vector<4x128xf32>
    %557 = arith.subf %553, %556 : vector<4x128xf32>
    %558 = vector.broadcast %549 : vector<1x128xf32> to vector<4x128xf32>
    %559 = vector.broadcast %1 : vector<4x1xf32> to vector<4x128xf32>
    %560 = arith.mulf %558, %559 : vector<4x128xf32>
    %561 = vector.broadcast %550 : vector<1x128xf32> to vector<4x128xf32>
    %562 = vector.broadcast %0 : vector<4x1xf32> to vector<4x128xf32>
    %563 = arith.mulf %561, %562 : vector<4x128xf32>
    %564 = arith.addf %560, %563 : vector<4x128xf32>
    %565 = vector.shape_cast %542 : vector<8x128xf32> to vector<8x1x128xf32>
    %566 = vector.shape_cast %557 : vector<4x128xf32> to vector<1x4x128xf32>
    %567 = vector.broadcast %565 : vector<8x1x128xf32> to vector<8x4x128xf32>
    %568 = vector.broadcast %566 : vector<1x4x128xf32> to vector<8x4x128xf32>
    %569 = arith.subf %567, %568 : vector<8x4x128xf32>
    %570 = vector.shape_cast %548 : vector<8x128xf32> to vector<8x1x128xf32>
    %571 = vector.shape_cast %564 : vector<4x128xf32> to vector<1x4x128xf32>
    %572 = vector.broadcast %570 : vector<8x1x128xf32> to vector<8x4x128xf32>
    %573 = vector.broadcast %571 : vector<1x4x128xf32> to vector<8x4x128xf32>
    %574 = arith.subf %572, %573 : vector<8x4x128xf32>
    %575 = vector.shape_cast %510 : vector<8x128xf32> to vector<8x1x128xf32>
    %576 = arith.mulf %569, %569 : vector<8x4x128xf32>
    %577 = vector.broadcast %575 : vector<8x1x128xf32> to vector<8x4x128xf32>
    %578 = arith.addf %577, %576 : vector<8x4x128xf32>
    %579 = arith.mulf %574, %574 : vector<8x4x128xf32>
    %580 = arith.addf %578, %579 : vector<8x4x128xf32>
    %581 = tpu.iota {dimensions = array<i32: 0>} : vector<8x4x128xi32>
    %582 = tpu.iota {dimensions = array<i32: 1>} : vector<8x4x128xi32>
    %c4_i32_164 = arith.constant 4 : i32
    %583 = vector.broadcast %c4_i32_164 : i32 to vector<8x4x128xi32>
    %584 = arith.muli %581, %583 : vector<8x4x128xi32>
    %585 = arith.addi %584, %582 : vector<8x4x128xi32>
    %586 = arith.sitofp %585 : vector<8x4x128xi32> to vector<8x4x128xf32>
    %cst_165 = arith.constant dense<0x7F800000> : vector<4x128xf32>
    %587 = vector.multi_reduction <minimumf>, %580, %cst_165 [0] : vector<8x4x128xf32> to vector<4x128xf32>
    %588 = vector.shape_cast %587 : vector<4x128xf32> to vector<1x4x128xf32>
    %cst_166 = arith.constant dense<0x7F800000> : vector<1x128xf32>
    %589 = vector.multi_reduction <minimumf>, %588, %cst_166 [1] : vector<1x4x128xf32> to vector<1x128xf32>
    %590 = vector.shape_cast %589 : vector<1x128xf32> to vector<1x1x128xf32>
    %591 = vector.broadcast %590 : vector<1x1x128xf32> to vector<8x4x128xf32>
    %592 = arith.cmpf oeq, %580, %591 : vector<8x4x128xf32>
    %cst_167 = arith.constant 3.200000e+01 : f32
    %593 = vector.broadcast %cst_167 : f32 to vector<8x4x128xf32>
    %594 = arith.select %592, %586, %593 : vector<8x4x128xi1>, vector<8x4x128xf32>
    %cst_168 = arith.constant dense<0x7F800000> : vector<4x128xf32>
    %595 = vector.multi_reduction <minimumf>, %594, %cst_168 [0] : vector<8x4x128xf32> to vector<4x128xf32>
    %596 = vector.shape_cast %595 : vector<4x128xf32> to vector<1x4x128xf32>
    %cst_169 = arith.constant dense<0x7F800000> : vector<1x128xf32>
    %597 = vector.multi_reduction <minimumf>, %596, %cst_169 [1] : vector<1x4x128xf32> to vector<1x128xf32>
    %598 = vector.shape_cast %597 : vector<1x128xf32> to vector<1x1x128xf32>
    %599 = vector.broadcast %598 : vector<1x1x128xf32> to vector<8x4x128xf32>
    %600 = arith.cmpf oeq, %586, %599 : vector<8x4x128xf32>
    %601 = arith.extui %600 : vector<8x4x128xi1> to vector<8x4x128xi32>
    %602 = arith.sitofp %601 : vector<8x4x128xi32> to vector<8x4x128xf32>
    %cst_170 = arith.constant dense<0.000000e+00> : vector<8x128xf32>
    %603 = vector.multi_reduction <add>, %602, %cst_170 [1] : vector<8x4x128xf32> to vector<8x128xf32>
    %cst_171 = arith.constant dense<0.000000e+00> : vector<4x128xf32>
    %604 = vector.multi_reduction <add>, %602, %cst_171 [0] : vector<8x4x128xf32> to vector<4x128xf32>
    %605 = vector.shape_cast %590 : vector<1x1x128xf32> to vector<1x128xf32>
    %606 = arith.mulf %603, %511 : vector<8x128xf32>
    %cst_172 = arith.constant dense<0.000000e+00> : vector<128xf32>
    %607 = vector.multi_reduction <add>, %606, %cst_172 [0] : vector<8x128xf32> to vector<128xf32>
    %608 = vector.shape_cast %607 : vector<128xf32> to vector<1x128xf32>
    %609 = arith.mulf %603, %513 : vector<8x128xf32>
    %cst_173 = arith.constant dense<0.000000e+00> : vector<128xf32>
    %610 = vector.multi_reduction <add>, %609, %cst_173 [0] : vector<8x128xf32> to vector<128xf32>
    %611 = vector.shape_cast %610 : vector<128xf32> to vector<1x128xf32>
    %612 = arith.mulf %603, %512 : vector<8x128xf32>
    %cst_174 = arith.constant dense<0.000000e+00> : vector<128xf32>
    %613 = vector.multi_reduction <add>, %612, %cst_174 [0] : vector<8x128xf32> to vector<128xf32>
    %614 = vector.shape_cast %613 : vector<128xf32> to vector<1x128xf32>
    %615 = arith.mulf %603, %514 : vector<8x128xf32>
    %cst_175 = arith.constant dense<0.000000e+00> : vector<128xf32>
    %616 = vector.multi_reduction <add>, %615, %cst_175 [0] : vector<8x128xf32> to vector<128xf32>
    %617 = vector.shape_cast %616 : vector<128xf32> to vector<1x128xf32>
    %618 = vector.broadcast %0 : vector<4x1xf32> to vector<4x128xf32>
    %619 = arith.mulf %604, %618 : vector<4x128xf32>
    %cst_176 = arith.constant dense<0.000000e+00> : vector<128xf32>
    %620 = vector.multi_reduction <add>, %619, %cst_176 [0] : vector<4x128xf32> to vector<128xf32>
    %621 = vector.shape_cast %620 : vector<128xf32> to vector<1x128xf32>
    %622 = vector.broadcast %1 : vector<4x1xf32> to vector<4x128xf32>
    %623 = arith.mulf %604, %622 : vector<4x128xf32>
    %cst_177 = arith.constant dense<0.000000e+00> : vector<128xf32>
    %624 = vector.multi_reduction <add>, %623, %cst_177 [0] : vector<4x128xf32> to vector<128xf32>
    %625 = vector.shape_cast %624 : vector<128xf32> to vector<1x128xf32>
    %cst_178 = arith.constant 0.000000e+00 : f32
    %626 = vector.broadcast %cst_178 : f32 to vector<8x4x128xf32>
    %627 = arith.cmpf ogt, %602, %626 : vector<8x4x128xf32>
    %cst_179 = arith.constant 0x7F800000 : f32
    %628 = vector.broadcast %cst_179 : f32 to vector<8x4x128xf32>
    %629 = arith.select %627, %628, %580 : vector<8x4x128xi1>, vector<8x4x128xf32>
    %cst_180 = arith.constant dense<0x7F800000> : vector<4x128xf32>
    %630 = vector.multi_reduction <minimumf>, %629, %cst_180 [0] : vector<8x4x128xf32> to vector<4x128xf32>
    %631 = vector.shape_cast %630 : vector<4x128xf32> to vector<1x4x128xf32>
    %cst_181 = arith.constant dense<0x7F800000> : vector<1x128xf32>
    %632 = vector.multi_reduction <minimumf>, %631, %cst_181 [1] : vector<1x4x128xf32> to vector<1x128xf32>
    %633 = vector.shape_cast %632 : vector<1x128xf32> to vector<1x1x128xf32>
    %634 = vector.broadcast %633 : vector<1x1x128xf32> to vector<8x4x128xf32>
    %635 = arith.cmpf oeq, %629, %634 : vector<8x4x128xf32>
    %cst_182 = arith.constant 3.200000e+01 : f32
    %636 = vector.broadcast %cst_182 : f32 to vector<8x4x128xf32>
    %637 = arith.select %635, %586, %636 : vector<8x4x128xi1>, vector<8x4x128xf32>
    %cst_183 = arith.constant dense<0x7F800000> : vector<4x128xf32>
    %638 = vector.multi_reduction <minimumf>, %637, %cst_183 [0] : vector<8x4x128xf32> to vector<4x128xf32>
    %639 = vector.shape_cast %638 : vector<4x128xf32> to vector<1x4x128xf32>
    %cst_184 = arith.constant dense<0x7F800000> : vector<1x128xf32>
    %640 = vector.multi_reduction <minimumf>, %639, %cst_184 [1] : vector<1x4x128xf32> to vector<1x128xf32>
    %641 = vector.shape_cast %640 : vector<1x128xf32> to vector<1x1x128xf32>
    %642 = vector.broadcast %641 : vector<1x1x128xf32> to vector<8x4x128xf32>
    %643 = arith.cmpf oeq, %586, %642 : vector<8x4x128xf32>
    %644 = arith.extui %643 : vector<8x4x128xi1> to vector<8x4x128xi32>
    %645 = arith.sitofp %644 : vector<8x4x128xi32> to vector<8x4x128xf32>
    %cst_185 = arith.constant dense<0.000000e+00> : vector<8x128xf32>
    %646 = vector.multi_reduction <add>, %645, %cst_185 [1] : vector<8x4x128xf32> to vector<8x128xf32>
    %cst_186 = arith.constant dense<0.000000e+00> : vector<4x128xf32>
    %647 = vector.multi_reduction <add>, %645, %cst_186 [0] : vector<8x4x128xf32> to vector<4x128xf32>
    %648 = vector.shape_cast %633 : vector<1x1x128xf32> to vector<1x128xf32>
    %649 = arith.mulf %646, %511 : vector<8x128xf32>
    %cst_187 = arith.constant dense<0.000000e+00> : vector<128xf32>
    %650 = vector.multi_reduction <add>, %649, %cst_187 [0] : vector<8x128xf32> to vector<128xf32>
    %651 = vector.shape_cast %650 : vector<128xf32> to vector<1x128xf32>
    %652 = arith.mulf %646, %513 : vector<8x128xf32>
    %cst_188 = arith.constant dense<0.000000e+00> : vector<128xf32>
    %653 = vector.multi_reduction <add>, %652, %cst_188 [0] : vector<8x128xf32> to vector<128xf32>
    %654 = vector.shape_cast %653 : vector<128xf32> to vector<1x128xf32>
    %655 = arith.mulf %646, %512 : vector<8x128xf32>
    %cst_189 = arith.constant dense<0.000000e+00> : vector<128xf32>
    %656 = vector.multi_reduction <add>, %655, %cst_189 [0] : vector<8x128xf32> to vector<128xf32>
    %657 = vector.shape_cast %656 : vector<128xf32> to vector<1x128xf32>
    %658 = arith.mulf %646, %514 : vector<8x128xf32>
    %cst_190 = arith.constant dense<0.000000e+00> : vector<128xf32>
    %659 = vector.multi_reduction <add>, %658, %cst_190 [0] : vector<8x128xf32> to vector<128xf32>
    %660 = vector.shape_cast %659 : vector<128xf32> to vector<1x128xf32>
    %661 = vector.broadcast %0 : vector<4x1xf32> to vector<4x128xf32>
    %662 = arith.mulf %647, %661 : vector<4x128xf32>
    %cst_191 = arith.constant dense<0.000000e+00> : vector<128xf32>
    %663 = vector.multi_reduction <add>, %662, %cst_191 [0] : vector<4x128xf32> to vector<128xf32>
    %664 = vector.shape_cast %663 : vector<128xf32> to vector<1x128xf32>
    %665 = vector.broadcast %1 : vector<4x1xf32> to vector<4x128xf32>
    %666 = arith.mulf %647, %665 : vector<4x128xf32>
    %cst_192 = arith.constant dense<0.000000e+00> : vector<128xf32>
    %667 = vector.multi_reduction <add>, %666, %cst_192 [0] : vector<4x128xf32> to vector<128xf32>
    %668 = vector.shape_cast %667 : vector<128xf32> to vector<1x128xf32>
    %cst_193 = arith.constant 0.000000e+00 : f32
    %669 = vector.broadcast %cst_193 : f32 to vector<8x4x128xf32>
    %670 = arith.cmpf ogt, %645, %669 : vector<8x4x128xf32>
    %cst_194 = arith.constant 0x7F800000 : f32
    %671 = vector.broadcast %cst_194 : f32 to vector<8x4x128xf32>
    %672 = arith.select %670, %671, %629 : vector<8x4x128xi1>, vector<8x4x128xf32>
    %cst_195 = arith.constant dense<0x7F800000> : vector<4x128xf32>
    %673 = vector.multi_reduction <minimumf>, %672, %cst_195 [0] : vector<8x4x128xf32> to vector<4x128xf32>
    %674 = vector.shape_cast %673 : vector<4x128xf32> to vector<1x4x128xf32>
    %cst_196 = arith.constant dense<0x7F800000> : vector<1x128xf32>
    %675 = vector.multi_reduction <minimumf>, %674, %cst_196 [1] : vector<1x4x128xf32> to vector<1x128xf32>
    %676 = vector.shape_cast %675 : vector<1x128xf32> to vector<1x1x128xf32>
    %677 = vector.broadcast %676 : vector<1x1x128xf32> to vector<8x4x128xf32>
    %678 = arith.cmpf oeq, %672, %677 : vector<8x4x128xf32>
    %cst_197 = arith.constant 3.200000e+01 : f32
    %679 = vector.broadcast %cst_197 : f32 to vector<8x4x128xf32>
    %680 = arith.select %678, %586, %679 : vector<8x4x128xi1>, vector<8x4x128xf32>
    %cst_198 = arith.constant dense<0x7F800000> : vector<4x128xf32>
    %681 = vector.multi_reduction <minimumf>, %680, %cst_198 [0] : vector<8x4x128xf32> to vector<4x128xf32>
    %682 = vector.shape_cast %681 : vector<4x128xf32> to vector<1x4x128xf32>
    %cst_199 = arith.constant dense<0x7F800000> : vector<1x128xf32>
    %683 = vector.multi_reduction <minimumf>, %682, %cst_199 [1] : vector<1x4x128xf32> to vector<1x128xf32>
    %684 = vector.shape_cast %683 : vector<1x128xf32> to vector<1x1x128xf32>
    %685 = vector.broadcast %684 : vector<1x1x128xf32> to vector<8x4x128xf32>
    %686 = arith.cmpf oeq, %586, %685 : vector<8x4x128xf32>
    %687 = arith.extui %686 : vector<8x4x128xi1> to vector<8x4x128xi32>
    %688 = arith.sitofp %687 : vector<8x4x128xi32> to vector<8x4x128xf32>
    %cst_200 = arith.constant dense<0.000000e+00> : vector<8x128xf32>
    %689 = vector.multi_reduction <add>, %688, %cst_200 [1] : vector<8x4x128xf32> to vector<8x128xf32>
    %cst_201 = arith.constant dense<0.000000e+00> : vector<4x128xf32>
    %690 = vector.multi_reduction <add>, %688, %cst_201 [0] : vector<8x4x128xf32> to vector<4x128xf32>
    %691 = vector.shape_cast %676 : vector<1x1x128xf32> to vector<1x128xf32>
    %692 = arith.mulf %689, %511 : vector<8x128xf32>
    %cst_202 = arith.constant dense<0.000000e+00> : vector<128xf32>
    %693 = vector.multi_reduction <add>, %692, %cst_202 [0] : vector<8x128xf32> to vector<128xf32>
    %694 = vector.shape_cast %693 : vector<128xf32> to vector<1x128xf32>
    %695 = arith.mulf %689, %513 : vector<8x128xf32>
    %cst_203 = arith.constant dense<0.000000e+00> : vector<128xf32>
    %696 = vector.multi_reduction <add>, %695, %cst_203 [0] : vector<8x128xf32> to vector<128xf32>
    %697 = vector.shape_cast %696 : vector<128xf32> to vector<1x128xf32>
    %698 = arith.mulf %689, %512 : vector<8x128xf32>
    %cst_204 = arith.constant dense<0.000000e+00> : vector<128xf32>
    %699 = vector.multi_reduction <add>, %698, %cst_204 [0] : vector<8x128xf32> to vector<128xf32>
    %700 = vector.shape_cast %699 : vector<128xf32> to vector<1x128xf32>
    %701 = arith.mulf %689, %514 : vector<8x128xf32>
    %cst_205 = arith.constant dense<0.000000e+00> : vector<128xf32>
    %702 = vector.multi_reduction <add>, %701, %cst_205 [0] : vector<8x128xf32> to vector<128xf32>
    %703 = vector.shape_cast %702 : vector<128xf32> to vector<1x128xf32>
    %704 = vector.broadcast %0 : vector<4x1xf32> to vector<4x128xf32>
    %705 = arith.mulf %690, %704 : vector<4x128xf32>
    %cst_206 = arith.constant dense<0.000000e+00> : vector<128xf32>
    %706 = vector.multi_reduction <add>, %705, %cst_206 [0] : vector<4x128xf32> to vector<128xf32>
    %707 = vector.shape_cast %706 : vector<128xf32> to vector<1x128xf32>
    %708 = vector.broadcast %1 : vector<4x1xf32> to vector<4x128xf32>
    %709 = arith.mulf %690, %708 : vector<4x128xf32>
    %cst_207 = arith.constant dense<0.000000e+00> : vector<128xf32>
    %710 = vector.multi_reduction <add>, %709, %cst_207 [0] : vector<4x128xf32> to vector<128xf32>
    %711 = vector.shape_cast %710 : vector<128xf32> to vector<1x128xf32>
    %cst_208 = arith.constant 0.000000e+00 : f32
    %712 = vector.broadcast %cst_208 : f32 to vector<8x4x128xf32>
    %713 = arith.cmpf ogt, %688, %712 : vector<8x4x128xf32>
    %cst_209 = arith.constant 0x7F800000 : f32
    %714 = vector.broadcast %cst_209 : f32 to vector<8x4x128xf32>
    %715 = arith.select %713, %714, %672 : vector<8x4x128xi1>, vector<8x4x128xf32>
    %cst_210 = arith.constant dense<0x7F800000> : vector<4x128xf32>
    %716 = vector.multi_reduction <minimumf>, %715, %cst_210 [0] : vector<8x4x128xf32> to vector<4x128xf32>
    %717 = vector.shape_cast %716 : vector<4x128xf32> to vector<1x4x128xf32>
    %cst_211 = arith.constant dense<0x7F800000> : vector<1x128xf32>
    %718 = vector.multi_reduction <minimumf>, %717, %cst_211 [1] : vector<1x4x128xf32> to vector<1x128xf32>
    %719 = vector.shape_cast %718 : vector<1x128xf32> to vector<1x1x128xf32>
    %720 = vector.broadcast %719 : vector<1x1x128xf32> to vector<8x4x128xf32>
    %721 = arith.cmpf oeq, %715, %720 : vector<8x4x128xf32>
    %cst_212 = arith.constant 3.200000e+01 : f32
    %722 = vector.broadcast %cst_212 : f32 to vector<8x4x128xf32>
    %723 = arith.select %721, %586, %722 : vector<8x4x128xi1>, vector<8x4x128xf32>
    %cst_213 = arith.constant dense<0x7F800000> : vector<4x128xf32>
    %724 = vector.multi_reduction <minimumf>, %723, %cst_213 [0] : vector<8x4x128xf32> to vector<4x128xf32>
    %725 = vector.shape_cast %724 : vector<4x128xf32> to vector<1x4x128xf32>
    %cst_214 = arith.constant dense<0x7F800000> : vector<1x128xf32>
    %726 = vector.multi_reduction <minimumf>, %725, %cst_214 [1] : vector<1x4x128xf32> to vector<1x128xf32>
    %727 = vector.shape_cast %726 : vector<1x128xf32> to vector<1x1x128xf32>
    %728 = vector.broadcast %727 : vector<1x1x128xf32> to vector<8x4x128xf32>
    %729 = arith.cmpf oeq, %586, %728 : vector<8x4x128xf32>
    %730 = arith.extui %729 : vector<8x4x128xi1> to vector<8x4x128xi32>
    %731 = arith.sitofp %730 : vector<8x4x128xi32> to vector<8x4x128xf32>
    %cst_215 = arith.constant dense<0.000000e+00> : vector<8x128xf32>
    %732 = vector.multi_reduction <add>, %731, %cst_215 [1] : vector<8x4x128xf32> to vector<8x128xf32>
    %cst_216 = arith.constant dense<0.000000e+00> : vector<4x128xf32>
    %733 = vector.multi_reduction <add>, %731, %cst_216 [0] : vector<8x4x128xf32> to vector<4x128xf32>
    %734 = vector.shape_cast %719 : vector<1x1x128xf32> to vector<1x128xf32>
    %735 = arith.mulf %732, %511 : vector<8x128xf32>
    %cst_217 = arith.constant dense<0.000000e+00> : vector<128xf32>
    %736 = vector.multi_reduction <add>, %735, %cst_217 [0] : vector<8x128xf32> to vector<128xf32>
    %737 = vector.shape_cast %736 : vector<128xf32> to vector<1x128xf32>
    %738 = arith.mulf %732, %513 : vector<8x128xf32>
    %cst_218 = arith.constant dense<0.000000e+00> : vector<128xf32>
    %739 = vector.multi_reduction <add>, %738, %cst_218 [0] : vector<8x128xf32> to vector<128xf32>
    %740 = vector.shape_cast %739 : vector<128xf32> to vector<1x128xf32>
    %741 = arith.mulf %732, %512 : vector<8x128xf32>
    %cst_219 = arith.constant dense<0.000000e+00> : vector<128xf32>
    %742 = vector.multi_reduction <add>, %741, %cst_219 [0] : vector<8x128xf32> to vector<128xf32>
    %743 = vector.shape_cast %742 : vector<128xf32> to vector<1x128xf32>
    %744 = arith.mulf %732, %514 : vector<8x128xf32>
    %cst_220 = arith.constant dense<0.000000e+00> : vector<128xf32>
    %745 = vector.multi_reduction <add>, %744, %cst_220 [0] : vector<8x128xf32> to vector<128xf32>
    %746 = vector.shape_cast %745 : vector<128xf32> to vector<1x128xf32>
    %747 = vector.broadcast %0 : vector<4x1xf32> to vector<4x128xf32>
    %748 = arith.mulf %733, %747 : vector<4x128xf32>
    %cst_221 = arith.constant dense<0.000000e+00> : vector<128xf32>
    %749 = vector.multi_reduction <add>, %748, %cst_221 [0] : vector<4x128xf32> to vector<128xf32>
    %750 = vector.shape_cast %749 : vector<128xf32> to vector<1x128xf32>
    %751 = vector.broadcast %1 : vector<4x1xf32> to vector<4x128xf32>
    %752 = arith.mulf %733, %751 : vector<4x128xf32>
    %cst_222 = arith.constant dense<0.000000e+00> : vector<128xf32>
    %753 = vector.multi_reduction <add>, %752, %cst_222 [0] : vector<4x128xf32> to vector<128xf32>
    %754 = vector.shape_cast %753 : vector<128xf32> to vector<1x128xf32>
    %cst_223 = arith.constant 0.000000e+00 : f32
    %755 = vector.broadcast %cst_223 : f32 to vector<8x4x128xf32>
    %756 = arith.cmpf ogt, %731, %755 : vector<8x4x128xf32>
    %cst_224 = arith.constant 0x7F800000 : f32
    %757 = vector.broadcast %cst_224 : f32 to vector<8x4x128xf32>
    %758 = arith.select %756, %757, %715 : vector<8x4x128xi1>, vector<8x4x128xf32>
    %cst_225 = arith.constant dense<0x7F800000> : vector<4x128xf32>
    %759 = vector.multi_reduction <minimumf>, %758, %cst_225 [0] : vector<8x4x128xf32> to vector<4x128xf32>
    %760 = vector.shape_cast %759 : vector<4x128xf32> to vector<1x4x128xf32>
    %cst_226 = arith.constant dense<0x7F800000> : vector<1x128xf32>
    %761 = vector.multi_reduction <minimumf>, %760, %cst_226 [1] : vector<1x4x128xf32> to vector<1x128xf32>
    %762 = vector.shape_cast %761 : vector<1x128xf32> to vector<1x1x128xf32>
    %763 = vector.broadcast %762 : vector<1x1x128xf32> to vector<8x4x128xf32>
    %764 = arith.cmpf oeq, %758, %763 : vector<8x4x128xf32>
    %cst_227 = arith.constant 3.200000e+01 : f32
    %765 = vector.broadcast %cst_227 : f32 to vector<8x4x128xf32>
    %766 = arith.select %764, %586, %765 : vector<8x4x128xi1>, vector<8x4x128xf32>
    %cst_228 = arith.constant dense<0x7F800000> : vector<4x128xf32>
    %767 = vector.multi_reduction <minimumf>, %766, %cst_228 [0] : vector<8x4x128xf32> to vector<4x128xf32>
    %768 = vector.shape_cast %767 : vector<4x128xf32> to vector<1x4x128xf32>
    %cst_229 = arith.constant dense<0x7F800000> : vector<1x128xf32>
    %769 = vector.multi_reduction <minimumf>, %768, %cst_229 [1] : vector<1x4x128xf32> to vector<1x128xf32>
    %770 = vector.shape_cast %769 : vector<1x128xf32> to vector<1x1x128xf32>
    %771 = vector.broadcast %770 : vector<1x1x128xf32> to vector<8x4x128xf32>
    %772 = arith.cmpf oeq, %586, %771 : vector<8x4x128xf32>
    %773 = arith.extui %772 : vector<8x4x128xi1> to vector<8x4x128xi32>
    %774 = arith.sitofp %773 : vector<8x4x128xi32> to vector<8x4x128xf32>
    %cst_230 = arith.constant dense<0.000000e+00> : vector<8x128xf32>
    %775 = vector.multi_reduction <add>, %774, %cst_230 [1] : vector<8x4x128xf32> to vector<8x128xf32>
    %cst_231 = arith.constant dense<0.000000e+00> : vector<4x128xf32>
    %776 = vector.multi_reduction <add>, %774, %cst_231 [0] : vector<8x4x128xf32> to vector<4x128xf32>
    %777 = vector.shape_cast %762 : vector<1x1x128xf32> to vector<1x128xf32>
    %778 = arith.mulf %775, %511 : vector<8x128xf32>
    %cst_232 = arith.constant dense<0.000000e+00> : vector<128xf32>
    %779 = vector.multi_reduction <add>, %778, %cst_232 [0] : vector<8x128xf32> to vector<128xf32>
    %780 = vector.shape_cast %779 : vector<128xf32> to vector<1x128xf32>
    %781 = arith.mulf %775, %513 : vector<8x128xf32>
    %cst_233 = arith.constant dense<0.000000e+00> : vector<128xf32>
    %782 = vector.multi_reduction <add>, %781, %cst_233 [0] : vector<8x128xf32> to vector<128xf32>
    %783 = vector.shape_cast %782 : vector<128xf32> to vector<1x128xf32>
    %784 = arith.mulf %775, %512 : vector<8x128xf32>
    %cst_234 = arith.constant dense<0.000000e+00> : vector<128xf32>
    %785 = vector.multi_reduction <add>, %784, %cst_234 [0] : vector<8x128xf32> to vector<128xf32>
    %786 = vector.shape_cast %785 : vector<128xf32> to vector<1x128xf32>
    %787 = arith.mulf %775, %514 : vector<8x128xf32>
    %cst_235 = arith.constant dense<0.000000e+00> : vector<128xf32>
    %788 = vector.multi_reduction <add>, %787, %cst_235 [0] : vector<8x128xf32> to vector<128xf32>
    %789 = vector.shape_cast %788 : vector<128xf32> to vector<1x128xf32>
    %790 = vector.broadcast %0 : vector<4x1xf32> to vector<4x128xf32>
    %791 = arith.mulf %776, %790 : vector<4x128xf32>
    %cst_236 = arith.constant dense<0.000000e+00> : vector<128xf32>
    %792 = vector.multi_reduction <add>, %791, %cst_236 [0] : vector<4x128xf32> to vector<128xf32>
    %793 = vector.shape_cast %792 : vector<128xf32> to vector<1x128xf32>
    %794 = vector.broadcast %1 : vector<4x1xf32> to vector<4x128xf32>
    %795 = arith.mulf %776, %794 : vector<4x128xf32>
    %cst_237 = arith.constant dense<0.000000e+00> : vector<128xf32>
    %796 = vector.multi_reduction <add>, %795, %cst_237 [0] : vector<4x128xf32> to vector<128xf32>
    %797 = vector.shape_cast %796 : vector<128xf32> to vector<1x128xf32>
    %cst_238 = arith.constant 0.000000e+00 : f32
    %798 = vector.broadcast %cst_238 : f32 to vector<8x4x128xf32>
    %799 = arith.cmpf ogt, %774, %798 : vector<8x4x128xf32>
    %cst_239 = arith.constant 0x7F800000 : f32
    %800 = vector.broadcast %cst_239 : f32 to vector<8x4x128xf32>
    %801 = arith.select %799, %800, %758 : vector<8x4x128xi1>, vector<8x4x128xf32>
    %cst_240 = arith.constant dense<0x7F800000> : vector<4x128xf32>
    %802 = vector.multi_reduction <minimumf>, %801, %cst_240 [0] : vector<8x4x128xf32> to vector<4x128xf32>
    %803 = vector.shape_cast %802 : vector<4x128xf32> to vector<1x4x128xf32>
    %cst_241 = arith.constant dense<0x7F800000> : vector<1x128xf32>
    %804 = vector.multi_reduction <minimumf>, %803, %cst_241 [1] : vector<1x4x128xf32> to vector<1x128xf32>
    %805 = vector.shape_cast %804 : vector<1x128xf32> to vector<1x1x128xf32>
    %806 = vector.broadcast %805 : vector<1x1x128xf32> to vector<8x4x128xf32>
    %807 = arith.cmpf oeq, %801, %806 : vector<8x4x128xf32>
    %cst_242 = arith.constant 3.200000e+01 : f32
    %808 = vector.broadcast %cst_242 : f32 to vector<8x4x128xf32>
    %809 = arith.select %807, %586, %808 : vector<8x4x128xi1>, vector<8x4x128xf32>
    %cst_243 = arith.constant dense<0x7F800000> : vector<4x128xf32>
    %810 = vector.multi_reduction <minimumf>, %809, %cst_243 [0] : vector<8x4x128xf32> to vector<4x128xf32>
    %811 = vector.shape_cast %810 : vector<4x128xf32> to vector<1x4x128xf32>
    %cst_244 = arith.constant dense<0x7F800000> : vector<1x128xf32>
    %812 = vector.multi_reduction <minimumf>, %811, %cst_244 [1] : vector<1x4x128xf32> to vector<1x128xf32>
    %813 = vector.shape_cast %812 : vector<1x128xf32> to vector<1x1x128xf32>
    %814 = vector.broadcast %813 : vector<1x1x128xf32> to vector<8x4x128xf32>
    %815 = arith.cmpf oeq, %586, %814 : vector<8x4x128xf32>
    %816 = arith.extui %815 : vector<8x4x128xi1> to vector<8x4x128xi32>
    %817 = arith.sitofp %816 : vector<8x4x128xi32> to vector<8x4x128xf32>
    %cst_245 = arith.constant dense<0.000000e+00> : vector<8x128xf32>
    %818 = vector.multi_reduction <add>, %817, %cst_245 [1] : vector<8x4x128xf32> to vector<8x128xf32>
    %cst_246 = arith.constant dense<0.000000e+00> : vector<4x128xf32>
    %819 = vector.multi_reduction <add>, %817, %cst_246 [0] : vector<8x4x128xf32> to vector<4x128xf32>
    %820 = vector.shape_cast %805 : vector<1x1x128xf32> to vector<1x128xf32>
    %821 = arith.mulf %818, %511 : vector<8x128xf32>
    %cst_247 = arith.constant dense<0.000000e+00> : vector<128xf32>
    %822 = vector.multi_reduction <add>, %821, %cst_247 [0] : vector<8x128xf32> to vector<128xf32>
    %823 = vector.shape_cast %822 : vector<128xf32> to vector<1x128xf32>
    %824 = arith.mulf %818, %513 : vector<8x128xf32>
    %cst_248 = arith.constant dense<0.000000e+00> : vector<128xf32>
    %825 = vector.multi_reduction <add>, %824, %cst_248 [0] : vector<8x128xf32> to vector<128xf32>
    %826 = vector.shape_cast %825 : vector<128xf32> to vector<1x128xf32>
    %827 = arith.mulf %818, %512 : vector<8x128xf32>
    %cst_249 = arith.constant dense<0.000000e+00> : vector<128xf32>
    %828 = vector.multi_reduction <add>, %827, %cst_249 [0] : vector<8x128xf32> to vector<128xf32>
    %829 = vector.shape_cast %828 : vector<128xf32> to vector<1x128xf32>
    %830 = arith.mulf %818, %514 : vector<8x128xf32>
    %cst_250 = arith.constant dense<0.000000e+00> : vector<128xf32>
    %831 = vector.multi_reduction <add>, %830, %cst_250 [0] : vector<8x128xf32> to vector<128xf32>
    %832 = vector.shape_cast %831 : vector<128xf32> to vector<1x128xf32>
    %833 = vector.broadcast %0 : vector<4x1xf32> to vector<4x128xf32>
    %834 = arith.mulf %819, %833 : vector<4x128xf32>
    %cst_251 = arith.constant dense<0.000000e+00> : vector<128xf32>
    %835 = vector.multi_reduction <add>, %834, %cst_251 [0] : vector<4x128xf32> to vector<128xf32>
    %836 = vector.shape_cast %835 : vector<128xf32> to vector<1x128xf32>
    %837 = vector.broadcast %1 : vector<4x1xf32> to vector<4x128xf32>
    %838 = arith.mulf %819, %837 : vector<4x128xf32>
    %cst_252 = arith.constant dense<0.000000e+00> : vector<128xf32>
    %839 = vector.multi_reduction <add>, %838, %cst_252 [0] : vector<4x128xf32> to vector<128xf32>
    %840 = vector.shape_cast %839 : vector<128xf32> to vector<1x128xf32>
    %cst_253 = arith.constant 0.000000e+00 : f32
    %841 = vector.broadcast %cst_253 : f32 to vector<8x4x128xf32>
    %842 = arith.cmpf ogt, %817, %841 : vector<8x4x128xf32>
    %cst_254 = arith.constant 0x7F800000 : f32
    %843 = vector.broadcast %cst_254 : f32 to vector<8x4x128xf32>
    %844 = arith.select %842, %843, %801 : vector<8x4x128xi1>, vector<8x4x128xf32>
    %cst_255 = arith.constant dense<0x7F800000> : vector<4x128xf32>
    %845 = vector.multi_reduction <minimumf>, %844, %cst_255 [0] : vector<8x4x128xf32> to vector<4x128xf32>
    %846 = vector.shape_cast %845 : vector<4x128xf32> to vector<1x4x128xf32>
    %cst_256 = arith.constant dense<0x7F800000> : vector<1x128xf32>
    %847 = vector.multi_reduction <minimumf>, %846, %cst_256 [1] : vector<1x4x128xf32> to vector<1x128xf32>
    %848 = vector.shape_cast %847 : vector<1x128xf32> to vector<1x1x128xf32>
    %849 = vector.broadcast %848 : vector<1x1x128xf32> to vector<8x4x128xf32>
    %850 = arith.cmpf oeq, %844, %849 : vector<8x4x128xf32>
    %cst_257 = arith.constant 3.200000e+01 : f32
    %851 = vector.broadcast %cst_257 : f32 to vector<8x4x128xf32>
    %852 = arith.select %850, %586, %851 : vector<8x4x128xi1>, vector<8x4x128xf32>
    %cst_258 = arith.constant dense<0x7F800000> : vector<4x128xf32>
    %853 = vector.multi_reduction <minimumf>, %852, %cst_258 [0] : vector<8x4x128xf32> to vector<4x128xf32>
    %854 = vector.shape_cast %853 : vector<4x128xf32> to vector<1x4x128xf32>
    %cst_259 = arith.constant dense<0x7F800000> : vector<1x128xf32>
    %855 = vector.multi_reduction <minimumf>, %854, %cst_259 [1] : vector<1x4x128xf32> to vector<1x128xf32>
    %856 = vector.shape_cast %855 : vector<1x128xf32> to vector<1x1x128xf32>
    %857 = vector.broadcast %856 : vector<1x1x128xf32> to vector<8x4x128xf32>
    %858 = arith.cmpf oeq, %586, %857 : vector<8x4x128xf32>
    %859 = arith.extui %858 : vector<8x4x128xi1> to vector<8x4x128xi32>
    %860 = arith.sitofp %859 : vector<8x4x128xi32> to vector<8x4x128xf32>
    %cst_260 = arith.constant dense<0.000000e+00> : vector<8x128xf32>
    %861 = vector.multi_reduction <add>, %860, %cst_260 [1] : vector<8x4x128xf32> to vector<8x128xf32>
    %cst_261 = arith.constant dense<0.000000e+00> : vector<4x128xf32>
    %862 = vector.multi_reduction <add>, %860, %cst_261 [0] : vector<8x4x128xf32> to vector<4x128xf32>
    %863 = vector.shape_cast %848 : vector<1x1x128xf32> to vector<1x128xf32>
    %864 = arith.mulf %861, %511 : vector<8x128xf32>
    %cst_262 = arith.constant dense<0.000000e+00> : vector<128xf32>
    %865 = vector.multi_reduction <add>, %864, %cst_262 [0] : vector<8x128xf32> to vector<128xf32>
    %866 = vector.shape_cast %865 : vector<128xf32> to vector<1x128xf32>
    %867 = arith.mulf %861, %513 : vector<8x128xf32>
    %cst_263 = arith.constant dense<0.000000e+00> : vector<128xf32>
    %868 = vector.multi_reduction <add>, %867, %cst_263 [0] : vector<8x128xf32> to vector<128xf32>
    %869 = vector.shape_cast %868 : vector<128xf32> to vector<1x128xf32>
    %870 = arith.mulf %861, %512 : vector<8x128xf32>
    %cst_264 = arith.constant dense<0.000000e+00> : vector<128xf32>
    %871 = vector.multi_reduction <add>, %870, %cst_264 [0] : vector<8x128xf32> to vector<128xf32>
    %872 = vector.shape_cast %871 : vector<128xf32> to vector<1x128xf32>
    %873 = arith.mulf %861, %514 : vector<8x128xf32>
    %cst_265 = arith.constant dense<0.000000e+00> : vector<128xf32>
    %874 = vector.multi_reduction <add>, %873, %cst_265 [0] : vector<8x128xf32> to vector<128xf32>
    %875 = vector.shape_cast %874 : vector<128xf32> to vector<1x128xf32>
    %876 = vector.broadcast %0 : vector<4x1xf32> to vector<4x128xf32>
    %877 = arith.mulf %862, %876 : vector<4x128xf32>
    %cst_266 = arith.constant dense<0.000000e+00> : vector<128xf32>
    %878 = vector.multi_reduction <add>, %877, %cst_266 [0] : vector<4x128xf32> to vector<128xf32>
    %879 = vector.shape_cast %878 : vector<128xf32> to vector<1x128xf32>
    %880 = vector.broadcast %1 : vector<4x1xf32> to vector<4x128xf32>
    %881 = arith.mulf %862, %880 : vector<4x128xf32>
    %cst_267 = arith.constant dense<0.000000e+00> : vector<128xf32>
    %882 = vector.multi_reduction <add>, %881, %cst_267 [0] : vector<4x128xf32> to vector<128xf32>
    %883 = vector.shape_cast %882 : vector<128xf32> to vector<1x128xf32>
    %cst_268 = arith.constant 0.000000e+00 : f32
    %884 = vector.broadcast %cst_268 : f32 to vector<8x4x128xf32>
    %885 = arith.cmpf ogt, %860, %884 : vector<8x4x128xf32>
    %cst_269 = arith.constant 0x7F800000 : f32
    %886 = vector.broadcast %cst_269 : f32 to vector<8x4x128xf32>
    %887 = arith.select %885, %886, %844 : vector<8x4x128xi1>, vector<8x4x128xf32>
    %cst_270 = arith.constant dense<0x7F800000> : vector<4x128xf32>
    %888 = vector.multi_reduction <minimumf>, %887, %cst_270 [0] : vector<8x4x128xf32> to vector<4x128xf32>
    %889 = vector.shape_cast %888 : vector<4x128xf32> to vector<1x4x128xf32>
    %cst_271 = arith.constant dense<0x7F800000> : vector<1x128xf32>
    %890 = vector.multi_reduction <minimumf>, %889, %cst_271 [1] : vector<1x4x128xf32> to vector<1x128xf32>
    %891 = vector.shape_cast %890 : vector<1x128xf32> to vector<1x1x128xf32>
    %892 = vector.broadcast %891 : vector<1x1x128xf32> to vector<8x4x128xf32>
    %893 = arith.cmpf oeq, %887, %892 : vector<8x4x128xf32>
    %cst_272 = arith.constant 3.200000e+01 : f32
    %894 = vector.broadcast %cst_272 : f32 to vector<8x4x128xf32>
    %895 = arith.select %893, %586, %894 : vector<8x4x128xi1>, vector<8x4x128xf32>
    %cst_273 = arith.constant dense<0x7F800000> : vector<4x128xf32>
    %896 = vector.multi_reduction <minimumf>, %895, %cst_273 [0] : vector<8x4x128xf32> to vector<4x128xf32>
    %897 = vector.shape_cast %896 : vector<4x128xf32> to vector<1x4x128xf32>
    %cst_274 = arith.constant dense<0x7F800000> : vector<1x128xf32>
    %898 = vector.multi_reduction <minimumf>, %897, %cst_274 [1] : vector<1x4x128xf32> to vector<1x128xf32>
    %899 = vector.shape_cast %898 : vector<1x128xf32> to vector<1x1x128xf32>
    %900 = vector.broadcast %899 : vector<1x1x128xf32> to vector<8x4x128xf32>
    %901 = arith.cmpf oeq, %586, %900 : vector<8x4x128xf32>
    %902 = arith.extui %901 : vector<8x4x128xi1> to vector<8x4x128xi32>
    %903 = arith.sitofp %902 : vector<8x4x128xi32> to vector<8x4x128xf32>
    %cst_275 = arith.constant dense<0.000000e+00> : vector<8x128xf32>
    %904 = vector.multi_reduction <add>, %903, %cst_275 [1] : vector<8x4x128xf32> to vector<8x128xf32>
    %cst_276 = arith.constant dense<0.000000e+00> : vector<4x128xf32>
    %905 = vector.multi_reduction <add>, %903, %cst_276 [0] : vector<8x4x128xf32> to vector<4x128xf32>
    %906 = vector.shape_cast %891 : vector<1x1x128xf32> to vector<1x128xf32>
    %907 = arith.mulf %904, %511 : vector<8x128xf32>
    %cst_277 = arith.constant dense<0.000000e+00> : vector<128xf32>
    %908 = vector.multi_reduction <add>, %907, %cst_277 [0] : vector<8x128xf32> to vector<128xf32>
    %909 = vector.shape_cast %908 : vector<128xf32> to vector<1x128xf32>
    %910 = arith.mulf %904, %513 : vector<8x128xf32>
    %cst_278 = arith.constant dense<0.000000e+00> : vector<128xf32>
    %911 = vector.multi_reduction <add>, %910, %cst_278 [0] : vector<8x128xf32> to vector<128xf32>
    %912 = vector.shape_cast %911 : vector<128xf32> to vector<1x128xf32>
    %913 = arith.mulf %904, %512 : vector<8x128xf32>
    %cst_279 = arith.constant dense<0.000000e+00> : vector<128xf32>
    %914 = vector.multi_reduction <add>, %913, %cst_279 [0] : vector<8x128xf32> to vector<128xf32>
    %915 = vector.shape_cast %914 : vector<128xf32> to vector<1x128xf32>
    %916 = arith.mulf %904, %514 : vector<8x128xf32>
    %cst_280 = arith.constant dense<0.000000e+00> : vector<128xf32>
    %917 = vector.multi_reduction <add>, %916, %cst_280 [0] : vector<8x128xf32> to vector<128xf32>
    %918 = vector.shape_cast %917 : vector<128xf32> to vector<1x128xf32>
    %919 = vector.broadcast %0 : vector<4x1xf32> to vector<4x128xf32>
    %920 = arith.mulf %905, %919 : vector<4x128xf32>
    %cst_281 = arith.constant dense<0.000000e+00> : vector<128xf32>
    %921 = vector.multi_reduction <add>, %920, %cst_281 [0] : vector<4x128xf32> to vector<128xf32>
    %922 = vector.shape_cast %921 : vector<128xf32> to vector<1x128xf32>
    %923 = vector.broadcast %1 : vector<4x1xf32> to vector<4x128xf32>
    %924 = arith.mulf %905, %923 : vector<4x128xf32>
    %cst_282 = arith.constant dense<0.000000e+00> : vector<128xf32>
    %925 = vector.multi_reduction <add>, %924, %cst_282 [0] : vector<4x128xf32> to vector<128xf32>
    %926 = vector.shape_cast %925 : vector<128xf32> to vector<1x128xf32>
    %927 = tpu.concatenate %605, %648, %691, %734, %777, %820, %863, %906 in 0 : vector<1x128xf32>, vector<1x128xf32>, vector<1x128xf32>, vector<1x128xf32>, vector<1x128xf32>, vector<1x128xf32>, vector<1x128xf32>, vector<1x128xf32> -> vector<8x128xf32>
    %928 = tpu.concatenate %608, %651, %694, %737, %780, %823, %866, %909 in 0 : vector<1x128xf32>, vector<1x128xf32>, vector<1x128xf32>, vector<1x128xf32>, vector<1x128xf32>, vector<1x128xf32>, vector<1x128xf32>, vector<1x128xf32> -> vector<8x128xf32>
    %929 = tpu.concatenate %614, %657, %700, %743, %786, %829, %872, %915 in 0 : vector<1x128xf32>, vector<1x128xf32>, vector<1x128xf32>, vector<1x128xf32>, vector<1x128xf32>, vector<1x128xf32>, vector<1x128xf32>, vector<1x128xf32> -> vector<8x128xf32>
    %930 = tpu.concatenate %621, %664, %707, %750, %793, %836, %879, %922 in 0 : vector<1x128xf32>, vector<1x128xf32>, vector<1x128xf32>, vector<1x128xf32>, vector<1x128xf32>, vector<1x128xf32>, vector<1x128xf32>, vector<1x128xf32> -> vector<8x128xf32>
    %931 = tpu.concatenate %611, %654, %697, %740, %783, %826, %869, %912 in 0 : vector<1x128xf32>, vector<1x128xf32>, vector<1x128xf32>, vector<1x128xf32>, vector<1x128xf32>, vector<1x128xf32>, vector<1x128xf32>, vector<1x128xf32> -> vector<8x128xf32>
    %932 = tpu.concatenate %617, %660, %703, %746, %789, %832, %875, %918 in 0 : vector<1x128xf32>, vector<1x128xf32>, vector<1x128xf32>, vector<1x128xf32>, vector<1x128xf32>, vector<1x128xf32>, vector<1x128xf32>, vector<1x128xf32> -> vector<8x128xf32>
    %933 = tpu.concatenate %625, %668, %711, %754, %797, %840, %883, %926 in 0 : vector<1x128xf32>, vector<1x128xf32>, vector<1x128xf32>, vector<1x128xf32>, vector<1x128xf32>, vector<1x128xf32>, vector<1x128xf32>, vector<1x128xf32> -> vector<8x128xf32>
    %c0_283 = arith.constant 0 : index
    %c0_284 = arith.constant 0 : index
    %934 = vector.load %arg1[%c0_283, %c0_284] : memref<8x128xf32, #tpu.memory_space<vmem>>, vector<1x128xf32>
    %935 = vector.shape_cast %934 : vector<1x128xf32> to vector<1x128xf32>
    %936 = vector.broadcast %935 : vector<1x128xf32> to vector<8x128xf32>
    %c4_285 = arith.constant 4 : index
    %c0_286 = arith.constant 0 : index
    %937 = vector.load %arg1[%c4_285, %c0_286] : memref<8x128xf32, #tpu.memory_space<vmem>>, vector<1x128xf32>
    %938 = vector.shape_cast %937 : vector<1x128xf32> to vector<1x128xf32>
    %939 = vector.broadcast %938 : vector<1x128xf32> to vector<8x128xf32>
    %c3_287 = arith.constant 3 : index
    %c0_288 = arith.constant 0 : index
    %940 = vector.load %arg2[%c3_287, %c0_288] : memref<32x128xf32, #tpu.memory_space<vmem>>, vector<1x128xf32>
    %c19 = arith.constant 19 : index
    %c0_289 = arith.constant 0 : index
    %941 = vector.load %arg2[%c19, %c0_289] : memref<32x128xf32, #tpu.memory_space<vmem>>, vector<1x128xf32>
    %942 = vector.broadcast %940 : vector<1x128xf32> to vector<8x128xf32>
    %943 = arith.mulf %942, %928 : vector<8x128xf32>
    %944 = vector.broadcast %941 : vector<1x128xf32> to vector<8x128xf32>
    %945 = arith.mulf %944, %931 : vector<8x128xf32>
    %946 = arith.subf %943, %945 : vector<8x128xf32>
    %947 = arith.subf %936, %946 : vector<8x128xf32>
    %948 = vector.broadcast %940 : vector<1x128xf32> to vector<8x128xf32>
    %949 = arith.mulf %948, %931 : vector<8x128xf32>
    %950 = vector.broadcast %941 : vector<1x128xf32> to vector<8x128xf32>
    %951 = arith.mulf %950, %928 : vector<8x128xf32>
    %952 = arith.addf %949, %951 : vector<8x128xf32>
    %953 = arith.subf %939, %952 : vector<8x128xf32>
    %c2_290 = arith.constant 2 : index
    %c0_291 = arith.constant 0 : index
    %954 = vector.load %arg2[%c2_290, %c0_291] : memref<32x128xf32, #tpu.memory_space<vmem>>, vector<1x128xf32>
    %c18 = arith.constant 18 : index
    %c0_292 = arith.constant 0 : index
    %955 = vector.load %arg2[%c18, %c0_292] : memref<32x128xf32, #tpu.memory_space<vmem>>, vector<1x128xf32>
    %956 = vector.broadcast %954 : vector<1x128xf32> to vector<8x128xf32>
    %957 = arith.mulf %956, %929 : vector<8x128xf32>
    %958 = vector.broadcast %955 : vector<1x128xf32> to vector<8x128xf32>
    %959 = arith.mulf %958, %932 : vector<8x128xf32>
    %960 = arith.subf %957, %959 : vector<8x128xf32>
    %961 = arith.subf %947, %960 : vector<8x128xf32>
    %962 = vector.broadcast %954 : vector<1x128xf32> to vector<8x128xf32>
    %963 = arith.mulf %962, %932 : vector<8x128xf32>
    %964 = vector.broadcast %955 : vector<1x128xf32> to vector<8x128xf32>
    %965 = arith.mulf %964, %929 : vector<8x128xf32>
    %966 = arith.addf %963, %965 : vector<8x128xf32>
    %967 = arith.subf %953, %966 : vector<8x128xf32>
    %c1_293 = arith.constant 1 : index
    %c0_294 = arith.constant 0 : index
    %968 = vector.load %arg2[%c1_293, %c0_294] : memref<32x128xf32, #tpu.memory_space<vmem>>, vector<1x128xf32>
    %c17 = arith.constant 17 : index
    %c0_295 = arith.constant 0 : index
    %969 = vector.load %arg2[%c17, %c0_295] : memref<32x128xf32, #tpu.memory_space<vmem>>, vector<1x128xf32>
    %970 = vector.broadcast %968 : vector<1x128xf32> to vector<8x128xf32>
    %971 = arith.mulf %970, %930 : vector<8x128xf32>
    %972 = vector.broadcast %969 : vector<1x128xf32> to vector<8x128xf32>
    %973 = arith.mulf %972, %933 : vector<8x128xf32>
    %974 = arith.subf %971, %973 : vector<8x128xf32>
    %975 = arith.subf %961, %974 : vector<8x128xf32>
    %976 = vector.broadcast %968 : vector<1x128xf32> to vector<8x128xf32>
    %977 = arith.mulf %976, %933 : vector<8x128xf32>
    %978 = vector.broadcast %969 : vector<1x128xf32> to vector<8x128xf32>
    %979 = arith.mulf %978, %930 : vector<8x128xf32>
    %980 = arith.addf %977, %979 : vector<8x128xf32>
    %981 = arith.subf %967, %980 : vector<8x128xf32>
    %c0_296 = arith.constant 0 : index
    %c0_297 = arith.constant 0 : index
    %982 = vector.load %arg2[%c0_296, %c0_297] : memref<32x128xf32, #tpu.memory_space<vmem>>, vector<1x128xf32>
    %c16 = arith.constant 16 : index
    %c0_298 = arith.constant 0 : index
    %983 = vector.load %arg2[%c16, %c0_298] : memref<32x128xf32, #tpu.memory_space<vmem>>, vector<1x128xf32>
    %984 = vector.broadcast %982 : vector<1x128xf32> to vector<4x128xf32>
    %985 = vector.broadcast %0 : vector<4x1xf32> to vector<4x128xf32>
    %986 = arith.mulf %984, %985 : vector<4x128xf32>
    %987 = vector.broadcast %983 : vector<1x128xf32> to vector<4x128xf32>
    %988 = vector.broadcast %1 : vector<4x1xf32> to vector<4x128xf32>
    %989 = arith.mulf %987, %988 : vector<4x128xf32>
    %990 = arith.subf %986, %989 : vector<4x128xf32>
    %991 = vector.broadcast %982 : vector<1x128xf32> to vector<4x128xf32>
    %992 = vector.broadcast %1 : vector<4x1xf32> to vector<4x128xf32>
    %993 = arith.mulf %991, %992 : vector<4x128xf32>
    %994 = vector.broadcast %983 : vector<1x128xf32> to vector<4x128xf32>
    %995 = vector.broadcast %0 : vector<4x1xf32> to vector<4x128xf32>
    %996 = arith.mulf %994, %995 : vector<4x128xf32>
    %997 = arith.addf %993, %996 : vector<4x128xf32>
    %998 = vector.shape_cast %975 : vector<8x128xf32> to vector<8x1x128xf32>
    %999 = vector.shape_cast %990 : vector<4x128xf32> to vector<1x4x128xf32>
    %1000 = vector.broadcast %998 : vector<8x1x128xf32> to vector<8x4x128xf32>
    %1001 = vector.broadcast %999 : vector<1x4x128xf32> to vector<8x4x128xf32>
    %1002 = arith.subf %1000, %1001 : vector<8x4x128xf32>
    %1003 = vector.shape_cast %981 : vector<8x128xf32> to vector<8x1x128xf32>
    %1004 = vector.shape_cast %997 : vector<4x128xf32> to vector<1x4x128xf32>
    %1005 = vector.broadcast %1003 : vector<8x1x128xf32> to vector<8x4x128xf32>
    %1006 = vector.broadcast %1004 : vector<1x4x128xf32> to vector<8x4x128xf32>
    %1007 = arith.subf %1005, %1006 : vector<8x4x128xf32>
    %1008 = vector.shape_cast %927 : vector<8x128xf32> to vector<8x1x128xf32>
    %1009 = arith.mulf %1002, %1002 : vector<8x4x128xf32>
    %1010 = vector.broadcast %1008 : vector<8x1x128xf32> to vector<8x4x128xf32>
    %1011 = arith.addf %1010, %1009 : vector<8x4x128xf32>
    %1012 = arith.mulf %1007, %1007 : vector<8x4x128xf32>
    %1013 = arith.addf %1011, %1012 : vector<8x4x128xf32>
    %1014 = tpu.iota {dimensions = array<i32: 0>} : vector<8x4x128xi32>
    %1015 = tpu.iota {dimensions = array<i32: 1>} : vector<8x4x128xi32>
    %c4_i32_299 = arith.constant 4 : i32
    %1016 = vector.broadcast %c4_i32_299 : i32 to vector<8x4x128xi32>
    %1017 = arith.muli %1014, %1016 : vector<8x4x128xi32>
    %1018 = arith.addi %1017, %1015 : vector<8x4x128xi32>
    %1019 = arith.sitofp %1018 : vector<8x4x128xi32> to vector<8x4x128xf32>
    %cst_300 = arith.constant dense<0x7F800000> : vector<4x128xf32>
    %1020 = vector.multi_reduction <minimumf>, %1013, %cst_300 [0] : vector<8x4x128xf32> to vector<4x128xf32>
    %1021 = vector.shape_cast %1020 : vector<4x128xf32> to vector<1x4x128xf32>
    %cst_301 = arith.constant dense<0x7F800000> : vector<1x128xf32>
    %1022 = vector.multi_reduction <minimumf>, %1021, %cst_301 [1] : vector<1x4x128xf32> to vector<1x128xf32>
    %1023 = vector.shape_cast %1022 : vector<1x128xf32> to vector<1x1x128xf32>
    %1024 = vector.broadcast %1023 : vector<1x1x128xf32> to vector<8x4x128xf32>
    %1025 = arith.cmpf oeq, %1013, %1024 : vector<8x4x128xf32>
    %cst_302 = arith.constant 3.200000e+01 : f32
    %1026 = vector.broadcast %cst_302 : f32 to vector<8x4x128xf32>
    %1027 = arith.select %1025, %1019, %1026 : vector<8x4x128xi1>, vector<8x4x128xf32>
    %cst_303 = arith.constant dense<0x7F800000> : vector<4x128xf32>
    %1028 = vector.multi_reduction <minimumf>, %1027, %cst_303 [0] : vector<8x4x128xf32> to vector<4x128xf32>
    %1029 = vector.shape_cast %1028 : vector<4x128xf32> to vector<1x4x128xf32>
    %cst_304 = arith.constant dense<0x7F800000> : vector<1x128xf32>
    %1030 = vector.multi_reduction <minimumf>, %1029, %cst_304 [1] : vector<1x4x128xf32> to vector<1x128xf32>
    %1031 = vector.shape_cast %1030 : vector<1x128xf32> to vector<1x1x128xf32>
    %1032 = vector.broadcast %1031 : vector<1x1x128xf32> to vector<8x4x128xf32>
    %1033 = arith.cmpf oeq, %1019, %1032 : vector<8x4x128xf32>
    %1034 = arith.extui %1033 : vector<8x4x128xi1> to vector<8x4x128xi32>
    %1035 = arith.sitofp %1034 : vector<8x4x128xi32> to vector<8x4x128xf32>
    %cst_305 = arith.constant dense<0.000000e+00> : vector<8x128xf32>
    %1036 = vector.multi_reduction <add>, %1035, %cst_305 [1] : vector<8x4x128xf32> to vector<8x128xf32>
    %cst_306 = arith.constant dense<0.000000e+00> : vector<4x128xf32>
    %1037 = vector.multi_reduction <add>, %1035, %cst_306 [0] : vector<8x4x128xf32> to vector<4x128xf32>
    %1038 = arith.mulf %1036, %928 : vector<8x128xf32>
    %cst_307 = arith.constant dense<0.000000e+00> : vector<128xf32>
    %1039 = vector.multi_reduction <add>, %1038, %cst_307 [0] : vector<8x128xf32> to vector<128xf32>
    %1040 = vector.shape_cast %1039 : vector<128xf32> to vector<1x128xf32>
    %1041 = arith.mulf %1036, %931 : vector<8x128xf32>
    %cst_308 = arith.constant dense<0.000000e+00> : vector<128xf32>
    %1042 = vector.multi_reduction <add>, %1041, %cst_308 [0] : vector<8x128xf32> to vector<128xf32>
    %1043 = vector.shape_cast %1042 : vector<128xf32> to vector<1x128xf32>
    %1044 = arith.mulf %1036, %929 : vector<8x128xf32>
    %cst_309 = arith.constant dense<0.000000e+00> : vector<128xf32>
    %1045 = vector.multi_reduction <add>, %1044, %cst_309 [0] : vector<8x128xf32> to vector<128xf32>
    %1046 = vector.shape_cast %1045 : vector<128xf32> to vector<1x128xf32>
    %1047 = arith.mulf %1036, %932 : vector<8x128xf32>
    %cst_310 = arith.constant dense<0.000000e+00> : vector<128xf32>
    %1048 = vector.multi_reduction <add>, %1047, %cst_310 [0] : vector<8x128xf32> to vector<128xf32>
    %1049 = vector.shape_cast %1048 : vector<128xf32> to vector<1x128xf32>
    %1050 = arith.mulf %1036, %930 : vector<8x128xf32>
    %cst_311 = arith.constant dense<0.000000e+00> : vector<128xf32>
    %1051 = vector.multi_reduction <add>, %1050, %cst_311 [0] : vector<8x128xf32> to vector<128xf32>
    %1052 = vector.shape_cast %1051 : vector<128xf32> to vector<1x128xf32>
    %1053 = arith.mulf %1036, %933 : vector<8x128xf32>
    %cst_312 = arith.constant dense<0.000000e+00> : vector<128xf32>
    %1054 = vector.multi_reduction <add>, %1053, %cst_312 [0] : vector<8x128xf32> to vector<128xf32>
    %1055 = vector.shape_cast %1054 : vector<128xf32> to vector<1x128xf32>
    %1056 = vector.broadcast %0 : vector<4x1xf32> to vector<4x128xf32>
    %1057 = arith.mulf %1037, %1056 : vector<4x128xf32>
    %cst_313 = arith.constant dense<0.000000e+00> : vector<128xf32>
    %1058 = vector.multi_reduction <add>, %1057, %cst_313 [0] : vector<4x128xf32> to vector<128xf32>
    %1059 = vector.shape_cast %1058 : vector<128xf32> to vector<1x128xf32>
    %1060 = vector.broadcast %1 : vector<4x1xf32> to vector<4x128xf32>
    %1061 = arith.mulf %1037, %1060 : vector<4x128xf32>
    %cst_314 = arith.constant dense<0.000000e+00> : vector<128xf32>
    %1062 = vector.multi_reduction <add>, %1061, %cst_314 [0] : vector<4x128xf32> to vector<128xf32>
    %1063 = vector.shape_cast %1062 : vector<128xf32> to vector<1x128xf32>
    %1064 = tpu.concatenate %1040, %1046, %1052, %1059, %1043, %1049, %1055, %1063 in 0 : vector<1x128xf32>, vector<1x128xf32>, vector<1x128xf32>, vector<1x128xf32>, vector<1x128xf32>, vector<1x128xf32>, vector<1x128xf32>, vector<1x128xf32> -> vector<8x128xf32>
    %c0_315 = arith.constant 0 : index
    %c0_316 = arith.constant 0 : index
    %1065 = vector.load %arg4[%c0_315, %c0_316] : memref<8x128xf32, #tpu.memory_space<vmem>>, vector<8x128xf32>
    tpu.vector_store %arg4[%c0_315, %c0_316], %1064 {strides = array<i32>} : memref<8x128xf32, #tpu.memory_space<vmem>>, vector<8x128xf32>,
    return
  }
  func.func @transform_0(%arg0: i32) -> (i32, i32) {
    %c0_i32 = arith.constant 0 : i32
    %c0_i32_0 = arith.constant 0 : i32
    return %c0_i32, %arg0 : i32, i32
  }
  func.func @transform_1(%arg0: i32) -> (i32, i32) {
    %c0_i32 = arith.constant 0 : i32
    %c0_i32_0 = arith.constant 0 : i32
    return %c0_i32, %arg0 : i32, i32
  }
  func.func @transform_2(%arg0: i32) -> (i32, i32) {
    %c0_i32 = arith.constant 0 : i32
    %c0_i32_0 = arith.constant 0 : i32
    %c0_i32_1 = arith.constant 0 : i32
    return %c0_i32, %c0_i32_0 : i32, i32
  }
  func.func @transform_3(%arg0: i32) -> (i32, i32) {
    %c0_i32 = arith.constant 0 : i32
    %c0_i32_0 = arith.constant 0 : i32
    return %c0_i32, %arg0 : i32, i32
  }
}

</mosaic_0001>

<llo_original>
// kernel: custom-call.1
$region0: #{custom-call.1}
  %s0 = inlined_call_operand.hbm [shape: c64[2,4,4], index: 0, kind: input, shape index: {}]
  %s1 = inlined_call_operand.vmem [shape: f32[2,4,4], index: 1, kind: output, shape index: {}]
  %s2 = scalar_lea.hbm %s0, 128
  $region1: #{custom-call.1} parent=0
    #allocation0 [shape = 's32[1]{0}', space=sflag, size = 0x4, scoped, tag = 'scoped memory for custom-call.1']
    %3 = vsyncpa [#allocation0], 0
    %s4 = sshll.u32 %s1, 4
    %s5 = int_to_ptr.vmem [resolvable:$true] %s4
    %7 = dma.hbm_to_vmem [thread:$0]  %s2, 128, %s5, [#allocation0]
    %8 = dma.done [#allocation0], 128
    %9 = vsyncpa [#allocation0], 1

// kernel: custom-call
$region0: #{custom-call}
  %s0 = inlined_call_operand.hbm [shape: c64[2,4,4], index: 0, kind: input, shape index: {}]
  %s1 = inlined_call_operand.vmem [shape: f32[2,4,4], index: 1, kind: output, shape index: {}]
  $region1: #{custom-call} parent=0
    #allocation0 [shape = 's32[1]{0}', space=sflag, size = 0x4, scoped, tag = 'scoped memory for custom-call']
    %2 = vsyncpa [#allocation0], 0
    %s3 = sshll.u32 %s1, 4
    %s4 = int_to_ptr.vmem [resolvable:$true] %s3
    %6 = dma.hbm_to_vmem [thread:$0]  %s0, 128, %s4, [#allocation0]
    %7 = dma.done [#allocation0], 128
    %8 = vsyncpa [#allocation0], 1

// kernel: custom-call.12
$region0: #{custom-call.12}
  %s0 = inlined_call_operand.vmem [shape: f32[2,4,4], index: 0, kind: input, shape index: {}]
  %s1 = inlined_call_operand.vmem [shape: f32[2,4,4], index: 1, kind: input, shape index: {}]
  %s2 = inlined_call_operand.vmem [shape: f32[2,4,4], index: 2, kind: output, shape index: {0}]
  %s3 = inlined_call_operand.vmem [shape: f32[2,4,4], index: 3, kind: output, shape index: {1}]
  %4 = xla_tuple %s2, %s3
  $region1: #{custom-call.12} parent=0
    #allocation0 [shape = 'u8[4096]{0}', space=vmem, size = 0x1000, scoped, tag = 'operand span for operand 0']
    #allocation1 [shape = 'u8[4096]{0}', space=vmem, size = 0x1000, scoped, tag = 'packed  for operand 0']
    #allocation2 [shape = 'u8[4096]{0}', space=vmem, size = 0x1000, scoped, tag = 'operand span for operand 2']
    #allocation3 [shape = 'u8[4096]{0}', space=vmem, size = 0x1000, scoped, tag = 'packed  for operand 2']
    #allocation4 [shape = 'u8[4096]{0}', space=vmem, size = 0x1000, scoped, tag = 'operand span for operand 1']
    #allocation5 [shape = 'u8[4096]{0}', space=vmem, size = 0x1000, scoped, tag = 'packed  for operand 1']
    #allocation6 [shape = 'u8[4096]{0}', space=vmem, size = 0x1000, scoped, tag = 'operand span for operand 3']
    #allocation7 [shape = 'u8[4096]{0}', space=vmem, size = 0x1000, scoped, tag = 'packed  for operand 3']
    loop: start=0, step=1, limit=4
    $region2: #{custom-call.12} parent=1 // loop_pre_header
      _
    $region3: #{custom-call.12} parent=1 // loop_header
      %s6 = sphi 0, %s10
      %p7 = scmp.ge.s32.totalorder %s6, 4
      %s13 = sphi 0, %s32
      %s14 = sphi 0, %s28
      %s15 = sphi 0, %s24
      %s16 = sphi 0, %s13
      %s17 = sphi 0, %s14
      %s18 = sphi 0, %s15
      %s19 = sphi 0, %s16
      %s20 = sphi 0, %s17
      %s21 = sphi 0, %s18
    $region4: #{custom-call.12} parent=1 // loop_header_branch
      %9 = sbr.rel (%p7) target = $region8
    $region5: #{custom-call.12} parent=1 // loop_body
      %s11 = ssub.s32 %s6, 1
      %s12 = ssub.s32 %s6, 2
      %s22 = sadd.s32 1, %s15
      %p23 = scmp.ge.s32.totalorder %s22, 1
      %s24 = scalar_select %p23, 0, %s22
      %s25 = sadd.s32 1, %s14
      %s26 = scalar_select %p23, %s25, %s14
      %p27 = scmp.ge.s32.totalorder %s26, 1
      %s28 = scalar_select %p27, 0, %s26
      %s29 = sadd.s32 1, %s13
      %s30 = scalar_select %p27, %s29, %s13
      %p31 = scmp.ge.s32.totalorder %s30, 2
      %s32 = scalar_select %p31, 0, %s30
      %p33 = scmp.le.s32.totalorder 1, %s6
      %p34 = scmp.lt.s32.totalorder %s6, 3
      %p35 = pnand %p33, %p34
      %p36 = pneg %p35
      // Predicated region
      $region9: #{custom-call.12} parent=5 // pred_check
        _
      $region10: #{custom-call.12} parent=5 // pred_check_branch
        %38 = sbr.rel (%p35) target = $region12
      $region11: #{custom-call.12} parent=5 // pred_region
        %s39 = ssub.s32 %s6, 1
      $region12: #{custom-call.12} parent=5 // pred_fallthru
        _
      %p40 = scmp.lt.s32.totalorder %s6, 2
      // Predicated region
      $region13: #{custom-call.12} parent=5 // pred_check
        %p41 = pneg %p40
      $region14: #{custom-call.12} parent=5 // pred_check_branch
        %43 = sbr.rel (%p41) target = $region16
      $region15: #{custom-call.12} parent=5 // pred_region
        %s44 = sand.u32 %s6, 1
        %s45 = sand.u32 %s6, 1
        %s46 = smul.addr %s45, 4
        %s47 = scalar_lea.vmem [#allocation1], %s46
        %s48 = sadd.s32 %s15, %s14
        %s49 = sadd.s32 %s48, %s13
        %s50 = smul.addr %s49, 4
        %s51 = scalar_lea.vmem %s0, %s50
        // Predicated region
        $region17: #{custom-call.12} parent=15 // pred_check
          _
        $region18: #{custom-call.12} parent=15 // pred_check_branch
          %53 = sbr.rel (0) target = $region20
        $region19: #{custom-call.12} parent=15 // pred_region
          // Predicated region
          $region21: #{custom-call.12} parent=19 // pred_check
            _
          $region22: #{custom-call.12} parent=19 // pred_check_branch
            %55 = sbr.rel target = $region24
          $region23: #{custom-call.12} parent=19 // pred_region
            // Predicated region
            $region36: #{custom-call.12} parent=23 // pred_check
              _
            $region37: #{custom-call.12} parent=23 // pred_check_branch
              %70 = sbr.rel (0) target = $region39
            $region38: #{custom-call.12} parent=23 // pred_region
              loop: start=0, step=1, limit=1
              $region40: #{custom-call.12} parent=38 // loop_pre_header
                _
              $region41: #{custom-call.12} parent=38 // loop_header
                %s73 = sphi 0, %s77
                %p74 = scmp.ge.s32.totalorder %s73, 1
                %s78 = sphi %s51, %s51
                %s79 = sphi %s47, %s47
              $region42: #{custom-call.12} parent=38 // loop_header_branch
                %76 = sbr.rel (%p74) target = $region46
              $region43: #{custom-call.12} parent=38 // loop_body
                %v80 = vld [vmem:[%s78] sm:$0xf]
                %81 = vst [vmem:[%s79] sm:$0xf] %v80
              $region44: #{custom-call.12} parent=38 // loop_footer
                %s77 = sadd.s32 1, %s73
              $region45: #{custom-call.12} parent=38 // loop_footer_branch
                %72 = sbr.rel target = $region41
              $region46: #{custom-call.12} parent=38 // loop_exit
                _
            $region39: #{custom-call.12} parent=23 // pred_fallthru
              _
          $region24: #{custom-call.12} parent=19 // pred_fallthru
            _
          // Predicated region
          $region25: #{custom-call.12} parent=19 // pred_check
            _
          $region26: #{custom-call.12} parent=19 // pred_check_branch
            %57 = sbr.rel (0) target = $region28
          $region27: #{custom-call.12} parent=19 // pred_region
            loop: start=0, step=1, limit=1
            $region29: #{custom-call.12} parent=27 // loop_pre_header
              _
            $region30: #{custom-call.12} parent=27 // loop_header
              %s60 = sphi 0, %s64
              %p61 = scmp.ge.s32.totalorder %s60, 1
              %s65 = sphi %s51, %s51
              %s66 = sphi %s47, %s47
            $region31: #{custom-call.12} parent=27 // loop_header_branch
              %63 = sbr.rel (%p61) target = $region35
            $region32: #{custom-call.12} parent=27 // loop_body
              %v67 = vld [vmem:[%s65] sm:$0xf]
              %68 = vst [vmem:[%s66] sm:$0xf] %v67
            $region33: #{custom-call.12} parent=27 // loop_footer
              %s64 = sadd.s32 1, %s60
            $region34: #{custom-call.12} parent=27 // loop_footer_branch
              %59 = sbr.rel target = $region30
            $region35: #{custom-call.12} parent=27 // loop_exit
              _
          $region28: #{custom-call.12} parent=19 // pred_fallthru
            _
        $region20: #{custom-call.12} parent=15 // pred_fallthru
          _
        %82 = vnop
        %s83 = sand.u32 %s6, 1
        %s84 = sand.u32 %s6, 1
        %s85 = smul.addr %s84, 4
        %s86 = scalar_lea.vmem [#allocation5], %s85
        %s87 = sadd.s32 %s15, %s14
        %s88 = sadd.s32 %s87, %s13
        %s89 = smul.addr %s88, 4
        %s90 = scalar_lea.vmem %s1, %s89
        // Predicated region
        $region47: #{custom-call.12} parent=15 // pred_check
          _
        $region48: #{custom-call.12} parent=15 // pred_check_branch
          %92 = sbr.rel (0) target = $region50
        $region49: #{custom-call.12} parent=15 // pred_region
          // Predicated region
          $region51: #{custom-call.12} parent=49 // pred_check
            _
          $region52: #{custom-call.12} parent=49 // pred_check_branch
            %94 = sbr.rel target = $region54
          $region53: #{custom-call.12} parent=49 // pred_region
            // Predicated region
            $region66: #{custom-call.12} parent=53 // pred_check
              _
            $region67: #{custom-call.12} parent=53 // pred_check_branch
              %109 = sbr.rel (0) target = $region69
            $region68: #{custom-call.12} parent=53 // pred_region
              loop: start=0, step=1, limit=1
              $region70: #{custom-call.12} parent=68 // loop_pre_header
                _
              $region71: #{custom-call.12} parent=68 // loop_header
                %s112 = sphi 0, %s116
                %p113 = scmp.ge.s32.totalorder %s112, 1
                %s117 = sphi %s90, %s90
                %s118 = sphi %s86, %s86
              $region72: #{custom-call.12} parent=68 // loop_header_branch
                %115 = sbr.rel (%p113) target = $region76
              $region73: #{custom-call.12} parent=68 // loop_body
                %v119 = vld [vmem:[%s117] sm:$0xf]
                %120 = vst [vmem:[%s118] sm:$0xf] %v119
              $region74: #{custom-call.12} parent=68 // loop_footer
                %s116 = sadd.s32 1, %s112
              $region75: #{custom-call.12} parent=68 // loop_footer_branch
                %111 = sbr.rel target = $region71
              $region76: #{custom-call.12} parent=68 // loop_exit
                _
            $region69: #{custom-call.12} parent=53 // pred_fallthru
              _
          $region54: #{custom-call.12} parent=49 // pred_fallthru
            _
          // Predicated region
          $region55: #{custom-call.12} parent=49 // pred_check
            _
          $region56: #{custom-call.12} parent=49 // pred_check_branch
            %96 = sbr.rel (0) target = $region58
          $region57: #{custom-call.12} parent=49 // pred_region
            loop: start=0, step=1, limit=1
            $region59: #{custom-call.12} parent=57 // loop_pre_header
              _
            $region60: #{custom-call.12} parent=57 // loop_header
              %s99 = sphi 0, %s103
              %p100 = scmp.ge.s32.totalorder %s99, 1
              %s104 = sphi %s90, %s90
              %s105 = sphi %s86, %s86
            $region61: #{custom-call.12} parent=57 // loop_header_branch
              %102 = sbr.rel (%p100) target = $region65
            $region62: #{custom-call.12} parent=57 // loop_body
              %v106 = vld [vmem:[%s104] sm:$0xf]
              %107 = vst [vmem:[%s105] sm:$0xf] %v106
            $region63: #{custom-call.12} parent=57 // loop_footer
              %s103 = sadd.s32 1, %s99
            $region64: #{custom-call.12} parent=57 // loop_footer_branch
              %98 = sbr.rel target = $region60
            $region65: #{custom-call.12} parent=57 // loop_exit
              _
          $region58: #{custom-call.12} parent=49 // pred_fallthru
            _
        $region50: #{custom-call.12} parent=15 // pred_fallthru
          _
        %121 = vnop
      $region16: #{custom-call.12} parent=5 // pred_fallthru
        _
      %p122 = scmp.le.s32.totalorder 1, %s6
      %p123 = scmp.lt.s32.totalorder %s6, 3
      %p124 = pnand %p122, %p123
      %p125 = pneg %p124
      // Predicated region
      $region77: #{custom-call.12} parent=5 // pred_check
        _
      $region78: #{custom-call.12} parent=5 // pred_check_branch
        %127 = sbr.rel (%p124) target = $region80
      $region79: #{custom-call.12} parent=5 // pred_region
        %s128 = ssub.s32 %s6, 1
        %s129 = sand.u32 %s11, 1
        %s130 = sand.u32 %s11, 1
        %s131 = smul.addr %s130, 4
        %s132 = scalar_lea.vmem [#allocation1], %s131
        %s133 = sand.u32 %s11, 1
        %s134 = sand.u32 %s11, 1
        %s135 = smul.addr %s134, 4
        %s136 = scalar_lea.vmem [#allocation5], %s135
        %s137 = sand.u32 %s11, 1
        %s138 = sand.u32 %s11, 1
        %s139 = smul.addr %s138, 4
        %s140 = scalar_lea.vmem [#allocation1], %s139
        %s141 = sand.u32 %s11, 1
        %s142 = sand.u32 %s11, 1
        %s143 = smul.addr %s142, 4
        %s144 = scalar_lea.vmem [#allocation5], %s143
        %s145 = sand.u32 %s11, 1
        %s146 = sand.u32 %s11, 1
        %s147 = smul.addr %s146, 4
        %s148 = scalar_lea.vmem [#allocation3], %s147
        %s149 = sand.u32 %s11, 1
        %s150 = sand.u32 %s11, 1
        %s151 = smul.addr %s150, 4
        %s152 = scalar_lea.vmem [#allocation7], %s151
        %s154 = sshllo.u32 0, 4
        %v155 = vld [vmem:[%s140] sm:%s154]
        %156 = vst [vmem:[#allocation0] sm:%s154] %v155
        %s158 = sshllo.u32 0, 4
        %v159 = vld [vmem:[%s144] sm:%s158]
        %160 = vst [vmem:[#allocation4] sm:%s158] %v159
        %161 = vst [vmem:[#allocation2] sm:$0xff] 0.0
        %162 = vst [vmem:[#allocation6] sm:$0xff] 0.0
        %vm163 = vcmask 7168
        %v164 = vld [vmem:[#allocation2] ss:$0 sm:$0xff]
        %v165 = vld [vmem:[#allocation6] ss:$0 sm:$0xff]
        %v166 = vld [vmem:[#allocation0] ss:$0 sm:$0xff]
        %v167 = vld [vmem:[#allocation4] ss:$0 sm:$0xff]
        %v168 = vxor.u32 %v165, 2147483648
        %169 = xla_tuple %v164, %v165
        %170 = xla_tuple %v164, %v168
        %v171 = vmul.f32 %v164, %v164
        %v172 = vmul.f32 %v165, %v168
        %v173 = vsub.f32 %v171, %v172
        %v174 = vmul.f32 %v164, %v168
        %v175 = vmul.f32 %v165, %v164
        %v176 = vadd.f32 %v174, %v175
        %177 = xla_tuple %v173, %v176
        %178 = vadd.xlane.f32.xlu0 %v173
        %v179 = vpop.xlane.xlu0 %178
        %180 = vadd.xlane.f32.xlu0 %v176
        %v181 = vpop.xlane.xlu0 %180
        %v182 = vsub.f32 %v166, %v179
        %v183 = vsub.f32 %v167, %v181
        %v184 = vrsqrt.pop %v182
        %v185 = vld [vmem:[#allocation0] sm:$0xff]
        %v186 = vld [vmem:[#allocation4] sm:$0xff]
        %v187 = vld [vmem:[#allocation2] sm:$0xff]
        %v188 = vld [vmem:[#allocation6] sm:$0xff]
        %v189 = vxor.u32 %v165, 2147483648
        %190 = xla_tuple %v187, %v188
        %191 = xla_tuple %v164, %v189
        %v192 = vmul.f32 %v187, %v164
        %v193 = vmul.f32 %v188, %v189
        %v194 = vsub.f32 %v192, %v193
        %v195 = vmul.f32 %v187, %v189
        %v196 = vmul.f32 %v188, %v164
        %v197 = vadd.f32 %v195, %v196
        %198 = xla_tuple %v194, %v197
        %199 = vadd.xlane.f32.xlu0 %v194
        %v200 = vpop.xlane.xlu0 %199
        %201 = vadd.xlane.f32.xlu0 %v197
        %v202 = vpop.xlane.xlu0 %201
        %v203 = vsub.f32 %v185, %v200
        %v204 = vsub.f32 %v186, %v202
        %205 = xla_tuple %v203, %v204
        %206 = xla_tuple %v184, 0.0
        %v207 = vmul.f32 %v203, %v184
        %v208 = vmul.f32 %v204, 0.0
        %v209 = vsub.f32 %v207, %v208
        %v210 = vmul.f32 %v203, 0.0
        %v211 = vmul.f32 %v204, %v184
        %v212 = vadd.f32 %v210, %v211
        %213 = xla_tuple %v209, %v212
        %v214 = vsel %vm163, %v209, 0.0
        %v215 = vsel %vm163, %v212, 0.0
        %v216 = vadd.f32 %v187, %v214
        %v217 = vadd.f32 %v188, %v215
        %218 = vst [vmem:[#allocation2] sm:$0xff] %v216
        %219 = vst [vmem:[#allocation6] sm:$0xff] %v217
        %vm220 = vcmask 15368
        %s221 = scalar_lea.vmem [#allocation2], 1
        %s222 = scalar_lea.vmem [#allocation6], 1
        %v223 = vld [vmem:[%s221] ss:$0 sm:$0xff]
        %v224 = vld [vmem:[%s222] ss:$0 sm:$0xff]
        %s225 = scalar_lea.vmem [#allocation0], 1
        %s226 = scalar_lea.vmem [#allocation4], 1
        %v227 = vld [vmem:[%s225] ss:$0 sm:$0xff]
        %v228 = vld [vmem:[%s226] ss:$0 sm:$0xff]
        %v229 = vxor.u32 %v224, 2147483648
        %230 = xla_tuple %v223, %v224
        %231 = xla_tuple %v223, %v229
        %v232 = vmul.f32 %v223, %v223
        %v233 = vmul.f32 %v224, %v229
        %v234 = vsub.f32 %v232, %v233
        %v235 = vmul.f32 %v223, %v229
        %v236 = vmul.f32 %v224, %v223
        %v237 = vadd.f32 %v235, %v236
        %238 = xla_tuple %v234, %v237
        %239 = vadd.xlane.f32.xlu0 %v234
        %v240 = vpop.xlane.xlu0 %239
        %241 = vadd.xlane.f32.xlu0 %v237
        %v242 = vpop.xlane.xlu0 %241
        %v243 = vsub.f32 %v227, %v240
        %v244 = vsub.f32 %v228, %v242
        %v245 = vrsqrt.pop %v243
        %v246 = vld [vmem:[#allocation0] sm:$0xff]
        %v247 = vld [vmem:[#allocation4] sm:$0xff]
        %v248 = vld [vmem:[#allocation2] sm:$0xff]
        %v249 = vld [vmem:[#allocation6] sm:$0xff]
        %v250 = vxor.u32 %v224, 2147483648
        %251 = xla_tuple %v248, %v249
        %252 = xla_tuple %v223, %v250
        %v253 = vmul.f32 %v248, %v223
        %v254 = vmul.f32 %v249, %v250
        %v255 = vsub.f32 %v253, %v254
        %v256 = vmul.f32 %v248, %v250
        %v257 = vmul.f32 %v249, %v223
        %v258 = vadd.f32 %v256, %v257
        %259 = xla_tuple %v255, %v258
        %260 = vadd.xlane.f32.xlu0 %v255
        %v261 = vpop.xlane.xlu0 %260
        %262 = vadd.xlane.f32.xlu0 %v258
        %v263 = vpop.xlane.xlu0 %262
        %v264 = vsub.f32 %v246, %v261
        %v265 = vsub.f32 %v247, %v263
        %266 = xla_tuple %v264, %v265
        %267 = xla_tuple %v245, 0.0
        %v268 = vmul.f32 %v264, %v245
        %v269 = vmul.f32 %v265, 0.0
        %v270 = vsub.f32 %v268, %v269
        %v271 = vmul.f32 %v264, 0.0
        %v272 = vmul.f32 %v265, %v245
        %v273 = vadd.f32 %v271, %v272
        %274 = xla_tuple %v270, %v273
        %vm275 = vcmask 1047553
        %vm276 = vmand %vm220, %vm275
        %v277 = vsel %vm276, %v270, 0.0
        %v278 = vsel %vm276, %v273, 0.0
        %v279 = vadd.f32 %v248, %v277
        %v280 = vadd.f32 %v249, %v278
        %281 = vst [vmem:[#allocation2] sm:$0xff] %v279
        %282 = vst [vmem:[#allocation6] sm:$0xff] %v280
        %vm283 = vcmask 23568
        %s284 = scalar_lea.vmem [#allocation2], 2
        %s285 = scalar_lea.vmem [#allocation6], 2
        %v286 = vld [vmem:[%s284] ss:$0 sm:$0xff]
        %v287 = vld [vmem:[%s285] ss:$0 sm:$0xff]
        %s288 = scalar_lea.vmem [#allocation0], 2
        %s289 = scalar_lea.vmem [#allocation4], 2
        %v290 = vld [vmem:[%s288] ss:$0 sm:$0xff]
        %v291 = vld [vmem:[%s289] ss:$0 sm:$0xff]
        %v292 = vxor.u32 %v287, 2147483648
        %293 = xla_tuple %v286, %v287
        %294 = xla_tuple %v286, %v292
        %v295 = vmul.f32 %v286, %v286
        %v296 = vmul.f32 %v287, %v292
        %v297 = vsub.f32 %v295, %v296
        %v298 = vmul.f32 %v286, %v292
        %v299 = vmul.f32 %v287, %v286
        %v300 = vadd.f32 %v298, %v299
        %301 = xla_tuple %v297, %v300
        %302 = vadd.xlane.f32.xlu0 %v297
        %v303 = vpop.xlane.xlu0 %302
        %304 = vadd.xlane.f32.xlu0 %v300
        %v305 = vpop.xlane.xlu0 %304
        %v306 = vsub.f32 %v290, %v303
        %v307 = vsub.f32 %v291, %v305
        %v308 = vrsqrt.pop %v306
        %v309 = vld [vmem:[#allocation0] sm:$0xff]
        %v310 = vld [vmem:[#allocation4] sm:$0xff]
        %v311 = vld [vmem:[#allocation2] sm:$0xff]
        %v312 = vld [vmem:[#allocation6] sm:$0xff]
        %v313 = vxor.u32 %v287, 2147483648
        %314 = xla_tuple %v311, %v312
        %315 = xla_tuple %v286, %v313
        %v316 = vmul.f32 %v311, %v286
        %v317 = vmul.f32 %v312, %v313
        %v318 = vsub.f32 %v316, %v317
        %v319 = vmul.f32 %v311, %v313
        %v320 = vmul.f32 %v312, %v286
        %v321 = vadd.f32 %v319, %v320
        %322 = xla_tuple %v318, %v321
        %323 = vadd.xlane.f32.xlu0 %v318
        %v324 = vpop.xlane.xlu0 %323
        %325 = vadd.xlane.f32.xlu0 %v321
        %v326 = vpop.xlane.xlu0 %325
        %v327 = vsub.f32 %v309, %v324
        %v328 = vsub.f32 %v310, %v326
        %329 = xla_tuple %v327, %v328
        %330 = xla_tuple %v308, 0.0
        %v331 = vmul.f32 %v327, %v308
        %v332 = vmul.f32 %v328, 0.0
        %v333 = vsub.f32 %v331, %v332
        %v334 = vmul.f32 %v327, 0.0
        %v335 = vmul.f32 %v328, %v308
        %v336 = vadd.f32 %v334, %v335
        %337 = xla_tuple %v333, %v336
        %vm338 = vcmask 1047554
        %vm339 = vmand %vm283, %vm338
        %v340 = vsel %vm339, %v333, 0.0
        %v341 = vsel %vm339, %v336, 0.0
        %v342 = vadd.f32 %v311, %v340
        %v343 = vadd.f32 %v312, %v341
        %344 = vst [vmem:[#allocation2] sm:$0xff] %v342
        %345 = vst [vmem:[#allocation6] sm:$0xff] %v343
        %vm346 = vcmask 31768
        %s347 = scalar_lea.vmem [#allocation2], 3
        %s348 = scalar_lea.vmem [#allocation6], 3
        %v349 = vld [vmem:[%s347] ss:$0 sm:$0xff]
        %v350 = vld [vmem:[%s348] ss:$0 sm:$0xff]
        %s351 = scalar_lea.vmem [#allocation0], 3
        %s352 = scalar_lea.vmem [#allocation4], 3
        %v353 = vld [vmem:[%s351] ss:$0 sm:$0xff]
        %v354 = vld [vmem:[%s352] ss:$0 sm:$0xff]
        %v355 = vxor.u32 %v350, 2147483648
        %356 = xla_tuple %v349, %v350
        %357 = xla_tuple %v349, %v355
        %v358 = vmul.f32 %v349, %v349
        %v359 = vmul.f32 %v350, %v355
        %v360 = vsub.f32 %v358, %v359
        %v361 = vmul.f32 %v349, %v355
        %v362 = vmul.f32 %v350, %v349
        %v363 = vadd.f32 %v361, %v362
        %364 = xla_tuple %v360, %v363
        %365 = vadd.xlane.f32.xlu0 %v360
        %v366 = vpop.xlane.xlu0 %365
        %367 = vadd.xlane.f32.xlu0 %v363
        %v368 = vpop.xlane.xlu0 %367
        %v369 = vsub.f32 %v353, %v366
        %v370 = vsub.f32 %v354, %v368
        %v371 = vrsqrt.pop %v369
        %v372 = vld [vmem:[#allocation0] sm:$0xff]
        %v373 = vld [vmem:[#allocation4] sm:$0xff]
        %v374 = vld [vmem:[#allocation2] sm:$0xff]
        %v375 = vld [vmem:[#allocation6] sm:$0xff]
        %v376 = vxor.u32 %v350, 2147483648
        %377 = xla_tuple %v374, %v375
        %378 = xla_tuple %v349, %v376
        %v379 = vmul.f32 %v374, %v349
        %v380 = vmul.f32 %v375, %v376
        %v381 = vsub.f32 %v379, %v380
        %v382 = vmul.f32 %v374, %v376
        %v383 = vmul.f32 %v375, %v349
        %v384 = vadd.f32 %v382, %v383
        %385 = xla_tuple %v381, %v384
        %386 = vadd.xlane.f32.xlu0 %v381
        %v387 = vpop.xlane.xlu0 %386
        %388 = vadd.xlane.f32.xlu0 %v384
        %v389 = vpop.xlane.xlu0 %388
        %v390 = vsub.f32 %v372, %v387
        %v391 = vsub.f32 %v373, %v389
        %392 = xla_tuple %v390, %v391
        %393 = xla_tuple %v371, 0.0
        %v394 = vmul.f32 %v390, %v371
        %v395 = vmul.f32 %v391, 0.0
        %v396 = vsub.f32 %v394, %v395
        %v397 = vmul.f32 %v390, 0.0
        %v398 = vmul.f32 %v391, %v371
        %v399 = vadd.f32 %v397, %v398
        %400 = xla_tuple %v396, %v399
        %vm401 = vcmask 1047555
        %vm402 = vmand %vm346, %vm401
        %v403 = vsel %vm402, %v396, 0.0
        %v404 = vsel %vm402, %v399, 0.0
        %v405 = vadd.f32 %v374, %v403
        %v406 = vadd.f32 %v375, %v404
        %407 = vst [vmem:[#allocation2] sm:$0xff] %v405
        %408 = vst [vmem:[#allocation6] sm:$0xff] %v406
        %s410 = sshllo.u32 0, 4
        %v412 = vld [vmem:[#allocation2] sm:%s410]
        %s413 = sshllo.u32 0, 4
        %414 = vst [vmem:[%s148] sm:%s413] %v412
        %s416 = sshllo.u32 0, 4
        %v418 = vld [vmem:[#allocation6] sm:%s416]
        %s419 = sshllo.u32 0, 4
        %420 = vst [vmem:[%s152] sm:%s419] %v418
        %s421 = sand.u32 %s11, 1
        %s422 = sand.u32 %s11, 1
        %s423 = smul.addr %s422, 4
        %s424 = scalar_lea.vmem [#allocation3], %s423
        %s425 = sand.u32 %s11, 1
        %s426 = sand.u32 %s11, 1
        %s427 = smul.addr %s426, 4
        %s428 = scalar_lea.vmem [#allocation7], %s427
        %s429 = sadd.s32 %s18, %s17
        %s430 = sadd.s32 %s429, %s16
        %s431 = smul.addr %s430, 4
        %s432 = scalar_lea.vmem %s2, %s431
        // Predicated region
        $region81: #{custom-call.12} parent=79 // pred_check
          _
        $region82: #{custom-call.12} parent=79 // pred_check_branch
          %434 = sbr.rel (0) target = $region84
        $region83: #{custom-call.12} parent=79 // pred_region
          // Predicated region
          $region85: #{custom-call.12} parent=83 // pred_check
            _
          $region86: #{custom-call.12} parent=83 // pred_check_branch
            %436 = sbr.rel target = $region88
          $region87: #{custom-call.12} parent=83 // pred_region
            // Predicated region
            $region100: #{custom-call.12} parent=87 // pred_check
              _
            $region101: #{custom-call.12} parent=87 // pred_check_branch
              %451 = sbr.rel (0) target = $region103
            $region102: #{custom-call.12} parent=87 // pred_region
              loop: start=0, step=1, limit=1
              $region104: #{custom-call.12} parent=102 // loop_pre_header
                _
              $region105: #{custom-call.12} parent=102 // loop_header
                %s454 = sphi 0, %s458
                %p455 = scmp.ge.s32.totalorder %s454, 1
                %s459 = sphi %s424, %s424
                %s460 = sphi %s432, %s432
              $region106: #{custom-call.12} parent=102 // loop_header_branch
                %457 = sbr.rel (%p455) target = $region110
              $region107: #{custom-call.12} parent=102 // loop_body
                %v461 = vld [vmem:[%s459] sm:$0xf]
                %462 = vst [vmem:[%s460] sm:$0xf] %v461
              $region108: #{custom-call.12} parent=102 // loop_footer
                %s458 = sadd.s32 1, %s454
              $region109: #{custom-call.12} parent=102 // loop_footer_branch
                %453 = sbr.rel target = $region105
              $region110: #{custom-call.12} parent=102 // loop_exit
                _
            $region103: #{custom-call.12} parent=87 // pred_fallthru
              _
          $region88: #{custom-call.12} parent=83 // pred_fallthru
            _
          // Predicated region
          $region89: #{custom-call.12} parent=83 // pred_check
            _
          $region90: #{custom-call.12} parent=83 // pred_check_branch
            %438 = sbr.rel (0) target = $region92
          $region91: #{custom-call.12} parent=83 // pred_region
            loop: start=0, step=1, limit=1
            $region93: #{custom-call.12} parent=91 // loop_pre_header
              _
            $region94: #{custom-call.12} parent=91 // loop_header
              %s441 = sphi 0, %s445
              %p442 = scmp.ge.s32.totalorder %s441, 1
              %s446 = sphi %s424, %s424
              %s447 = sphi %s432, %s432
            $region95: #{custom-call.12} parent=91 // loop_header_branch
              %444 = sbr.rel (%p442) target = $region99
            $region96: #{custom-call.12} parent=91 // loop_body
              %v448 = vld [vmem:[%s446] sm:$0xf]
              %449 = vst [vmem:[%s447] sm:$0xf] %v448
            $region97: #{custom-call.12} parent=91 // loop_footer
              %s445 = sadd.s32 1, %s441
            $region98: #{custom-call.12} parent=91 // loop_footer_branch
              %440 = sbr.rel target = $region94
            $region99: #{custom-call.12} parent=91 // loop_exit
              _
          $region92: #{custom-call.12} parent=83 // pred_fallthru
            _
        $region84: #{custom-call.12} parent=79 // pred_fallthru
          _
        %463 = vnop
        %s464 = sadd.s32 %s18, %s17
        %s465 = sadd.s32 %s464, %s16
        %s466 = smul.addr %s465, 4
        %s467 = scalar_lea.vmem %s3, %s466
        // Predicated region
        $region111: #{custom-call.12} parent=79 // pred_check
          _
        $region112: #{custom-call.12} parent=79 // pred_check_branch
          %469 = sbr.rel (0) target = $region114
        $region113: #{custom-call.12} parent=79 // pred_region
          // Predicated region
          $region115: #{custom-call.12} parent=113 // pred_check
            _
          $region116: #{custom-call.12} parent=113 // pred_check_branch
            %471 = sbr.rel target = $region118
          $region117: #{custom-call.12} parent=113 // pred_region
            // Predicated region
            $region130: #{custom-call.12} parent=117 // pred_check
              _
            $region131: #{custom-call.12} parent=117 // pred_check_branch
              %486 = sbr.rel (0) target = $region133
            $region132: #{custom-call.12} parent=117 // pred_region
              loop: start=0, step=1, limit=1
              $region134: #{custom-call.12} parent=132 // loop_pre_header
                _
              $region135: #{custom-call.12} parent=132 // loop_header
                %s489 = sphi 0, %s493
                %p490 = scmp.ge.s32.totalorder %s489, 1
                %s494 = sphi %s428, %s428
                %s495 = sphi %s467, %s467
              $region136: #{custom-call.12} parent=132 // loop_header_branch
                %492 = sbr.rel (%p490) target = $region140
              $region137: #{custom-call.12} parent=132 // loop_body
                %v496 = vld [vmem:[%s494] sm:$0xf]
                %497 = vst [vmem:[%s495] sm:$0xf] %v496
              $region138: #{custom-call.12} parent=132 // loop_footer
                %s493 = sadd.s32 1, %s489
              $region139: #{custom-call.12} parent=132 // loop_footer_branch
                %488 = sbr.rel target = $region135
              $region140: #{custom-call.12} parent=132 // loop_exit
                _
            $region133: #{custom-call.12} parent=117 // pred_fallthru
              _
          $region118: #{custom-call.12} parent=113 // pred_fallthru
            _
          // Predicated region
          $region119: #{custom-call.12} parent=113 // pred_check
            _
          $region120: #{custom-call.12} parent=113 // pred_check_branch
            %473 = sbr.rel (0) target = $region122
          $region121: #{custom-call.12} parent=113 // pred_region
            loop: start=0, step=1, limit=1
            $region123: #{custom-call.12} parent=121 // loop_pre_header
              _
            $region124: #{custom-call.12} parent=121 // loop_header
              %s476 = sphi 0, %s480
              %p477 = scmp.ge.s32.totalorder %s476, 1
              %s481 = sphi %s428, %s428
              %s482 = sphi %s467, %s467
            $region125: #{custom-call.12} parent=121 // loop_header_branch
              %479 = sbr.rel (%p477) target = $region129
            $region126: #{custom-call.12} parent=121 // loop_body
              %v483 = vld [vmem:[%s481] sm:$0xf]
              %484 = vst [vmem:[%s482] sm:$0xf] %v483
            $region127: #{custom-call.12} parent=121 // loop_footer
              %s480 = sadd.s32 1, %s476
            $region128: #{custom-call.12} parent=121 // loop_footer_branch
              %475 = sbr.rel target = $region124
            $region129: #{custom-call.12} parent=121 // loop_exit
              _
          $region122: #{custom-call.12} parent=113 // pred_fallthru
            _
        $region114: #{custom-call.12} parent=79 // pred_fallthru
          _
        %498 = vnop
      $region80: #{custom-call.12} parent=5 // pred_fallthru
        _
      %p499 = scmp.le.s32.totalorder 2, %s6
      // Predicated region
      $region141: #{custom-call.12} parent=5 // pred_check
        %p500 = pneg %p499
      $region142: #{custom-call.12} parent=5 // pred_check_branch
        %502 = sbr.rel (%p500) target = $region144
      $region143: #{custom-call.12} parent=5 // pred_region
        %s503 = ssub.s32 %s6, 2
        %s504 = sand.u32 %s12, 1
        %s505 = sand.u32 %s12, 1
        %s506 = smul.addr %s505, 4
        %s507 = scalar_lea.vmem [#allocation3], %s506
        %s508 = sand.u32 %s12, 1
        %s509 = sand.u32 %s12, 1
        %s510 = smul.addr %s509, 4
        %s511 = scalar_lea.vmem [#allocation7], %s510
      $region144: #{custom-call.12} parent=5 // pred_fallthru
        _
    $region6: #{custom-call.12} parent=1 // loop_footer
      %s10 = sadd.s32 1, %s6
    $region7: #{custom-call.12} parent=1 // loop_footer_branch
      %5 = sbr.rel target = $region3
    $region8: #{custom-call.12} parent=1 // loop_exit
      _

// kernel: custom-call.13
$region0: #{custom-call.13}
  %s0 = inlined_call_operand.vmem [shape: f32[2,1,4,4], index: 0, kind: input, shape index: {}]
  %s1 = inlined_call_operand.vmem [shape: f32[2,1,4,4], index: 1, kind: input, shape index: {}]
  %s2 = inlined_call_operand.vmem [shape: f32[2,1,4,4], index: 2, kind: output, shape index: {0}]
  %s3 = inlined_call_operand.vmem [shape: f32[2,1,4,4], index: 3, kind: output, shape index: {1}]
  %4 = xla_tuple %s2, %s3
  $region1: #{custom-call.13} parent=0
    #allocation0 [shape = 'u8[4096]{0}', space=vmem, size = 0x1000, scoped, tag = 'operand span for operand 0']
    #allocation1 [shape = 'u8[4096]{0}', space=vmem, size = 0x1000, scoped, tag = 'packed  for operand 0']
    #allocation2 [shape = 'u8[4096]{0}', space=vmem, size = 0x1000, scoped, tag = 'operand span for operand 1']
    #allocation3 [shape = 'u8[4096]{0}', space=vmem, size = 0x1000, scoped, tag = 'packed  for operand 1']
    #allocation4 [shape = 'u8[4096]{0}', space=vmem, size = 0x1000, scoped, tag = 'operand span for operand 2']
    #allocation5 [shape = 'u8[4096]{0}', space=vmem, size = 0x1000, scoped, tag = 'packed  for operand 2']
    #allocation6 [shape = 'u8[4096]{0}', space=vmem, size = 0x1000, scoped, tag = 'operand span for operand 3']
    #allocation7 [shape = 'u8[4096]{0}', space=vmem, size = 0x1000, scoped, tag = 'packed  for operand 3']
    loop: start=0, step=1, limit=4
    $region2: #{custom-call.13} parent=1 // loop_pre_header
      _
    $region3: #{custom-call.13} parent=1 // loop_header
      %s6 = sphi 0, %s10
      %p7 = scmp.ge.s32.totalorder %s6, 4
      %s13 = sphi 0, %s39
      %s14 = sphi 0, %s35
      %s15 = sphi 0, %s31
      %s16 = sphi 0, %s27
      %s17 = sphi 0, %s13
      %s18 = sphi 0, %s14
      %s19 = sphi 0, %s15
      %s20 = sphi 0, %s16
      %s21 = sphi 0, %s17
      %s22 = sphi 0, %s18
      %s23 = sphi 0, %s19
      %s24 = sphi 0, %s20
    $region4: #{custom-call.13} parent=1 // loop_header_branch
      %9 = sbr.rel (%p7) target = $region8
    $region5: #{custom-call.13} parent=1 // loop_body
      %s11 = ssub.s32 %s6, 1
      %s12 = ssub.s32 %s6, 2
      %s25 = sadd.s32 1, %s16
      %p26 = scmp.ge.s32.totalorder %s25, 1
      %s27 = scalar_select %p26, 0, %s25
      %s28 = sadd.s32 1, %s15
      %s29 = scalar_select %p26, %s28, %s15
      %p30 = scmp.ge.s32.totalorder %s29, 1
      %s31 = scalar_select %p30, 0, %s29
      %s32 = sadd.s32 1, %s14
      %s33 = scalar_select %p30, %s32, %s14
      %p34 = scmp.ge.s32.totalorder %s33, 1
      %s35 = scalar_select %p34, 0, %s33
      %s36 = sadd.s32 1, %s13
      %s37 = scalar_select %p34, %s36, %s13
      %p38 = scmp.ge.s32.totalorder %s37, 2
      %s39 = scalar_select %p38, 0, %s37
      %p40 = scmp.le.s32.totalorder 1, %s6
      %p41 = scmp.lt.s32.totalorder %s6, 3
      %p42 = pnand %p40, %p41
      %p43 = pneg %p42
      // Predicated region
      $region9: #{custom-call.13} parent=5 // pred_check
        _
      $region10: #{custom-call.13} parent=5 // pred_check_branch
        %45 = sbr.rel (%p42) target = $region12
      $region11: #{custom-call.13} parent=5 // pred_region
        %s46 = ssub.s32 %s6, 1
      $region12: #{custom-call.13} parent=5 // pred_fallthru
        _
      %p47 = scmp.lt.s32.totalorder %s6, 2
      // Predicated region
      $region13: #{custom-call.13} parent=5 // pred_check
        %p48 = pneg %p47
      $region14: #{custom-call.13} parent=5 // pred_check_branch
        %50 = sbr.rel (%p48) target = $region16
      $region15: #{custom-call.13} parent=5 // pred_region
        %s51 = sand.u32 %s6, 1
        %s52 = sand.u32 %s6, 1
        %s53 = smul.addr %s52, 4
        %s54 = scalar_lea.vmem [#allocation1], %s53
        %s55 = sadd.s32 %s16, %s15
        %s56 = sadd.s32 %s55, %s14
        %s57 = sadd.s32 %s56, %s13
        %s58 = smul.addr %s57, 4
        %s59 = scalar_lea.vmem %s0, %s58
        // Predicated region
        $region17: #{custom-call.13} parent=15 // pred_check
          _
        $region18: #{custom-call.13} parent=15 // pred_check_branch
          %61 = sbr.rel (0) target = $region20
        $region19: #{custom-call.13} parent=15 // pred_region
          // Predicated region
          $region21: #{custom-call.13} parent=19 // pred_check
            _
          $region22: #{custom-call.13} parent=19 // pred_check_branch
            %63 = sbr.rel target = $region24
          $region23: #{custom-call.13} parent=19 // pred_region
            // Predicated region
            $region36: #{custom-call.13} parent=23 // pred_check
              _
            $region37: #{custom-call.13} parent=23 // pred_check_branch
              %78 = sbr.rel (0) target = $region39
            $region38: #{custom-call.13} parent=23 // pred_region
              loop: start=0, step=1, limit=1
              $region40: #{custom-call.13} parent=38 // loop_pre_header
                _
              $region41: #{custom-call.13} parent=38 // loop_header
                %s81 = sphi 0, %s85
                %p82 = scmp.ge.s32.totalorder %s81, 1
                %s86 = sphi %s59, %s59
                %s87 = sphi %s54, %s54
              $region42: #{custom-call.13} parent=38 // loop_header_branch
                %84 = sbr.rel (%p82) target = $region46
              $region43: #{custom-call.13} parent=38 // loop_body
                %v88 = vld [vmem:[%s86] sm:$0xf]
                %89 = vst [vmem:[%s87] sm:$0xf] %v88
              $region44: #{custom-call.13} parent=38 // loop_footer
                %s85 = sadd.s32 1, %s81
              $region45: #{custom-call.13} parent=38 // loop_footer_branch
                %80 = sbr.rel target = $region41
              $region46: #{custom-call.13} parent=38 // loop_exit
                _
            $region39: #{custom-call.13} parent=23 // pred_fallthru
              _
          $region24: #{custom-call.13} parent=19 // pred_fallthru
            _
          // Predicated region
          $region25: #{custom-call.13} parent=19 // pred_check
            _
          $region26: #{custom-call.13} parent=19 // pred_check_branch
            %65 = sbr.rel (0) target = $region28
          $region27: #{custom-call.13} parent=19 // pred_region
            loop: start=0, step=1, limit=1
            $region29: #{custom-call.13} parent=27 // loop_pre_header
              _
            $region30: #{custom-call.13} parent=27 // loop_header
              %s68 = sphi 0, %s72
              %p69 = scmp.ge.s32.totalorder %s68, 1
              %s73 = sphi %s59, %s59
              %s74 = sphi %s54, %s54
            $region31: #{custom-call.13} parent=27 // loop_header_branch
              %71 = sbr.rel (%p69) target = $region35
            $region32: #{custom-call.13} parent=27 // loop_body
              %v75 = vld [vmem:[%s73] sm:$0xf]
              %76 = vst [vmem:[%s74] sm:$0xf] %v75
            $region33: #{custom-call.13} parent=27 // loop_footer
              %s72 = sadd.s32 1, %s68
            $region34: #{custom-call.13} parent=27 // loop_footer_branch
              %67 = sbr.rel target = $region30
            $region35: #{custom-call.13} parent=27 // loop_exit
              _
          $region28: #{custom-call.13} parent=19 // pred_fallthru
            _
        $region20: #{custom-call.13} parent=15 // pred_fallthru
          _
        %90 = vnop
        %s91 = sand.u32 %s6, 1
        %s92 = sand.u32 %s6, 1
        %s93 = smul.addr %s92, 4
        %s94 = scalar_lea.vmem [#allocation3], %s93
        %s95 = sadd.s32 %s16, %s15
        %s96 = sadd.s32 %s95, %s14
        %s97 = sadd.s32 %s96, %s13
        %s98 = smul.addr %s97, 4
        %s99 = scalar_lea.vmem %s1, %s98
        // Predicated region
        $region47: #{custom-call.13} parent=15 // pred_check
          _
        $region48: #{custom-call.13} parent=15 // pred_check_branch
          %101 = sbr.rel (0) target = $region50
        $region49: #{custom-call.13} parent=15 // pred_region
          // Predicated region
          $region51: #{custom-call.13} parent=49 // pred_check
            _
          $region52: #{custom-call.13} parent=49 // pred_check_branch
            %103 = sbr.rel target = $region54
          $region53: #{custom-call.13} parent=49 // pred_region
            // Predicated region
            $region66: #{custom-call.13} parent=53 // pred_check
              _
            $region67: #{custom-call.13} parent=53 // pred_check_branch
              %118 = sbr.rel (0) target = $region69
            $region68: #{custom-call.13} parent=53 // pred_region
              loop: start=0, step=1, limit=1
              $region70: #{custom-call.13} parent=68 // loop_pre_header
                _
              $region71: #{custom-call.13} parent=68 // loop_header
                %s121 = sphi 0, %s125
                %p122 = scmp.ge.s32.totalorder %s121, 1
                %s126 = sphi %s99, %s99
                %s127 = sphi %s94, %s94
              $region72: #{custom-call.13} parent=68 // loop_header_branch
                %124 = sbr.rel (%p122) target = $region76
              $region73: #{custom-call.13} parent=68 // loop_body
                %v128 = vld [vmem:[%s126] sm:$0xf]
                %129 = vst [vmem:[%s127] sm:$0xf] %v128
              $region74: #{custom-call.13} parent=68 // loop_footer
                %s125 = sadd.s32 1, %s121
              $region75: #{custom-call.13} parent=68 // loop_footer_branch
                %120 = sbr.rel target = $region71
              $region76: #{custom-call.13} parent=68 // loop_exit
                _
            $region69: #{custom-call.13} parent=53 // pred_fallthru
              _
          $region54: #{custom-call.13} parent=49 // pred_fallthru
            _
          // Predicated region
          $region55: #{custom-call.13} parent=49 // pred_check
            _
          $region56: #{custom-call.13} parent=49 // pred_check_branch
            %105 = sbr.rel (0) target = $region58
          $region57: #{custom-call.13} parent=49 // pred_region
            loop: start=0, step=1, limit=1
            $region59: #{custom-call.13} parent=57 // loop_pre_header
              _
            $region60: #{custom-call.13} parent=57 // loop_header
              %s108 = sphi 0, %s112
              %p109 = scmp.ge.s32.totalorder %s108, 1
              %s113 = sphi %s99, %s99
              %s114 = sphi %s94, %s94
            $region61: #{custom-call.13} parent=57 // loop_header_branch
              %111 = sbr.rel (%p109) target = $region65
            $region62: #{custom-call.13} parent=57 // loop_body
              %v115 = vld [vmem:[%s113] sm:$0xf]
              %116 = vst [vmem:[%s114] sm:$0xf] %v115
            $region63: #{custom-call.13} parent=57 // loop_footer
              %s112 = sadd.s32 1, %s108
            $region64: #{custom-call.13} parent=57 // loop_footer_branch
              %107 = sbr.rel target = $region60
            $region65: #{custom-call.13} parent=57 // loop_exit
              _
          $region58: #{custom-call.13} parent=49 // pred_fallthru
            _
        $region50: #{custom-call.13} parent=15 // pred_fallthru
          _
        %130 = vnop
      $region16: #{custom-call.13} parent=5 // pred_fallthru
        _
      %p131 = scmp.le.s32.totalorder 1, %s6
      %p132 = scmp.lt.s32.totalorder %s6, 3
      %p133 = pnand %p131, %p132
      %p134 = pneg %p133
      // Predicated region
      $region77: #{custom-call.13} parent=5 // pred_check
        _
      $region78: #{custom-call.13} parent=5 // pred_check_branch
        %136 = sbr.rel (%p133) target = $region80
      $region79: #{custom-call.13} parent=5 // pred_region
        #allocation8 [shape = 'f32[4,4]{1,0}', space=vmem, size = 0x1000, scoped, tag = 'rescaled input a real']
        #allocation9 [shape = 'f32[4,4]{1,0}', space=vmem, size = 0x1000, scoped, tag = 'rescaled input a imaginary']
        %s137 = ssub.s32 %s6, 1
        %s138 = sand.u32 %s11, 1
        %s139 = sand.u32 %s11, 1
        %s140 = smul.addr %s139, 4
        %s141 = scalar_lea.vmem [#allocation1], %s140
        %s142 = sand.u32 %s11, 1
        %s143 = sand.u32 %s11, 1
        %s144 = smul.addr %s143, 4
        %s145 = scalar_lea.vmem [#allocation3], %s144
        %s146 = sand.u32 %s11, 1
        %s147 = sand.u32 %s11, 1
        %s148 = smul.addr %s147, 4
        %s149 = scalar_lea.vmem [#allocation1], %s148
        %s150 = sand.u32 %s11, 1
        %s151 = sand.u32 %s11, 1
        %s152 = smul.addr %s151, 4
        %s153 = scalar_lea.vmem [#allocation3], %s152
        %s154 = sand.u32 %s11, 1
        %s155 = sand.u32 %s11, 1
        %s156 = smul.addr %s155, 4
        %s157 = scalar_lea.vmem [#allocation5], %s156
        %s158 = sand.u32 %s11, 1
        %s159 = sand.u32 %s11, 1
        %s160 = smul.addr %s159, 4
        %s161 = scalar_lea.vmem [#allocation7], %s160
        %s163 = sshllo.u32 0, 4
        %v164 = vld [vmem:[%s149] sm:%s163]
        %165 = vst [vmem:[#allocation0] sm:%s163] %v164
        %s167 = sshllo.u32 0, 4
        %v168 = vld [vmem:[%s153] sm:%s167]
        %169 = vst [vmem:[#allocation2] sm:%s167] %v168
        %v170 = vlaneseq
        %v171 = vand.u32 %v170, 127
        %vm172 = vcmp.lt.s32.totalorder %v171, 4
        %v173 = vlaneseq
        %v174 = vshrl.u32 %v173, 7
        %vm176 = vcmp.eq.s32.totalorder %v174, %v171
        %v177 = vld [vmem:[#allocation0] sm:$0xff]
        %v178 = vld [vmem:[#allocation2] sm:$0xff]
        %v179 = vsel %vm176, %v177, 0.0
        %v180 = vsel %vm176, %v178, 0.0
        %181 = vadd.xlane.f32.xlu0 %v179
        %v182 = vpop.xlane.xlu0 %181
        %183 = vadd.xlane.f32.xlu0 %v180
        %v184 = vpop.xlane.xlu0 %183
        %vm185 = vcmp.ge.s32.totalorder %v174, %v171
        %vm186 = vmand %vm185, %vm172
        %v187 = vsel %vm186, %v177, 0.0
        %v188 = vsel %vm186, %v178, 0.0
        %189 = xla_tuple %v187, %v188
        %190 = xla_tuple %v182, %v184
        %v191 = vand.u32 2147483647, %v182
        %v192 = vand.u32 2147483647, %v184
        %vm193 = vcmp.lt.f32.partialorder %v191, %v192
        %v194 = vsel %vm193, %v182, %v184
        %v195 = vsel %vm193, %v184, %v182
        %v196 = vrcp.pop %v195
        %v197 = vmul.f32 %v194, %v196
        %v198 = vmul.f32 %v197, %v182
        %v199 = vadd.f32 %v184, %v198
        %v200 = vmul.f32 %v197, %v184
        %v201 = vadd.f32 %v182, %v200
        %v202 = vmul.f32 %v197, %v187
        %v203 = vadd.f32 %v202, %v188
        %v204 = vmul.f32 %v197, %v188
        %v205 = vadd.f32 %v204, %v187
        %v206 = vsel %vm193, %v203, %v205
        %v207 = vsel %vm193, %v199, %v201
        %v208 = vrcp.pop %v207
        %v209 = vmul.f32 %v206, %v208
        %v210 = vmul.f32 %v197, %v188
        %v211 = vsub.f32 %v210, %v187
        %v212 = vmul.f32 %v197, %v187
        %v213 = vsub.f32 %v188, %v212
        %v214 = vsel %vm193, %v211, %v213
        %v215 = vmul.f32 %v214, %v208
        %vm216 = vcmp.eq.f32.partialorder %v182, 0.0
        %vm217 = vcmp.eq.f32.partialorder %v184, 0.0
        %vm218 = vmand %vm216, %vm217
        %v219 = vand.u32 %v187, 2147483648
        %v220 = vor.u32 inf, %v219
        %v221 = vand.u32 %v188, 2147483648
        %v222 = vor.u32 inf, %v221
        %vm223 = vcmp.eq.f32.partialorder %v187, 0.0
        %v224 = vsel %vm223, nan, %v220
        %vm225 = vcmp.eq.f32.partialorder %v188, 0.0
        %v226 = vsel %vm225, nan, %v222
        %v227 = vsel %vm218, %v224, %v209
        %v228 = vsel %vm218, %v226, %v215
        %229 = xla_tuple %v227, %v228
        %230 = vst [vmem:[#allocation8] sm:$0xff] %v227
        %231 = vst [vmem:[#allocation9] sm:$0xff] %v228
        %v232 = vlaneseq
        %v233 = vand.u32 %v232, 127
        %v234 = vlaneseq
        %v235 = vshrl.u32 %v234, 7
        %vm237 = vcmp.eq.s32.totalorder %v233, %v235
        %v238 = vlaneseq
        %v239 = vand.u32 %v238, 127
        %vm240 = vcmp.eq.s32.totalorder %v239, 0
        %v241 = vsel %vm240, 1.0, -1.0
        %v242 = vsel %vm237, %v241, 0.0
        %s243 = scalar_lea.vmem [#allocation8], 1
        %s244 = scalar_lea.vmem [#allocation9], 1
        %v245 = vld [vmem:[%s243] ss:$0 sm:$0xff]
        %v246 = vld [vmem:[%s244] ss:$0 sm:$0xff]
        %v247 = vxor.u32 %v245, 2147483648
        %v248 = vxor.u32 %v246, 2147483648
        %v249 = vlaneseq
        %v250 = vand.u32 %v249, 127
        %vm251 = vcmp.eq.s32.totalorder %v250, 1
        %252 = xla_tuple %v247, %v248
        %253 = xla_tuple %v242, 0.0
        %v254 = vmul.f32 %v247, %v242
        %v255 = vmul.f32 %v248, 0.0
        %v256 = vsub.f32 %v254, %v255
        %v257 = vmul.f32 %v247, 0.0
        %v258 = vmul.f32 %v248, %v242
        %v259 = vadd.f32 %v257, %v258
        %260 = xla_tuple %v256, %v259
        %261 = vadd.xlane.f32.xlu0 %v256
        %v262 = vpop.xlane.xlu0 %261
        %263 = vadd.xlane.f32.xlu0 %v259
        %v264 = vpop.xlane.xlu0 %263
        %v265 = vsel %vm251, %v262, %v242
        %v266 = vsel %vm251, %v264, 0.0
        %s267 = scalar_lea.vmem [#allocation8], 2
        %s268 = scalar_lea.vmem [#allocation9], 2
        %v269 = vld [vmem:[%s267] ss:$0 sm:$0xff]
        %v270 = vld [vmem:[%s268] ss:$0 sm:$0xff]
        %v271 = vxor.u32 %v269, 2147483648
        %v272 = vxor.u32 %v270, 2147483648
        %v273 = vlaneseq
        %v274 = vand.u32 %v273, 127
        %vm275 = vcmp.eq.s32.totalorder %v274, 2
        %276 = xla_tuple %v271, %v272
        %277 = xla_tuple %v265, %v266
        %v278 = vmul.f32 %v271, %v265
        %v279 = vmul.f32 %v272, %v266
        %v280 = vsub.f32 %v278, %v279
        %v281 = vmul.f32 %v271, %v266
        %v282 = vmul.f32 %v272, %v265
        %v283 = vadd.f32 %v281, %v282
        %284 = xla_tuple %v280, %v283
        %285 = vadd.xlane.f32.xlu0 %v280
        %v286 = vpop.xlane.xlu0 %285
        %287 = vadd.xlane.f32.xlu0 %v283
        %v288 = vpop.xlane.xlu0 %287
        %v289 = vsel %vm275, %v286, %v265
        %v290 = vsel %vm275, %v288, %v266
        %s291 = scalar_lea.vmem [#allocation8], 3
        %s292 = scalar_lea.vmem [#allocation9], 3
        %v293 = vld [vmem:[%s291] ss:$0 sm:$0xff]
        %v294 = vld [vmem:[%s292] ss:$0 sm:$0xff]
        %v295 = vxor.u32 %v293, 2147483648
        %v296 = vxor.u32 %v294, 2147483648
        %v297 = vlaneseq
        %v298 = vand.u32 %v297, 127
        %vm299 = vcmp.eq.s32.totalorder %v298, 3
        %300 = xla_tuple %v295, %v296
        %301 = xla_tuple %v289, %v290
        %v302 = vmul.f32 %v295, %v289
        %v303 = vmul.f32 %v296, %v290
        %v304 = vsub.f32 %v302, %v303
        %v305 = vmul.f32 %v295, %v290
        %v306 = vmul.f32 %v296, %v289
        %v307 = vadd.f32 %v305, %v306
        %308 = xla_tuple %v304, %v307
        %309 = vadd.xlane.f32.xlu0 %v304
        %v310 = vpop.xlane.xlu0 %309
        %311 = vadd.xlane.f32.xlu0 %v307
        %v312 = vpop.xlane.xlu0 %311
        %v313 = vsel %vm299, %v310, %v289
        %v314 = vsel %vm299, %v312, %v290
        %315 = xla_tuple %v313, %v314
        %316 = xla_tuple %v182, %v184
        %v317 = vand.u32 2147483647, %v182
        %v318 = vand.u32 2147483647, %v184
        %vm319 = vcmp.lt.f32.partialorder %v317, %v318
        %v320 = vsel %vm319, %v182, %v184
        %v321 = vsel %vm319, %v184, %v182
        %v322 = vrcp.pop %v321
        %v323 = vmul.f32 %v320, %v322
        %v324 = vmul.f32 %v323, %v182
        %v325 = vadd.f32 %v184, %v324
        %v326 = vmul.f32 %v323, %v184
        %v327 = vadd.f32 %v182, %v326
        %v328 = vmul.f32 %v323, %v313
        %v329 = vadd.f32 %v328, %v314
        %v330 = vmul.f32 %v323, %v314
        %v331 = vadd.f32 %v330, %v313
        %v332 = vsel %vm319, %v329, %v331
        %v333 = vsel %vm319, %v325, %v327
        %v334 = vrcp.pop %v333
        %v335 = vmul.f32 %v332, %v334
        %v336 = vmul.f32 %v323, %v314
        %v337 = vsub.f32 %v336, %v313
        %v338 = vmul.f32 %v323, %v313
        %v339 = vsub.f32 %v314, %v338
        %v340 = vsel %vm319, %v337, %v339
        %v341 = vmul.f32 %v340, %v334
        %vm342 = vcmp.eq.f32.partialorder %v182, 0.0
        %vm343 = vcmp.eq.f32.partialorder %v184, 0.0
        %vm344 = vmand %vm342, %vm343
        %v345 = vand.u32 %v313, 2147483648
        %v346 = vor.u32 inf, %v345
        %v347 = vand.u32 %v314, 2147483648
        %v348 = vor.u32 inf, %v347
        %vm349 = vcmp.eq.f32.partialorder %v313, 0.0
        %v350 = vsel %vm349, nan, %v346
        %vm351 = vcmp.eq.f32.partialorder %v314, 0.0
        %v352 = vsel %vm351, nan, %v348
        %v353 = vsel %vm344, %v350, %v335
        %v354 = vsel %vm344, %v352, %v341
        %355 = xla_tuple %v353, %v354
        %vm356 = vweird.f32 %v182
        %vm357 = vweird.f32 %v184
        %vm358 = vmor %vm356, %vm357
        %v359 = vsel %vm358, %v313, %v353
        %v360 = vsel %vm358, %v314, %v354
        %361 = vst [vmem:[#allocation4] sm:$0xff] %v359
        %362 = vst [vmem:[#allocation6] sm:$0xff] %v360
        %s364 = sshllo.u32 0, 4
        %v366 = vld [vmem:[#allocation4] sm:%s364]
        %s367 = sshllo.u32 0, 4
        %368 = vst [vmem:[%s157] sm:%s367] %v366
        %s370 = sshllo.u32 0, 4
        %v372 = vld [vmem:[#allocation6] sm:%s370]
        %s373 = sshllo.u32 0, 4
        %374 = vst [vmem:[%s161] sm:%s373] %v372
        %s375 = sand.u32 %s11, 1
        %s376 = sand.u32 %s11, 1
        %s377 = smul.addr %s376, 4
        %s378 = scalar_lea.vmem [#allocation5], %s377
        %s379 = sand.u32 %s11, 1
        %s380 = sand.u32 %s11, 1
        %s381 = smul.addr %s380, 4
        %s382 = scalar_lea.vmem [#allocation7], %s381
        %s383 = sadd.s32 %s20, %s19
        %s384 = sadd.s32 %s383, %s18
        %s385 = sadd.s32 %s384, %s17
        %s386 = smul.addr %s385, 4
        %s387 = scalar_lea.vmem %s2, %s386
        // Predicated region
        $region81: #{custom-call.13} parent=79 // pred_check
          _
        $region82: #{custom-call.13} parent=79 // pred_check_branch
          %389 = sbr.rel (0) target = $region84
        $region83: #{custom-call.13} parent=79 // pred_region
          // Predicated region
          $region85: #{custom-call.13} parent=83 // pred_check
            _
          $region86: #{custom-call.13} parent=83 // pred_check_branch
            %391 = sbr.rel target = $region88
          $region87: #{custom-call.13} parent=83 // pred_region
            // Predicated region
            $region100: #{custom-call.13} parent=87 // pred_check
              _
            $region101: #{custom-call.13} parent=87 // pred_check_branch
              %406 = sbr.rel (0) target = $region103
            $region102: #{custom-call.13} parent=87 // pred_region
              loop: start=0, step=1, limit=1
              $region104: #{custom-call.13} parent=102 // loop_pre_header
                _
              $region105: #{custom-call.13} parent=102 // loop_header
                %s409 = sphi 0, %s413
                %p410 = scmp.ge.s32.totalorder %s409, 1
                %s414 = sphi %s378, %s378
                %s415 = sphi %s387, %s387
              $region106: #{custom-call.13} parent=102 // loop_header_branch
                %412 = sbr.rel (%p410) target = $region110
              $region107: #{custom-call.13} parent=102 // loop_body
                %v416 = vld [vmem:[%s414] sm:$0xf]
                %417 = vst [vmem:[%s415] sm:$0xf] %v416
              $region108: #{custom-call.13} parent=102 // loop_footer
                %s413 = sadd.s32 1, %s409
              $region109: #{custom-call.13} parent=102 // loop_footer_branch
                %408 = sbr.rel target = $region105
              $region110: #{custom-call.13} parent=102 // loop_exit
                _
            $region103: #{custom-call.13} parent=87 // pred_fallthru
              _
          $region88: #{custom-call.13} parent=83 // pred_fallthru
            _
          // Predicated region
          $region89: #{custom-call.13} parent=83 // pred_check
            _
          $region90: #{custom-call.13} parent=83 // pred_check_branch
            %393 = sbr.rel (0) target = $region92
          $region91: #{custom-call.13} parent=83 // pred_region
            loop: start=0, step=1, limit=1
            $region93: #{custom-call.13} parent=91 // loop_pre_header
              _
            $region94: #{custom-call.13} parent=91 // loop_header
              %s396 = sphi 0, %s400
              %p397 = scmp.ge.s32.totalorder %s396, 1
              %s401 = sphi %s378, %s378
              %s402 = sphi %s387, %s387
            $region95: #{custom-call.13} parent=91 // loop_header_branch
              %399 = sbr.rel (%p397) target = $region99
            $region96: #{custom-call.13} parent=91 // loop_body
              %v403 = vld [vmem:[%s401] sm:$0xf]
              %404 = vst [vmem:[%s402] sm:$0xf] %v403
            $region97: #{custom-call.13} parent=91 // loop_footer
              %s400 = sadd.s32 1, %s396
            $region98: #{custom-call.13} parent=91 // loop_footer_branch
              %395 = sbr.rel target = $region94
            $region99: #{custom-call.13} parent=91 // loop_exit
              _
          $region92: #{custom-call.13} parent=83 // pred_fallthru
            _
        $region84: #{custom-call.13} parent=79 // pred_fallthru
          _
        %418 = vnop
        %s419 = sadd.s32 %s20, %s19
        %s420 = sadd.s32 %s419, %s18
        %s421 = sadd.s32 %s420, %s17
        %s422 = smul.addr %s421, 4
        %s423 = scalar_lea.vmem %s3, %s422
        // Predicated region
        $region111: #{custom-call.13} parent=79 // pred_check
          _
        $region112: #{custom-call.13} parent=79 // pred_check_branch
          %425 = sbr.rel (0) target = $region114
        $region113: #{custom-call.13} parent=79 // pred_region
          // Predicated region
          $region115: #{custom-call.13} parent=113 // pred_check
            _
          $region116: #{custom-call.13} parent=113 // pred_check_branch
            %427 = sbr.rel target = $region118
          $region117: #{custom-call.13} parent=113 // pred_region
            // Predicated region
            $region130: #{custom-call.13} parent=117 // pred_check
              _
            $region131: #{custom-call.13} parent=117 // pred_check_branch
              %442 = sbr.rel (0) target = $region133
            $region132: #{custom-call.13} parent=117 // pred_region
              loop: start=0, step=1, limit=1
              $region134: #{custom-call.13} parent=132 // loop_pre_header
                _
              $region135: #{custom-call.13} parent=132 // loop_header
                %s445 = sphi 0, %s449
                %p446 = scmp.ge.s32.totalorder %s445, 1
                %s450 = sphi %s382, %s382
                %s451 = sphi %s423, %s423
              $region136: #{custom-call.13} parent=132 // loop_header_branch
                %448 = sbr.rel (%p446) target = $region140
              $region137: #{custom-call.13} parent=132 // loop_body
                %v452 = vld [vmem:[%s450] sm:$0xf]
                %453 = vst [vmem:[%s451] sm:$0xf] %v452
              $region138: #{custom-call.13} parent=132 // loop_footer
                %s449 = sadd.s32 1, %s445
              $region139: #{custom-call.13} parent=132 // loop_footer_branch
                %444 = sbr.rel target = $region135
              $region140: #{custom-call.13} parent=132 // loop_exit
                _
            $region133: #{custom-call.13} parent=117 // pred_fallthru
              _
          $region118: #{custom-call.13} parent=113 // pred_fallthru
            _
          // Predicated region
          $region119: #{custom-call.13} parent=113 // pred_check
            _
          $region120: #{custom-call.13} parent=113 // pred_check_branch
            %429 = sbr.rel (0) target = $region122
          $region121: #{custom-call.13} parent=113 // pred_region
            loop: start=0, step=1, limit=1
            $region123: #{custom-call.13} parent=121 // loop_pre_header
              _
            $region124: #{custom-call.13} parent=121 // loop_header
              %s432 = sphi 0, %s436
              %p433 = scmp.ge.s32.totalorder %s432, 1
              %s437 = sphi %s382, %s382
              %s438 = sphi %s423, %s423
            $region125: #{custom-call.13} parent=121 // loop_header_branch
              %435 = sbr.rel (%p433) target = $region129
            $region126: #{custom-call.13} parent=121 // loop_body
              %v439 = vld [vmem:[%s437] sm:$0xf]
              %440 = vst [vmem:[%s438] sm:$0xf] %v439
            $region127: #{custom-call.13} parent=121 // loop_footer
              %s436 = sadd.s32 1, %s432
            $region128: #{custom-call.13} parent=121 // loop_footer_branch
              %431 = sbr.rel target = $region124
            $region129: #{custom-call.13} parent=121 // loop_exit
              _
          $region122: #{custom-call.13} parent=113 // pred_fallthru
            _
        $region114: #{custom-call.13} parent=79 // pred_fallthru
          _
        %454 = vnop
      $region80: #{custom-call.13} parent=5 // pred_fallthru
        _
      %p455 = scmp.le.s32.totalorder 2, %s6
      // Predicated region
      $region141: #{custom-call.13} parent=5 // pred_check
        %p456 = pneg %p455
      $region142: #{custom-call.13} parent=5 // pred_check_branch
        %458 = sbr.rel (%p456) target = $region144
      $region143: #{custom-call.13} parent=5 // pred_region
        %s459 = ssub.s32 %s6, 2
        %s460 = sand.u32 %s12, 1
        %s461 = sand.u32 %s12, 1
        %s462 = smul.addr %s461, 4
        %s463 = scalar_lea.vmem [#allocation5], %s462
        %s464 = sand.u32 %s12, 1
        %s465 = sand.u32 %s12, 1
        %s466 = smul.addr %s465, 4
        %s467 = scalar_lea.vmem [#allocation7], %s466
      $region144: #{custom-call.13} parent=5 // pred_fallthru
        _
    $region6: #{custom-call.13} parent=1 // loop_footer
      %s10 = sadd.s32 1, %s6
    $region7: #{custom-call.13} parent=1 // loop_footer_branch
      %5 = sbr.rel target = $region3
    $region8: #{custom-call.13} parent=1 // loop_exit
      _

// kernel: custom-call.4
$region0: #{custom-call.4}
  %s0 = inlined_call_operand.hbm [shape: c64[2,4], index: 0, kind: input, shape index: {}]
  %s1 = inlined_call_operand.vmem [shape: f32[2,4], index: 1, kind: output, shape index: {}]
  $region1: #{custom-call.4} parent=0
    #allocation0 [shape = 's32[1]{0}', space=sflag, size = 0x4, scoped, tag = 'scoped memory for custom-call.4']
    %2 = vsyncpa [#allocation0], 0
    %s3 = sshll.u32 %s1, 4
    %s4 = int_to_ptr.vmem [resolvable:$true] %s3
    %6 = dma.hbm_to_vmem [thread:$0]  %s0, 32, %s4, [#allocation0]
    %7 = dma.done [#allocation0], 32
    %8 = vsyncpa [#allocation0], 1

// kernel: custom-call.5
$region0: #{custom-call.5}
  %s0 = inlined_call_operand.hbm [shape: c64[2,4], index: 0, kind: input, shape index: {}]
  %s1 = inlined_call_operand.vmem [shape: f32[2,4], index: 1, kind: output, shape index: {}]
  %s2 = scalar_lea.hbm %s0, 32
  $region1: #{custom-call.5} parent=0
    #allocation0 [shape = 's32[1]{0}', space=sflag, size = 0x4, scoped, tag = 'scoped memory for custom-call.5']
    %3 = vsyncpa [#allocation0], 0
    %s4 = sshll.u32 %s1, 4
    %s5 = int_to_ptr.vmem [resolvable:$true] %s4
    %7 = dma.hbm_to_vmem [thread:$0]  %s2, 32, %s5, [#allocation0]
    %8 = dma.done [#allocation0], 32
    %9 = vsyncpa [#allocation0], 1

// kernel: neg.4
$region0: #{neg.4}
  #allocation0 [shape = 's32[1]{0}', space=sflag, size = 0x4, scoped, tag = 'scoped memory for neg.4']
  %s0 = inlined_call_operand.vmem [shape: f32[2,4], index: 0, kind: input, shape index: {}]
  %s1 = inlined_call_operand.vmem [shape: f32[2,4], index: 1, kind: output, shape index: {}]
  %v2 = vld [vmem:[%s0] sm:$0x3]
  %3 = xla_tuple %v2
  %4 = xla_tuple %3
  %v5 = vxor.u32 %v2, 2147483648
  %6 = xla_tuple %v5
  %7 = vst [vmem:[%s1] sm:$0x3] %v5

// kernel: custom-call.14
$region0: #{custom-call.14}
  %s0 = inlined_call_operand.vmem [shape: f32[2,4,4], index: 0, kind: input, shape index: {}]
  %s1 = inlined_call_operand.vmem [shape: f32[2,4,4], index: 1, kind: input, shape index: {}]
  %s2 = inlined_call_operand.vmem [shape: f32[2,4,4], index: 2, kind: output, shape index: {0}]
  %s3 = inlined_call_operand.vmem [shape: f32[2,4,4], index: 3, kind: output, shape index: {1}]
  %s4 = inlined_call_operand.vmem [shape: f32[2,4], index: 4, kind: output, shape index: {2}]
  %s5 = inlined_call_operand.vmem [shape: f32[2,4], index: 5, kind: output, shape index: {3}]
  %6 = xla_tuple %s2, %s3, %s4, %s5
  $region1: #{custom-call.14} parent=0
    #allocation0 [shape = 'u8[4096]{0}', space=vmem, size = 0x1000, scoped, tag = 'operand span for operand 0']
    #allocation1 [shape = 'u8[4096]{0}', space=vmem, size = 0x1000, scoped, tag = 'packed  for operand 0']
    #allocation2 [shape = 'u8[4096]{0}', space=vmem, size = 0x1000, scoped, tag = 'operand span for operand 1']
    #allocation3 [shape = 'u8[4096]{0}', space=vmem, size = 0x1000, scoped, tag = 'packed  for operand 1']
    #allocation4 [shape = 'u8[4096]{0}', space=vmem, size = 0x1000, scoped, tag = 'operand span for operand 2']
    #allocation5 [shape = 'u8[4096]{0}', space=vmem, size = 0x1000, scoped, tag = 'packed  for operand 2']
    #allocation6 [shape = 'u8[4096]{0}', space=vmem, size = 0x1000, scoped, tag = 'operand span for operand 3']
    #allocation7 [shape = 'u8[4096]{0}', space=vmem, size = 0x1000, scoped, tag = 'packed  for operand 3']
    #allocation8 [shape = 'u8[4096]{0}', space=vmem, size = 0x1000, scoped, tag = 'operand span for operand 4']
    #allocation9 [shape = 'u8[2048]{0}', space=vmem, size = 0x800, scoped, tag = 'packed  for operand 4']
    #allocation10 [shape = 'u8[4096]{0}', space=vmem, size = 0x1000, scoped, tag = 'operand span for operand 5']
    #allocation11 [shape = 'u8[2048]{0}', space=vmem, size = 0x800, scoped, tag = 'packed  for operand 5']
    loop: start=0, step=1, limit=4
    $region2: #{custom-call.14} parent=1 // loop_pre_header
      _
    $region3: #{custom-call.14} parent=1 // loop_header
      %s8 = sphi 0, %s12
      %p9 = scmp.ge.s32.totalorder %s8, 4
      %s15 = sphi 0, %s34
      %s16 = sphi 0, %s30
      %s17 = sphi 0, %s26
      %s18 = sphi 0, %s15
      %s19 = sphi 0, %s16
      %s20 = sphi 0, %s17
      %s21 = sphi 0, %s18
      %s22 = sphi 0, %s19
      %s23 = sphi 0, %s20
      %s49 = sphi 0, %s51
      %s52 = sphi 0, %s49
      %s53 = sphi 0, %s52
      %s69 = sphi 0, %s53
      %s87 = sphi 0, %s89
      %s90 = sphi 0, %s87
      %s91 = sphi 0, %s90
      %s107 = sphi 0, %s91
    $region4: #{custom-call.14} parent=1 // loop_header_branch
      %11 = sbr.rel (%p9) target = $region8
    $region5: #{custom-call.14} parent=1 // loop_body
      %s13 = ssub.s32 %s8, 1
      %s14 = ssub.s32 %s8, 2
      %s24 = sadd.s32 1, %s17
      %p25 = scmp.ge.s32.totalorder %s24, 1
      %s26 = scalar_select %p25, 0, %s24
      %s27 = sadd.s32 1, %s16
      %s28 = scalar_select %p25, %s27, %s16
      %p29 = scmp.ge.s32.totalorder %s28, 1
      %s30 = scalar_select %p29, 0, %s28
      %s31 = sadd.s32 1, %s15
      %s32 = scalar_select %p29, %s31, %s15
      %p33 = scmp.ge.s32.totalorder %s32, 2
      %s34 = scalar_select %p33, 0, %s32
      %p35 = scmp.lt.s32.totalorder %s15, 0
      %s36 = ssub.s32 0, %s15
      %s37 = scalar_select %p35, %s36, %s15
      %s38 = sshrl.u32 %s37, 3
      %s39 = ssub.s32 0, %s38
      %s40 = scalar_select %p35, %s39, %s38
      %p41 = scmp.lt.s32.totalorder %s34, 0
      %s42 = ssub.s32 0, %s34
      %s43 = scalar_select %p41, %s42, %s34
      %s44 = sshrl.u32 %s43, 3
      %s45 = ssub.s32 0, %s44
      %s46 = scalar_select %p41, %s45, %s44
      %s47 = ssub.s32 %s40, %s46
      %p48 = scmp.eq.s32.totalorder %s47, 0
      %s50 = sadd.s32 %s49, 1
      %s51 = scalar_select %p48, %s49, %s50
      %p54 = pneg %p48
      %p55 = scmp.eq.s32.totalorder %s8, 1
      %p56 = por %p54, %p55
      %p57 = scmp.ne.s32.totalorder %s49, %s52
      %p58 = scmp.eq.s32.totalorder %s8, 0
      %p59 = por %p57, %p58
      %p60 = scmp.ne.s32.totalorder %s49, %s52
      %p61 = scmp.eq.s32.totalorder %s13, 1
      %p62 = por %p60, %p61
      %p63 = scmp.ne.s32.totalorder %s52, %s53
      %p64 = scmp.eq.s32.totalorder %s13, 0
      %p65 = por %p63, %p64
      %p66 = scmp.ne.s32.totalorder %s52, %s53
      %p67 = scmp.eq.s32.totalorder %s14, 1
      %p68 = por %p66, %p67
      %p70 = scmp.ne.s32.totalorder %s53, %s69
      %p71 = scmp.eq.s32.totalorder %s14, 0
      %p72 = por %p70, %p71
      %p73 = scmp.lt.s32.totalorder %s15, 0
      %s74 = ssub.s32 0, %s15
      %s75 = scalar_select %p73, %s74, %s15
      %s76 = sshrl.u32 %s75, 3
      %s77 = ssub.s32 0, %s76
      %s78 = scalar_select %p73, %s77, %s76
      %p79 = scmp.lt.s32.totalorder %s34, 0
      %s80 = ssub.s32 0, %s34
      %s81 = scalar_select %p79, %s80, %s34
      %s82 = sshrl.u32 %s81, 3
      %s83 = ssub.s32 0, %s82
      %s84 = scalar_select %p79, %s83, %s82
      %s85 = ssub.s32 %s78, %s84
      %p86 = scmp.eq.s32.totalorder %s85, 0
      %s88 = sadd.s32 %s87, 1
      %s89 = scalar_select %p86, %s87, %s88
      %p92 = pneg %p86
      %p93 = scmp.eq.s32.totalorder %s8, 1
      %p94 = por %p92, %p93
      %p95 = scmp.ne.s32.totalorder %s87, %s90
      %p96 = scmp.eq.s32.totalorder %s8, 0
      %p97 = por %p95, %p96
      %p98 = scmp.ne.s32.totalorder %s87, %s90
      %p99 = scmp.eq.s32.totalorder %s13, 1
      %p100 = por %p98, %p99
      %p101 = scmp.ne.s32.totalorder %s90, %s91
      %p102 = scmp.eq.s32.totalorder %s13, 0
      %p103 = por %p101, %p102
      %p104 = scmp.ne.s32.totalorder %s90, %s91
      %p105 = scmp.eq.s32.totalorder %s14, 1
      %p106 = por %p104, %p105
      %p108 = scmp.ne.s32.totalorder %s91, %s107
      %p109 = scmp.eq.s32.totalorder %s14, 0
      %p110 = por %p108, %p109
      %p111 = scmp.le.s32.totalorder 1, %s8
      %p112 = scmp.lt.s32.totalorder %s8, 3
      %p113 = pnand %p111, %p112
      %p114 = pneg %p113
      // Predicated region
      $region9: #{custom-call.14} parent=5 // pred_check
        _
      $region10: #{custom-call.14} parent=5 // pred_check_branch
        %116 = sbr.rel (%p113) target = $region12
      $region11: #{custom-call.14} parent=5 // pred_region
        %s117 = ssub.s32 %s8, 1
      $region12: #{custom-call.14} parent=5 // pred_fallthru
        _
      %p118 = scmp.lt.s32.totalorder %s8, 2
      // Predicated region
      $region13: #{custom-call.14} parent=5 // pred_check
        %p119 = pneg %p118
      $region14: #{custom-call.14} parent=5 // pred_check_branch
        %121 = sbr.rel (%p119) target = $region16
      $region15: #{custom-call.14} parent=5 // pred_region
        %s122 = sand.u32 %s8, 1
        %s123 = sand.u32 %s8, 1
        %s124 = smul.addr %s123, 4
        %s125 = scalar_lea.vmem [#allocation1], %s124
        %s126 = sadd.s32 %s17, %s16
        %s127 = sadd.s32 %s126, %s15
        %s128 = smul.addr %s127, 4
        %s129 = scalar_lea.vmem %s0, %s128
        // Predicated region
        $region17: #{custom-call.14} parent=15 // pred_check
          _
        $region18: #{custom-call.14} parent=15 // pred_check_branch
          %131 = sbr.rel (0) target = $region20
        $region19: #{custom-call.14} parent=15 // pred_region
          // Predicated region
          $region21: #{custom-call.14} parent=19 // pred_check
            _
          $region22: #{custom-call.14} parent=19 // pred_check_branch
            %133 = sbr.rel target = $region24
          $region23: #{custom-call.14} parent=19 // pred_region
            // Predicated region
            $region36: #{custom-call.14} parent=23 // pred_check
              _
            $region37: #{custom-call.14} parent=23 // pred_check_branch
              %148 = sbr.rel (0) target = $region39
            $region38: #{custom-call.14} parent=23 // pred_region
              loop: start=0, step=1, limit=1
              $region40: #{custom-call.14} parent=38 // loop_pre_header
                _
              $region41: #{custom-call.14} parent=38 // loop_header
                %s151 = sphi 0, %s155
                %p152 = scmp.ge.s32.totalorder %s151, 1
                %s156 = sphi %s129, %s129
                %s157 = sphi %s125, %s125
              $region42: #{custom-call.14} parent=38 // loop_header_branch
                %154 = sbr.rel (%p152) target = $region46
              $region43: #{custom-call.14} parent=38 // loop_body
                %v158 = vld [vmem:[%s156] sm:$0xf]
                %159 = vst [vmem:[%s157] sm:$0xf] %v158
              $region44: #{custom-call.14} parent=38 // loop_footer
                %s155 = sadd.s32 1, %s151
              $region45: #{custom-call.14} parent=38 // loop_footer_branch
                %150 = sbr.rel target = $region41
              $region46: #{custom-call.14} parent=38 // loop_exit
                _
            $region39: #{custom-call.14} parent=23 // pred_fallthru
              _
          $region24: #{custom-call.14} parent=19 // pred_fallthru
            _
          // Predicated region
          $region25: #{custom-call.14} parent=19 // pred_check
            _
          $region26: #{custom-call.14} parent=19 // pred_check_branch
            %135 = sbr.rel (0) target = $region28
          $region27: #{custom-call.14} parent=19 // pred_region
            loop: start=0, step=1, limit=1
            $region29: #{custom-call.14} parent=27 // loop_pre_header
              _
            $region30: #{custom-call.14} parent=27 // loop_header
              %s138 = sphi 0, %s142
              %p139 = scmp.ge.s32.totalorder %s138, 1
              %s143 = sphi %s129, %s129
              %s144 = sphi %s125, %s125
            $region31: #{custom-call.14} parent=27 // loop_header_branch
              %141 = sbr.rel (%p139) target = $region35
            $region32: #{custom-call.14} parent=27 // loop_body
              %v145 = vld [vmem:[%s143] sm:$0xf]
              %146 = vst [vmem:[%s144] sm:$0xf] %v145
            $region33: #{custom-call.14} parent=27 // loop_footer
              %s142 = sadd.s32 1, %s138
            $region34: #{custom-call.14} parent=27 // loop_footer_branch
              %137 = sbr.rel target = $region30
            $region35: #{custom-call.14} parent=27 // loop_exit
              _
          $region28: #{custom-call.14} parent=19 // pred_fallthru
            _
        $region20: #{custom-call.14} parent=15 // pred_fallthru
          _
        %160 = vnop
        %s161 = sand.u32 %s8, 1
        %s162 = sand.u32 %s8, 1
        %s163 = smul.addr %s162, 4
        %s164 = scalar_lea.vmem [#allocation3], %s163
        %s165 = sadd.s32 %s17, %s16
        %s166 = sadd.s32 %s165, %s15
        %s167 = smul.addr %s166, 4
        %s168 = scalar_lea.vmem %s1, %s167
        // Predicated region
        $region47: #{custom-call.14} parent=15 // pred_check
          _
        $region48: #{custom-call.14} parent=15 // pred_check_branch
          %170 = sbr.rel (0) target = $region50
        $region49: #{custom-call.14} parent=15 // pred_region
          // Predicated region
          $region51: #{custom-call.14} parent=49 // pred_check
            _
          $region52: #{custom-call.14} parent=49 // pred_check_branch
            %172 = sbr.rel target = $region54
          $region53: #{custom-call.14} parent=49 // pred_region
            // Predicated region
            $region66: #{custom-call.14} parent=53 // pred_check
              _
            $region67: #{custom-call.14} parent=53 // pred_check_branch
              %187 = sbr.rel (0) target = $region69
            $region68: #{custom-call.14} parent=53 // pred_region
              loop: start=0, step=1, limit=1
              $region70: #{custom-call.14} parent=68 // loop_pre_header
                _
              $region71: #{custom-call.14} parent=68 // loop_header
                %s190 = sphi 0, %s194
                %p191 = scmp.ge.s32.totalorder %s190, 1
                %s195 = sphi %s168, %s168
                %s196 = sphi %s164, %s164
              $region72: #{custom-call.14} parent=68 // loop_header_branch
                %193 = sbr.rel (%p191) target = $region76
              $region73: #{custom-call.14} parent=68 // loop_body
                %v197 = vld [vmem:[%s195] sm:$0xf]
                %198 = vst [vmem:[%s196] sm:$0xf] %v197
              $region74: #{custom-call.14} parent=68 // loop_footer
                %s194 = sadd.s32 1, %s190
              $region75: #{custom-call.14} parent=68 // loop_footer_branch
                %189 = sbr.rel target = $region71
              $region76: #{custom-call.14} parent=68 // loop_exit
                _
            $region69: #{custom-call.14} parent=53 // pred_fallthru
              _
          $region54: #{custom-call.14} parent=49 // pred_fallthru
            _
          // Predicated region
          $region55: #{custom-call.14} parent=49 // pred_check
            _
          $region56: #{custom-call.14} parent=49 // pred_check_branch
            %174 = sbr.rel (0) target = $region58
          $region57: #{custom-call.14} parent=49 // pred_region
            loop: start=0, step=1, limit=1
            $region59: #{custom-call.14} parent=57 // loop_pre_header
              _
            $region60: #{custom-call.14} parent=57 // loop_header
              %s177 = sphi 0, %s181
              %p178 = scmp.ge.s32.totalorder %s177, 1
              %s182 = sphi %s168, %s168
              %s183 = sphi %s164, %s164
            $region61: #{custom-call.14} parent=57 // loop_header_branch
              %180 = sbr.rel (%p178) target = $region65
            $region62: #{custom-call.14} parent=57 // loop_body
              %v184 = vld [vmem:[%s182] sm:$0xf]
              %185 = vst [vmem:[%s183] sm:$0xf] %v184
            $region63: #{custom-call.14} parent=57 // loop_footer
              %s181 = sadd.s32 1, %s177
            $region64: #{custom-call.14} parent=57 // loop_footer_branch
              %176 = sbr.rel target = $region60
            $region65: #{custom-call.14} parent=57 // loop_exit
              _
          $region58: #{custom-call.14} parent=49 // pred_fallthru
            _
        $region50: #{custom-call.14} parent=15 // pred_fallthru
          _
        %199 = vnop
      $region16: #{custom-call.14} parent=5 // pred_fallthru
        _
      %p200 = scmp.le.s32.totalorder 1, %s8
      %p201 = scmp.lt.s32.totalorder %s8, 3
      %p202 = pnand %p200, %p201
      %p203 = pneg %p202
      // Predicated region
      $region77: #{custom-call.14} parent=5 // pred_check
        _
      $region78: #{custom-call.14} parent=5 // pred_check_branch
        %205 = sbr.rel (%p202) target = $region80
      $region79: #{custom-call.14} parent=5 // pred_region
        #allocation12 [shape = 'f32[4,128]{1,0}', space=vmem, size = 0x1000, scoped, tag = 'scratch for real Householder reflectors']
        #allocation13 [shape = 'f32[4,128]{1,0}', space=vmem, size = 0x1000, scoped, tag = 'scratch for imaginary Householder reflectors']
        %s206 = ssub.s32 %s8, 1
        %s207 = sand.u32 %s13, 1
        %s208 = sand.u32 %s13, 1
        %s209 = smul.addr %s208, 4
        %s210 = scalar_lea.vmem [#allocation1], %s209
        %s211 = sand.u32 %s13, 1
        %s212 = sand.u32 %s13, 1
        %s213 = smul.addr %s212, 4
        %s214 = scalar_lea.vmem [#allocation3], %s213
        %s215 = sand.u32 %s13, 1
        %s216 = sand.u32 %s13, 1
        %s217 = smul.addr %s216, 4
        %s218 = scalar_lea.vmem [#allocation1], %s217
        %s219 = sand.u32 %s13, 1
        %s220 = sand.u32 %s13, 1
        %s221 = smul.addr %s220, 4
        %s222 = scalar_lea.vmem [#allocation3], %s221
        %s223 = sand.u32 %s13, 1
        %s224 = sand.u32 %s13, 1
        %s225 = smul.addr %s224, 4
        %s226 = scalar_lea.vmem [#allocation5], %s225
        %s227 = sand.u32 %s13, 1
        %s228 = sand.u32 %s13, 1
        %s229 = smul.addr %s228, 4
        %s230 = scalar_lea.vmem [#allocation7], %s229
        %p231 = pneg %p65
        %p232 = pneg %p62
        %s233 = sand.u32 %s52, 1
        %s234 = sand.u32 %s52, 1
        %s235 = smul.addr %s234, 2
        %s236 = scalar_lea.vmem [#allocation9], %s235
        %p237 = pneg %p103
        %p238 = pneg %p100
        %s239 = sand.u32 %s90, 1
        %s240 = sand.u32 %s90, 1
        %s241 = smul.addr %s240, 2
        %s242 = scalar_lea.vmem [#allocation11], %s241
        %s244 = sshllo.u32 0, 4
        %v245 = vld [vmem:[%s218] sm:%s244]
        %246 = vst [vmem:[#allocation0] sm:%s244] %v245
        %s248 = sshllo.u32 0, 4
        %v249 = vld [vmem:[%s222] sm:%s248]
        %250 = vst [vmem:[#allocation2] sm:%s248] %v249
        %p251 = scmp.lt.s32.totalorder %s18, 0
        %s252 = ssub.s32 0, %s18
        %s253 = scalar_select %p251, %s252, %s18
        %s254 = sshrl.u32 %s253, 3
        %s255 = ssub.s32 0, %s254
        %s256 = scalar_select %p251, %s255, %s254
        %p257 = scmp.lt.s32.totalorder %s18, 0
        %s258 = ssub.s32 0, %s18
        %s259 = scalar_select %p257, %s258, %s18
        %s260 = sshrl.u32 %s259, 3
        %s261 = ssub.s32 0, %s260
        %s262 = scalar_select %p257, %s261, %s260
        %s263 = sand.u32 %s18, 7
        %s264 = scalar_lea.vmem [#allocation8], %s263
        %s265 = scalar_lea.vmem [#allocation10], %s263
        %v266 = vld [vmem:[#allocation0] sm:$0xff]
        %267 = vst [vmem:[#allocation4] sm:$0xff] %v266
        %v268 = vld [vmem:[#allocation2] sm:$0xff]
        %269 = vst [vmem:[#allocation6] sm:$0xff] %v268
        %270 = vst [vmem:[%s264] sm:$0x1] 0.0
        %271 = vst [vmem:[%s265] sm:$0x1] 0.0
        loop: start=0, step=1, limit=4
        $region81: #{custom-call.14} parent=79 // loop_pre_header
          _
        $region82: #{custom-call.14} parent=79 // loop_header
          %s273 = sphi 0, %s277
          %p274 = scmp.ge.s32.totalorder %s273, 4
        $region83: #{custom-call.14} parent=79 // loop_header_branch
          %276 = sbr.rel (%p274) target = $region87
        $region84: #{custom-call.14} parent=79 // loop_body
          %v278 = vld [vmem:[#allocation4] sm:$0xff]
          %v279 = vld [vmem:[#allocation6] sm:$0xff]
          %v280 = vlaneseq
          %v281 = vshrl.u32 %v280, 7
          %v283 = vstv %s273
          %vm284 = vcmp.gt.s32.totalorder %v281, %v283
          %vm285 = vcmp.lt.s32.totalorder %v281, 4
          %vm286 = vmand %vm284, %vm285
          %v287 = vsel %vm286, %v278, 0.0
          %v288 = vsel %vm286, %v279, 0.0
          %v289 = vxor.u32 %v288, 2147483648
          %290 = xla_tuple %v287, %v288
          %291 = xla_tuple %v287, %v289
          %v292 = vmul.f32 %v287, %v287
          %v293 = vmul.f32 %v288, %v289
          %v294 = vsub.f32 %v292, %v293
          %v295 = vmul.f32 %v287, %v289
          %v296 = vmul.f32 %v288, %v287
          %v297 = vadd.f32 %v295, %v296
          %298 = xla_tuple %v294, %v297
          %v299 = vrot.slane %v294, 4
          %v300 = vadd.f32 %v294, %v299
          %v301 = vrot.slane %v300, 2
          %v302 = vadd.f32 %v300, %v301
          %v303 = vrot.slane %v302, 1
          %v304 = vadd.f32 %v302, %v303
          %v305 = vrsqrt.pop %v304
          %v306 = vmul.f32 %v304, %v305
          %vm307 = vcmp.eq.f32.partialorder %v304, inf
          %v308 = vsel %vm307, %v304, %v306
          %vm309 = vcmp.eq.f32.partialorder %v304, 0.0
          %v310 = vand.u32 %v304, 2147483648
          %v311 = vsel %vm309, %v310, %v308
          %vm312 = vcmp.eq.f32.partialorder %v304, 0.0
          %s313 = sshrl.u32 %s273, 3
          %s314 = sand.u32 %s273, 7
          %s315 = smul.addr %s313, 8
          %s316 = sadd.s32 %s314, %s315
          %s317 = scalar_lea.vmem [#allocation4], %s316
          %s318 = scalar_lea.vmem [#allocation6], %s316
          %v319 = vld [vmem:[%s317] ss:$0 sm:$0xff]
          %v320 = vld [vmem:[%s318] ss:$0 sm:$0xff]
          %v321 = vand.u32 2147483647, %v319
          %v322 = vand.u32 2147483647, %v320
          %v323 = vmax.f32 %v321, %v322
          %v324 = vand.u32 2147483647, %v311
          %v325 = vmax.f32 %v323, %v324
          %v326 = vrcp.pop %v325
          %v327 = vmul.f32 %v321, %v326
          %v328 = vmul.f32 %v327, %v327
          %v329 = vrcp.pop %v325
          %v330 = vmul.f32 %v322, %v329
          %v331 = vmul.f32 %v330, %v330
          %v332 = vadd.f32 %v328, %v331
          %v333 = vrcp.pop %v325
          %v334 = vmul.f32 %v324, %v333
          %v335 = vmul.f32 %v334, %v334
          %v336 = vadd.f32 %v332, %v335
          %vm337 = vcmp.eq.f32.partialorder %v325, 0.0
          %v338 = vrsqrt.pop %v336
          %v339 = vmul.f32 %v336, %v338
          %vm340 = vcmp.eq.f32.partialorder %v336, inf
          %v341 = vsel %vm340, %v336, %v339
          %vm342 = vcmp.eq.f32.partialorder %v336, 0.0
          %v343 = vand.u32 %v336, 2147483648
          %v344 = vsel %vm342, %v343, %v341
          %v345 = vmul.f32 %v325, %v344
          %v346 = vsel %vm337, 0.0, %v345
          %vm347 = vcmp.lt.f32.partialorder %v319, 0.0
          %v348 = vxor.u32 %v346, 2147483648
          %v349 = vsel %vm347, %v346, %v348
          %v350 = vsub.f32 %v349, %v319
          %v351 = vrcp.pop %v349
          %v352 = vmul.f32 %v350, %v351
          %v353 = vxor.u32 %v320, 2147483648
          %v354 = vrcp.pop %v349
          %v355 = vmul.f32 %v353, %v354
          %vm356 = vcmp.eq.f32.partialorder %v320, 0.0
          %vm357 = vmand %vm312, %vm356
          %v358 = vsel %vm357, %v319, %v349
          %v359 = vsel %vm357, 0.0, %v352
          %v360 = vsel %vm357, 0.0, %v355
          %v361 = vsub.f32 %v319, %v358
          %s362 = smov [#allocation4]
          %s363 = smov [#allocation6]
          %v364 = vlaneseq
          %v365 = vshrl.u32 %v364, 7
          %v366 = vmov %v365
          %v367 = vld [vmem:[%s362] sm:$0xff]
          %v368 = vld [vmem:[%s363] sm:$0xff]
          %v370 = vstv %s273
          %vm371 = vcmp.gt.s32.totalorder %v366, %v370
          %vm372 = vcmp.lt.s32.totalorder %v366, 4
          %vm373 = vmand %vm371, %vm372
          %v374 = vsel %vm373, %v367, 0.0
          %v375 = vsel %vm373, %v368, 0.0
          %376 = xla_tuple %v374, %v375
          %377 = xla_tuple %v361, %v320
          %v378 = vand.u32 2147483647, %v361
          %v379 = vand.u32 2147483647, %v320
          %vm380 = vcmp.lt.f32.partialorder %v378, %v379
          %v381 = vsel %vm380, %v361, %v320
          %v382 = vsel %vm380, %v320, %v361
          %v383 = vrcp.pop %v382
          %v384 = vmul.f32 %v381, %v383
          %v385 = vmul.f32 %v384, %v361
          %v386 = vadd.f32 %v320, %v385
          %v387 = vmul.f32 %v384, %v320
          %v388 = vadd.f32 %v361, %v387
          %v389 = vmul.f32 %v384, %v374
          %v390 = vadd.f32 %v389, %v375
          %v391 = vmul.f32 %v384, %v375
          %v392 = vadd.f32 %v391, %v374
          %v393 = vsel %vm380, %v390, %v392
          %v394 = vsel %vm380, %v386, %v388
          %v395 = vrcp.pop %v394
          %v396 = vmul.f32 %v393, %v395
          %v397 = vmul.f32 %v384, %v375
          %v398 = vsub.f32 %v397, %v374
          %v399 = vmul.f32 %v384, %v374
          %v400 = vsub.f32 %v375, %v399
          %v401 = vsel %vm380, %v398, %v400
          %v402 = vmul.f32 %v401, %v395
          %vm403 = vcmp.eq.f32.partialorder %v361, 0.0
          %vm404 = vcmp.eq.f32.partialorder %v320, 0.0
          %vm405 = vmand %vm403, %vm404
          %v406 = vand.u32 %v374, 2147483648
          %v407 = vor.u32 inf, %v406
          %v408 = vand.u32 %v375, 2147483648
          %v409 = vor.u32 inf, %v408
          %vm410 = vcmp.eq.f32.partialorder %v374, 0.0
          %v411 = vsel %vm410, nan, %v407
          %vm412 = vcmp.eq.f32.partialorder %v375, 0.0
          %v413 = vsel %vm412, nan, %v409
          %v414 = vsel %vm405, %v411, %v396
          %v415 = vsel %vm405, %v413, %v402
          %416 = xla_tuple %v414, %v415
          %v417 = vsel %vm357, 0.0, %v414
          %v418 = vsel %vm357, 0.0, %v415
          %v419 = vstv %s273
          %v420 = vlaneseq
          %v421 = vand.u32 %v420, 127
          %vm422 = vcmp.eq.s32.totalorder %v421, %v419
          %v423 = vsel %vm422, %v417, 0.0
          %v424 = vsel %vm422, %v418, 0.0
          %425 = vadd.xlane.f32.xlu0 %v423
          %v426 = vpop.xlane.xlu0 %425
          %427 = vadd.xlane.f32.xlu0 %v424
          %v428 = vpop.xlane.xlu0 %427
          %429 = vst [vmem:[#allocation12] sm:$0xff] %v426
          %430 = vst [vmem:[#allocation13] sm:$0xff] %v428
          %s431 = scalar_lea.vmem [#allocation12], %s273
          %s432 = scalar_lea.vmem [#allocation13], %s273
          %433 = vst [vmem:[%s431] sm:$0x1] 1.0
          %434 = vst [vmem:[%s432] sm:$0x1] 0.0
          %v435 = vstv %s273
          %v436 = vlaneseq
          %v437 = vand.u32 %v436, 127
          %vm438 = vcmp.eq.s32.totalorder %v437, %v435
          %v439 = vsel %vm438, %v359, 0.0
          %v440 = vsel %vm438, %v360, 0.0
          %441 = vadd.xlane.f32.xlu0 %v439
          %v442 = vpop.xlane.xlu0 %441
          %443 = vadd.xlane.f32.xlu0 %v440
          %v444 = vpop.xlane.xlu0 %443
          %v445 = vstv %s273
          %v446 = vlaneseq
          %v447 = vand.u32 %v446, 127
          %vm448 = vcmp.eq.s32.totalorder %v447, %v445
          %v449 = vld [vmem:[%s264] ss:$0 sm:$0xff]
          %v450 = vld [vmem:[%s265] ss:$0 sm:$0xff]
          %v451 = vsel %vm448, %v442, %v449
          %v452 = vsel %vm448, %v444, %v450
          %453 = vst [vmem:[%s264] sm:$0x1] %v451
          %454 = vst [vmem:[%s265] sm:$0x1] %v452
          %s455 = smov [#allocation4]
          %s456 = smov [#allocation6]
          %s457 = smov [#allocation12]
          %s458 = smov [#allocation13]
          %v459 = vlaneseq
          %v460 = vshrl.u32 %v459, 7
          %v461 = vmov %v460
          %v463 = vld [vmem:[%s457] sm:$0xff]
          %v464 = vld [vmem:[%s458] sm:$0xff]
          %v465 = vld [vmem:[%s455] sm:$0xff]
          %v466 = vld [vmem:[%s456] sm:$0xff]
          %v467 = vxor.u32 %v464, 2147483648
          %468 = xla_tuple %v463, %v467
          %469 = xla_tuple %v465, %v466
          %v470 = vmul.f32 %v463, %v465
          %v471 = vmul.f32 %v467, %v466
          %v472 = vsub.f32 %v470, %v471
          %v473 = vmul.f32 %v463, %v466
          %v474 = vmul.f32 %v467, %v465
          %v475 = vadd.f32 %v473, %v474
          %476 = xla_tuple %v472, %v475
          %vm477 = vcmp.lt.s32.totalorder %v461, 4
          %v478 = vsel %vm477, %v472, 0.0
          %v479 = vsel %vm477, %v475, 0.0
          %v480 = vrot.slane %v478, 4
          %v481 = vadd.f32 %v478, %v480
          %v482 = vrot.slane %v481, 2
          %v483 = vadd.f32 %v481, %v482
          %v484 = vrot.slane %v483, 1
          %v485 = vadd.f32 %v483, %v484
          %v486 = vrot.slane %v479, 4
          %v487 = vadd.f32 %v479, %v486
          %v488 = vrot.slane %v487, 2
          %v489 = vadd.f32 %v487, %v488
          %v490 = vrot.slane %v489, 1
          %v491 = vadd.f32 %v489, %v490
          %s492 = smov %s455
          %s493 = smov %s456
          %s494 = smov %s457
          %s495 = smov %s458
          %v496 = vlaneseq
          %v497 = vshrl.u32 %v496, 7
          %v498 = vmov %v497
          %v499 = vxor.u32 %v444, 2147483648
          %500 = xla_tuple %v485, %v491
          %501 = xla_tuple %v442, %v499
          %v502 = vmul.f32 %v485, %v442
          %v503 = vmul.f32 %v491, %v499
          %v504 = vsub.f32 %v502, %v503
          %v505 = vmul.f32 %v485, %v499
          %v506 = vmul.f32 %v491, %v442
          %v507 = vadd.f32 %v505, %v506
          %508 = xla_tuple %v504, %v507
          %v510 = vlaneseq
          %v511 = vand.u32 %v510, 127
          %v512 = vld [vmem:[%s494] sm:$0xff]
          %v513 = vld [vmem:[%s495] sm:$0xff]
          %514 = xla_tuple %v512, %v513
          %515 = xla_tuple %v504, %v507
          %v516 = vmul.f32 %v512, %v504
          %v517 = vmul.f32 %v513, %v507
          %v518 = vsub.f32 %v516, %v517
          %v519 = vmul.f32 %v512, %v507
          %v520 = vmul.f32 %v513, %v504
          %v521 = vadd.f32 %v519, %v520
          %522 = xla_tuple %v518, %v521
          %v523 = vld [vmem:[%s492] sm:$0xff]
          %v524 = vld [vmem:[%s493] sm:$0xff]
          %v525 = vstv %s273
          %vm526 = vcmp.gt.s32.totalorder %v511, %v525
          %v527 = vsub.f32 %v523, %v518
          %v528 = vsub.f32 %v524, %v521
          %v529 = vsel %vm526, %v527, %v523
          %v530 = vsel %vm526, %v528, %v524
          %v531 = vstv %s273
          %v532 = vlaneseq
          %v533 = vand.u32 %v532, 127
          %vm534 = vcmp.eq.s32.totalorder %v533, %v531
          %v535 = vstv %s273
          %vm536 = vcmp.ge.s32.totalorder %v498, %v535
          %vm537 = vmand %vm534, %vm536
          %v538 = vsel %vm537, %v512, %v529
          %v539 = vsel %vm537, %v513, %v530
          %540 = vst [vmem:[%s492] sm:$0xff] %v538
          %541 = vst [vmem:[%s493] sm:$0xff] %v539
          %s542 = scalar_lea.vmem %s492, %s273
          %s543 = scalar_lea.vmem %s493, %s273
          %v544 = vld [vmem:[%s542] ss:$0 sm:$0xff]
          %v545 = vld [vmem:[%s543] ss:$0 sm:$0xff]
          %v546 = vstv %s273
          %v547 = vlaneseq
          %v548 = vand.u32 %v547, 127
          %vm549 = vcmp.eq.s32.totalorder %v548, %v546
          %v550 = vsel %vm549, %v358, %v544
          %v551 = vsel %vm549, 0.0, %v545
          %552 = vst [vmem:[%s542] sm:$0x1] %v550
          %553 = vst [vmem:[%s543] sm:$0x1] %v551
        $region85: #{custom-call.14} parent=79 // loop_footer
          %s277 = sadd.s32 1, %s273
        $region86: #{custom-call.14} parent=79 // loop_footer_branch
          %272 = sbr.rel target = $region82
        $region87: #{custom-call.14} parent=79 // loop_exit
          _
        %s555 = sshllo.u32 0, 4
        %v557 = vld [vmem:[#allocation4] sm:%s555]
        %s558 = sshllo.u32 0, 4
        %559 = vst [vmem:[%s226] sm:%s558] %v557
        %s561 = sshllo.u32 0, 4
        %v563 = vld [vmem:[#allocation6] sm:%s561]
        %s564 = sshllo.u32 0, 4
        %565 = vst [vmem:[%s230] sm:%s564] %v563
        %s567 = sshllo.u32 0, 2
        %v569 = vld [vmem:[#allocation8] sm:%s567]
        %s570 = sshllo.u32 0, 2
        %571 = vst [vmem:[%s236] sm:%s570] %v569
        %s573 = sshllo.u32 0, 2
        %v575 = vld [vmem:[#allocation10] sm:%s573]
        %s576 = sshllo.u32 0, 2
        %577 = vst [vmem:[%s242] sm:%s576] %v575
        %s578 = sand.u32 %s13, 1
        %s579 = sand.u32 %s13, 1
        %s580 = smul.addr %s579, 4
        %s581 = scalar_lea.vmem [#allocation5], %s580
        %s582 = sand.u32 %s13, 1
        %s583 = sand.u32 %s13, 1
        %s584 = smul.addr %s583, 4
        %s585 = scalar_lea.vmem [#allocation7], %s584
        %s586 = sand.u32 %s52, 1
        %s587 = sand.u32 %s52, 1
        %s588 = smul.addr %s587, 2
        %s589 = scalar_lea.vmem [#allocation9], %s588
        %s590 = sand.u32 %s90, 1
        %s591 = sand.u32 %s90, 1
        %s592 = smul.addr %s591, 2
        %s593 = scalar_lea.vmem [#allocation11], %s592
        %s594 = sadd.s32 %s20, %s19
        %s595 = sadd.s32 %s594, %s18
        %s596 = smul.addr %s595, 4
        %s597 = scalar_lea.vmem %s2, %s596
        // Predicated region
        $region88: #{custom-call.14} parent=79 // pred_check
          _
        $region89: #{custom-call.14} parent=79 // pred_check_branch
          %599 = sbr.rel (0) target = $region91
        $region90: #{custom-call.14} parent=79 // pred_region
          // Predicated region
          $region92: #{custom-call.14} parent=90 // pred_check
            _
          $region93: #{custom-call.14} parent=90 // pred_check_branch
            %601 = sbr.rel target = $region95
          $region94: #{custom-call.14} parent=90 // pred_region
            // Predicated region
            $region107: #{custom-call.14} parent=94 // pred_check
              _
            $region108: #{custom-call.14} parent=94 // pred_check_branch
              %616 = sbr.rel (0) target = $region110
            $region109: #{custom-call.14} parent=94 // pred_region
              loop: start=0, step=1, limit=1
              $region111: #{custom-call.14} parent=109 // loop_pre_header
                _
              $region112: #{custom-call.14} parent=109 // loop_header
                %s619 = sphi 0, %s623
                %p620 = scmp.ge.s32.totalorder %s619, 1
                %s624 = sphi %s581, %s581
                %s625 = sphi %s597, %s597
              $region113: #{custom-call.14} parent=109 // loop_header_branch
                %622 = sbr.rel (%p620) target = $region117
              $region114: #{custom-call.14} parent=109 // loop_body
                %v626 = vld [vmem:[%s624] sm:$0xf]
                %627 = vst [vmem:[%s625] sm:$0xf] %v626
              $region115: #{custom-call.14} parent=109 // loop_footer
                %s623 = sadd.s32 1, %s619
              $region116: #{custom-call.14} parent=109 // loop_footer_branch
                %618 = sbr.rel target = $region112
              $region117: #{custom-call.14} parent=109 // loop_exit
                _
            $region110: #{custom-call.14} parent=94 // pred_fallthru
              _
          $region95: #{custom-call.14} parent=90 // pred_fallthru
            _
          // Predicated region
          $region96: #{custom-call.14} parent=90 // pred_check
            _
          $region97: #{custom-call.14} parent=90 // pred_check_branch
            %603 = sbr.rel (0) target = $region99
          $region98: #{custom-call.14} parent=90 // pred_region
            loop: start=0, step=1, limit=1
            $region100: #{custom-call.14} parent=98 // loop_pre_header
              _
            $region101: #{custom-call.14} parent=98 // loop_header
              %s606 = sphi 0, %s610
              %p607 = scmp.ge.s32.totalorder %s606, 1
              %s611 = sphi %s581, %s581
              %s612 = sphi %s597, %s597
            $region102: #{custom-call.14} parent=98 // loop_header_branch
              %609 = sbr.rel (%p607) target = $region106
            $region103: #{custom-call.14} parent=98 // loop_body
              %v613 = vld [vmem:[%s611] sm:$0xf]
              %614 = vst [vmem:[%s612] sm:$0xf] %v613
            $region104: #{custom-call.14} parent=98 // loop_footer
              %s610 = sadd.s32 1, %s606
            $region105: #{custom-call.14} parent=98 // loop_footer_branch
              %605 = sbr.rel target = $region101
            $region106: #{custom-call.14} parent=98 // loop_exit
              _
          $region99: #{custom-call.14} parent=90 // pred_fallthru
            _
        $region91: #{custom-call.14} parent=79 // pred_fallthru
          _
        %628 = vnop
        %s629 = sadd.s32 %s20, %s19
        %s630 = sadd.s32 %s629, %s18
        %s631 = smul.addr %s630, 4
        %s632 = scalar_lea.vmem %s3, %s631
        // Predicated region
        $region118: #{custom-call.14} parent=79 // pred_check
          _
        $region119: #{custom-call.14} parent=79 // pred_check_branch
          %634 = sbr.rel (0) target = $region121
        $region120: #{custom-call.14} parent=79 // pred_region
          // Predicated region
          $region122: #{custom-call.14} parent=120 // pred_check
            _
          $region123: #{custom-call.14} parent=120 // pred_check_branch
            %636 = sbr.rel target = $region125
          $region124: #{custom-call.14} parent=120 // pred_region
            // Predicated region
            $region137: #{custom-call.14} parent=124 // pred_check
              _
            $region138: #{custom-call.14} parent=124 // pred_check_branch
              %651 = sbr.rel (0) target = $region140
            $region139: #{custom-call.14} parent=124 // pred_region
              loop: start=0, step=1, limit=1
              $region141: #{custom-call.14} parent=139 // loop_pre_header
                _
              $region142: #{custom-call.14} parent=139 // loop_header
                %s654 = sphi 0, %s658
                %p655 = scmp.ge.s32.totalorder %s654, 1
                %s659 = sphi %s585, %s585
                %s660 = sphi %s632, %s632
              $region143: #{custom-call.14} parent=139 // loop_header_branch
                %657 = sbr.rel (%p655) target = $region147
              $region144: #{custom-call.14} parent=139 // loop_body
                %v661 = vld [vmem:[%s659] sm:$0xf]
                %662 = vst [vmem:[%s660] sm:$0xf] %v661
              $region145: #{custom-call.14} parent=139 // loop_footer
                %s658 = sadd.s32 1, %s654
              $region146: #{custom-call.14} parent=139 // loop_footer_branch
                %653 = sbr.rel target = $region142
              $region147: #{custom-call.14} parent=139 // loop_exit
                _
            $region140: #{custom-call.14} parent=124 // pred_fallthru
              _
          $region125: #{custom-call.14} parent=120 // pred_fallthru
            _
          // Predicated region
          $region126: #{custom-call.14} parent=120 // pred_check
            _
          $region127: #{custom-call.14} parent=120 // pred_check_branch
            %638 = sbr.rel (0) target = $region129
          $region128: #{custom-call.14} parent=120 // pred_region
            loop: start=0, step=1, limit=1
            $region130: #{custom-call.14} parent=128 // loop_pre_header
              _
            $region131: #{custom-call.14} parent=128 // loop_header
              %s641 = sphi 0, %s645
              %p642 = scmp.ge.s32.totalorder %s641, 1
              %s646 = sphi %s585, %s585
              %s647 = sphi %s632, %s632
            $region132: #{custom-call.14} parent=128 // loop_header_branch
              %644 = sbr.rel (%p642) target = $region136
            $region133: #{custom-call.14} parent=128 // loop_body
              %v648 = vld [vmem:[%s646] sm:$0xf]
              %649 = vst [vmem:[%s647] sm:$0xf] %v648
            $region134: #{custom-call.14} parent=128 // loop_footer
              %s645 = sadd.s32 1, %s641
            $region135: #{custom-call.14} parent=128 // loop_footer_branch
              %640 = sbr.rel target = $region131
            $region136: #{custom-call.14} parent=128 // loop_exit
              _
          $region129: #{custom-call.14} parent=120 // pred_fallthru
            _
        $region121: #{custom-call.14} parent=79 // pred_fallthru
          _
        %663 = vnop
        // Predicated region
        $region148: #{custom-call.14} parent=79 // pred_check
          %p664 = pneg %p62
        $region149: #{custom-call.14} parent=79 // pred_check_branch
          %666 = sbr.rel (%p664) target = $region151
        $region150: #{custom-call.14} parent=79 // pred_region
          %p667 = scmp.lt.s32.totalorder %s18, 0
          %s668 = ssub.s32 0, %s18
          %s669 = scalar_select %p667, %s668, %s18
          %s670 = sshrl.u32 %s669, 3
          %s671 = ssub.s32 0, %s670
          %s672 = scalar_select %p667, %s671, %s670
          %s673 = smul.addr %s672, 2
          %s674 = scalar_lea.vmem %s4, %s673
          // Predicated region
          $region152: #{custom-call.14} parent=150 // pred_check
            _
          $region153: #{custom-call.14} parent=150 // pred_check_branch
            %676 = sbr.rel (0) target = $region155
          $region154: #{custom-call.14} parent=150 // pred_region
            // Predicated region
            $region156: #{custom-call.14} parent=154 // pred_check
              _
            $region157: #{custom-call.14} parent=154 // pred_check_branch
              %678 = sbr.rel target = $region159
            $region158: #{custom-call.14} parent=154 // pred_region
              // Predicated region
              $region171: #{custom-call.14} parent=158 // pred_check
                _
              $region172: #{custom-call.14} parent=158 // pred_check_branch
                %693 = sbr.rel (0) target = $region174
              $region173: #{custom-call.14} parent=158 // pred_region
                loop: start=0, step=1, limit=1
                $region175: #{custom-call.14} parent=173 // loop_pre_header
                  _
                $region176: #{custom-call.14} parent=173 // loop_header
                  %s696 = sphi 0, %s700
                  %p697 = scmp.ge.s32.totalorder %s696, 1
                  %s701 = sphi %s589, %s589
                  %s702 = sphi %s674, %s674
                $region177: #{custom-call.14} parent=173 // loop_header_branch
                  %699 = sbr.rel (%p697) target = $region181
                $region178: #{custom-call.14} parent=173 // loop_body
                  %v703 = vld [vmem:[%s701] sm:$0x3]
                  %704 = vst [vmem:[%s702] sm:$0x3] %v703
                $region179: #{custom-call.14} parent=173 // loop_footer
                  %s700 = sadd.s32 1, %s696
                $region180: #{custom-call.14} parent=173 // loop_footer_branch
                  %695 = sbr.rel target = $region176
                $region181: #{custom-call.14} parent=173 // loop_exit
                  _
              $region174: #{custom-call.14} parent=158 // pred_fallthru
                _
            $region159: #{custom-call.14} parent=154 // pred_fallthru
              _
            // Predicated region
            $region160: #{custom-call.14} parent=154 // pred_check
              _
            $region161: #{custom-call.14} parent=154 // pred_check_branch
              %680 = sbr.rel (0) target = $region163
            $region162: #{custom-call.14} parent=154 // pred_region
              loop: start=0, step=1, limit=1
              $region164: #{custom-call.14} parent=162 // loop_pre_header
                _
              $region165: #{custom-call.14} parent=162 // loop_header
                %s683 = sphi 0, %s687
                %p684 = scmp.ge.s32.totalorder %s683, 1
                %s688 = sphi %s589, %s589
                %s689 = sphi %s674, %s674
              $region166: #{custom-call.14} parent=162 // loop_header_branch
                %686 = sbr.rel (%p684) target = $region170
              $region167: #{custom-call.14} parent=162 // loop_body
                %v690 = vld [vmem:[%s688] sm:$0x3]
                %691 = vst [vmem:[%s689] sm:$0x3] %v690
              $region168: #{custom-call.14} parent=162 // loop_footer
                %s687 = sadd.s32 1, %s683
              $region169: #{custom-call.14} parent=162 // loop_footer_branch
                %682 = sbr.rel target = $region165
              $region170: #{custom-call.14} parent=162 // loop_exit
                _
            $region163: #{custom-call.14} parent=154 // pred_fallthru
              _
          $region155: #{custom-call.14} parent=150 // pred_fallthru
            _
          %705 = vnop
        $region151: #{custom-call.14} parent=79 // pred_fallthru
          _
        // Predicated region
        $region182: #{custom-call.14} parent=79 // pred_check
          %p706 = pneg %p100
        $region183: #{custom-call.14} parent=79 // pred_check_branch
          %708 = sbr.rel (%p706) target = $region185
        $region184: #{custom-call.14} parent=79 // pred_region
          %p709 = scmp.lt.s32.totalorder %s18, 0
          %s710 = ssub.s32 0, %s18
          %s711 = scalar_select %p709, %s710, %s18
          %s712 = sshrl.u32 %s711, 3
          %s713 = ssub.s32 0, %s712
          %s714 = scalar_select %p709, %s713, %s712
          %s715 = smul.addr %s714, 2
          %s716 = scalar_lea.vmem %s5, %s715
          // Predicated region
          $region186: #{custom-call.14} parent=184 // pred_check
            _
          $region187: #{custom-call.14} parent=184 // pred_check_branch
            %718 = sbr.rel (0) target = $region189
          $region188: #{custom-call.14} parent=184 // pred_region
            // Predicated region
            $region190: #{custom-call.14} parent=188 // pred_check
              _
            $region191: #{custom-call.14} parent=188 // pred_check_branch
              %720 = sbr.rel target = $region193
            $region192: #{custom-call.14} parent=188 // pred_region
              // Predicated region
              $region205: #{custom-call.14} parent=192 // pred_check
                _
              $region206: #{custom-call.14} parent=192 // pred_check_branch
                %735 = sbr.rel (0) target = $region208
              $region207: #{custom-call.14} parent=192 // pred_region
                loop: start=0, step=1, limit=1
                $region209: #{custom-call.14} parent=207 // loop_pre_header
                  _
                $region210: #{custom-call.14} parent=207 // loop_header
                  %s738 = sphi 0, %s742
                  %p739 = scmp.ge.s32.totalorder %s738, 1
                  %s743 = sphi %s593, %s593
                  %s744 = sphi %s716, %s716
                $region211: #{custom-call.14} parent=207 // loop_header_branch
                  %741 = sbr.rel (%p739) target = $region215
                $region212: #{custom-call.14} parent=207 // loop_body
                  %v745 = vld [vmem:[%s743] sm:$0x3]
                  %746 = vst [vmem:[%s744] sm:$0x3] %v745
                $region213: #{custom-call.14} parent=207 // loop_footer
                  %s742 = sadd.s32 1, %s738
                $region214: #{custom-call.14} parent=207 // loop_footer_branch
                  %737 = sbr.rel target = $region210
                $region215: #{custom-call.14} parent=207 // loop_exit
                  _
              $region208: #{custom-call.14} parent=192 // pred_fallthru
                _
            $region193: #{custom-call.14} parent=188 // pred_fallthru
              _
            // Predicated region
            $region194: #{custom-call.14} parent=188 // pred_check
              _
            $region195: #{custom-call.14} parent=188 // pred_check_branch
              %722 = sbr.rel (0) target = $region197
            $region196: #{custom-call.14} parent=188 // pred_region
              loop: start=0, step=1, limit=1
              $region198: #{custom-call.14} parent=196 // loop_pre_header
                _
              $region199: #{custom-call.14} parent=196 // loop_header
                %s725 = sphi 0, %s729
                %p726 = scmp.ge.s32.totalorder %s725, 1
                %s730 = sphi %s593, %s593
                %s731 = sphi %s716, %s716
              $region200: #{custom-call.14} parent=196 // loop_header_branch
                %728 = sbr.rel (%p726) target = $region204
              $region201: #{custom-call.14} parent=196 // loop_body
                %v732 = vld [vmem:[%s730] sm:$0x3]
                %733 = vst [vmem:[%s731] sm:$0x3] %v732
              $region202: #{custom-call.14} parent=196 // loop_footer
                %s729 = sadd.s32 1, %s725
              $region203: #{custom-call.14} parent=196 // loop_footer_branch
                %724 = sbr.rel target = $region199
              $region204: #{custom-call.14} parent=196 // loop_exit
                _
            $region197: #{custom-call.14} parent=188 // pred_fallthru
              _
          $region189: #{custom-call.14} parent=184 // pred_fallthru
            _
          %747 = vnop
        $region185: #{custom-call.14} parent=79 // pred_fallthru
          _
      $region80: #{custom-call.14} parent=5 // pred_fallthru
        _
      %p748 = scmp.le.s32.totalorder 2, %s8
      // Predicated region
      $region216: #{custom-call.14} parent=5 // pred_check
        %p749 = pneg %p748
      $region217: #{custom-call.14} parent=5 // pred_check_branch
        %751 = sbr.rel (%p749) target = $region219
      $region218: #{custom-call.14} parent=5 // pred_region
        %s752 = ssub.s32 %s8, 2
        %s753 = sand.u32 %s14, 1
        %s754 = sand.u32 %s14, 1
        %s755 = smul.addr %s754, 4
        %s756 = scalar_lea.vmem [#allocation5], %s755
        %s757 = sand.u32 %s14, 1
        %s758 = sand.u32 %s14, 1
        %s759 = smul.addr %s758, 4
        %s760 = scalar_lea.vmem [#allocation7], %s759
        // Predicated region
        $region220: #{custom-call.14} parent=218 // pred_check
          %p761 = pneg %p68
        $region221: #{custom-call.14} parent=218 // pred_check_branch
          %763 = sbr.rel (%p761) target = $region223
        $region222: #{custom-call.14} parent=218 // pred_region
          %s764 = sand.u32 %s53, 1
          %s765 = sand.u32 %s53, 1
          %s766 = smul.addr %s765, 2
          %s767 = scalar_lea.vmem [#allocation9], %s766
        $region223: #{custom-call.14} parent=218 // pred_fallthru
          _
        // Predicated region
        $region224: #{custom-call.14} parent=218 // pred_check
          %p768 = pneg %p106
        $region225: #{custom-call.14} parent=218 // pred_check_branch
          %770 = sbr.rel (%p768) target = $region227
        $region226: #{custom-call.14} parent=218 // pred_region
          %s771 = sand.u32 %s91, 1
          %s772 = sand.u32 %s91, 1
          %s773 = smul.addr %s772, 2
          %s774 = scalar_lea.vmem [#allocation11], %s773
        $region227: #{custom-call.14} parent=218 // pred_fallthru
          _
      $region219: #{custom-call.14} parent=5 // pred_fallthru
        _
    $region6: #{custom-call.14} parent=1 // loop_footer
      %s12 = sadd.s32 1, %s8
    $region7: #{custom-call.14} parent=1 // loop_footer_branch
      %7 = sbr.rel target = $region3
    $region8: #{custom-call.14} parent=1 // loop_exit
      _

// kernel: custom-call.16
$region0: #{custom-call.16}
  %s0 = inlined_call_operand.vmem [shape: f32[2,4,4], index: 0, kind: input, shape index: {}]
  %s1 = inlined_call_operand.vmem [shape: f32[2,4,4], index: 1, kind: input, shape index: {}]
  %s2 = inlined_call_operand.vmem [shape: f32[2,4,4], index: 2, kind: output, shape index: {0}]
  %s3 = inlined_call_operand.vmem [shape: f32[2,4,4], index: 3, kind: output, shape index: {1}]
  %4 = xla_tuple %s2, %s3
  $region1: #{custom-call.16} parent=0
    #allocation0 [shape = 'u8[4096]{0}', space=vmem, size = 0x1000, scoped, tag = 'operand span for operand 0']
    #allocation1 [shape = 'u8[4096]{0}', space=vmem, size = 0x1000, scoped, tag = 'packed  for operand 0']
    #allocation2 [shape = 'u8[4096]{0}', space=vmem, size = 0x1000, scoped, tag = 'operand span for operand 1']
    #allocation3 [shape = 'u8[4096]{0}', space=vmem, size = 0x1000, scoped, tag = 'packed  for operand 1']
    #allocation4 [shape = 'u8[4096]{0}', space=vmem, size = 0x1000, scoped, tag = 'operand span for operand 2']
    #allocation5 [shape = 'u8[4096]{0}', space=vmem, size = 0x1000, scoped, tag = 'packed  for operand 2']
    #allocation6 [shape = 'u8[4096]{0}', space=vmem, size = 0x1000, scoped, tag = 'operand span for operand 3']
    #allocation7 [shape = 'u8[4096]{0}', space=vmem, size = 0x1000, scoped, tag = 'packed  for operand 3']
    loop: start=0, step=1, limit=4
    $region2: #{custom-call.16} parent=1 // loop_pre_header
      _
    $region3: #{custom-call.16} parent=1 // loop_header
      %s6 = sphi 0, %s10
      %p7 = scmp.ge.s32.totalorder %s6, 4
    $region4: #{custom-call.16} parent=1 // loop_header_branch
      %9 = sbr.rel (%p7) target = $region8
    $region5: #{custom-call.16} parent=1 // loop_body
      %s11 = ssub.s32 %s6, 1
      %s12 = ssub.s32 %s6, 2
      %s13 = sadd.s32 %s6, 1
      %p14 = scmp.le.s32.totalorder 1, %s6
      %p15 = scmp.lt.s32.totalorder %s6, 3
      %p16 = pnand %p14, %p15
      %p17 = pneg %p16
      // Predicated region
      $region9: #{custom-call.16} parent=5 // pred_check
        _
      $region10: #{custom-call.16} parent=5 // pred_check_branch
        %19 = sbr.rel (%p16) target = $region12
      $region11: #{custom-call.16} parent=5 // pred_region
        %s20 = ssub.s32 %s6, 1
      $region12: #{custom-call.16} parent=5 // pred_fallthru
        _
      %p21 = scmp.lt.s32.totalorder %s6, 2
      // Predicated region
      $region13: #{custom-call.16} parent=5 // pred_check
        %p22 = pneg %p21
      $region14: #{custom-call.16} parent=5 // pred_check_branch
        %24 = sbr.rel (%p22) target = $region16
      $region15: #{custom-call.16} parent=5 // pred_region
        %s25 = sand.u32 %s6, 1
        %s26 = sand.u32 %s6, 1
        %s27 = smul.addr %s26, 4
        %s28 = scalar_lea.vmem [#allocation1], %s27
        %s29 = smul.addr %s6, 4
        %s30 = scalar_lea.vmem %s0, %s29
        // Predicated region
        $region17: #{custom-call.16} parent=15 // pred_check
          _
        $region18: #{custom-call.16} parent=15 // pred_check_branch
          %32 = sbr.rel (0) target = $region20
        $region19: #{custom-call.16} parent=15 // pred_region
          // Predicated region
          $region21: #{custom-call.16} parent=19 // pred_check
            _
          $region22: #{custom-call.16} parent=19 // pred_check_branch
            %34 = sbr.rel target = $region24
          $region23: #{custom-call.16} parent=19 // pred_region
            // Predicated region
            $region36: #{custom-call.16} parent=23 // pred_check
              _
            $region37: #{custom-call.16} parent=23 // pred_check_branch
              %49 = sbr.rel (0) target = $region39
            $region38: #{custom-call.16} parent=23 // pred_region
              loop: start=0, step=1, limit=1
              $region40: #{custom-call.16} parent=38 // loop_pre_header
                _
              $region41: #{custom-call.16} parent=38 // loop_header
                %s52 = sphi 0, %s56
                %p53 = scmp.ge.s32.totalorder %s52, 1
                %s57 = sphi %s30, %s30
                %s58 = sphi %s28, %s28
              $region42: #{custom-call.16} parent=38 // loop_header_branch
                %55 = sbr.rel (%p53) target = $region46
              $region43: #{custom-call.16} parent=38 // loop_body
                %v59 = vld [vmem:[%s57] sm:$0xf]
                %60 = vst [vmem:[%s58] sm:$0xf] %v59
              $region44: #{custom-call.16} parent=38 // loop_footer
                %s56 = sadd.s32 1, %s52
              $region45: #{custom-call.16} parent=38 // loop_footer_branch
                %51 = sbr.rel target = $region41
              $region46: #{custom-call.16} parent=38 // loop_exit
                _
            $region39: #{custom-call.16} parent=23 // pred_fallthru
              _
          $region24: #{custom-call.16} parent=19 // pred_fallthru
            _
          // Predicated region
          $region25: #{custom-call.16} parent=19 // pred_check
            _
          $region26: #{custom-call.16} parent=19 // pred_check_branch
            %36 = sbr.rel (0) target = $region28
          $region27: #{custom-call.16} parent=19 // pred_region
            loop: start=0, step=1, limit=1
            $region29: #{custom-call.16} parent=27 // loop_pre_header
              _
            $region30: #{custom-call.16} parent=27 // loop_header
              %s39 = sphi 0, %s43
              %p40 = scmp.ge.s32.totalorder %s39, 1
              %s44 = sphi %s30, %s30
              %s45 = sphi %s28, %s28
            $region31: #{custom-call.16} parent=27 // loop_header_branch
              %42 = sbr.rel (%p40) target = $region35
            $region32: #{custom-call.16} parent=27 // loop_body
              %v46 = vld [vmem:[%s44] sm:$0xf]
              %47 = vst [vmem:[%s45] sm:$0xf] %v46
            $region33: #{custom-call.16} parent=27 // loop_footer
              %s43 = sadd.s32 1, %s39
            $region34: #{custom-call.16} parent=27 // loop_footer_branch
              %38 = sbr.rel target = $region30
            $region35: #{custom-call.16} parent=27 // loop_exit
              _
          $region28: #{custom-call.16} parent=19 // pred_fallthru
            _
        $region20: #{custom-call.16} parent=15 // pred_fallthru
          _
        %61 = vnop
        %s62 = sand.u32 %s6, 1
        %s63 = sand.u32 %s6, 1
        %s64 = smul.addr %s63, 4
        %s65 = scalar_lea.vmem [#allocation3], %s64
        %s66 = smul.addr %s6, 4
        %s67 = scalar_lea.vmem %s1, %s66
        // Predicated region
        $region47: #{custom-call.16} parent=15 // pred_check
          _
        $region48: #{custom-call.16} parent=15 // pred_check_branch
          %69 = sbr.rel (0) target = $region50
        $region49: #{custom-call.16} parent=15 // pred_region
          // Predicated region
          $region51: #{custom-call.16} parent=49 // pred_check
            _
          $region52: #{custom-call.16} parent=49 // pred_check_branch
            %71 = sbr.rel target = $region54
          $region53: #{custom-call.16} parent=49 // pred_region
            // Predicated region
            $region66: #{custom-call.16} parent=53 // pred_check
              _
            $region67: #{custom-call.16} parent=53 // pred_check_branch
              %86 = sbr.rel (0) target = $region69
            $region68: #{custom-call.16} parent=53 // pred_region
              loop: start=0, step=1, limit=1
              $region70: #{custom-call.16} parent=68 // loop_pre_header
                _
              $region71: #{custom-call.16} parent=68 // loop_header
                %s89 = sphi 0, %s93
                %p90 = scmp.ge.s32.totalorder %s89, 1
                %s94 = sphi %s67, %s67
                %s95 = sphi %s65, %s65
              $region72: #{custom-call.16} parent=68 // loop_header_branch
                %92 = sbr.rel (%p90) target = $region76
              $region73: #{custom-call.16} parent=68 // loop_body
                %v96 = vld [vmem:[%s94] sm:$0xf]
                %97 = vst [vmem:[%s95] sm:$0xf] %v96
              $region74: #{custom-call.16} parent=68 // loop_footer
                %s93 = sadd.s32 1, %s89
              $region75: #{custom-call.16} parent=68 // loop_footer_branch
                %88 = sbr.rel target = $region71
              $region76: #{custom-call.16} parent=68 // loop_exit
                _
            $region69: #{custom-call.16} parent=53 // pred_fallthru
              _
          $region54: #{custom-call.16} parent=49 // pred_fallthru
            _
          // Predicated region
          $region55: #{custom-call.16} parent=49 // pred_check
            _
          $region56: #{custom-call.16} parent=49 // pred_check_branch
            %73 = sbr.rel (0) target = $region58
          $region57: #{custom-call.16} parent=49 // pred_region
            loop: start=0, step=1, limit=1
            $region59: #{custom-call.16} parent=57 // loop_pre_header
              _
            $region60: #{custom-call.16} parent=57 // loop_header
              %s76 = sphi 0, %s80
              %p77 = scmp.ge.s32.totalorder %s76, 1
              %s81 = sphi %s67, %s67
              %s82 = sphi %s65, %s65
            $region61: #{custom-call.16} parent=57 // loop_header_branch
              %79 = sbr.rel (%p77) target = $region65
            $region62: #{custom-call.16} parent=57 // loop_body
              %v83 = vld [vmem:[%s81] sm:$0xf]
              %84 = vst [vmem:[%s82] sm:$0xf] %v83
            $region63: #{custom-call.16} parent=57 // loop_footer
              %s80 = sadd.s32 1, %s76
            $region64: #{custom-call.16} parent=57 // loop_footer_branch
              %75 = sbr.rel target = $region60
            $region65: #{custom-call.16} parent=57 // loop_exit
              _
          $region58: #{custom-call.16} parent=49 // pred_fallthru
            _
        $region50: #{custom-call.16} parent=15 // pred_fallthru
          _
        %98 = vnop
      $region16: #{custom-call.16} parent=5 // pred_fallthru
        _
      %p99 = scmp.le.s32.totalorder 1, %s6
      %p100 = scmp.lt.s32.totalorder %s6, 3
      %p101 = pnand %p99, %p100
      %p102 = pneg %p101
      // Predicated region
      $region77: #{custom-call.16} parent=5 // pred_check
        _
      $region78: #{custom-call.16} parent=5 // pred_check_branch
        %104 = sbr.rel (%p101) target = $region80
      $region79: #{custom-call.16} parent=5 // pred_region
        %s105 = ssub.s32 %s6, 1
        %s106 = sand.u32 %s11, 1
        %s107 = sand.u32 %s11, 1
        %s108 = smul.addr %s107, 4
        %s109 = scalar_lea.vmem [#allocation1], %s108
        %s110 = sand.u32 %s11, 1
        %s111 = sand.u32 %s11, 1
        %s112 = smul.addr %s111, 4
        %s113 = scalar_lea.vmem [#allocation3], %s112
        %s114 = sand.u32 %s11, 1
        %s115 = sand.u32 %s11, 1
        %s116 = smul.addr %s115, 4
        %s117 = scalar_lea.vmem [#allocation1], %s116
        %s118 = sand.u32 %s11, 1
        %s119 = sand.u32 %s11, 1
        %s120 = smul.addr %s119, 4
        %s121 = scalar_lea.vmem [#allocation3], %s120
        %s122 = sand.u32 %s11, 1
        %s123 = sand.u32 %s11, 1
        %s124 = smul.addr %s123, 4
        %s125 = scalar_lea.vmem [#allocation5], %s124
        %s126 = sand.u32 %s11, 1
        %s127 = sand.u32 %s11, 1
        %s128 = smul.addr %s127, 4
        %s129 = scalar_lea.vmem [#allocation7], %s128
        %s131 = sshllo.u32 0, 4
        %v132 = vld [vmem:[%s117] sm:%s131]
        %133 = vst [vmem:[#allocation0] sm:%s131] %v132
        %s135 = sshllo.u32 0, 4
        %v136 = vld [vmem:[%s121] sm:%s135]
        %137 = vst [vmem:[#allocation2] sm:%s135] %v136
        %v138 = vlaneseq
        %v139 = vand.u32 %v138, 127
        %v140 = vlaneseq
        %v141 = vshrl.u32 %v140, 7
        %vm143 = vcmp.eq.s32.totalorder %v139, %v141
        %v144 = vld [vmem:[#allocation0] sm:$0xff]
        %v145 = vld [vmem:[#allocation2] sm:$0xff]
        %v146 = vlaneseq
        %v147 = vand.u32 %v146, 127
        %vm148 = vcmp.eq.s32.totalorder %v147, 0
        %v149 = vsel %vm148, %v144, 1.0
        %v150 = vsel %vm148, %v145, 0.0
        %v151 = vsel %vm143, %v149, 0.0
        %v152 = vsel %vm143, %v150, 0.0
        %s153 = scalar_lea.vmem [#allocation0], 1
        %s154 = scalar_lea.vmem [#allocation2], 1
        %v155 = vld [vmem:[%s153] ss:$0 sm:$0xff]
        %v156 = vld [vmem:[%s154] ss:$0 sm:$0xff]
        %vm157 = vcmask 31744
        %v158 = vsel %vm157, %v155, 0.0
        %v159 = vsel %vm157, %v156, 0.0
        %v160 = vlaneseq
        %v161 = vand.u32 %v160, 127
        %vm162 = vcmp.eq.s32.totalorder %v161, 1
        %163 = xla_tuple %v158, %v159
        %164 = xla_tuple %v151, %v152
        %v165 = vmul.f32 %v158, %v151
        %v166 = vmul.f32 %v159, %v152
        %v167 = vsub.f32 %v165, %v166
        %v168 = vmul.f32 %v158, %v152
        %v169 = vmul.f32 %v159, %v151
        %v170 = vadd.f32 %v168, %v169
        %171 = xla_tuple %v167, %v170
        %172 = vadd.xlane.f32.xlu0 %v167
        %v173 = vpop.xlane.xlu0 %172
        %174 = vadd.xlane.f32.xlu0 %v170
        %v175 = vpop.xlane.xlu0 %174
        %v176 = vsel %vm162, %v173, %v151
        %v177 = vsel %vm162, %v175, %v152
        %s178 = scalar_lea.vmem [#allocation0], 2
        %s179 = scalar_lea.vmem [#allocation2], 2
        %v180 = vld [vmem:[%s178] ss:$0 sm:$0xff]
        %v181 = vld [vmem:[%s179] ss:$0 sm:$0xff]
        %vm182 = vcmask 31744
        %v183 = vsel %vm182, %v180, 0.0
        %v184 = vsel %vm182, %v181, 0.0
        %v185 = vlaneseq
        %v186 = vand.u32 %v185, 127
        %vm187 = vcmp.eq.s32.totalorder %v186, 2
        %188 = xla_tuple %v183, %v184
        %189 = xla_tuple %v176, %v177
        %v190 = vmul.f32 %v183, %v176
        %v191 = vmul.f32 %v184, %v177
        %v192 = vsub.f32 %v190, %v191
        %v193 = vmul.f32 %v183, %v177
        %v194 = vmul.f32 %v184, %v176
        %v195 = vadd.f32 %v193, %v194
        %196 = xla_tuple %v192, %v195
        %197 = vadd.xlane.f32.xlu0 %v192
        %v198 = vpop.xlane.xlu0 %197
        %199 = vadd.xlane.f32.xlu0 %v195
        %v200 = vpop.xlane.xlu0 %199
        %v201 = vsel %vm187, %v198, %v176
        %v202 = vsel %vm187, %v200, %v177
        %s203 = scalar_lea.vmem [#allocation0], 3
        %s204 = scalar_lea.vmem [#allocation2], 3
        %v205 = vld [vmem:[%s203] ss:$0 sm:$0xff]
        %v206 = vld [vmem:[%s204] ss:$0 sm:$0xff]
        %vm207 = vcmask 31744
        %v208 = vsel %vm207, %v205, 0.0
        %v209 = vsel %vm207, %v206, 0.0
        %v210 = vlaneseq
        %v211 = vand.u32 %v210, 127
        %vm212 = vcmp.eq.s32.totalorder %v211, 3
        %213 = xla_tuple %v208, %v209
        %214 = xla_tuple %v201, %v202
        %v215 = vmul.f32 %v208, %v201
        %v216 = vmul.f32 %v209, %v202
        %v217 = vsub.f32 %v215, %v216
        %v218 = vmul.f32 %v208, %v202
        %v219 = vmul.f32 %v209, %v201
        %v220 = vadd.f32 %v218, %v219
        %221 = xla_tuple %v217, %v220
        %222 = vadd.xlane.f32.xlu0 %v217
        %v223 = vpop.xlane.xlu0 %222
        %224 = vadd.xlane.f32.xlu0 %v220
        %v225 = vpop.xlane.xlu0 %224
        %v226 = vsel %vm212, %v223, %v201
        %v227 = vsel %vm212, %v225, %v202
        %228 = vst [vmem:[#allocation4] sm:$0xff] %v226
        %229 = vst [vmem:[#allocation6] sm:$0xff] %v227
        %s231 = sshllo.u32 0, 4
        %v233 = vld [vmem:[#allocation4] sm:%s231]
        %s234 = sshllo.u32 0, 4
        %235 = vst [vmem:[%s125] sm:%s234] %v233
        %s237 = sshllo.u32 0, 4
        %v239 = vld [vmem:[#allocation6] sm:%s237]
        %s240 = sshllo.u32 0, 4
        %241 = vst [vmem:[%s129] sm:%s240] %v239
        %s242 = sand.u32 %s11, 1
        %s243 = sand.u32 %s11, 1
        %s244 = smul.addr %s243, 4
        %s245 = scalar_lea.vmem [#allocation5], %s244
        %s246 = sand.u32 %s11, 1
        %s247 = sand.u32 %s11, 1
        %s248 = smul.addr %s247, 4
        %s249 = scalar_lea.vmem [#allocation7], %s248
        %s250 = smul.addr %s11, 4
        %s251 = scalar_lea.vmem %s2, %s250
        // Predicated region
        $region81: #{custom-call.16} parent=79 // pred_check
          _
        $region82: #{custom-call.16} parent=79 // pred_check_branch
          %253 = sbr.rel (0) target = $region84
        $region83: #{custom-call.16} parent=79 // pred_region
          // Predicated region
          $region85: #{custom-call.16} parent=83 // pred_check
            _
          $region86: #{custom-call.16} parent=83 // pred_check_branch
            %255 = sbr.rel target = $region88
          $region87: #{custom-call.16} parent=83 // pred_region
            // Predicated region
            $region100: #{custom-call.16} parent=87 // pred_check
              _
            $region101: #{custom-call.16} parent=87 // pred_check_branch
              %270 = sbr.rel (0) target = $region103
            $region102: #{custom-call.16} parent=87 // pred_region
              loop: start=0, step=1, limit=1
              $region104: #{custom-call.16} parent=102 // loop_pre_header
                _
              $region105: #{custom-call.16} parent=102 // loop_header
                %s273 = sphi 0, %s277
                %p274 = scmp.ge.s32.totalorder %s273, 1
                %s278 = sphi %s245, %s245
                %s279 = sphi %s251, %s251
              $region106: #{custom-call.16} parent=102 // loop_header_branch
                %276 = sbr.rel (%p274) target = $region110
              $region107: #{custom-call.16} parent=102 // loop_body
                %v280 = vld [vmem:[%s278] sm:$0xf]
                %281 = vst [vmem:[%s279] sm:$0xf] %v280
              $region108: #{custom-call.16} parent=102 // loop_footer
                %s277 = sadd.s32 1, %s273
              $region109: #{custom-call.16} parent=102 // loop_footer_branch
                %272 = sbr.rel target = $region105
              $region110: #{custom-call.16} parent=102 // loop_exit
                _
            $region103: #{custom-call.16} parent=87 // pred_fallthru
              _
          $region88: #{custom-call.16} parent=83 // pred_fallthru
            _
          // Predicated region
          $region89: #{custom-call.16} parent=83 // pred_check
            _
          $region90: #{custom-call.16} parent=83 // pred_check_branch
            %257 = sbr.rel (0) target = $region92
          $region91: #{custom-call.16} parent=83 // pred_region
            loop: start=0, step=1, limit=1
            $region93: #{custom-call.16} parent=91 // loop_pre_header
              _
            $region94: #{custom-call.16} parent=91 // loop_header
              %s260 = sphi 0, %s264
              %p261 = scmp.ge.s32.totalorder %s260, 1
              %s265 = sphi %s245, %s245
              %s266 = sphi %s251, %s251
            $region95: #{custom-call.16} parent=91 // loop_header_branch
              %263 = sbr.rel (%p261) target = $region99
            $region96: #{custom-call.16} parent=91 // loop_body
              %v267 = vld [vmem:[%s265] sm:$0xf]
              %268 = vst [vmem:[%s266] sm:$0xf] %v267
            $region97: #{custom-call.16} parent=91 // loop_footer
              %s264 = sadd.s32 1, %s260
            $region98: #{custom-call.16} parent=91 // loop_footer_branch
              %259 = sbr.rel target = $region94
            $region99: #{custom-call.16} parent=91 // loop_exit
              _
          $region92: #{custom-call.16} parent=83 // pred_fallthru
            _
        $region84: #{custom-call.16} parent=79 // pred_fallthru
          _
        %282 = vnop
        %s283 = smul.addr %s11, 4
        %s284 = scalar_lea.vmem %s3, %s283
        // Predicated region
        $region111: #{custom-call.16} parent=79 // pred_check
          _
        $region112: #{custom-call.16} parent=79 // pred_check_branch
          %286 = sbr.rel (0) target = $region114
        $region113: #{custom-call.16} parent=79 // pred_region
          // Predicated region
          $region115: #{custom-call.16} parent=113 // pred_check
            _
          $region116: #{custom-call.16} parent=113 // pred_check_branch
            %288 = sbr.rel target = $region118
          $region117: #{custom-call.16} parent=113 // pred_region
            // Predicated region
            $region130: #{custom-call.16} parent=117 // pred_check
              _
            $region131: #{custom-call.16} parent=117 // pred_check_branch
              %303 = sbr.rel (0) target = $region133
            $region132: #{custom-call.16} parent=117 // pred_region
              loop: start=0, step=1, limit=1
              $region134: #{custom-call.16} parent=132 // loop_pre_header
                _
              $region135: #{custom-call.16} parent=132 // loop_header
                %s306 = sphi 0, %s310
                %p307 = scmp.ge.s32.totalorder %s306, 1
                %s311 = sphi %s249, %s249
                %s312 = sphi %s284, %s284
              $region136: #{custom-call.16} parent=132 // loop_header_branch
                %309 = sbr.rel (%p307) target = $region140
              $region137: #{custom-call.16} parent=132 // loop_body
                %v313 = vld [vmem:[%s311] sm:$0xf]
                %314 = vst [vmem:[%s312] sm:$0xf] %v313
              $region138: #{custom-call.16} parent=132 // loop_footer
                %s310 = sadd.s32 1, %s306
              $region139: #{custom-call.16} parent=132 // loop_footer_branch
                %305 = sbr.rel target = $region135
              $region140: #{custom-call.16} parent=132 // loop_exit
                _
            $region133: #{custom-call.16} parent=117 // pred_fallthru
              _
          $region118: #{custom-call.16} parent=113 // pred_fallthru
            _
          // Predicated region
          $region119: #{custom-call.16} parent=113 // pred_check
            _
          $region120: #{custom-call.16} parent=113 // pred_check_branch
            %290 = sbr.rel (0) target = $region122
          $region121: #{custom-call.16} parent=113 // pred_region
            loop: start=0, step=1, limit=1
            $region123: #{custom-call.16} parent=121 // loop_pre_header
              _
            $region124: #{custom-call.16} parent=121 // loop_header
              %s293 = sphi 0, %s297
              %p294 = scmp.ge.s32.totalorder %s293, 1
              %s298 = sphi %s249, %s249
              %s299 = sphi %s284, %s284
            $region125: #{custom-call.16} parent=121 // loop_header_branch
              %296 = sbr.rel (%p294) target = $region129
            $region126: #{custom-call.16} parent=121 // loop_body
              %v300 = vld [vmem:[%s298] sm:$0xf]
              %301 = vst [vmem:[%s299] sm:$0xf] %v300
            $region127: #{custom-call.16} parent=121 // loop_footer
              %s297 = sadd.s32 1, %s293
            $region128: #{custom-call.16} parent=121 // loop_footer_branch
              %292 = sbr.rel target = $region124
            $region129: #{custom-call.16} parent=121 // loop_exit
              _
          $region122: #{custom-call.16} parent=113 // pred_fallthru
            _
        $region114: #{custom-call.16} parent=79 // pred_fallthru
          _
        %315 = vnop
      $region80: #{custom-call.16} parent=5 // pred_fallthru
        _
      %p316 = scmp.le.s32.totalorder 2, %s6
      // Predicated region
      $region141: #{custom-call.16} parent=5 // pred_check
        %p317 = pneg %p316
      $region142: #{custom-call.16} parent=5 // pred_check_branch
        %319 = sbr.rel (%p317) target = $region144
      $region143: #{custom-call.16} parent=5 // pred_region
        %s320 = ssub.s32 %s6, 2
        %s321 = sand.u32 %s12, 1
        %s322 = sand.u32 %s12, 1
        %s323 = smul.addr %s322, 4
        %s324 = scalar_lea.vmem [#allocation5], %s323
        %s325 = sand.u32 %s12, 1
        %s326 = sand.u32 %s12, 1
        %s327 = smul.addr %s326, 4
        %s328 = scalar_lea.vmem [#allocation7], %s327
      $region144: #{custom-call.16} parent=5 // pred_fallthru
        _
    $region6: #{custom-call.16} parent=1 // loop_footer
      %s10 = sadd.s32 1, %s6
    $region7: #{custom-call.16} parent=1 // loop_footer_branch
      %5 = sbr.rel target = $region3
    $region8: #{custom-call.16} parent=1 // loop_exit
      _

// kernel: custom-call.7
$region0: #{custom-call.7}
  %s0 = inlined_call_operand.hbm [shape: c64[4], index: 0, kind: input, shape index: {}]
  %s1 = inlined_call_operand.vmem [shape: f32[4], index: 1, kind: output, shape index: {}]
  %s2 = scalar_lea.hbm %s0, 16
  $region1: #{custom-call.7} parent=0
    #allocation0 [shape = 's32[1]{0}', space=sflag, size = 0x4, scoped, tag = 'scoped memory for custom-call.7']
    %3 = vsyncpa [#allocation0], 0
    %s4 = sshll.u32 %s1, 4
    %s5 = int_to_ptr.vmem [resolvable:$true] %s4
    %7 = dma.hbm_to_vmem [thread:$0]  %s2, 16, %s5, [#allocation0]
    %8 = dma.done [#allocation0], 16
    %9 = vsyncpa [#allocation0], 1

// kernel: custom-call.6
$region0: #{custom-call.6}
  %s0 = inlined_call_operand.hbm [shape: c64[4], index: 0, kind: input, shape index: {}]
  %s1 = inlined_call_operand.vmem [shape: f32[4], index: 1, kind: output, shape index: {}]
  $region1: #{custom-call.6} parent=0
    #allocation0 [shape = 's32[1]{0}', space=sflag, size = 0x4, scoped, tag = 'scoped memory for custom-call.6']
    %2 = vsyncpa [#allocation0], 0
    %s3 = sshll.u32 %s1, 4
    %s4 = int_to_ptr.vmem [resolvable:$true] %s3
    %6 = dma.hbm_to_vmem [thread:$0]  %s0, 16, %s4, [#allocation0]
    %7 = dma.done [#allocation0], 16
    %8 = vsyncpa [#allocation0], 1

// kernel: reverse
$region0: #{reverse}
  %s0 = inlined_call_operand.vmem [shape: f32[2,4], index: 0, kind: input, shape index: {}]
  %s1 = inlined_call_operand.vmem [shape: f32[2,4], index: 1, kind: output, shape index: {}]
  $region1: #{reverse} parent=0
    #allocation0 [shape = 'u8[8192]{0}', space=vmem, size = 0x2000, scoped, tag = 'operand span for operand 0']
    #allocation1 [shape = 'u8[4096]{0}', space=vmem, size = 0x1000, scoped, tag = 'packed  for operand 0']
    #allocation2 [shape = 'u8[4096]{0}', space=vmem, size = 0x1000, scoped, tag = 'operand span for operand 1']
    #allocation3 [shape = 'u8[2048]{0}', space=vmem, size = 0x800, scoped, tag = 'packed  for operand 1']
    %s2 = scalar_lea.vmem [#allocation1], 4
    // Predicated region
    $region2: #{reverse} parent=1 // pred_check
      _
    $region3: #{reverse} parent=1 // pred_check_branch
      %4 = sbr.rel (0) target = $region5
    $region4: #{reverse} parent=1 // pred_region
      // Predicated region
      $region6: #{reverse} parent=4 // pred_check
        _
      $region7: #{reverse} parent=4 // pred_check_branch
        %6 = sbr.rel target = $region9
      $region8: #{reverse} parent=4 // pred_region
        // Predicated region
        $region21: #{reverse} parent=8 // pred_check
          _
        $region22: #{reverse} parent=8 // pred_check_branch
          %21 = sbr.rel (0) target = $region24
        $region23: #{reverse} parent=8 // pred_region
          loop: start=0, step=1, limit=1
          $region25: #{reverse} parent=23 // loop_pre_header
            _
          $region26: #{reverse} parent=23 // loop_header
            %s24 = sphi 0, %s28
            %p25 = scmp.ge.s32.totalorder %s24, 1
            %s29 = sphi %s0, %s0
            %s30 = sphi %s2, %s2
          $region27: #{reverse} parent=23 // loop_header_branch
            %27 = sbr.rel (%p25) target = $region31
          $region28: #{reverse} parent=23 // loop_body
            %v31 = vld [vmem:[%s29] sm:$0xf]
            %32 = vst [vmem:[%s30] sm:$0xf] %v31
          $region29: #{reverse} parent=23 // loop_footer
            %s28 = sadd.s32 1, %s24
          $region30: #{reverse} parent=23 // loop_footer_branch
            %23 = sbr.rel target = $region26
          $region31: #{reverse} parent=23 // loop_exit
            _
        $region24: #{reverse} parent=8 // pred_fallthru
          _
      $region9: #{reverse} parent=4 // pred_fallthru
        _
      // Predicated region
      $region10: #{reverse} parent=4 // pred_check
        _
      $region11: #{reverse} parent=4 // pred_check_branch
        %8 = sbr.rel (0) target = $region13
      $region12: #{reverse} parent=4 // pred_region
        loop: start=0, step=1, limit=1
        $region14: #{reverse} parent=12 // loop_pre_header
          _
        $region15: #{reverse} parent=12 // loop_header
          %s11 = sphi 0, %s15
          %p12 = scmp.ge.s32.totalorder %s11, 1
          %s16 = sphi %s0, %s0
          %s17 = sphi %s2, %s2
        $region16: #{reverse} parent=12 // loop_header_branch
          %14 = sbr.rel (%p12) target = $region20
        $region17: #{reverse} parent=12 // loop_body
          %v18 = vld [vmem:[%s16] sm:$0xf]
          %19 = vst [vmem:[%s17] sm:$0xf] %v18
        $region18: #{reverse} parent=12 // loop_footer
          %s15 = sadd.s32 1, %s11
        $region19: #{reverse} parent=12 // loop_footer_branch
          %10 = sbr.rel target = $region15
        $region20: #{reverse} parent=12 // loop_exit
          _
      $region13: #{reverse} parent=4 // pred_fallthru
        _
    $region5: #{reverse} parent=1 // pred_fallthru
      _
    %33 = vnop
    %s35 = sshllo.u32 0, 4
    %s36 = scalar_lea.vmem [#allocation1], 4
    %v37 = vld [vmem:[%s36] sm:%s35]
    %s38 = scalar_lea.vmem [#allocation0], 8
    %39 = vst [vmem:[%s38] sm:%s35] %v37
    %v40 = vld [vmem:[#allocation1] sm:%s35]
    %41 = vst [vmem:[#allocation0] sm:%s35] %v40
    %s42 = scalar_lea.vmem [#allocation0], 7
    %v43 = vld [vmem:[%s42] ss:$-1 sm:$0xff]
    %v44 = vrot.slane %v43, 4
    %45 = vst [vmem:[#allocation2] sm:$0xff] %v44
    %s46 = scalar_lea.vmem [#allocation0], 8
    %s47 = scalar_lea.vmem %s46, 7 [#allocation0]
    %v48 = vld [vmem:[%s47] ss:$-1 sm:$0xff]
    %v49 = vrot.slane %v48, 4
    %v50 = vlaneseq
    %v51 = vshrl.u32 %v50, 7
    %vm52 = vcmp.lt.s32.totalorder %v51, 4
    %53 = vst.msk [vmem:[#allocation2] sm:$0xff] %vm52, %v49
    %s55 = sshllo.u32 0, 4
    %v57 = vld [vmem:[#allocation2] sm:%s55]
    %s58 = sshllo.u32 0, 4
    %59 = vst [vmem:[#allocation3] sm:%s58] %v57
    // Predicated region
    $region32: #{reverse} parent=1 // pred_check
      _
    $region33: #{reverse} parent=1 // pred_check_branch
      %61 = sbr.rel (0) target = $region35
    $region34: #{reverse} parent=1 // pred_region
      // Predicated region
      $region36: #{reverse} parent=34 // pred_check
        _
      $region37: #{reverse} parent=34 // pred_check_branch
        %63 = sbr.rel target = $region39
      $region38: #{reverse} parent=34 // pred_region
        // Predicated region
        $region51: #{reverse} parent=38 // pred_check
          _
        $region52: #{reverse} parent=38 // pred_check_branch
          %78 = sbr.rel (0) target = $region54
        $region53: #{reverse} parent=38 // pred_region
          loop: start=0, step=1, limit=1
          $region55: #{reverse} parent=53 // loop_pre_header
            _
          $region56: #{reverse} parent=53 // loop_header
            %s81 = sphi 0, %s85
            %p82 = scmp.ge.s32.totalorder %s81, 1
            %s86 = sphi [#allocation3], [#allocation3]
            %s87 = sphi %s1, %s1
          $region57: #{reverse} parent=53 // loop_header_branch
            %84 = sbr.rel (%p82) target = $region61
          $region58: #{reverse} parent=53 // loop_body
            %v88 = vld [vmem:[%s86] sm:$0xf]
            %89 = vst [vmem:[%s87] sm:$0xf] %v88
          $region59: #{reverse} parent=53 // loop_footer
            %s85 = sadd.s32 1, %s81
          $region60: #{reverse} parent=53 // loop_footer_branch
            %80 = sbr.rel target = $region56
          $region61: #{reverse} parent=53 // loop_exit
            _
        $region54: #{reverse} parent=38 // pred_fallthru
          _
      $region39: #{reverse} parent=34 // pred_fallthru
        _
      // Predicated region
      $region40: #{reverse} parent=34 // pred_check
        _
      $region41: #{reverse} parent=34 // pred_check_branch
        %65 = sbr.rel (0) target = $region43
      $region42: #{reverse} parent=34 // pred_region
        loop: start=0, step=1, limit=1
        $region44: #{reverse} parent=42 // loop_pre_header
          _
        $region45: #{reverse} parent=42 // loop_header
          %s68 = sphi 0, %s72
          %p69 = scmp.ge.s32.totalorder %s68, 1
          %s73 = sphi [#allocation3], [#allocation3]
          %s74 = sphi %s1, %s1
        $region46: #{reverse} parent=42 // loop_header_branch
          %71 = sbr.rel (%p69) target = $region50
        $region47: #{reverse} parent=42 // loop_body
          %v75 = vld [vmem:[%s73] sm:$0xf]
          %76 = vst [vmem:[%s74] sm:$0xf] %v75
        $region48: #{reverse} parent=42 // loop_footer
          %s72 = sadd.s32 1, %s68
        $region49: #{reverse} parent=42 // loop_footer_branch
          %67 = sbr.rel target = $region45
        $region50: #{reverse} parent=42 // loop_exit
          _
      $region43: #{reverse} parent=34 // pred_fallthru
        _
    $region35: #{reverse} parent=1 // pred_fallthru
      _
    %90 = vnop

// kernel: custom-call.8
$region0: #{custom-call.8}
  %s0 = inlined_call_operand.vmem [shape: f32[2,4], index: 0, kind: input, shape index: {}]
  %s1 = inlined_call_operand.vmem [shape: f32[2,4], index: 1, kind: input, shape index: {}]
  %s2 = inlined_call_operand.vmem [shape: c64[2,4], index: 2, kind: output, shape index: {}]
  %s4 = scalar_lea.vmem %s2, 4
  %v5 = vld [vmem:[%s0] sm:$0xf]
  %vm6 = vcmask 1043456
  %7 = vst.msk [vmem:[%s2] sm:$0xff] %vm6, %v5
  %v8 = vld [vmem:[%s1] sm:$0xf]
  %vm9 = vcmask 1043456
  %10 = vst.msk [vmem:[%s4] sm:$0xff] %vm9, %v8

// kernel: custom-call.9
$region0: #{custom-call.9}
  %s0 = inlined_call_operand.vmem [shape: f32[2,4], index: 0, kind: input, shape index: {}]
  %s1 = inlined_call_operand.vmem [shape: f32[2,4], index: 1, kind: input, shape index: {}]
  %s2 = inlined_call_operand.hbm [shape: c64[2,4], index: 2, kind: output, shape index: {}]
  %s3 = scalar_lea.hbm %s2, 32
  $region1: #{custom-call.9} parent=0
    #allocation0 [shape = 's32[1]{0}', space=sflag, size = 0x4, scoped, tag = 'scoped memory for custom-call.9']
    %4 = vsyncpa [#allocation0], 0
    %s5 = sshll.u32 %s0, 4
    %s6 = int_to_ptr.vmem [resolvable:$true] %s5
    %8 = dma.vmem_to_hbm [thread:$0]  %s6, 32, %s2, [#allocation0]
    %9 = dma.done [#allocation0], 32
    %10 = vsyncpa [#allocation0], 1
  $region2: #{custom-call.9} parent=0
    #allocation1 [shape = 's32[1]{0}', space=sflag, size = 0x4, scoped, tag = 'scoped memory for custom-call.9']
    %11 = vsyncpa [#allocation1], 0
    %s12 = sshll.u32 %s1, 4
    %s13 = int_to_ptr.vmem [resolvable:$true] %s12
    %15 = dma.vmem_to_hbm [thread:$0]  %s13, 32, %s3, [#allocation1]
    %16 = dma.done [#allocation1], 32
    %17 = vsyncpa [#allocation1], 1

// kernel: kbest_detector_forward.1
$region0: #{kbest_detector_forward.1}
  #allocation0 [shape = 'u32[]', space=smem, size = 0x4, offset = 0x4, fixed_abs, tag = 'smem constant byte address 0x4 - core index']
  #allocation1 [shape = 'u32[144,128]{1,0:T(1,128)}', space=vmem, size = 0x12000, scoped, tag = 'internal scratch']
  %s0 = inlined_call_operand.vmem [shape: f32[8,128], index: 0, kind: input, shape index: {}]
  %s1 = inlined_call_operand.vmem [shape: f32[32,128], index: 1, kind: input, shape index: {}]
  %s2 = inlined_call_operand.vmem [shape: f32[8,1], index: 2, kind: input, shape index: {}]
  %s3 = inlined_call_operand.vmem [shape: f32[8,128], index: 3, kind: output, shape index: {}]
  %s4 = sld [smem:[#allocation0]]
  $region22: #{kbest_detector_forward.1} parent=0
    _
  %s6 = ssub.s32 1, %s4
  %s7 = scalar_select 0, %s6, %s4
  // Predicated region
  $region2: #{kbest_detector_forward.1} parent=0 // pred_check
    _
  $region3: #{kbest_detector_forward.1} parent=0 // pred_check_branch
    %9 = sbr.rel (0) target = $region5
  $region4: #{kbest_detector_forward.1} parent=0 // pred_region
    _
  $region5: #{kbest_detector_forward.1} parent=0 // pred_fallthru
    _
  // Predicated region
  $region6: #{kbest_detector_forward.1} parent=0 // pred_check
    _
  $region7: #{kbest_detector_forward.1} parent=0 // pred_check_branch
    %11 = sbr.rel (0) target = $region9
  $region8: #{kbest_detector_forward.1} parent=0 // pred_region
    _
  $region9: #{kbest_detector_forward.1} parent=0 // pred_fallthru
    _
  // Predicated region
  $region10: #{kbest_detector_forward.1} parent=0 // pred_check
    _
  $region11: #{kbest_detector_forward.1} parent=0 // pred_check_branch
    %13 = sbr.rel (0) target = $region13
  $region12: #{kbest_detector_forward.1} parent=0 // pred_region
    _
  $region13: #{kbest_detector_forward.1} parent=0 // pred_fallthru
    _
  %v14 = vld [vmem:[%s2] sm:$0xf]
  %v15 = vld [vmem:[%s2 + $0x4] sm:$0xf]
  %v16 = vld [vmem:[%s0 + $0x3] sm:$0x1]
  %v17 = vld [vmem:[%s0 + $0x7] sm:$0x1]
  %v18 = vld [vmem:[%s1 + $0xf] sm:$0x1]
  %v19 = vld [vmem:[%s1 + $0x1f] sm:$0x1]
  %v20 = vlaneseq
  %v21 = vshrl.u32 %v20, 7
  %v22 = vsub.s32 0, %v21
  %v23 = vrot.slane %v18, %v22
  %25 = vset.pattern.permute.xlu0 0
  %26 = vperm.xlu0 %25, %v14
  %v27 = vpop.permute.xlu0 %26
  %v29 = vmul.f32 %v23, %v27
  %v30 = vlaneseq
  %v31 = vshrl.u32 %v30, 7
  %v32 = vsub.s32 0, %v31
  %v33 = vrot.slane %v19, %v32
  %35 = vset.pattern.permute.xlu0 0
  %36 = vperm.xlu0 %35, %v15
  %v37 = vpop.permute.xlu0 %36
  %v39 = vmul.f32 %v33, %v37
  %v40 = vsub.f32 %v29, %v39
  %v41 = vmul.f32 %v23, %v37
  %v42 = vmul.f32 %v33, %v27
  %v43 = vadd.f32 %v41, %v42
  %v44 = vlaneseq
  %v45 = vshrl.u32 %v44, 7
  %v46 = vsub.s32 0, %v45
  %v47 = vrot.slane %v16, %v46
  %v48 = vsub.f32 %v47, %v40
  %v49 = vlaneseq
  %v50 = vshrl.u32 %v49, 7
  %v51 = vsub.s32 0, %v50
  %v52 = vrot.slane %v17, %v51
  %v53 = vsub.f32 %v52, %v43
  %v54 = vmul.f32 %v48, %v48
  %v55 = vadd.f32 %v54, 0.0
  %v56 = vmul.f32 %v53, %v53
  %v57 = vadd.f32 %v55, %v56
  %v58 = vlaneseq
  %v59 = vshrl.u32 %v58, 7
  %v60 = vcvt.s32.f32 %v59
  %vm61 = vcmask 1043456
  %v62 = vsel %vm61, %v57, inf
  %v63 = vrot.slane %v62, 4
  %v64 = vmin.f32 %v62, %v63
  %v65 = vrot.slane %v64, 2
  %v66 = vmin.f32 %v64, %v65
  %v67 = vrot.slane %v66, 1
  %v68 = vmin.f32 %v66, %v67
  %vm69 = vcmp.eq.f32.partialorder %v57, %v68
  %v70 = vsel %vm69, %v60, 4.0
  %v71 = vsel %vm61, %v70, inf
  %v72 = vrot.slane %v71, 4
  %v73 = vmin.f32 %v71, %v72
  %v74 = vrot.slane %v73, 2
  %v75 = vmin.f32 %v73, %v74
  %v76 = vrot.slane %v75, 1
  %v77 = vmin.f32 %v75, %v76
  %vm78 = vcmp.eq.f32.partialorder %v60, %v77
  %v79 = vsel %vm78, 1, 0
  %v80 = vcvt.s32.f32 %v79
  %v81 = vadd.f32 %v80, 0.0
  %v82 = vmul.f32 %v81, %v27
  %v83 = vsel %vm61, %v82, 0.0
  %v84 = vrot.slane %v83, 4
  %v85 = vadd.f32 %v83, %v84
  %v86 = vrot.slane %v85, 2
  %v87 = vadd.f32 %v85, %v86
  %v88 = vrot.slane %v87, 1
  %v89 = vadd.f32 %v87, %v88
  %v90 = vmul.f32 %v81, %v37
  %v91 = vsel %vm61, %v90, 0.0
  %v92 = vrot.slane %v91, 4
  %v93 = vadd.f32 %v91, %v92
  %v94 = vrot.slane %v93, 2
  %v95 = vadd.f32 %v93, %v94
  %v96 = vrot.slane %v95, 1
  %v97 = vadd.f32 %v95, %v96
  %vm98 = vcmp.gt.f32.partialorder %v80, 0.0
  %v99 = vsel %vm98, inf, %v57
  %v100 = vsel %vm61, %v99, inf
  %v101 = vrot.slane %v100, 4
  %v102 = vmin.f32 %v100, %v101
  %v103 = vrot.slane %v102, 2
  %v104 = vmin.f32 %v102, %v103
  %v105 = vrot.slane %v104, 1
  %v106 = vmin.f32 %v104, %v105
  %vm107 = vcmp.eq.f32.partialorder %v99, %v106
  %v108 = vsel %vm107, %v60, 4.0
  %v109 = vsel %vm61, %v108, inf
  %v110 = vrot.slane %v109, 4
  %v111 = vmin.f32 %v109, %v110
  %v112 = vrot.slane %v111, 2
  %v113 = vmin.f32 %v111, %v112
  %v114 = vrot.slane %v113, 1
  %v115 = vmin.f32 %v113, %v114
  %vm116 = vcmp.eq.f32.partialorder %v60, %v115
  %v117 = vsel %vm116, 1, 0
  %v118 = vcvt.s32.f32 %v117
  %v119 = vadd.f32 %v118, 0.0
  %v120 = vmul.f32 %v119, %v27
  %v121 = vsel %vm61, %v120, 0.0
  %v122 = vrot.slane %v121, 4
  %v123 = vadd.f32 %v121, %v122
  %v124 = vrot.slane %v123, 2
  %v125 = vadd.f32 %v123, %v124
  %v126 = vrot.slane %v125, 1
  %v127 = vadd.f32 %v125, %v126
  %v128 = vmul.f32 %v119, %v37
  %v129 = vsel %vm61, %v128, 0.0
  %v130 = vrot.slane %v129, 4
  %v131 = vadd.f32 %v129, %v130
  %v132 = vrot.slane %v131, 2
  %v133 = vadd.f32 %v131, %v132
  %v134 = vrot.slane %v133, 1
  %v135 = vadd.f32 %v133, %v134
  %vm136 = vcmp.gt.f32.partialorder %v118, 0.0
  %v137 = vsel %vm136, inf, %v99
  %v138 = vsel %vm61, %v137, inf
  %v139 = vrot.slane %v138, 4
  %v140 = vmin.f32 %v138, %v139
  %v141 = vrot.slane %v140, 2
  %v142 = vmin.f32 %v140, %v141
  %v143 = vrot.slane %v142, 1
  %v144 = vmin.f32 %v142, %v143
  %vm145 = vcmp.eq.f32.partialorder %v137, %v144
  %v146 = vsel %vm145, %v60, 4.0
  %v147 = vsel %vm61, %v146, inf
  %v148 = vrot.slane %v147, 4
  %v149 = vmin.f32 %v147, %v148
  %v150 = vrot.slane %v149, 2
  %v151 = vmin.f32 %v149, %v150
  %v152 = vrot.slane %v151, 1
  %v153 = vmin.f32 %v151, %v152
  %vm154 = vcmp.eq.f32.partialorder %v60, %v153
  %v155 = vsel %vm154, 1, 0
  %v156 = vcvt.s32.f32 %v155
  %v157 = vadd.f32 %v156, 0.0
  %v158 = vmul.f32 %v157, %v27
  %v159 = vsel %vm61, %v158, 0.0
  %v160 = vrot.slane %v159, 4
  %v161 = vadd.f32 %v159, %v160
  %v162 = vrot.slane %v161, 2
  %v163 = vadd.f32 %v161, %v162
  %v164 = vrot.slane %v163, 1
  %v165 = vadd.f32 %v163, %v164
  %v166 = vmul.f32 %v157, %v37
  %v167 = vsel %vm61, %v166, 0.0
  %v168 = vrot.slane %v167, 4
  %v169 = vadd.f32 %v167, %v168
  %v170 = vrot.slane %v169, 2
  %v171 = vadd.f32 %v169, %v170
  %v172 = vrot.slane %v171, 1
  %v173 = vadd.f32 %v171, %v172
  %vm174 = vcmp.gt.f32.partialorder %v156, 0.0
  %v175 = vsel %vm174, inf, %v137
  %v176 = vsel %vm61, %v175, inf
  %v177 = vrot.slane %v176, 4
  %v178 = vmin.f32 %v176, %v177
  %v179 = vrot.slane %v178, 2
  %v180 = vmin.f32 %v178, %v179
  %v181 = vrot.slane %v180, 1
  %v182 = vmin.f32 %v180, %v181
  %vm183 = vcmp.eq.f32.partialorder %v175, %v182
  %v184 = vsel %vm183, %v60, 4.0
  %v185 = vsel %vm61, %v184, inf
  %v186 = vrot.slane %v185, 4
  %v187 = vmin.f32 %v185, %v186
  %v188 = vrot.slane %v187, 2
  %v189 = vmin.f32 %v187, %v188
  %v190 = vrot.slane %v189, 1
  %v191 = vmin.f32 %v189, %v190
  %vm192 = vcmp.eq.f32.partialorder %v60, %v191
  %v193 = vsel %vm192, 1, 0
  %v194 = vcvt.s32.f32 %v193
  %v195 = vadd.f32 %v194, 0.0
  %v196 = vmul.f32 %v195, %v27
  %v197 = vsel %vm61, %v196, 0.0
  %v198 = vrot.slane %v197, 4
  %v199 = vadd.f32 %v197, %v198
  %v200 = vrot.slane %v199, 2
  %v201 = vadd.f32 %v199, %v200
  %v202 = vrot.slane %v201, 1
  %v203 = vadd.f32 %v201, %v202
  %v204 = vmul.f32 %v195, %v37
  %v205 = vsel %vm61, %v204, 0.0
  %v206 = vrot.slane %v205, 4
  %v207 = vadd.f32 %v205, %v206
  %v208 = vrot.slane %v207, 2
  %v209 = vadd.f32 %v207, %v208
  %v210 = vrot.slane %v209, 1
  %v211 = vadd.f32 %v209, %v210
  %vm212 = vcmask 1040384
  %v213 = vsel %vm212, %v68, %v106
  %vm214 = vcmask 1041408
  %v215 = vsel %vm214, %v213, %v144
  %vm216 = vcmask 1042432
  %v217 = vsel %vm216, %v215, %v182
  %v218 = vsel %vm212, %v89, %v127
  %v219 = vsel %vm214, %v218, %v165
  %v220 = vsel %vm216, %v219, %v203
  %v221 = vsel %vm212, %v97, %v135
  %v222 = vsel %vm214, %v221, %v173
  %v223 = vsel %vm216, %v222, %v211
  %v224 = vld [vmem:[%s0 + $0x2] sm:$0x1]
  %v225 = vlaneseq
  %v226 = vshrl.u32 %v225, 7
  %v227 = vsub.s32 0, %v226
  %v228 = vrot.slane %v224, %v227
  %v229 = vld [vmem:[%s0 + $0x6] sm:$0x1]
  %v230 = vlaneseq
  %v231 = vshrl.u32 %v230, 7
  %v232 = vsub.s32 0, %v231
  %v233 = vrot.slane %v229, %v232
  %v234 = vld [vmem:[%s1 + $0xb] sm:$0x1]
  %v235 = vld [vmem:[%s1 + $0x1b] sm:$0x1]
  %v236 = vlaneseq
  %v237 = vshrl.u32 %v236, 7
  %v238 = vsub.s32 0, %v237
  %v239 = vrot.slane %v234, %v238
  %v240 = vmul.f32 %v239, %v220
  %v241 = vlaneseq
  %v242 = vshrl.u32 %v241, 7
  %v243 = vsub.s32 0, %v242
  %v244 = vrot.slane %v235, %v243
  %v245 = vmul.f32 %v244, %v223
  %v246 = vsub.f32 %v240, %v245
  %v247 = vsub.f32 %v228, %v246
  %v248 = vmul.f32 %v239, %v223
  %v249 = vmul.f32 %v244, %v220
  %v250 = vadd.f32 %v248, %v249
  %v251 = vsub.f32 %v233, %v250
  %v252 = vld [vmem:[%s1 + $0xa] sm:$0x1]
  %v253 = vld [vmem:[%s1 + $0x1a] sm:$0x1]
  %v254 = vlaneseq
  %v255 = vshrl.u32 %v254, 7
  %v256 = vsub.s32 0, %v255
  %v257 = vrot.slane %v252, %v256
  %v258 = vmul.f32 %v257, %v27
  %v259 = vlaneseq
  %v260 = vshrl.u32 %v259, 7
  %v261 = vsub.s32 0, %v260
  %v262 = vrot.slane %v253, %v261
  %v263 = vmul.f32 %v262, %v37
  %v264 = vsub.f32 %v258, %v263
  %v265 = vmul.f32 %v257, %v37
  %v266 = vmul.f32 %v262, %v27
  %v267 = vadd.f32 %v265, %v266
  %v270 = vunpack.c.l.s4 1966171168
  %v271 = vunpack.c.0.s8 %v270
  %v272 = vlaneseq
  %v273 = vshrl.u32 %v272, 7
  %v274 = vsub.s32 %v271, %v273
  %v275 = vrot.slane %v247, %v274
  %v276 = vcombine.high %v275, %v275
  %v278 = vunpack.c.l.s4 1966171168
  %v279 = vunpack.c.0.s8 %v278
  %v280 = vlaneseq
  %v281 = vshrl.u32 %v280, 7
  %v282 = vsub.s32 %v279, %v281
  %v283 = vrot.slane %v275, %v282
  %v285 = vunpack.c.l.s4 1966171168
  %v286 = vunpack.c.0.s8 %v285
  %v287 = vlaneseq
  %v288 = vshrl.u32 %v287, 7
  %v289 = vsub.s32 %v286, %v288
  %v290 = vrot.slane %v276, %v289
  %v291 = vcombine.high %v283, %v283
  %v292 = vcombine.high %v290, %v290
  %v293 = vlaneseq
  %v294 = vshrl.u32 %v293, 7
  %v295 = vsub.s32 0, %v294
  %v296 = vrot.slane %v283, %v295
  %v297 = vlaneseq
  %v298 = vshrl.u32 %v297, 7
  %v299 = vsub.s32 0, %v298
  %v300 = vrot.slane %v290, %v299
  %v301 = vlaneseq
  %v302 = vshrl.u32 %v301, 7
  %v303 = vsub.s32 0, %v302
  %v304 = vrot.slane %v291, %v303
  %v305 = vlaneseq
  %v306 = vshrl.u32 %v305, 7
  %v307 = vsub.s32 0, %v306
  %v308 = vrot.slane %v292, %v307
  %v313 = vsub.f32 %v296, %v264
  %v314 = vsub.f32 %v300, %v264
  %v315 = vsub.f32 %v304, %v264
  %v316 = vsub.f32 %v308, %v264
  %v319 = vunpack.c.l.s4 1966171168
  %v320 = vunpack.c.0.s8 %v319
  %v321 = vlaneseq
  %v322 = vshrl.u32 %v321, 7
  %v323 = vsub.s32 %v320, %v322
  %v324 = vrot.slane %v251, %v323
  %v325 = vcombine.high %v324, %v324
  %v327 = vunpack.c.l.s4 1966171168
  %v328 = vunpack.c.0.s8 %v327
  %v329 = vlaneseq
  %v330 = vshrl.u32 %v329, 7
  %v331 = vsub.s32 %v328, %v330
  %v332 = vrot.slane %v324, %v331
  %v334 = vunpack.c.l.s4 1966171168
  %v335 = vunpack.c.0.s8 %v334
  %v336 = vlaneseq
  %v337 = vshrl.u32 %v336, 7
  %v338 = vsub.s32 %v335, %v337
  %v339 = vrot.slane %v325, %v338
  %v340 = vcombine.high %v332, %v332
  %v341 = vcombine.high %v339, %v339
  %v342 = vlaneseq
  %v343 = vshrl.u32 %v342, 7
  %v344 = vsub.s32 0, %v343
  %v345 = vrot.slane %v332, %v344
  %v346 = vlaneseq
  %v347 = vshrl.u32 %v346, 7
  %v348 = vsub.s32 0, %v347
  %v349 = vrot.slane %v339, %v348
  %v350 = vlaneseq
  %v351 = vshrl.u32 %v350, 7
  %v352 = vsub.s32 0, %v351
  %v353 = vrot.slane %v340, %v352
  %v354 = vlaneseq
  %v355 = vshrl.u32 %v354, 7
  %v356 = vsub.s32 0, %v355
  %v357 = vrot.slane %v341, %v356
  %v362 = vsub.f32 %v345, %v267
  %v363 = vsub.f32 %v349, %v267
  %v364 = vsub.f32 %v353, %v267
  %v365 = vsub.f32 %v357, %v267
  %v368 = vunpack.c.l.s4 1966171168
  %v369 = vunpack.c.0.s8 %v368
  %v370 = vlaneseq
  %v371 = vshrl.u32 %v370, 7
  %v372 = vsub.s32 %v369, %v371
  %v373 = vrot.slane %v217, %v372
  %v374 = vcombine.high %v373, %v373
  %v376 = vunpack.c.l.s4 1966171168
  %v377 = vunpack.c.0.s8 %v376
  %v378 = vlaneseq
  %v379 = vshrl.u32 %v378, 7
  %v380 = vsub.s32 %v377, %v379
  %v381 = vrot.slane %v373, %v380
  %v383 = vunpack.c.l.s4 1966171168
  %v384 = vunpack.c.0.s8 %v383
  %v385 = vlaneseq
  %v386 = vshrl.u32 %v385, 7
  %v387 = vsub.s32 %v384, %v386
  %v388 = vrot.slane %v374, %v387
  %v389 = vcombine.high %v381, %v381
  %v390 = vcombine.high %v388, %v388
  %v391 = vmul.f32 %v313, %v313
  %v392 = vmul.f32 %v314, %v314
  %v393 = vmul.f32 %v315, %v315
  %v394 = vmul.f32 %v316, %v316
  %v395 = vlaneseq
  %v396 = vshrl.u32 %v395, 7
  %v397 = vsub.s32 0, %v396
  %v398 = vrot.slane %v381, %v397
  %v399 = vlaneseq
  %v400 = vshrl.u32 %v399, 7
  %v401 = vsub.s32 0, %v400
  %v402 = vrot.slane %v388, %v401
  %v403 = vlaneseq
  %v404 = vshrl.u32 %v403, 7
  %v405 = vsub.s32 0, %v404
  %v406 = vrot.slane %v389, %v405
  %v407 = vlaneseq
  %v408 = vshrl.u32 %v407, 7
  %v409 = vsub.s32 0, %v408
  %v410 = vrot.slane %v390, %v409
  %v415 = vadd.f32 %v398, %v391
  %v416 = vadd.f32 %v402, %v392
  %v417 = vadd.f32 %v406, %v393
  %v418 = vadd.f32 %v410, %v394
  %v419 = vmul.f32 %v362, %v362
  %v420 = vmul.f32 %v363, %v363
  %v421 = vmul.f32 %v364, %v364
  %v422 = vmul.f32 %v365, %v365
  %v423 = vadd.f32 %v415, %v419
  %v424 = vadd.f32 %v416, %v420
  %v425 = vadd.f32 %v417, %v421
  %v426 = vadd.f32 %v418, %v422
  %v427 = vadd.s32 %v59, 4
  %v428 = vadd.s32 %v59, 8
  %v429 = vadd.s32 %v59, 12
  %v430 = vcvt.s32.f32 %v427
  %v431 = vcvt.s32.f32 %v428
  %v432 = vcvt.s32.f32 %v429
  %v433 = vsel %vm61, %v423, inf
  %v434 = vsel %vm61, %v424, inf
  %v435 = vsel %vm61, %v425, inf
  %v436 = vsel %vm61, %v426, inf
  %v437 = vmin.f32 %v433, %v434
  %v438 = vmin.f32 %v435, %v436
  %v439 = vmin.f32 %v437, %v438
  %v440 = vsel %vm61, %v439, inf
  %v441 = vrot.slane %v440, 4
  %v442 = vmin.f32 %v440, %v441
  %v443 = vrot.slane %v442, 2
  %v444 = vmin.f32 %v442, %v443
  %v445 = vrot.slane %v444, 1
  %v446 = vmin.f32 %v444, %v445
  %vm447 = vcmp.eq.f32.partialorder %v423, %v446
  %vm448 = vcmp.eq.f32.partialorder %v424, %v446
  %vm449 = vcmp.eq.f32.partialorder %v425, %v446
  %vm450 = vcmp.eq.f32.partialorder %v426, %v446
  %v451 = vsel %vm447, %v60, 16.0
  %v452 = vsel %vm448, %v430, 16.0
  %v453 = vsel %vm449, %v431, 16.0
  %v454 = vsel %vm450, %v432, 16.0
  %v455 = vsel %vm61, %v451, inf
  %v456 = vsel %vm61, %v452, inf
  %v457 = vsel %vm61, %v453, inf
  %v458 = vsel %vm61, %v454, inf
  %v459 = vmin.f32 %v455, %v456
  %v460 = vmin.f32 %v457, %v458
  %v461 = vmin.f32 %v459, %v460
  %v462 = vsel %vm61, %v461, inf
  %v463 = vrot.slane %v462, 4
  %v464 = vmin.f32 %v462, %v463
  %v465 = vrot.slane %v464, 2
  %v466 = vmin.f32 %v464, %v465
  %v467 = vrot.slane %v466, 1
  %v468 = vmin.f32 %v466, %v467
  %vm469 = vcmp.eq.f32.partialorder %v60, %v468
  %vm470 = vcmp.eq.f32.partialorder %v430, %v468
  %vm471 = vcmp.eq.f32.partialorder %v431, %v468
  %vm472 = vcmp.eq.f32.partialorder %v432, %v468
  %v473 = vsel %vm469, 1, 0
  %v474 = vsel %vm470, 1, 0
  %v475 = vsel %vm471, 1, 0
  %v476 = vsel %vm472, 1, 0
  %v477 = vcvt.s32.f32 %v473
  %v478 = vcvt.s32.f32 %v474
  %v479 = vcvt.s32.f32 %v475
  %v480 = vcvt.s32.f32 %v476
  %v481 = vsel %vm61, %v477, 0.0
  %v482 = vrot.slane %v481, 4
  %v483 = vadd.f32 %v481, %v482
  %v484 = vrot.slane %v483, 2
  %v485 = vadd.f32 %v483, %v484
  %v486 = vrot.slane %v485, 1
  %v487 = vadd.f32 %v485, %v486
  %v488 = vsel %vm61, %v478, 0.0
  %v489 = vrot.slane %v488, 4
  %v490 = vadd.f32 %v488, %v489
  %v491 = vrot.slane %v490, 2
  %v492 = vadd.f32 %v490, %v491
  %v493 = vrot.slane %v492, 1
  %v494 = vadd.f32 %v492, %v493
  %v495 = vsel %vm61, %v479, 0.0
  %v496 = vrot.slane %v495, 4
  %v497 = vadd.f32 %v495, %v496
  %v498 = vrot.slane %v497, 2
  %v499 = vadd.f32 %v497, %v498
  %v500 = vrot.slane %v499, 1
  %v501 = vadd.f32 %v499, %v500
  %v502 = vsel %vm61, %v480, 0.0
  %v503 = vrot.slane %v502, 4
  %v504 = vadd.f32 %v502, %v503
  %v505 = vrot.slane %v504, 2
  %v506 = vadd.f32 %v504, %v505
  %v507 = vrot.slane %v506, 1
  %v508 = vadd.f32 %v506, %v507
  %v509 = vadd.f32 %v481, %v488
  %v510 = vadd.f32 %v509, %v495
  %v511 = vadd.f32 %v510, %v502
  %v513 = vrot.slane %v220, 1
  %v514 = vrot.slane %v220, 2
  %v515 = vrot.slane %v220, 3
  %v520 = vmul.f32 %v487, %v220
  %v521 = vmul.f32 %v494, %v513
  %v522 = vmul.f32 %v501, %v514
  %v523 = vmul.f32 %v508, %v515
  %v528 = vrot.slane %v521, 7
  %vm529 = vcmask 1041409
  %v530 = vsel %vm529, %v528, %v520
  %v531 = vrot.slane %v522, 6
  %vm532 = vcmask 1042434
  %v533 = vsel %vm532, %v531, %v530
  %v534 = vrot.slane %v523, 5
  %vm535 = vcmask 1043459
  %v536 = vsel %vm535, %v534, %v533
  %v538 = vsel %vm61, %v536, 0.0
  %v539 = vrot.slane %v538, 4
  %v540 = vadd.f32 %v538, %v539
  %v541 = vrot.slane %v540, 2
  %v542 = vadd.f32 %v540, %v541
  %v543 = vrot.slane %v542, 1
  %v544 = vadd.f32 %v542, %v543
  %v546 = vrot.slane %v223, 1
  %v547 = vrot.slane %v223, 2
  %v548 = vrot.slane %v223, 3
  %v553 = vmul.f32 %v487, %v223
  %v554 = vmul.f32 %v494, %v546
  %v555 = vmul.f32 %v501, %v547
  %v556 = vmul.f32 %v508, %v548
  %v561 = vrot.slane %v554, 7
  %v562 = vsel %vm529, %v561, %v553
  %v563 = vrot.slane %v555, 6
  %v564 = vsel %vm532, %v563, %v562
  %v565 = vrot.slane %v556, 5
  %v566 = vsel %vm535, %v565, %v564
  %v568 = vsel %vm61, %v566, 0.0
  %v569 = vrot.slane %v568, 4
  %v570 = vadd.f32 %v568, %v569
  %v571 = vrot.slane %v570, 2
  %v572 = vadd.f32 %v570, %v571
  %v573 = vrot.slane %v572, 1
  %v574 = vadd.f32 %v572, %v573
  %v575 = vmul.f32 %v511, %v27
  %v576 = vsel %vm61, %v575, 0.0
  %v577 = vrot.slane %v576, 4
  %v578 = vadd.f32 %v576, %v577
  %v579 = vrot.slane %v578, 2
  %v580 = vadd.f32 %v578, %v579
  %v581 = vrot.slane %v580, 1
  %v582 = vadd.f32 %v580, %v581
  %v583 = vmul.f32 %v511, %v37
  %v584 = vsel %vm61, %v583, 0.0
  %v585 = vrot.slane %v584, 4
  %v586 = vadd.f32 %v584, %v585
  %v587 = vrot.slane %v586, 2
  %v588 = vadd.f32 %v586, %v587
  %v589 = vrot.slane %v588, 1
  %v590 = vadd.f32 %v588, %v589
  %vm591 = vcmp.gt.f32.partialorder %v477, 0.0
  %vm592 = vcmp.gt.f32.partialorder %v478, 0.0
  %vm593 = vcmp.gt.f32.partialorder %v479, 0.0
  %vm594 = vcmp.gt.f32.partialorder %v480, 0.0
  %v595 = vsel %vm591, inf, %v423
  %v596 = vsel %vm592, inf, %v424
  %v597 = vsel %vm593, inf, %v425
  %v598 = vsel %vm594, inf, %v426
  %v599 = vsel %vm61, %v595, inf
  %v600 = vsel %vm61, %v596, inf
  %v601 = vsel %vm61, %v597, inf
  %v602 = vsel %vm61, %v598, inf
  %v603 = vmin.f32 %v599, %v600
  %v604 = vmin.f32 %v601, %v602
  %v605 = vmin.f32 %v603, %v604
  %v606 = vsel %vm61, %v605, inf
  %v607 = vrot.slane %v606, 4
  %v608 = vmin.f32 %v606, %v607
  %v609 = vrot.slane %v608, 2
  %v610 = vmin.f32 %v608, %v609
  %v611 = vrot.slane %v610, 1
  %v612 = vmin.f32 %v610, %v611
  %vm613 = vcmp.eq.f32.partialorder %v595, %v612
  %vm614 = vcmp.eq.f32.partialorder %v596, %v612
  %vm615 = vcmp.eq.f32.partialorder %v597, %v612
  %vm616 = vcmp.eq.f32.partialorder %v598, %v612
  %v617 = vsel %vm613, %v60, 16.0
  %v618 = vsel %vm614, %v430, 16.0
  %v619 = vsel %vm615, %v431, 16.0
  %v620 = vsel %vm616, %v432, 16.0
  %v621 = vsel %vm61, %v617, inf
  %v622 = vsel %vm61, %v618, inf
  %v623 = vsel %vm61, %v619, inf
  %v624 = vsel %vm61, %v620, inf
  %v625 = vmin.f32 %v621, %v622
  %v626 = vmin.f32 %v623, %v624
  %v627 = vmin.f32 %v625, %v626
  %v628 = vsel %vm61, %v627, inf
  %v629 = vrot.slane %v628, 4
  %v630 = vmin.f32 %v628, %v629
  %v631 = vrot.slane %v630, 2
  %v632 = vmin.f32 %v630, %v631
  %v633 = vrot.slane %v632, 1
  %v634 = vmin.f32 %v632, %v633
  %vm635 = vcmp.eq.f32.partialorder %v60, %v634
  %vm636 = vcmp.eq.f32.partialorder %v430, %v634
  %vm637 = vcmp.eq.f32.partialorder %v431, %v634
  %vm638 = vcmp.eq.f32.partialorder %v432, %v634
  %v639 = vsel %vm635, 1, 0
  %v640 = vsel %vm636, 1, 0
  %v641 = vsel %vm637, 1, 0
  %v642 = vsel %vm638, 1, 0
  %v643 = vcvt.s32.f32 %v639
  %v644 = vcvt.s32.f32 %v640
  %v645 = vcvt.s32.f32 %v641
  %v646 = vcvt.s32.f32 %v642
  %v647 = vsel %vm61, %v643, 0.0
  %v648 = vrot.slane %v647, 4
  %v649 = vadd.f32 %v647, %v648
  %v650 = vrot.slane %v649, 2
  %v651 = vadd.f32 %v649, %v650
  %v652 = vrot.slane %v651, 1
  %v653 = vadd.f32 %v651, %v652
  %v654 = vsel %vm61, %v644, 0.0
  %v655 = vrot.slane %v654, 4
  %v656 = vadd.f32 %v654, %v655
  %v657 = vrot.slane %v656, 2
  %v658 = vadd.f32 %v656, %v657
  %v659 = vrot.slane %v658, 1
  %v660 = vadd.f32 %v658, %v659
  %v661 = vsel %vm61, %v645, 0.0
  %v662 = vrot.slane %v661, 4
  %v663 = vadd.f32 %v661, %v662
  %v664 = vrot.slane %v663, 2
  %v665 = vadd.f32 %v663, %v664
  %v666 = vrot.slane %v665, 1
  %v667 = vadd.f32 %v665, %v666
  %v668 = vsel %vm61, %v646, 0.0
  %v669 = vrot.slane %v668, 4
  %v670 = vadd.f32 %v668, %v669
  %v671 = vrot.slane %v670, 2
  %v672 = vadd.f32 %v670, %v671
  %v673 = vrot.slane %v672, 1
  %v674 = vadd.f32 %v672, %v673
  %v675 = vadd.f32 %v647, %v654
  %v676 = vadd.f32 %v675, %v661
  %v677 = vadd.f32 %v676, %v668
  %v678 = vmul.f32 %v653, %v220
  %v679 = vmul.f32 %v660, %v513
  %v680 = vmul.f32 %v667, %v514
  %v681 = vmul.f32 %v674, %v515
  %v686 = vrot.slane %v679, 7
  %v687 = vsel %vm529, %v686, %v678
  %v688 = vrot.slane %v680, 6
  %v689 = vsel %vm532, %v688, %v687
  %v690 = vrot.slane %v681, 5
  %v691 = vsel %vm535, %v690, %v689
  %v693 = vsel %vm61, %v691, 0.0
  %v694 = vrot.slane %v693, 4
  %v695 = vadd.f32 %v693, %v694
  %v696 = vrot.slane %v695, 2
  %v697 = vadd.f32 %v695, %v696
  %v698 = vrot.slane %v697, 1
  %v699 = vadd.f32 %v697, %v698
  %v700 = vmul.f32 %v653, %v223
  %v701 = vmul.f32 %v660, %v546
  %v702 = vmul.f32 %v667, %v547
  %v703 = vmul.f32 %v674, %v548
  %v708 = vrot.slane %v701, 7
  %v709 = vsel %vm529, %v708, %v700
  %v710 = vrot.slane %v702, 6
  %v711 = vsel %vm532, %v710, %v709
  %v712 = vrot.slane %v703, 5
  %v713 = vsel %vm535, %v712, %v711
  %v715 = vsel %vm61, %v713, 0.0
  %v716 = vrot.slane %v715, 4
  %v717 = vadd.f32 %v715, %v716
  %v718 = vrot.slane %v717, 2
  %v719 = vadd.f32 %v717, %v718
  %v720 = vrot.slane %v719, 1
  %v721 = vadd.f32 %v719, %v720
  %v722 = vmul.f32 %v677, %v27
  %v723 = vsel %vm61, %v722, 0.0
  %v724 = vrot.slane %v723, 4
  %v725 = vadd.f32 %v723, %v724
  %v726 = vrot.slane %v725, 2
  %v727 = vadd.f32 %v725, %v726
  %v728 = vrot.slane %v727, 1
  %v729 = vadd.f32 %v727, %v728
  %v730 = vmul.f32 %v677, %v37
  %v731 = vsel %vm61, %v730, 0.0
  %v732 = vrot.slane %v731, 4
  %v733 = vadd.f32 %v731, %v732
  %v734 = vrot.slane %v733, 2
  %v735 = vadd.f32 %v733, %v734
  %v736 = vrot.slane %v735, 1
  %v737 = vadd.f32 %v735, %v736
  %vm738 = vcmp.gt.f32.partialorder %v643, 0.0
  %vm739 = vcmp.gt.f32.partialorder %v644, 0.0
  %vm740 = vcmp.gt.f32.partialorder %v645, 0.0
  %vm741 = vcmp.gt.f32.partialorder %v646, 0.0
  %v742 = vsel %vm738, inf, %v595
  %v743 = vsel %vm739, inf, %v596
  %v744 = vsel %vm740, inf, %v597
  %v745 = vsel %vm741, inf, %v598
  %v746 = vsel %vm61, %v742, inf
  %v747 = vsel %vm61, %v743, inf
  %v748 = vsel %vm61, %v744, inf
  %v749 = vsel %vm61, %v745, inf
  %v750 = vmin.f32 %v746, %v747
  %v751 = vmin.f32 %v748, %v749
  %v752 = vmin.f32 %v750, %v751
  %v753 = vsel %vm61, %v752, inf
  %v754 = vrot.slane %v753, 4
  %v755 = vmin.f32 %v753, %v754
  %v756 = vrot.slane %v755, 2
  %v757 = vmin.f32 %v755, %v756
  %v758 = vrot.slane %v757, 1
  %v759 = vmin.f32 %v757, %v758
  %vm760 = vcmp.eq.f32.partialorder %v742, %v759
  %vm761 = vcmp.eq.f32.partialorder %v743, %v759
  %vm762 = vcmp.eq.f32.partialorder %v744, %v759
  %vm763 = vcmp.eq.f32.partialorder %v745, %v759
  %v764 = vsel %vm760, %v60, 16.0
  %v765 = vsel %vm761, %v430, 16.0
  %v766 = vsel %vm762, %v431, 16.0
  %v767 = vsel %vm763, %v432, 16.0
  %v768 = vsel %vm61, %v764, inf
  %v769 = vsel %vm61, %v765, inf
  %v770 = vsel %vm61, %v766, inf
  %v771 = vsel %vm61, %v767, inf
  %v772 = vmin.f32 %v768, %v769
  %v773 = vmin.f32 %v770, %v771
  %v774 = vmin.f32 %v772, %v773
  %v775 = vsel %vm61, %v774, inf
  %v776 = vrot.slane %v775, 4
  %v777 = vmin.f32 %v775, %v776
  %v778 = vrot.slane %v777, 2
  %v779 = vmin.f32 %v777, %v778
  %v780 = vrot.slane %v779, 1
  %v781 = vmin.f32 %v779, %v780
  %vm782 = vcmp.eq.f32.partialorder %v60, %v781
  %vm783 = vcmp.eq.f32.partialorder %v430, %v781
  %vm784 = vcmp.eq.f32.partialorder %v431, %v781
  %vm785 = vcmp.eq.f32.partialorder %v432, %v781
  %v786 = vsel %vm782, 1, 0
  %v787 = vsel %vm783, 1, 0
  %v788 = vsel %vm784, 1, 0
  %v789 = vsel %vm785, 1, 0
  %v790 = vcvt.s32.f32 %v786
  %v791 = vcvt.s32.f32 %v787
  %v792 = vcvt.s32.f32 %v788
  %v793 = vcvt.s32.f32 %v789
  %v794 = vsel %vm61, %v790, 0.0
  %v795 = vrot.slane %v794, 4
  %v796 = vadd.f32 %v794, %v795
  %v797 = vrot.slane %v796, 2
  %v798 = vadd.f32 %v796, %v797
  %v799 = vrot.slane %v798, 1
  %v800 = vadd.f32 %v798, %v799
  %v801 = vsel %vm61, %v791, 0.0
  %v802 = vrot.slane %v801, 4
  %v803 = vadd.f32 %v801, %v802
  %v804 = vrot.slane %v803, 2
  %v805 = vadd.f32 %v803, %v804
  %v806 = vrot.slane %v805, 1
  %v807 = vadd.f32 %v805, %v806
  %v808 = vsel %vm61, %v792, 0.0
  %v809 = vrot.slane %v808, 4
  %v810 = vadd.f32 %v808, %v809
  %v811 = vrot.slane %v810, 2
  %v812 = vadd.f32 %v810, %v811
  %v813 = vrot.slane %v812, 1
  %v814 = vadd.f32 %v812, %v813
  %v815 = vsel %vm61, %v793, 0.0
  %v816 = vrot.slane %v815, 4
  %v817 = vadd.f32 %v815, %v816
  %v818 = vrot.slane %v817, 2
  %v819 = vadd.f32 %v817, %v818
  %v820 = vrot.slane %v819, 1
  %v821 = vadd.f32 %v819, %v820
  %v822 = vadd.f32 %v794, %v801
  %v823 = vadd.f32 %v822, %v808
  %v824 = vadd.f32 %v823, %v815
  %v825 = vmul.f32 %v800, %v220
  %v826 = vmul.f32 %v807, %v513
  %v827 = vmul.f32 %v814, %v514
  %v828 = vmul.f32 %v821, %v515
  %v833 = vrot.slane %v826, 7
  %v834 = vsel %vm529, %v833, %v825
  %v835 = vrot.slane %v827, 6
  %v836 = vsel %vm532, %v835, %v834
  %v837 = vrot.slane %v828, 5
  %v838 = vsel %vm535, %v837, %v836
  %v840 = vsel %vm61, %v838, 0.0
  %v841 = vrot.slane %v840, 4
  %v842 = vadd.f32 %v840, %v841
  %v843 = vrot.slane %v842, 2
  %v844 = vadd.f32 %v842, %v843
  %v845 = vrot.slane %v844, 1
  %v846 = vadd.f32 %v844, %v845
  %v847 = vmul.f32 %v800, %v223
  %v848 = vmul.f32 %v807, %v546
  %v849 = vmul.f32 %v814, %v547
  %v850 = vmul.f32 %v821, %v548
  %v855 = vrot.slane %v848, 7
  %v856 = vsel %vm529, %v855, %v847
  %v857 = vrot.slane %v849, 6
  %v858 = vsel %vm532, %v857, %v856
  %v859 = vrot.slane %v850, 5
  %v860 = vsel %vm535, %v859, %v858
  %v862 = vsel %vm61, %v860, 0.0
  %v863 = vrot.slane %v862, 4
  %v864 = vadd.f32 %v862, %v863
  %v865 = vrot.slane %v864, 2
  %v866 = vadd.f32 %v864, %v865
  %v867 = vrot.slane %v866, 1
  %v868 = vadd.f32 %v866, %v867
  %v869 = vmul.f32 %v824, %v27
  %v870 = vsel %vm61, %v869, 0.0
  %v871 = vrot.slane %v870, 4
  %v872 = vadd.f32 %v870, %v871
  %v873 = vrot.slane %v872, 2
  %v874 = vadd.f32 %v872, %v873
  %v875 = vrot.slane %v874, 1
  %v876 = vadd.f32 %v874, %v875
  %v877 = vmul.f32 %v824, %v37
  %v878 = vsel %vm61, %v877, 0.0
  %v879 = vrot.slane %v878, 4
  %v880 = vadd.f32 %v878, %v879
  %v881 = vrot.slane %v880, 2
  %v882 = vadd.f32 %v880, %v881
  %v883 = vrot.slane %v882, 1
  %v884 = vadd.f32 %v882, %v883
  %vm885 = vcmp.gt.f32.partialorder %v790, 0.0
  %vm886 = vcmp.gt.f32.partialorder %v791, 0.0
  %vm887 = vcmp.gt.f32.partialorder %v792, 0.0
  %vm888 = vcmp.gt.f32.partialorder %v793, 0.0
  %v889 = vsel %vm885, inf, %v742
  %v890 = vsel %vm886, inf, %v743
  %v891 = vsel %vm887, inf, %v744
  %v892 = vsel %vm888, inf, %v745
  %v893 = vsel %vm61, %v889, inf
  %v894 = vsel %vm61, %v890, inf
  %v895 = vsel %vm61, %v891, inf
  %v896 = vsel %vm61, %v892, inf
  %v897 = vmin.f32 %v893, %v894
  %v898 = vmin.f32 %v895, %v896
  %v899 = vmin.f32 %v897, %v898
  %v900 = vsel %vm61, %v899, inf
  %v901 = vrot.slane %v900, 4
  %v902 = vmin.f32 %v900, %v901
  %v903 = vrot.slane %v902, 2
  %v904 = vmin.f32 %v902, %v903
  %v905 = vrot.slane %v904, 1
  %v906 = vmin.f32 %v904, %v905
  %vm907 = vcmp.eq.f32.partialorder %v889, %v906
  %vm908 = vcmp.eq.f32.partialorder %v890, %v906
  %vm909 = vcmp.eq.f32.partialorder %v891, %v906
  %vm910 = vcmp.eq.f32.partialorder %v892, %v906
  %v911 = vsel %vm907, %v60, 16.0
  %v912 = vsel %vm908, %v430, 16.0
  %v913 = vsel %vm909, %v431, 16.0
  %v914 = vsel %vm910, %v432, 16.0
  %v915 = vsel %vm61, %v911, inf
  %v916 = vsel %vm61, %v912, inf
  %v917 = vsel %vm61, %v913, inf
  %v918 = vsel %vm61, %v914, inf
  %v919 = vmin.f32 %v915, %v916
  %v920 = vmin.f32 %v917, %v918
  %v921 = vmin.f32 %v919, %v920
  %v922 = vsel %vm61, %v921, inf
  %v923 = vrot.slane %v922, 4
  %v924 = vmin.f32 %v922, %v923
  %v925 = vrot.slane %v924, 2
  %v926 = vmin.f32 %v924, %v925
  %v927 = vrot.slane %v926, 1
  %v928 = vmin.f32 %v926, %v927
  %vm929 = vcmp.eq.f32.partialorder %v60, %v928
  %vm930 = vcmp.eq.f32.partialorder %v430, %v928
  %vm931 = vcmp.eq.f32.partialorder %v431, %v928
  %vm932 = vcmp.eq.f32.partialorder %v432, %v928
  %v933 = vsel %vm929, 1, 0
  %v934 = vsel %vm930, 1, 0
  %v935 = vsel %vm931, 1, 0
  %v936 = vsel %vm932, 1, 0
  %v937 = vcvt.s32.f32 %v933
  %v938 = vcvt.s32.f32 %v934
  %v939 = vcvt.s32.f32 %v935
  %v940 = vcvt.s32.f32 %v936
  %v941 = vsel %vm61, %v937, 0.0
  %v942 = vrot.slane %v941, 4
  %v943 = vadd.f32 %v941, %v942
  %v944 = vrot.slane %v943, 2
  %v945 = vadd.f32 %v943, %v944
  %v946 = vrot.slane %v945, 1
  %v947 = vadd.f32 %v945, %v946
  %v948 = vsel %vm61, %v938, 0.0
  %v949 = vrot.slane %v948, 4
  %v950 = vadd.f32 %v948, %v949
  %v951 = vrot.slane %v950, 2
  %v952 = vadd.f32 %v950, %v951
  %v953 = vrot.slane %v952, 1
  %v954 = vadd.f32 %v952, %v953
  %v955 = vsel %vm61, %v939, 0.0
  %v956 = vrot.slane %v955, 4
  %v957 = vadd.f32 %v955, %v956
  %v958 = vrot.slane %v957, 2
  %v959 = vadd.f32 %v957, %v958
  %v960 = vrot.slane %v959, 1
  %v961 = vadd.f32 %v959, %v960
  %v962 = vsel %vm61, %v940, 0.0
  %v963 = vrot.slane %v962, 4
  %v964 = vadd.f32 %v962, %v963
  %v965 = vrot.slane %v964, 2
  %v966 = vadd.f32 %v964, %v965
  %v967 = vrot.slane %v966, 1
  %v968 = vadd.f32 %v966, %v967
  %v969 = vadd.f32 %v941, %v948
  %v970 = vadd.f32 %v969, %v955
  %v971 = vadd.f32 %v970, %v962
  %v972 = vmul.f32 %v947, %v220
  %v973 = vmul.f32 %v954, %v513
  %v974 = vmul.f32 %v961, %v514
  %v975 = vmul.f32 %v968, %v515
  %v980 = vrot.slane %v973, 7
  %v981 = vsel %vm529, %v980, %v972
  %v982 = vrot.slane %v974, 6
  %v983 = vsel %vm532, %v982, %v981
  %v984 = vrot.slane %v975, 5
  %v985 = vsel %vm535, %v984, %v983
  %v987 = vsel %vm61, %v985, 0.0
  %v988 = vrot.slane %v987, 4
  %v989 = vadd.f32 %v987, %v988
  %v990 = vrot.slane %v989, 2
  %v991 = vadd.f32 %v989, %v990
  %v992 = vrot.slane %v991, 1
  %v993 = vadd.f32 %v991, %v992
  %v994 = vmul.f32 %v947, %v223
  %v995 = vmul.f32 %v954, %v546
  %v996 = vmul.f32 %v961, %v547
  %v997 = vmul.f32 %v968, %v548
  %v1002 = vrot.slane %v995, 7
  %v1003 = vsel %vm529, %v1002, %v994
  %v1004 = vrot.slane %v996, 6
  %v1005 = vsel %vm532, %v1004, %v1003
  %v1006 = vrot.slane %v997, 5
  %v1007 = vsel %vm535, %v1006, %v1005
  %v1009 = vsel %vm61, %v1007, 0.0
  %v1010 = vrot.slane %v1009, 4
  %v1011 = vadd.f32 %v1009, %v1010
  %v1012 = vrot.slane %v1011, 2
  %v1013 = vadd.f32 %v1011, %v1012
  %v1014 = vrot.slane %v1013, 1
  %v1015 = vadd.f32 %v1013, %v1014
  %v1016 = vmul.f32 %v971, %v27
  %v1017 = vsel %vm61, %v1016, 0.0
  %v1018 = vrot.slane %v1017, 4
  %v1019 = vadd.f32 %v1017, %v1018
  %v1020 = vrot.slane %v1019, 2
  %v1021 = vadd.f32 %v1019, %v1020
  %v1022 = vrot.slane %v1021, 1
  %v1023 = vadd.f32 %v1021, %v1022
  %v1024 = vmul.f32 %v971, %v37
  %v1025 = vsel %vm61, %v1024, 0.0
  %v1026 = vrot.slane %v1025, 4
  %v1027 = vadd.f32 %v1025, %v1026
  %v1028 = vrot.slane %v1027, 2
  %v1029 = vadd.f32 %v1027, %v1028
  %v1030 = vrot.slane %v1029, 1
  %v1031 = vadd.f32 %v1029, %v1030
  %vm1032 = vcmp.gt.f32.partialorder %v937, 0.0
  %vm1033 = vcmp.gt.f32.partialorder %v938, 0.0
  %vm1034 = vcmp.gt.f32.partialorder %v939, 0.0
  %vm1035 = vcmp.gt.f32.partialorder %v940, 0.0
  %v1036 = vsel %vm1032, inf, %v889
  %v1037 = vsel %vm1033, inf, %v890
  %v1038 = vsel %vm1034, inf, %v891
  %v1039 = vsel %vm1035, inf, %v892
  %v1040 = vsel %vm61, %v1036, inf
  %v1041 = vsel %vm61, %v1037, inf
  %v1042 = vsel %vm61, %v1038, inf
  %v1043 = vsel %vm61, %v1039, inf
  %v1044 = vmin.f32 %v1040, %v1041
  %v1045 = vmin.f32 %v1042, %v1043
  %v1046 = vmin.f32 %v1044, %v1045
  %v1047 = vsel %vm61, %v1046, inf
  %v1048 = vrot.slane %v1047, 4
  %v1049 = vmin.f32 %v1047, %v1048
  %v1050 = vrot.slane %v1049, 2
  %v1051 = vmin.f32 %v1049, %v1050
  %v1052 = vrot.slane %v1051, 1
  %v1053 = vmin.f32 %v1051, %v1052
  %vm1054 = vcmp.eq.f32.partialorder %v1036, %v1053
  %vm1055 = vcmp.eq.f32.partialorder %v1037, %v1053
  %vm1056 = vcmp.eq.f32.partialorder %v1038, %v1053
  %vm1057 = vcmp.eq.f32.partialorder %v1039, %v1053
  %v1058 = vsel %vm1054, %v60, 16.0
  %v1059 = vsel %vm1055, %v430, 16.0
  %v1060 = vsel %vm1056, %v431, 16.0
  %v1061 = vsel %vm1057, %v432, 16.0
  %v1062 = vsel %vm61, %v1058, inf
  %v1063 = vsel %vm61, %v1059, inf
  %v1064 = vsel %vm61, %v1060, inf
  %v1065 = vsel %vm61, %v1061, inf
  %v1066 = vmin.f32 %v1062, %v1063
  %v1067 = vmin.f32 %v1064, %v1065
  %v1068 = vmin.f32 %v1066, %v1067
  %v1069 = vsel %vm61, %v1068, inf
  %v1070 = vrot.slane %v1069, 4
  %v1071 = vmin.f32 %v1069, %v1070
  %v1072 = vrot.slane %v1071, 2
  %v1073 = vmin.f32 %v1071, %v1072
  %v1074 = vrot.slane %v1073, 1
  %v1075 = vmin.f32 %v1073, %v1074
  %vm1076 = vcmp.eq.f32.partialorder %v60, %v1075
  %vm1077 = vcmp.eq.f32.partialorder %v430, %v1075
  %vm1078 = vcmp.eq.f32.partialorder %v431, %v1075
  %vm1079 = vcmp.eq.f32.partialorder %v432, %v1075
  %v1080 = vsel %vm1076, 1, 0
  %v1081 = vsel %vm1077, 1, 0
  %v1082 = vsel %vm1078, 1, 0
  %v1083 = vsel %vm1079, 1, 0
  %v1084 = vcvt.s32.f32 %v1080
  %v1085 = vcvt.s32.f32 %v1081
  %v1086 = vcvt.s32.f32 %v1082
  %v1087 = vcvt.s32.f32 %v1083
  %v1088 = vsel %vm61, %v1084, 0.0
  %v1089 = vrot.slane %v1088, 4
  %v1090 = vadd.f32 %v1088, %v1089
  %v1091 = vrot.slane %v1090, 2
  %v1092 = vadd.f32 %v1090, %v1091
  %v1093 = vrot.slane %v1092, 1
  %v1094 = vadd.f32 %v1092, %v1093
  %v1095 = vsel %vm61, %v1085, 0.0
  %v1096 = vrot.slane %v1095, 4
  %v1097 = vadd.f32 %v1095, %v1096
  %v1098 = vrot.slane %v1097, 2
  %v1099 = vadd.f32 %v1097, %v1098
  %v1100 = vrot.slane %v1099, 1
  %v1101 = vadd.f32 %v1099, %v1100
  %v1102 = vsel %vm61, %v1086, 0.0
  %v1103 = vrot.slane %v1102, 4
  %v1104 = vadd.f32 %v1102, %v1103
  %v1105 = vrot.slane %v1104, 2
  %v1106 = vadd.f32 %v1104, %v1105
  %v1107 = vrot.slane %v1106, 1
  %v1108 = vadd.f32 %v1106, %v1107
  %v1109 = vsel %vm61, %v1087, 0.0
  %v1110 = vrot.slane %v1109, 4
  %v1111 = vadd.f32 %v1109, %v1110
  %v1112 = vrot.slane %v1111, 2
  %v1113 = vadd.f32 %v1111, %v1112
  %v1114 = vrot.slane %v1113, 1
  %v1115 = vadd.f32 %v1113, %v1114
  %v1116 = vadd.f32 %v1088, %v1095
  %v1117 = vadd.f32 %v1116, %v1102
  %v1118 = vadd.f32 %v1117, %v1109
  %v1119 = vmul.f32 %v1094, %v220
  %v1120 = vmul.f32 %v1101, %v513
  %v1121 = vmul.f32 %v1108, %v514
  %v1122 = vmul.f32 %v1115, %v515
  %v1127 = vrot.slane %v1120, 7
  %v1128 = vsel %vm529, %v1127, %v1119
  %v1129 = vrot.slane %v1121, 6
  %v1130 = vsel %vm532, %v1129, %v1128
  %v1131 = vrot.slane %v1122, 5
  %v1132 = vsel %vm535, %v1131, %v1130
  %v1134 = vsel %vm61, %v1132, 0.0
  %v1135 = vrot.slane %v1134, 4
  %v1136 = vadd.f32 %v1134, %v1135
  %v1137 = vrot.slane %v1136, 2
  %v1138 = vadd.f32 %v1136, %v1137
  %v1139 = vrot.slane %v1138, 1
  %v1140 = vadd.f32 %v1138, %v1139
  %v1141 = vmul.f32 %v1094, %v223
  %v1142 = vmul.f32 %v1101, %v546
  %v1143 = vmul.f32 %v1108, %v547
  %v1144 = vmul.f32 %v1115, %v548
  %v1149 = vrot.slane %v1142, 7
  %v1150 = vsel %vm529, %v1149, %v1141
  %v1151 = vrot.slane %v1143, 6
  %v1152 = vsel %vm532, %v1151, %v1150
  %v1153 = vrot.slane %v1144, 5
  %v1154 = vsel %vm535, %v1153, %v1152
  %v1156 = vsel %vm61, %v1154, 0.0
  %v1157 = vrot.slane %v1156, 4
  %v1158 = vadd.f32 %v1156, %v1157
  %v1159 = vrot.slane %v1158, 2
  %v1160 = vadd.f32 %v1158, %v1159
  %v1161 = vrot.slane %v1160, 1
  %v1162 = vadd.f32 %v1160, %v1161
  %v1163 = vmul.f32 %v1118, %v27
  %v1164 = vsel %vm61, %v1163, 0.0
  %v1165 = vrot.slane %v1164, 4
  %v1166 = vadd.f32 %v1164, %v1165
  %v1167 = vrot.slane %v1166, 2
  %v1168 = vadd.f32 %v1166, %v1167
  %v1169 = vrot.slane %v1168, 1
  %v1170 = vadd.f32 %v1168, %v1169
  %v1171 = vmul.f32 %v1118, %v37
  %v1172 = vsel %vm61, %v1171, 0.0
  %v1173 = vrot.slane %v1172, 4
  %v1174 = vadd.f32 %v1172, %v1173
  %v1175 = vrot.slane %v1174, 2
  %v1176 = vadd.f32 %v1174, %v1175
  %v1177 = vrot.slane %v1176, 1
  %v1178 = vadd.f32 %v1176, %v1177
  %vm1179 = vcmp.gt.f32.partialorder %v1084, 0.0
  %vm1180 = vcmp.gt.f32.partialorder %v1085, 0.0
  %vm1181 = vcmp.gt.f32.partialorder %v1086, 0.0
  %vm1182 = vcmp.gt.f32.partialorder %v1087, 0.0
  %v1183 = vsel %vm1179, inf, %v1036
  %v1184 = vsel %vm1180, inf, %v1037
  %v1185 = vsel %vm1181, inf, %v1038
  %v1186 = vsel %vm1182, inf, %v1039
  %v1187 = vsel %vm61, %v1183, inf
  %v1188 = vsel %vm61, %v1184, inf
  %v1189 = vsel %vm61, %v1185, inf
  %v1190 = vsel %vm61, %v1186, inf
  %v1191 = vmin.f32 %v1187, %v1188
  %v1192 = vmin.f32 %v1189, %v1190
  %v1193 = vmin.f32 %v1191, %v1192
  %v1194 = vsel %vm61, %v1193, inf
  %v1195 = vrot.slane %v1194, 4
  %v1196 = vmin.f32 %v1194, %v1195
  %v1197 = vrot.slane %v1196, 2
  %v1198 = vmin.f32 %v1196, %v1197
  %v1199 = vrot.slane %v1198, 1
  %v1200 = vmin.f32 %v1198, %v1199
  %vm1201 = vcmp.eq.f32.partialorder %v1183, %v1200
  %vm1202 = vcmp.eq.f32.partialorder %v1184, %v1200
  %vm1203 = vcmp.eq.f32.partialorder %v1185, %v1200
  %vm1204 = vcmp.eq.f32.partialorder %v1186, %v1200
  %v1205 = vsel %vm1201, %v60, 16.0
  %v1206 = vsel %vm1202, %v430, 16.0
  %v1207 = vsel %vm1203, %v431, 16.0
  %v1208 = vsel %vm1204, %v432, 16.0
  %v1209 = vsel %vm61, %v1205, inf
  %v1210 = vsel %vm61, %v1206, inf
  %v1211 = vsel %vm61, %v1207, inf
  %v1212 = vsel %vm61, %v1208, inf
  %v1213 = vmin.f32 %v1209, %v1210
  %v1214 = vmin.f32 %v1211, %v1212
  %v1215 = vmin.f32 %v1213, %v1214
  %v1216 = vsel %vm61, %v1215, inf
  %v1217 = vrot.slane %v1216, 4
  %v1218 = vmin.f32 %v1216, %v1217
  %v1219 = vrot.slane %v1218, 2
  %v1220 = vmin.f32 %v1218, %v1219
  %v1221 = vrot.slane %v1220, 1
  %v1222 = vmin.f32 %v1220, %v1221
  %vm1223 = vcmp.eq.f32.partialorder %v60, %v1222
  %vm1224 = vcmp.eq.f32.partialorder %v430, %v1222
  %vm1225 = vcmp.eq.f32.partialorder %v431, %v1222
  %vm1226 = vcmp.eq.f32.partialorder %v432, %v1222
  %v1227 = vsel %vm1223, 1, 0
  %v1228 = vsel %vm1224, 1, 0
  %v1229 = vsel %vm1225, 1, 0
  %v1230 = vsel %vm1226, 1, 0
  %v1231 = vcvt.s32.f32 %v1227
  %v1232 = vcvt.s32.f32 %v1228
  %v1233 = vcvt.s32.f32 %v1229
  %v1234 = vcvt.s32.f32 %v1230
  %v1235 = vsel %vm61, %v1231, 0.0
  %v1236 = vrot.slane %v1235, 4
  %v1237 = vadd.f32 %v1235, %v1236
  %v1238 = vrot.slane %v1237, 2
  %v1239 = vadd.f32 %v1237, %v1238
  %v1240 = vrot.slane %v1239, 1
  %v1241 = vadd.f32 %v1239, %v1240
  %v1242 = vsel %vm61, %v1232, 0.0
  %v1243 = vrot.slane %v1242, 4
  %v1244 = vadd.f32 %v1242, %v1243
  %v1245 = vrot.slane %v1244, 2
  %v1246 = vadd.f32 %v1244, %v1245
  %v1247 = vrot.slane %v1246, 1
  %v1248 = vadd.f32 %v1246, %v1247
  %v1249 = vsel %vm61, %v1233, 0.0
  %v1250 = vrot.slane %v1249, 4
  %v1251 = vadd.f32 %v1249, %v1250
  %v1252 = vrot.slane %v1251, 2
  %v1253 = vadd.f32 %v1251, %v1252
  %v1254 = vrot.slane %v1253, 1
  %v1255 = vadd.f32 %v1253, %v1254
  %v1256 = vsel %vm61, %v1234, 0.0
  %v1257 = vrot.slane %v1256, 4
  %v1258 = vadd.f32 %v1256, %v1257
  %v1259 = vrot.slane %v1258, 2
  %v1260 = vadd.f32 %v1258, %v1259
  %v1261 = vrot.slane %v1260, 1
  %v1262 = vadd.f32 %v1260, %v1261
  %v1263 = vadd.f32 %v1235, %v1242
  %v1264 = vadd.f32 %v1263, %v1249
  %v1265 = vadd.f32 %v1264, %v1256
  %v1266 = vmul.f32 %v1241, %v220
  %v1267 = vmul.f32 %v1248, %v513
  %v1268 = vmul.f32 %v1255, %v514
  %v1269 = vmul.f32 %v1262, %v515
  %v1274 = vrot.slane %v1267, 7
  %v1275 = vsel %vm529, %v1274, %v1266
  %v1276 = vrot.slane %v1268, 6
  %v1277 = vsel %vm532, %v1276, %v1275
  %v1278 = vrot.slane %v1269, 5
  %v1279 = vsel %vm535, %v1278, %v1277
  %v1281 = vsel %vm61, %v1279, 0.0
  %v1282 = vrot.slane %v1281, 4
  %v1283 = vadd.f32 %v1281, %v1282
  %v1284 = vrot.slane %v1283, 2
  %v1285 = vadd.f32 %v1283, %v1284
  %v1286 = vrot.slane %v1285, 1
  %v1287 = vadd.f32 %v1285, %v1286
  %v1288 = vmul.f32 %v1241, %v223
  %v1289 = vmul.f32 %v1248, %v546
  %v1290 = vmul.f32 %v1255, %v547
  %v1291 = vmul.f32 %v1262, %v548
  %v1296 = vrot.slane %v1289, 7
  %v1297 = vsel %vm529, %v1296, %v1288
  %v1298 = vrot.slane %v1290, 6
  %v1299 = vsel %vm532, %v1298, %v1297
  %v1300 = vrot.slane %v1291, 5
  %v1301 = vsel %vm535, %v1300, %v1299
  %v1303 = vsel %vm61, %v1301, 0.0
  %v1304 = vrot.slane %v1303, 4
  %v1305 = vadd.f32 %v1303, %v1304
  %v1306 = vrot.slane %v1305, 2
  %v1307 = vadd.f32 %v1305, %v1306
  %v1308 = vrot.slane %v1307, 1
  %v1309 = vadd.f32 %v1307, %v1308
  %v1310 = vmul.f32 %v1265, %v27
  %v1311 = vsel %vm61, %v1310, 0.0
  %v1312 = vrot.slane %v1311, 4
  %v1313 = vadd.f32 %v1311, %v1312
  %v1314 = vrot.slane %v1313, 2
  %v1315 = vadd.f32 %v1313, %v1314
  %v1316 = vrot.slane %v1315, 1
  %v1317 = vadd.f32 %v1315, %v1316
  %v1318 = vmul.f32 %v1265, %v37
  %v1319 = vsel %vm61, %v1318, 0.0
  %v1320 = vrot.slane %v1319, 4
  %v1321 = vadd.f32 %v1319, %v1320
  %v1322 = vrot.slane %v1321, 2
  %v1323 = vadd.f32 %v1321, %v1322
  %v1324 = vrot.slane %v1323, 1
  %v1325 = vadd.f32 %v1323, %v1324
  %vm1326 = vcmp.gt.f32.partialorder %v1231, 0.0
  %vm1327 = vcmp.gt.f32.partialorder %v1232, 0.0
  %vm1328 = vcmp.gt.f32.partialorder %v1233, 0.0
  %vm1329 = vcmp.gt.f32.partialorder %v1234, 0.0
  %v1330 = vsel %vm1326, inf, %v1183
  %v1331 = vsel %vm1327, inf, %v1184
  %v1332 = vsel %vm1328, inf, %v1185
  %v1333 = vsel %vm1329, inf, %v1186
  %v1334 = vsel %vm61, %v1330, inf
  %v1335 = vsel %vm61, %v1331, inf
  %v1336 = vsel %vm61, %v1332, inf
  %v1337 = vsel %vm61, %v1333, inf
  %v1338 = vmin.f32 %v1334, %v1335
  %v1339 = vmin.f32 %v1336, %v1337
  %v1340 = vmin.f32 %v1338, %v1339
  %v1341 = vsel %vm61, %v1340, inf
  %v1342 = vrot.slane %v1341, 4
  %v1343 = vmin.f32 %v1341, %v1342
  %v1344 = vrot.slane %v1343, 2
  %v1345 = vmin.f32 %v1343, %v1344
  %v1346 = vrot.slane %v1345, 1
  %v1347 = vmin.f32 %v1345, %v1346
  %vm1348 = vcmp.eq.f32.partialorder %v1330, %v1347
  %vm1349 = vcmp.eq.f32.partialorder %v1331, %v1347
  %vm1350 = vcmp.eq.f32.partialorder %v1332, %v1347
  %vm1351 = vcmp.eq.f32.partialorder %v1333, %v1347
  %v1352 = vsel %vm1348, %v60, 16.0
  %v1353 = vsel %vm1349, %v430, 16.0
  %v1354 = vsel %vm1350, %v431, 16.0
  %v1355 = vsel %vm1351, %v432, 16.0
  %v1356 = vsel %vm61, %v1352, inf
  %v1357 = vsel %vm61, %v1353, inf
  %v1358 = vsel %vm61, %v1354, inf
  %v1359 = vsel %vm61, %v1355, inf
  %v1360 = vmin.f32 %v1356, %v1357
  %v1361 = vmin.f32 %v1358, %v1359
  %v1362 = vmin.f32 %v1360, %v1361
  %v1363 = vsel %vm61, %v1362, inf
  %v1364 = vrot.slane %v1363, 4
  %v1365 = vmin.f32 %v1363, %v1364
  %v1366 = vrot.slane %v1365, 2
  %v1367 = vmin.f32 %v1365, %v1366
  %v1368 = vrot.slane %v1367, 1
  %v1369 = vmin.f32 %v1367, %v1368
  %vm1370 = vcmp.eq.f32.partialorder %v60, %v1369
  %vm1371 = vcmp.eq.f32.partialorder %v430, %v1369
  %vm1372 = vcmp.eq.f32.partialorder %v431, %v1369
  %vm1373 = vcmp.eq.f32.partialorder %v432, %v1369
  %v1374 = vsel %vm1370, 1, 0
  %v1375 = vsel %vm1371, 1, 0
  %v1376 = vsel %vm1372, 1, 0
  %v1377 = vsel %vm1373, 1, 0
  %v1378 = vcvt.s32.f32 %v1374
  %v1379 = vcvt.s32.f32 %v1375
  %v1380 = vcvt.s32.f32 %v1376
  %v1381 = vcvt.s32.f32 %v1377
  %v1382 = vsel %vm61, %v1378, 0.0
  %v1383 = vrot.slane %v1382, 4
  %v1384 = vadd.f32 %v1382, %v1383
  %v1385 = vrot.slane %v1384, 2
  %v1386 = vadd.f32 %v1384, %v1385
  %v1387 = vrot.slane %v1386, 1
  %v1388 = vadd.f32 %v1386, %v1387
  %v1389 = vsel %vm61, %v1379, 0.0
  %v1390 = vrot.slane %v1389, 4
  %v1391 = vadd.f32 %v1389, %v1390
  %v1392 = vrot.slane %v1391, 2
  %v1393 = vadd.f32 %v1391, %v1392
  %v1394 = vrot.slane %v1393, 1
  %v1395 = vadd.f32 %v1393, %v1394
  %v1396 = vsel %vm61, %v1380, 0.0
  %v1397 = vrot.slane %v1396, 4
  %v1398 = vadd.f32 %v1396, %v1397
  %v1399 = vrot.slane %v1398, 2
  %v1400 = vadd.f32 %v1398, %v1399
  %v1401 = vrot.slane %v1400, 1
  %v1402 = vadd.f32 %v1400, %v1401
  %v1403 = vsel %vm61, %v1381, 0.0
  %v1404 = vrot.slane %v1403, 4
  %v1405 = vadd.f32 %v1403, %v1404
  %v1406 = vrot.slane %v1405, 2
  %v1407 = vadd.f32 %v1405, %v1406
  %v1408 = vrot.slane %v1407, 1
  %v1409 = vadd.f32 %v1407, %v1408
  %v1410 = vadd.f32 %v1382, %v1389
  %v1411 = vadd.f32 %v1410, %v1396
  %v1412 = vadd.f32 %v1411, %v1403
  %v1413 = vmul.f32 %v1388, %v220
  %v1414 = vmul.f32 %v1395, %v513
  %v1415 = vmul.f32 %v1402, %v514
  %v1416 = vmul.f32 %v1409, %v515
  %v1421 = vrot.slane %v1414, 7
  %v1422 = vsel %vm529, %v1421, %v1413
  %v1423 = vrot.slane %v1415, 6
  %v1424 = vsel %vm532, %v1423, %v1422
  %v1425 = vrot.slane %v1416, 5
  %v1426 = vsel %vm535, %v1425, %v1424
  %v1428 = vsel %vm61, %v1426, 0.0
  %v1429 = vrot.slane %v1428, 4
  %v1430 = vadd.f32 %v1428, %v1429
  %v1431 = vrot.slane %v1430, 2
  %v1432 = vadd.f32 %v1430, %v1431
  %v1433 = vrot.slane %v1432, 1
  %v1434 = vadd.f32 %v1432, %v1433
  %v1435 = vmul.f32 %v1388, %v223
  %v1436 = vmul.f32 %v1395, %v546
  %v1437 = vmul.f32 %v1402, %v547
  %v1438 = vmul.f32 %v1409, %v548
  %v1443 = vrot.slane %v1436, 7
  %v1444 = vsel %vm529, %v1443, %v1435
  %v1445 = vrot.slane %v1437, 6
  %v1446 = vsel %vm532, %v1445, %v1444
  %v1447 = vrot.slane %v1438, 5
  %v1448 = vsel %vm535, %v1447, %v1446
  %v1450 = vsel %vm61, %v1448, 0.0
  %v1451 = vrot.slane %v1450, 4
  %v1452 = vadd.f32 %v1450, %v1451
  %v1453 = vrot.slane %v1452, 2
  %v1454 = vadd.f32 %v1452, %v1453
  %v1455 = vrot.slane %v1454, 1
  %v1456 = vadd.f32 %v1454, %v1455
  %v1457 = vmul.f32 %v1412, %v27
  %v1458 = vsel %vm61, %v1457, 0.0
  %v1459 = vrot.slane %v1458, 4
  %v1460 = vadd.f32 %v1458, %v1459
  %v1461 = vrot.slane %v1460, 2
  %v1462 = vadd.f32 %v1460, %v1461
  %v1463 = vrot.slane %v1462, 1
  %v1464 = vadd.f32 %v1462, %v1463
  %v1465 = vmul.f32 %v1412, %v37
  %v1466 = vsel %vm61, %v1465, 0.0
  %v1467 = vrot.slane %v1466, 4
  %v1468 = vadd.f32 %v1466, %v1467
  %v1469 = vrot.slane %v1468, 2
  %v1470 = vadd.f32 %v1468, %v1469
  %v1471 = vrot.slane %v1470, 1
  %v1472 = vadd.f32 %v1470, %v1471
  %vm1473 = vcmp.gt.f32.partialorder %v1378, 0.0
  %vm1474 = vcmp.gt.f32.partialorder %v1379, 0.0
  %vm1475 = vcmp.gt.f32.partialorder %v1380, 0.0
  %vm1476 = vcmp.gt.f32.partialorder %v1381, 0.0
  %v1477 = vsel %vm1473, inf, %v1330
  %v1478 = vsel %vm1474, inf, %v1331
  %v1479 = vsel %vm1475, inf, %v1332
  %v1480 = vsel %vm1476, inf, %v1333
  %v1481 = vsel %vm61, %v1477, inf
  %v1482 = vsel %vm61, %v1478, inf
  %v1483 = vsel %vm61, %v1479, inf
  %v1484 = vsel %vm61, %v1480, inf
  %v1485 = vmin.f32 %v1481, %v1482
  %v1486 = vmin.f32 %v1483, %v1484
  %v1487 = vmin.f32 %v1485, %v1486
  %v1488 = vsel %vm61, %v1487, inf
  %v1489 = vrot.slane %v1488, 4
  %v1490 = vmin.f32 %v1488, %v1489
  %v1491 = vrot.slane %v1490, 2
  %v1492 = vmin.f32 %v1490, %v1491
  %v1493 = vrot.slane %v1492, 1
  %v1494 = vmin.f32 %v1492, %v1493
  %vm1495 = vcmp.eq.f32.partialorder %v1477, %v1494
  %vm1496 = vcmp.eq.f32.partialorder %v1478, %v1494
  %vm1497 = vcmp.eq.f32.partialorder %v1479, %v1494
  %vm1498 = vcmp.eq.f32.partialorder %v1480, %v1494
  %v1499 = vsel %vm1495, %v60, 16.0
  %v1500 = vsel %vm1496, %v430, 16.0
  %v1501 = vsel %vm1497, %v431, 16.0
  %v1502 = vsel %vm1498, %v432, 16.0
  %v1503 = vsel %vm61, %v1499, inf
  %v1504 = vsel %vm61, %v1500, inf
  %v1505 = vsel %vm61, %v1501, inf
  %v1506 = vsel %vm61, %v1502, inf
  %v1507 = vmin.f32 %v1503, %v1504
  %v1508 = vmin.f32 %v1505, %v1506
  %v1509 = vmin.f32 %v1507, %v1508
  %v1510 = vsel %vm61, %v1509, inf
  %v1511 = vrot.slane %v1510, 4
  %v1512 = vmin.f32 %v1510, %v1511
  %v1513 = vrot.slane %v1512, 2
  %v1514 = vmin.f32 %v1512, %v1513
  %v1515 = vrot.slane %v1514, 1
  %v1516 = vmin.f32 %v1514, %v1515
  %vm1517 = vcmp.eq.f32.partialorder %v60, %v1516
  %vm1518 = vcmp.eq.f32.partialorder %v430, %v1516
  %vm1519 = vcmp.eq.f32.partialorder %v431, %v1516
  %vm1520 = vcmp.eq.f32.partialorder %v432, %v1516
  %v1521 = vsel %vm1517, 1, 0
  %v1522 = vsel %vm1518, 1, 0
  %v1523 = vsel %vm1519, 1, 0
  %v1524 = vsel %vm1520, 1, 0
  %v1525 = vcvt.s32.f32 %v1521
  %v1526 = vcvt.s32.f32 %v1522
  %v1527 = vcvt.s32.f32 %v1523
  %v1528 = vcvt.s32.f32 %v1524
  %v1529 = vsel %vm61, %v1525, 0.0
  %v1530 = vrot.slane %v1529, 4
  %v1531 = vadd.f32 %v1529, %v1530
  %v1532 = vrot.slane %v1531, 2
  %v1533 = vadd.f32 %v1531, %v1532
  %v1534 = vrot.slane %v1533, 1
  %v1535 = vadd.f32 %v1533, %v1534
  %v1536 = vsel %vm61, %v1526, 0.0
  %v1537 = vrot.slane %v1536, 4
  %v1538 = vadd.f32 %v1536, %v1537
  %v1539 = vrot.slane %v1538, 2
  %v1540 = vadd.f32 %v1538, %v1539
  %v1541 = vrot.slane %v1540, 1
  %v1542 = vadd.f32 %v1540, %v1541
  %v1543 = vsel %vm61, %v1527, 0.0
  %v1544 = vrot.slane %v1543, 4
  %v1545 = vadd.f32 %v1543, %v1544
  %v1546 = vrot.slane %v1545, 2
  %v1547 = vadd.f32 %v1545, %v1546
  %v1548 = vrot.slane %v1547, 1
  %v1549 = vadd.f32 %v1547, %v1548
  %v1550 = vsel %vm61, %v1528, 0.0
  %v1551 = vrot.slane %v1550, 4
  %v1552 = vadd.f32 %v1550, %v1551
  %v1553 = vrot.slane %v1552, 2
  %v1554 = vadd.f32 %v1552, %v1553
  %v1555 = vrot.slane %v1554, 1
  %v1556 = vadd.f32 %v1554, %v1555
  %v1557 = vadd.f32 %v1529, %v1536
  %v1558 = vadd.f32 %v1557, %v1543
  %v1559 = vadd.f32 %v1558, %v1550
  %v1560 = vmul.f32 %v1535, %v220
  %v1561 = vmul.f32 %v1542, %v513
  %v1562 = vmul.f32 %v1549, %v514
  %v1563 = vmul.f32 %v1556, %v515
  %v1568 = vrot.slane %v1561, 7
  %v1569 = vsel %vm529, %v1568, %v1560
  %v1570 = vrot.slane %v1562, 6
  %v1571 = vsel %vm532, %v1570, %v1569
  %v1572 = vrot.slane %v1563, 5
  %v1573 = vsel %vm535, %v1572, %v1571
  %v1575 = vsel %vm61, %v1573, 0.0
  %v1576 = vrot.slane %v1575, 4
  %v1577 = vadd.f32 %v1575, %v1576
  %v1578 = vrot.slane %v1577, 2
  %v1579 = vadd.f32 %v1577, %v1578
  %v1580 = vrot.slane %v1579, 1
  %v1581 = vadd.f32 %v1579, %v1580
  %v1582 = vmul.f32 %v1535, %v223
  %v1583 = vmul.f32 %v1542, %v546
  %v1584 = vmul.f32 %v1549, %v547
  %v1585 = vmul.f32 %v1556, %v548
  %v1590 = vrot.slane %v1583, 7
  %v1591 = vsel %vm529, %v1590, %v1582
  %v1592 = vrot.slane %v1584, 6
  %v1593 = vsel %vm532, %v1592, %v1591
  %v1594 = vrot.slane %v1585, 5
  %v1595 = vsel %vm535, %v1594, %v1593
  %v1597 = vsel %vm61, %v1595, 0.0
  %v1598 = vrot.slane %v1597, 4
  %v1599 = vadd.f32 %v1597, %v1598
  %v1600 = vrot.slane %v1599, 2
  %v1601 = vadd.f32 %v1599, %v1600
  %v1602 = vrot.slane %v1601, 1
  %v1603 = vadd.f32 %v1601, %v1602
  %v1604 = vmul.f32 %v1559, %v27
  %v1605 = vsel %vm61, %v1604, 0.0
  %v1606 = vrot.slane %v1605, 4
  %v1607 = vadd.f32 %v1605, %v1606
  %v1608 = vrot.slane %v1607, 2
  %v1609 = vadd.f32 %v1607, %v1608
  %v1610 = vrot.slane %v1609, 1
  %v1611 = vadd.f32 %v1609, %v1610
  %v1612 = vmul.f32 %v1559, %v37
  %v1613 = vsel %vm61, %v1612, 0.0
  %v1614 = vrot.slane %v1613, 4
  %v1615 = vadd.f32 %v1613, %v1614
  %v1616 = vrot.slane %v1615, 2
  %v1617 = vadd.f32 %v1615, %v1616
  %v1618 = vrot.slane %v1617, 1
  %v1619 = vadd.f32 %v1617, %v1618
  %v1620 = vsel %vm212, %v446, %v612
  %v1621 = vsel %vm214, %v1620, %v759
  %v1622 = vsel %vm216, %v1621, %v906
  %v1623 = vsel %vm61, %v1622, %v1053
  %vm1624 = vcmask 1044480
  %v1625 = vsel %vm1624, %v1623, %v1200
  %vm1626 = vcmask 1045504
  %v1627 = vsel %vm1626, %v1625, %v1347
  %vm1628 = vcmask 1046528
  %v1629 = vsel %vm1628, %v1627, %v1494
  %v1631 = vrot.slane %v699, 7
  %v1634 = vrot.slane %v846, 6
  %v1637 = vrot.slane %v993, 5
  %v1640 = vrot.slane %v1140, 4
  %v1643 = vrot.slane %v1287, 3
  %v1646 = vrot.slane %v1434, 2
  %v1649 = vrot.slane %v1581, 1
  %v1651 = vsel %vm212, %v544, %v1631
  %v1652 = vsel %vm214, %v1651, %v1634
  %v1653 = vsel %vm216, %v1652, %v1637
  %v1654 = vsel %vm61, %v1653, %v1640
  %v1655 = vsel %vm1624, %v1654, %v1643
  %v1656 = vsel %vm1626, %v1655, %v1646
  %v1657 = vsel %vm1628, %v1656, %v1649
  %v1658 = vsel %vm212, %v582, %v729
  %v1659 = vsel %vm214, %v1658, %v876
  %v1660 = vsel %vm216, %v1659, %v1023
  %v1661 = vsel %vm61, %v1660, %v1170
  %v1662 = vsel %vm1624, %v1661, %v1317
  %v1663 = vsel %vm1626, %v1662, %v1464
  %v1664 = vsel %vm1628, %v1663, %v1611
  %v1666 = vrot.slane %v721, 7
  %v1669 = vrot.slane %v868, 6
  %v1672 = vrot.slane %v1015, 5
  %v1675 = vrot.slane %v1162, 4
  %v1678 = vrot.slane %v1309, 3
  %v1681 = vrot.slane %v1456, 2
  %v1684 = vrot.slane %v1603, 1
  %v1686 = vsel %vm212, %v574, %v1666
  %v1687 = vsel %vm214, %v1686, %v1669
  %v1688 = vsel %vm216, %v1687, %v1672
  %v1689 = vsel %vm61, %v1688, %v1675
  %v1690 = vsel %vm1624, %v1689, %v1678
  %v1691 = vsel %vm1626, %v1690, %v1681
  %v1692 = vsel %vm1628, %v1691, %v1684
  %v1693 = vsel %vm212, %v590, %v737
  %v1694 = vsel %vm214, %v1693, %v884
  %v1695 = vsel %vm216, %v1694, %v1031
  %v1696 = vsel %vm61, %v1695, %v1178
  %v1697 = vsel %vm1624, %v1696, %v1325
  %v1698 = vsel %vm1626, %v1697, %v1472
  %v1699 = vsel %vm1628, %v1698, %v1619
  %v1700 = vld [vmem:[%s0 + $0x1] sm:$0x1]
  %v1701 = vlaneseq
  %v1702 = vshrl.u32 %v1701, 7
  %v1703 = vsub.s32 0, %v1702
  %v1704 = vrot.slane %v1700, %v1703
  %v1705 = vld [vmem:[%s0 + $0x5] sm:$0x1]
  %v1706 = vlaneseq
  %v1707 = vshrl.u32 %v1706, 7
  %v1708 = vsub.s32 0, %v1707
  %v1709 = vrot.slane %v1705, %v1708
  %v1710 = vld [vmem:[%s1 + $0x7] sm:$0x1]
  %v1711 = vld [vmem:[%s1 + $0x17] sm:$0x1]
  %v1712 = vlaneseq
  %v1713 = vshrl.u32 %v1712, 7
  %v1714 = vsub.s32 0, %v1713
  %v1715 = vrot.slane %v1710, %v1714
  %v1716 = vmul.f32 %v1715, %v1657
  %v1717 = vlaneseq
  %v1718 = vshrl.u32 %v1717, 7
  %v1719 = vsub.s32 0, %v1718
  %v1720 = vrot.slane %v1711, %v1719
  %v1721 = vmul.f32 %v1720, %v1692
  %v1722 = vsub.f32 %v1716, %v1721
  %v1723 = vsub.f32 %v1704, %v1722
  %v1724 = vmul.f32 %v1715, %v1692
  %v1725 = vmul.f32 %v1720, %v1657
  %v1726 = vadd.f32 %v1724, %v1725
  %v1727 = vsub.f32 %v1709, %v1726
  %v1728 = vld [vmem:[%s1 + $0x6] sm:$0x1]
  %v1729 = vld [vmem:[%s1 + $0x16] sm:$0x1]
  %v1730 = vlaneseq
  %v1731 = vshrl.u32 %v1730, 7
  %v1732 = vsub.s32 0, %v1731
  %v1733 = vrot.slane %v1728, %v1732
  %v1734 = vmul.f32 %v1733, %v1664
  %v1735 = vlaneseq
  %v1736 = vshrl.u32 %v1735, 7
  %v1737 = vsub.s32 0, %v1736
  %v1738 = vrot.slane %v1729, %v1737
  %v1739 = vmul.f32 %v1738, %v1699
  %v1740 = vsub.f32 %v1734, %v1739
  %v1741 = vsub.f32 %v1723, %v1740
  %v1742 = vmul.f32 %v1733, %v1699
  %v1743 = vmul.f32 %v1738, %v1664
  %v1744 = vadd.f32 %v1742, %v1743
  %v1745 = vsub.f32 %v1727, %v1744
  %v1746 = vld [vmem:[%s1 + $0x5] sm:$0x1]
  %v1747 = vld [vmem:[%s1 + $0x15] sm:$0x1]
  %v1748 = vlaneseq
  %v1749 = vshrl.u32 %v1748, 7
  %v1750 = vsub.s32 0, %v1749
  %v1751 = vrot.slane %v1746, %v1750
  %v1752 = vmul.f32 %v1751, %v27
  %v1753 = vlaneseq
  %v1754 = vshrl.u32 %v1753, 7
  %v1755 = vsub.s32 0, %v1754
  %v1756 = vrot.slane %v1747, %v1755
  %v1757 = vmul.f32 %v1756, %v37
  %v1758 = vsub.f32 %v1752, %v1757
  %v1759 = vmul.f32 %v1751, %v37
  %v1760 = vmul.f32 %v1756, %v27
  %v1761 = vadd.f32 %v1759, %v1760
  %v1763 = vcombine.high %v1741, %v1741
  %v1765 = vunpack.c.l.s4 1966171168
  %v1766 = vunpack.c.0.s8 %v1765
  %v1767 = vlaneseq
  %v1768 = vshrl.u32 %v1767, 7
  %v1769 = vsub.s32 %v1766, %v1768
  %v1770 = vrot.slane %v1741, %v1769
  %v1772 = vunpack.c.l.s4 1966171168
  %v1773 = vunpack.c.0.s8 %v1772
  %v1774 = vlaneseq
  %v1775 = vshrl.u32 %v1774, 7
  %v1776 = vsub.s32 %v1773, %v1775
  %v1777 = vrot.slane %v1763, %v1776
  %v1778 = vcombine.high %v1770, %v1770
  %v1779 = vcombine.high %v1777, %v1777
  %v1781 = vunpack.c.l.s4 1966171168
  %v1782 = vunpack.c.0.s8 %v1781
  %v1783 = vlaneseq
  %v1784 = vshrl.u32 %v1783, 7
  %v1785 = vsub.s32 %v1782, %v1784
  %v1786 = vrot.slane %v1770, %v1785
  %v1788 = vunpack.c.l.s4 1966171168
  %v1789 = vunpack.c.0.s8 %v1788
  %v1790 = vlaneseq
  %v1791 = vshrl.u32 %v1790, 7
  %v1792 = vsub.s32 %v1789, %v1791
  %v1793 = vrot.slane %v1777, %v1792
  %v1795 = vunpack.c.l.s4 1966171168
  %v1796 = vunpack.c.0.s8 %v1795
  %v1797 = vlaneseq
  %v1798 = vshrl.u32 %v1797, 7
  %v1799 = vsub.s32 %v1796, %v1798
  %v1800 = vrot.slane %v1778, %v1799
  %v1802 = vunpack.c.l.s4 1966171168
  %v1803 = vunpack.c.0.s8 %v1802
  %v1804 = vlaneseq
  %v1805 = vshrl.u32 %v1804, 7
  %v1806 = vsub.s32 %v1803, %v1805
  %v1807 = vrot.slane %v1779, %v1806
  %v1808 = vcombine.high %v1786, %v1786
  %v1809 = vcombine.high %v1793, %v1793
  %v1810 = vcombine.high %v1800, %v1800
  %v1811 = vcombine.high %v1807, %v1807
  %v1812 = vlaneseq
  %v1813 = vshrl.u32 %v1812, 7
  %v1814 = vsub.s32 0, %v1813
  %v1815 = vrot.slane %v1786, %v1814
  %v1816 = vlaneseq
  %v1817 = vshrl.u32 %v1816, 7
  %v1818 = vsub.s32 0, %v1817
  %v1819 = vrot.slane %v1800, %v1818
  %v1820 = vlaneseq
  %v1821 = vshrl.u32 %v1820, 7
  %v1822 = vsub.s32 0, %v1821
  %v1823 = vrot.slane %v1808, %v1822
  %v1824 = vlaneseq
  %v1825 = vshrl.u32 %v1824, 7
  %v1826 = vsub.s32 0, %v1825
  %v1827 = vrot.slane %v1810, %v1826
  %v1828 = vlaneseq
  %v1829 = vshrl.u32 %v1828, 7
  %v1830 = vsub.s32 0, %v1829
  %v1831 = vrot.slane %v1793, %v1830
  %v1832 = vlaneseq
  %v1833 = vshrl.u32 %v1832, 7
  %v1834 = vsub.s32 0, %v1833
  %v1835 = vrot.slane %v1807, %v1834
  %v1836 = vlaneseq
  %v1837 = vshrl.u32 %v1836, 7
  %v1838 = vsub.s32 0, %v1837
  %v1839 = vrot.slane %v1809, %v1838
  %v1840 = vlaneseq
  %v1841 = vshrl.u32 %v1840, 7
  %v1842 = vsub.s32 0, %v1841
  %v1843 = vrot.slane %v1811, %v1842
  %v1852 = vsub.f32 %v1815, %v1758
  %v1853 = vsub.f32 %v1819, %v1758
  %v1854 = vsub.f32 %v1823, %v1758
  %v1855 = vsub.f32 %v1827, %v1758
  %v1856 = vsub.f32 %v1831, %v1758
  %v1857 = vsub.f32 %v1835, %v1758
  %v1858 = vsub.f32 %v1839, %v1758
  %v1859 = vsub.f32 %v1843, %v1758
  %v1861 = vcombine.high %v1745, %v1745
  %v1863 = vunpack.c.l.s4 1966171168
  %v1864 = vunpack.c.0.s8 %v1863
  %v1865 = vlaneseq
  %v1866 = vshrl.u32 %v1865, 7
  %v1867 = vsub.s32 %v1864, %v1866
  %v1868 = vrot.slane %v1745, %v1867
  %v1870 = vunpack.c.l.s4 1966171168
  %v1871 = vunpack.c.0.s8 %v1870
  %v1872 = vlaneseq
  %v1873 = vshrl.u32 %v1872, 7
  %v1874 = vsub.s32 %v1871, %v1873
  %v1875 = vrot.slane %v1861, %v1874
  %v1876 = vcombine.high %v1868, %v1868
  %v1877 = vcombine.high %v1875, %v1875
  %v1879 = vunpack.c.l.s4 1966171168
  %v1880 = vunpack.c.0.s8 %v1879
  %v1881 = vlaneseq
  %v1882 = vshrl.u32 %v1881, 7
  %v1883 = vsub.s32 %v1880, %v1882
  %v1884 = vrot.slane %v1868, %v1883
  %v1886 = vunpack.c.l.s4 1966171168
  %v1887 = vunpack.c.0.s8 %v1886
  %v1888 = vlaneseq
  %v1889 = vshrl.u32 %v1888, 7
  %v1890 = vsub.s32 %v1887, %v1889
  %v1891 = vrot.slane %v1875, %v1890
  %v1893 = vunpack.c.l.s4 1966171168
  %v1894 = vunpack.c.0.s8 %v1893
  %v1895 = vlaneseq
  %v1896 = vshrl.u32 %v1895, 7
  %v1897 = vsub.s32 %v1894, %v1896
  %v1898 = vrot.slane %v1876, %v1897
  %v1900 = vunpack.c.l.s4 1966171168
  %v1901 = vunpack.c.0.s8 %v1900
  %v1902 = vlaneseq
  %v1903 = vshrl.u32 %v1902, 7
  %v1904 = vsub.s32 %v1901, %v1903
  %v1905 = vrot.slane %v1877, %v1904
  %v1906 = vcombine.high %v1884, %v1884
  %v1907 = vcombine.high %v1891, %v1891
  %v1908 = vcombine.high %v1898, %v1898
  %v1909 = vcombine.high %v1905, %v1905
  %v1910 = vlaneseq
  %v1911 = vshrl.u32 %v1910, 7
  %v1912 = vsub.s32 0, %v1911
  %v1913 = vrot.slane %v1884, %v1912
  %v1914 = vlaneseq
  %v1915 = vshrl.u32 %v1914, 7
  %v1916 = vsub.s32 0, %v1915
  %v1917 = vrot.slane %v1898, %v1916
  %v1918 = vlaneseq
  %v1919 = vshrl.u32 %v1918, 7
  %v1920 = vsub.s32 0, %v1919
  %v1921 = vrot.slane %v1906, %v1920
  %v1922 = vlaneseq
  %v1923 = vshrl.u32 %v1922, 7
  %v1924 = vsub.s32 0, %v1923
  %v1925 = vrot.slane %v1908, %v1924
  %v1926 = vlaneseq
  %v1927 = vshrl.u32 %v1926, 7
  %v1928 = vsub.s32 0, %v1927
  %v1929 = vrot.slane %v1891, %v1928
  %v1930 = vlaneseq
  %v1931 = vshrl.u32 %v1930, 7
  %v1932 = vsub.s32 0, %v1931
  %v1933 = vrot.slane %v1905, %v1932
  %v1934 = vlaneseq
  %v1935 = vshrl.u32 %v1934, 7
  %v1936 = vsub.s32 0, %v1935
  %v1937 = vrot.slane %v1907, %v1936
  %v1938 = vlaneseq
  %v1939 = vshrl.u32 %v1938, 7
  %v1940 = vsub.s32 0, %v1939
  %v1941 = vrot.slane %v1909, %v1940
  %v1950 = vsub.f32 %v1913, %v1761
  %v1951 = vsub.f32 %v1917, %v1761
  %v1952 = vsub.f32 %v1921, %v1761
  %v1953 = vsub.f32 %v1925, %v1761
  %v1954 = vsub.f32 %v1929, %v1761
  %v1955 = vsub.f32 %v1933, %v1761
  %v1956 = vsub.f32 %v1937, %v1761
  %v1957 = vsub.f32 %v1941, %v1761
  %v1959 = vcombine.high %v1629, %v1629
  %v1961 = vunpack.c.l.s4 1966171168
  %v1962 = vunpack.c.0.s8 %v1961
  %v1963 = vlaneseq
  %v1964 = vshrl.u32 %v1963, 7
  %v1965 = vsub.s32 %v1962, %v1964
  %v1966 = vrot.slane %v1629, %v1965
  %v1968 = vunpack.c.l.s4 1966171168
  %v1969 = vunpack.c.0.s8 %v1968
  %v1970 = vlaneseq
  %v1971 = vshrl.u32 %v1970, 7
  %v1972 = vsub.s32 %v1969, %v1971
  %v1973 = vrot.slane %v1959, %v1972
  %v1974 = vcombine.high %v1966, %v1966
  %v1975 = vcombine.high %v1973, %v1973
  %v1977 = vunpack.c.l.s4 1966171168
  %v1978 = vunpack.c.0.s8 %v1977
  %v1979 = vlaneseq
  %v1980 = vshrl.u32 %v1979, 7
  %v1981 = vsub.s32 %v1978, %v1980
  %v1982 = vrot.slane %v1966, %v1981
  %v1984 = vunpack.c.l.s4 1966171168
  %v1985 = vunpack.c.0.s8 %v1984
  %v1986 = vlaneseq
  %v1987 = vshrl.u32 %v1986, 7
  %v1988 = vsub.s32 %v1985, %v1987
  %v1989 = vrot.slane %v1973, %v1988
  %v1991 = vunpack.c.l.s4 1966171168
  %v1992 = vunpack.c.0.s8 %v1991
  %v1993 = vlaneseq
  %v1994 = vshrl.u32 %v1993, 7
  %v1995 = vsub.s32 %v1992, %v1994
  %v1996 = vrot.slane %v1974, %v1995
  %v1998 = vunpack.c.l.s4 1966171168
  %v1999 = vunpack.c.0.s8 %v1998
  %v2000 = vlaneseq
  %v2001 = vshrl.u32 %v2000, 7
  %v2002 = vsub.s32 %v1999, %v2001
  %v2003 = vrot.slane %v1975, %v2002
  %v2004 = vcombine.high %v1982, %v1982
  %v2005 = vcombine.high %v1989, %v1989
  %v2006 = vcombine.high %v1996, %v1996
  %v2007 = vcombine.high %v2003, %v2003
  %v2008 = vmul.f32 %v1852, %v1852
  %v2009 = vmul.f32 %v1853, %v1853
  %v2010 = vmul.f32 %v1854, %v1854
  %v2011 = vmul.f32 %v1855, %v1855
  %v2012 = vmul.f32 %v1856, %v1856
  %v2013 = vmul.f32 %v1857, %v1857
  %v2014 = vmul.f32 %v1858, %v1858
  %v2015 = vmul.f32 %v1859, %v1859
  %v2016 = vlaneseq
  %v2017 = vshrl.u32 %v2016, 7
  %v2018 = vsub.s32 0, %v2017
  %v2019 = vrot.slane %v1982, %v2018
  %v2020 = vlaneseq
  %v2021 = vshrl.u32 %v2020, 7
  %v2022 = vsub.s32 0, %v2021
  %v2023 = vrot.slane %v1996, %v2022
  %v2024 = vlaneseq
  %v2025 = vshrl.u32 %v2024, 7
  %v2026 = vsub.s32 0, %v2025
  %v2027 = vrot.slane %v2004, %v2026
  %v2028 = vlaneseq
  %v2029 = vshrl.u32 %v2028, 7
  %v2030 = vsub.s32 0, %v2029
  %v2031 = vrot.slane %v2006, %v2030
  %v2032 = vlaneseq
  %v2033 = vshrl.u32 %v2032, 7
  %v2034 = vsub.s32 0, %v2033
  %v2035 = vrot.slane %v1989, %v2034
  %v2036 = vlaneseq
  %v2037 = vshrl.u32 %v2036, 7
  %v2038 = vsub.s32 0, %v2037
  %v2039 = vrot.slane %v2003, %v2038
  %v2040 = vlaneseq
  %v2041 = vshrl.u32 %v2040, 7
  %v2042 = vsub.s32 0, %v2041
  %v2043 = vrot.slane %v2005, %v2042
  %v2044 = vlaneseq
  %v2045 = vshrl.u32 %v2044, 7
  %v2046 = vsub.s32 0, %v2045
  %v2047 = vrot.slane %v2007, %v2046
  %v2056 = vadd.f32 %v2019, %v2008
  %v2057 = vadd.f32 %v2023, %v2009
  %v2058 = vadd.f32 %v2027, %v2010
  %v2059 = vadd.f32 %v2031, %v2011
  %v2060 = vadd.f32 %v2035, %v2012
  %v2061 = vadd.f32 %v2039, %v2013
  %v2062 = vadd.f32 %v2043, %v2014
  %v2063 = vadd.f32 %v2047, %v2015
  %v2064 = vmul.f32 %v1950, %v1950
  %v2065 = vmul.f32 %v1951, %v1951
  %v2066 = vmul.f32 %v1952, %v1952
  %v2067 = vmul.f32 %v1953, %v1953
  %v2068 = vmul.f32 %v1954, %v1954
  %v2069 = vmul.f32 %v1955, %v1955
  %v2070 = vmul.f32 %v1956, %v1956
  %v2071 = vmul.f32 %v1957, %v1957
  %v2072 = vadd.f32 %v2056, %v2064
  %v2073 = vadd.f32 %v2057, %v2065
  %v2074 = vadd.f32 %v2058, %v2066
  %v2075 = vadd.f32 %v2059, %v2067
  %v2076 = vadd.f32 %v2060, %v2068
  %v2077 = vadd.f32 %v2061, %v2069
  %v2078 = vadd.f32 %v2062, %v2070
  %v2079 = vadd.f32 %v2063, %v2071
  %v2080 = vadd.s32 %v59, 16
  %v2081 = vadd.s32 %v59, 20
  %v2082 = vadd.s32 %v59, 24
  %v2083 = vadd.s32 %v59, 28
  %v2084 = vcvt.s32.f32 %v2080
  %v2085 = vcvt.s32.f32 %v2081
  %v2086 = vcvt.s32.f32 %v2082
  %v2087 = vcvt.s32.f32 %v2083
  %v2088 = vsel %vm61, %v2072, inf
  %v2089 = vsel %vm61, %v2073, inf
  %v2090 = vsel %vm61, %v2074, inf
  %v2091 = vsel %vm61, %v2075, inf
  %v2092 = vsel %vm61, %v2076, inf
  %v2093 = vmin.f32 %v2088, %v2092
  %v2094 = vsel %vm61, %v2077, inf
  %v2095 = vmin.f32 %v2089, %v2094
  %v2096 = vsel %vm61, %v2078, inf
  %v2097 = vmin.f32 %v2090, %v2096
  %v2098 = vsel %vm61, %v2079, inf
  %v2099 = vmin.f32 %v2091, %v2098
  %v2100 = vmin.f32 %v2093, %v2095
  %v2101 = vmin.f32 %v2097, %v2099
  %v2102 = vmin.f32 %v2100, %v2101
  %v2103 = vsel %vm61, %v2102, inf
  %v2104 = vrot.slane %v2103, 4
  %v2105 = vmin.f32 %v2103, %v2104
  %v2106 = vrot.slane %v2105, 2
  %v2107 = vmin.f32 %v2105, %v2106
  %v2108 = vrot.slane %v2107, 1
  %v2109 = vmin.f32 %v2107, %v2108
  %vm2110 = vcmp.eq.f32.partialorder %v2072, %v2109
  %vm2111 = vcmp.eq.f32.partialorder %v2073, %v2109
  %vm2112 = vcmp.eq.f32.partialorder %v2074, %v2109
  %vm2113 = vcmp.eq.f32.partialorder %v2075, %v2109
  %vm2114 = vcmp.eq.f32.partialorder %v2076, %v2109
  %vm2115 = vcmp.eq.f32.partialorder %v2077, %v2109
  %vm2116 = vcmp.eq.f32.partialorder %v2078, %v2109
  %vm2117 = vcmp.eq.f32.partialorder %v2079, %v2109
  %v2118 = vsel %vm2110, %v60, 32.0
  %v2119 = vsel %vm2111, %v430, 32.0
  %v2120 = vsel %vm2112, %v431, 32.0
  %v2121 = vsel %vm2113, %v432, 32.0
  %v2122 = vsel %vm2114, %v2084, 32.0
  %v2123 = vsel %vm2115, %v2085, 32.0
  %v2124 = vsel %vm2116, %v2086, 32.0
  %v2125 = vsel %vm2117, %v2087, 32.0
  %v2126 = vsel %vm61, %v2118, inf
  %v2127 = vsel %vm61, %v2119, inf
  %v2128 = vsel %vm61, %v2120, inf
  %v2129 = vsel %vm61, %v2121, inf
  %v2130 = vsel %vm61, %v2122, inf
  %v2131 = vmin.f32 %v2126, %v2130
  %v2132 = vsel %vm61, %v2123, inf
  %v2133 = vmin.f32 %v2127, %v2132
  %v2134 = vsel %vm61, %v2124, inf
  %v2135 = vmin.f32 %v2128, %v2134
  %v2136 = vsel %vm61, %v2125, inf
  %v2137 = vmin.f32 %v2129, %v2136
  %v2138 = vmin.f32 %v2131, %v2133
  %v2139 = vmin.f32 %v2135, %v2137
  %v2140 = vmin.f32 %v2138, %v2139
  %v2141 = vsel %vm61, %v2140, inf
  %v2142 = vrot.slane %v2141, 4
  %v2143 = vmin.f32 %v2141, %v2142
  %v2144 = vrot.slane %v2143, 2
  %v2145 = vmin.f32 %v2143, %v2144
  %v2146 = vrot.slane %v2145, 1
  %v2147 = vmin.f32 %v2145, %v2146
  %vm2148 = vcmp.eq.f32.partialorder %v60, %v2147
  %vm2149 = vcmp.eq.f32.partialorder %v430, %v2147
  %vm2150 = vcmp.eq.f32.partialorder %v431, %v2147
  %vm2151 = vcmp.eq.f32.partialorder %v432, %v2147
  %vm2152 = vcmp.eq.f32.partialorder %v2084, %v2147
  %vm2153 = vcmp.eq.f32.partialorder %v2085, %v2147
  %vm2154 = vcmp.eq.f32.partialorder %v2086, %v2147
  %vm2155 = vcmp.eq.f32.partialorder %v2087, %v2147
  %v2156 = vsel %vm2148, 1, 0
  %v2157 = vsel %vm2149, 1, 0
  %v2158 = vsel %vm2150, 1, 0
  %v2159 = vsel %vm2151, 1, 0
  %v2160 = vsel %vm2152, 1, 0
  %v2161 = vsel %vm2153, 1, 0
  %v2162 = vsel %vm2154, 1, 0
  %v2163 = vsel %vm2155, 1, 0
  %v2164 = vcvt.s32.f32 %v2156
  %v2165 = vcvt.s32.f32 %v2157
  %v2166 = vcvt.s32.f32 %v2158
  %v2167 = vcvt.s32.f32 %v2159
  %v2168 = vcvt.s32.f32 %v2160
  %v2169 = vcvt.s32.f32 %v2161
  %v2170 = vcvt.s32.f32 %v2162
  %v2171 = vcvt.s32.f32 %v2163
  %v2172 = vsel %vm61, %v2164, 0.0
  %v2173 = vrot.slane %v2172, 4
  %v2174 = vadd.f32 %v2172, %v2173
  %v2175 = vrot.slane %v2174, 2
  %v2176 = vadd.f32 %v2174, %v2175
  %v2177 = vrot.slane %v2176, 1
  %v2178 = vadd.f32 %v2176, %v2177
  %v2179 = vsel %vm61, %v2165, 0.0
  %v2180 = vrot.slane %v2179, 4
  %v2181 = vadd.f32 %v2179, %v2180
  %v2182 = vrot.slane %v2181, 2
  %v2183 = vadd.f32 %v2181, %v2182
  %v2184 = vrot.slane %v2183, 1
  %v2185 = vadd.f32 %v2183, %v2184
  %v2186 = vsel %vm61, %v2166, 0.0
  %v2187 = vrot.slane %v2186, 4
  %v2188 = vadd.f32 %v2186, %v2187
  %v2189 = vrot.slane %v2188, 2
  %v2190 = vadd.f32 %v2188, %v2189
  %v2191 = vrot.slane %v2190, 1
  %v2192 = vadd.f32 %v2190, %v2191
  %v2193 = vsel %vm61, %v2167, 0.0
  %v2194 = vrot.slane %v2193, 4
  %v2195 = vadd.f32 %v2193, %v2194
  %v2196 = vrot.slane %v2195, 2
  %v2197 = vadd.f32 %v2195, %v2196
  %v2198 = vrot.slane %v2197, 1
  %v2199 = vadd.f32 %v2197, %v2198
  %v2200 = vsel %vm61, %v2168, 0.0
  %v2201 = vrot.slane %v2200, 4
  %v2202 = vadd.f32 %v2200, %v2201
  %v2203 = vrot.slane %v2202, 2
  %v2204 = vadd.f32 %v2202, %v2203
  %v2205 = vrot.slane %v2204, 1
  %v2206 = vadd.f32 %v2204, %v2205
  %v2207 = vsel %vm61, %v2169, 0.0
  %v2208 = vrot.slane %v2207, 4
  %v2209 = vadd.f32 %v2207, %v2208
  %v2210 = vrot.slane %v2209, 2
  %v2211 = vadd.f32 %v2209, %v2210
  %v2212 = vrot.slane %v2211, 1
  %v2213 = vadd.f32 %v2211, %v2212
  %v2214 = vsel %vm61, %v2170, 0.0
  %v2215 = vrot.slane %v2214, 4
  %v2216 = vadd.f32 %v2214, %v2215
  %v2217 = vrot.slane %v2216, 2
  %v2218 = vadd.f32 %v2216, %v2217
  %v2219 = vrot.slane %v2218, 1
  %v2220 = vadd.f32 %v2218, %v2219
  %v2221 = vsel %vm61, %v2171, 0.0
  %v2222 = vrot.slane %v2221, 4
  %v2223 = vadd.f32 %v2221, %v2222
  %v2224 = vrot.slane %v2223, 2
  %v2225 = vadd.f32 %v2223, %v2224
  %v2226 = vrot.slane %v2225, 1
  %v2227 = vadd.f32 %v2225, %v2226
  %v2228 = vadd.f32 %v2172, %v2179
  %v2229 = vadd.f32 %v2228, %v2186
  %v2230 = vadd.f32 %v2229, %v2193
  %v2231 = vadd.f32 %v2230, %v2200
  %v2232 = vadd.f32 %v2231, %v2207
  %v2233 = vadd.f32 %v2232, %v2214
  %v2234 = vadd.f32 %v2233, %v2221
  %v2236 = vrot.slane %v1657, 1
  %v2237 = vrot.slane %v1657, 2
  %v2238 = vrot.slane %v1657, 3
  %v2239 = vrot.slane %v1657, 4
  %v2240 = vrot.slane %v1657, 5
  %v2241 = vrot.slane %v1657, 6
  %v2242 = vrot.slane %v1657, 7
  %v2251 = vmul.f32 %v2178, %v1657
  %v2252 = vmul.f32 %v2185, %v2236
  %v2253 = vmul.f32 %v2192, %v2237
  %v2254 = vmul.f32 %v2199, %v2238
  %v2255 = vmul.f32 %v2206, %v2239
  %v2256 = vmul.f32 %v2213, %v2240
  %v2257 = vmul.f32 %v2220, %v2241
  %v2258 = vmul.f32 %v2227, %v2242
  %v2267 = vrot.slane %v2252, 7
  %v2268 = vsel %vm529, %v2267, %v2251
  %v2269 = vrot.slane %v2253, 6
  %v2270 = vsel %vm532, %v2269, %v2268
  %v2271 = vrot.slane %v2254, 5
  %v2272 = vsel %vm535, %v2271, %v2270
  %v2273 = vrot.slane %v2255, 4
  %vm2274 = vcmask 1044484
  %v2275 = vsel %vm2274, %v2273, %v2272
  %v2276 = vrot.slane %v2256, 3
  %vm2277 = vcmask 1045509
  %v2278 = vsel %vm2277, %v2276, %v2275
  %v2279 = vrot.slane %v2257, 2
  %vm2280 = vcmask 1046534
  %v2281 = vsel %vm2280, %v2279, %v2278
  %v2282 = vrot.slane %v2258, 1
  %vm2283 = vcmask 1047559
  %v2284 = vsel %vm2283, %v2282, %v2281
  %v2286 = vrot.slane %v2284, 4
  %v2287 = vadd.f32 %v2284, %v2286
  %v2288 = vrot.slane %v2287, 2
  %v2289 = vadd.f32 %v2287, %v2288
  %v2290 = vrot.slane %v2289, 1
  %v2291 = vadd.f32 %v2289, %v2290
  %v2293 = vrot.slane %v1692, 1
  %v2294 = vrot.slane %v1692, 2
  %v2295 = vrot.slane %v1692, 3
  %v2296 = vrot.slane %v1692, 4
  %v2297 = vrot.slane %v1692, 5
  %v2298 = vrot.slane %v1692, 6
  %v2299 = vrot.slane %v1692, 7
  %v2308 = vmul.f32 %v2178, %v1692
  %v2309 = vmul.f32 %v2185, %v2293
  %v2310 = vmul.f32 %v2192, %v2294
  %v2311 = vmul.f32 %v2199, %v2295
  %v2312 = vmul.f32 %v2206, %v2296
  %v2313 = vmul.f32 %v2213, %v2297
  %v2314 = vmul.f32 %v2220, %v2298
  %v2315 = vmul.f32 %v2227, %v2299
  %v2324 = vrot.slane %v2309, 7
  %v2325 = vsel %vm529, %v2324, %v2308
  %v2326 = vrot.slane %v2310, 6
  %v2327 = vsel %vm532, %v2326, %v2325
  %v2328 = vrot.slane %v2311, 5
  %v2329 = vsel %vm535, %v2328, %v2327
  %v2330 = vrot.slane %v2312, 4
  %v2331 = vsel %vm2274, %v2330, %v2329
  %v2332 = vrot.slane %v2313, 3
  %v2333 = vsel %vm2277, %v2332, %v2331
  %v2334 = vrot.slane %v2314, 2
  %v2335 = vsel %vm2280, %v2334, %v2333
  %v2336 = vrot.slane %v2315, 1
  %v2337 = vsel %vm2283, %v2336, %v2335
  %v2339 = vrot.slane %v2337, 4
  %v2340 = vadd.f32 %v2337, %v2339
  %v2341 = vrot.slane %v2340, 2
  %v2342 = vadd.f32 %v2340, %v2341
  %v2343 = vrot.slane %v2342, 1
  %v2344 = vadd.f32 %v2342, %v2343
  %v2346 = vrot.slane %v1664, 1
  %v2347 = vrot.slane %v1664, 2
  %v2348 = vrot.slane %v1664, 3
  %v2349 = vrot.slane %v1664, 4
  %v2350 = vrot.slane %v1664, 5
  %v2351 = vrot.slane %v1664, 6
  %v2352 = vrot.slane %v1664, 7
  %v2361 = vmul.f32 %v2178, %v1664
  %v2362 = vmul.f32 %v2185, %v2346
  %v2363 = vmul.f32 %v2192, %v2347
  %v2364 = vmul.f32 %v2199, %v2348
  %v2365 = vmul.f32 %v2206, %v2349
  %v2366 = vmul.f32 %v2213, %v2350
  %v2367 = vmul.f32 %v2220, %v2351
  %v2368 = vmul.f32 %v2227, %v2352
  %v2377 = vrot.slane %v2362, 7
  %v2378 = vsel %vm529, %v2377, %v2361
  %v2379 = vrot.slane %v2363, 6
  %v2380 = vsel %vm532, %v2379, %v2378
  %v2381 = vrot.slane %v2364, 5
  %v2382 = vsel %vm535, %v2381, %v2380
  %v2383 = vrot.slane %v2365, 4
  %v2384 = vsel %vm2274, %v2383, %v2382
  %v2385 = vrot.slane %v2366, 3
  %v2386 = vsel %vm2277, %v2385, %v2384
  %v2387 = vrot.slane %v2367, 2
  %v2388 = vsel %vm2280, %v2387, %v2386
  %v2389 = vrot.slane %v2368, 1
  %v2390 = vsel %vm2283, %v2389, %v2388
  %v2392 = vrot.slane %v2390, 4
  %v2393 = vadd.f32 %v2390, %v2392
  %v2394 = vrot.slane %v2393, 2
  %v2395 = vadd.f32 %v2393, %v2394
  %v2396 = vrot.slane %v2395, 1
  %v2397 = vadd.f32 %v2395, %v2396
  %v2399 = vrot.slane %v1699, 1
  %v2400 = vrot.slane %v1699, 2
  %v2401 = vrot.slane %v1699, 3
  %v2402 = vrot.slane %v1699, 4
  %v2403 = vrot.slane %v1699, 5
  %v2404 = vrot.slane %v1699, 6
  %v2405 = vrot.slane %v1699, 7
  %v2414 = vmul.f32 %v2178, %v1699
  %v2415 = vmul.f32 %v2185, %v2399
  %v2416 = vmul.f32 %v2192, %v2400
  %v2417 = vmul.f32 %v2199, %v2401
  %v2418 = vmul.f32 %v2206, %v2402
  %v2419 = vmul.f32 %v2213, %v2403
  %v2420 = vmul.f32 %v2220, %v2404
  %v2421 = vmul.f32 %v2227, %v2405
  %v2430 = vrot.slane %v2415, 7
  %v2431 = vsel %vm529, %v2430, %v2414
  %v2432 = vrot.slane %v2416, 6
  %v2433 = vsel %vm532, %v2432, %v2431
  %v2434 = vrot.slane %v2417, 5
  %v2435 = vsel %vm535, %v2434, %v2433
  %v2436 = vrot.slane %v2418, 4
  %v2437 = vsel %vm2274, %v2436, %v2435
  %v2438 = vrot.slane %v2419, 3
  %v2439 = vsel %vm2277, %v2438, %v2437
  %v2440 = vrot.slane %v2420, 2
  %v2441 = vsel %vm2280, %v2440, %v2439
  %v2442 = vrot.slane %v2421, 1
  %v2443 = vsel %vm2283, %v2442, %v2441
  %v2445 = vrot.slane %v2443, 4
  %v2446 = vadd.f32 %v2443, %v2445
  %v2447 = vrot.slane %v2446, 2
  %v2448 = vadd.f32 %v2446, %v2447
  %v2449 = vrot.slane %v2448, 1
  %v2450 = vadd.f32 %v2448, %v2449
  %v2451 = vmul.f32 %v2234, %v27
  %v2452 = vsel %vm61, %v2451, 0.0
  %v2453 = vrot.slane %v2452, 4
  %v2454 = vadd.f32 %v2452, %v2453
  %v2455 = vrot.slane %v2454, 2
  %v2456 = vadd.f32 %v2454, %v2455
  %v2457 = vrot.slane %v2456, 1
  %v2458 = vadd.f32 %v2456, %v2457
  %v2459 = vmul.f32 %v2234, %v37
  %v2460 = vsel %vm61, %v2459, 0.0
  %v2461 = vrot.slane %v2460, 4
  %v2462 = vadd.f32 %v2460, %v2461
  %v2463 = vrot.slane %v2462, 2
  %v2464 = vadd.f32 %v2462, %v2463
  %v2465 = vrot.slane %v2464, 1
  %v2466 = vadd.f32 %v2464, %v2465
  %vm2467 = vcmp.gt.f32.partialorder %v2164, 0.0
  %vm2468 = vcmp.gt.f32.partialorder %v2165, 0.0
  %vm2469 = vcmp.gt.f32.partialorder %v2166, 0.0
  %vm2470 = vcmp.gt.f32.partialorder %v2167, 0.0
  %vm2471 = vcmp.gt.f32.partialorder %v2168, 0.0
  %vm2472 = vcmp.gt.f32.partialorder %v2169, 0.0
  %vm2473 = vcmp.gt.f32.partialorder %v2170, 0.0
  %vm2474 = vcmp.gt.f32.partialorder %v2171, 0.0
  %v2475 = vsel %vm2467, inf, %v2072
  %v2476 = vsel %vm2468, inf, %v2073
  %v2477 = vsel %vm2469, inf, %v2074
  %v2478 = vsel %vm2470, inf, %v2075
  %v2479 = vsel %vm2471, inf, %v2076
  %v2480 = vsel %vm2472, inf, %v2077
  %v2481 = vsel %vm2473, inf, %v2078
  %v2482 = vsel %vm2474, inf, %v2079
  %v2483 = vsel %vm61, %v2475, inf
  %v2484 = vsel %vm61, %v2476, inf
  %v2485 = vsel %vm61, %v2477, inf
  %v2486 = vsel %vm61, %v2478, inf
  %v2487 = vsel %vm61, %v2479, inf
  %v2488 = vmin.f32 %v2483, %v2487
  %v2489 = vsel %vm61, %v2480, inf
  %v2490 = vmin.f32 %v2484, %v2489
  %v2491 = vsel %vm61, %v2481, inf
  %v2492 = vmin.f32 %v2485, %v2491
  %v2493 = vsel %vm61, %v2482, inf
  %v2494 = vmin.f32 %v2486, %v2493
  %v2495 = vmin.f32 %v2488, %v2490
  %v2496 = vmin.f32 %v2492, %v2494
  %v2497 = vmin.f32 %v2495, %v2496
  %v2498 = vsel %vm61, %v2497, inf
  %v2499 = vrot.slane %v2498, 4
  %v2500 = vmin.f32 %v2498, %v2499
  %v2501 = vrot.slane %v2500, 2
  %v2502 = vmin.f32 %v2500, %v2501
  %v2503 = vrot.slane %v2502, 1
  %v2504 = vmin.f32 %v2502, %v2503
  %vm2505 = vcmp.eq.f32.partialorder %v2475, %v2504
  %vm2506 = vcmp.eq.f32.partialorder %v2476, %v2504
  %vm2507 = vcmp.eq.f32.partialorder %v2477, %v2504
  %vm2508 = vcmp.eq.f32.partialorder %v2478, %v2504
  %vm2509 = vcmp.eq.f32.partialorder %v2479, %v2504
  %vm2510 = vcmp.eq.f32.partialorder %v2480, %v2504
  %vm2511 = vcmp.eq.f32.partialorder %v2481, %v2504
  %vm2512 = vcmp.eq.f32.partialorder %v2482, %v2504
  %v2513 = vsel %vm2505, %v60, 32.0
  %v2514 = vsel %vm2506, %v430, 32.0
  %v2515 = vsel %vm2507, %v431, 32.0
  %v2516 = vsel %vm2508, %v432, 32.0
  %v2517 = vsel %vm2509, %v2084, 32.0
  %v2518 = vsel %vm2510, %v2085, 32.0
  %v2519 = vsel %vm2511, %v2086, 32.0
  %v2520 = vsel %vm2512, %v2087, 32.0
  %v2521 = vsel %vm61, %v2513, inf
  %v2522 = vsel %vm61, %v2514, inf
  %v2523 = vsel %vm61, %v2515, inf
  %v2524 = vsel %vm61, %v2516, inf
  %v2525 = vsel %vm61, %v2517, inf
  %v2526 = vmin.f32 %v2521, %v2525
  %v2527 = vsel %vm61, %v2518, inf
  %v2528 = vmin.f32 %v2522, %v2527
  %v2529 = vsel %vm61, %v2519, inf
  %v2530 = vmin.f32 %v2523, %v2529
  %v2531 = vsel %vm61, %v2520, inf
  %v2532 = vmin.f32 %v2524, %v2531
  %v2533 = vmin.f32 %v2526, %v2528
  %v2534 = vmin.f32 %v2530, %v2532
  %v2535 = vmin.f32 %v2533, %v2534
  %v2536 = vsel %vm61, %v2535, inf
  %v2537 = vrot.slane %v2536, 4
  %v2538 = vmin.f32 %v2536, %v2537
  %v2539 = vrot.slane %v2538, 2
  %v2540 = vmin.f32 %v2538, %v2539
  %v2541 = vrot.slane %v2540, 1
  %v2542 = vmin.f32 %v2540, %v2541
  %vm2543 = vcmp.eq.f32.partialorder %v60, %v2542
  %vm2544 = vcmp.eq.f32.partialorder %v430, %v2542
  %vm2545 = vcmp.eq.f32.partialorder %v431, %v2542
  %vm2546 = vcmp.eq.f32.partialorder %v432, %v2542
  %vm2547 = vcmp.eq.f32.partialorder %v2084, %v2542
  %vm2548 = vcmp.eq.f32.partialorder %v2085, %v2542
  %vm2549 = vcmp.eq.f32.partialorder %v2086, %v2542
  %vm2550 = vcmp.eq.f32.partialorder %v2087, %v2542
  %v2551 = vsel %vm2543, 1, 0
  %v2552 = vsel %vm2544, 1, 0
  %v2553 = vsel %vm2545, 1, 0
  %v2554 = vsel %vm2546, 1, 0
  %v2555 = vsel %vm2547, 1, 0
  %v2556 = vsel %vm2548, 1, 0
  %v2557 = vsel %vm2549, 1, 0
  %v2558 = vsel %vm2550, 1, 0
  %v2559 = vcvt.s32.f32 %v2551
  %v2560 = vcvt.s32.f32 %v2552
  %v2561 = vcvt.s32.f32 %v2553
  %v2562 = vcvt.s32.f32 %v2554
  %v2563 = vcvt.s32.f32 %v2555
  %v2564 = vcvt.s32.f32 %v2556
  %v2565 = vcvt.s32.f32 %v2557
  %v2566 = vcvt.s32.f32 %v2558
  %v2567 = vsel %vm61, %v2559, 0.0
  %v2568 = vrot.slane %v2567, 4
  %v2569 = vadd.f32 %v2567, %v2568
  %v2570 = vrot.slane %v2569, 2
  %v2571 = vadd.f32 %v2569, %v2570
  %v2572 = vrot.slane %v2571, 1
  %v2573 = vadd.f32 %v2571, %v2572
  %v2574 = vsel %vm61, %v2560, 0.0
  %v2575 = vrot.slane %v2574, 4
  %v2576 = vadd.f32 %v2574, %v2575
  %v2577 = vrot.slane %v2576, 2
  %v2578 = vadd.f32 %v2576, %v2577
  %v2579 = vrot.slane %v2578, 1
  %v2580 = vadd.f32 %v2578, %v2579
  %v2581 = vsel %vm61, %v2561, 0.0
  %v2582 = vrot.slane %v2581, 4
  %v2583 = vadd.f32 %v2581, %v2582
  %v2584 = vrot.slane %v2583, 2
  %v2585 = vadd.f32 %v2583, %v2584
  %v2586 = vrot.slane %v2585, 1
  %v2587 = vadd.f32 %v2585, %v2586
  %v2588 = vsel %vm61, %v2562, 0.0
  %v2589 = vrot.slane %v2588, 4
  %v2590 = vadd.f32 %v2588, %v2589
  %v2591 = vrot.slane %v2590, 2
  %v2592 = vadd.f32 %v2590, %v2591
  %v2593 = vrot.slane %v2592, 1
  %v2594 = vadd.f32 %v2592, %v2593
  %v2595 = vsel %vm61, %v2563, 0.0
  %v2596 = vrot.slane %v2595, 4
  %v2597 = vadd.f32 %v2595, %v2596
  %v2598 = vrot.slane %v2597, 2
  %v2599 = vadd.f32 %v2597, %v2598
  %v2600 = vrot.slane %v2599, 1
  %v2601 = vadd.f32 %v2599, %v2600
  %v2602 = vsel %vm61, %v2564, 0.0
  %v2603 = vrot.slane %v2602, 4
  %v2604 = vadd.f32 %v2602, %v2603
  %v2605 = vrot.slane %v2604, 2
  %v2606 = vadd.f32 %v2604, %v2605
  %v2607 = vrot.slane %v2606, 1
  %v2608 = vadd.f32 %v2606, %v2607
  %v2609 = vsel %vm61, %v2565, 0.0
  %v2610 = vrot.slane %v2609, 4
  %v2611 = vadd.f32 %v2609, %v2610
  %v2612 = vrot.slane %v2611, 2
  %v2613 = vadd.f32 %v2611, %v2612
  %v2614 = vrot.slane %v2613, 1
  %v2615 = vadd.f32 %v2613, %v2614
  %v2616 = vsel %vm61, %v2566, 0.0
  %v2617 = vrot.slane %v2616, 4
  %v2618 = vadd.f32 %v2616, %v2617
  %v2619 = vrot.slane %v2618, 2
  %v2620 = vadd.f32 %v2618, %v2619
  %v2621 = vrot.slane %v2620, 1
  %v2622 = vadd.f32 %v2620, %v2621
  %v2623 = vadd.f32 %v2567, %v2574
  %v2624 = vadd.f32 %v2623, %v2581
  %v2625 = vadd.f32 %v2624, %v2588
  %v2626 = vadd.f32 %v2625, %v2595
  %v2627 = vadd.f32 %v2626, %v2602
  %v2628 = vadd.f32 %v2627, %v2609
  %v2629 = vadd.f32 %v2628, %v2616
  %v2630 = vmul.f32 %v2573, %v1657
  %v2631 = vmul.f32 %v2580, %v2236
  %v2632 = vmul.f32 %v2587, %v2237
  %v2633 = vmul.f32 %v2594, %v2238
  %v2634 = vmul.f32 %v2601, %v2239
  %v2635 = vmul.f32 %v2608, %v2240
  %v2636 = vmul.f32 %v2615, %v2241
  %v2637 = vmul.f32 %v2622, %v2242
  %v2646 = vrot.slane %v2631, 7
  %v2647 = vsel %vm529, %v2646, %v2630
  %v2648 = vrot.slane %v2632, 6
  %v2649 = vsel %vm532, %v2648, %v2647
  %v2650 = vrot.slane %v2633, 5
  %v2651 = vsel %vm535, %v2650, %v2649
  %v2652 = vrot.slane %v2634, 4
  %v2653 = vsel %vm2274, %v2652, %v2651
  %v2654 = vrot.slane %v2635, 3
  %v2655 = vsel %vm2277, %v2654, %v2653
  %v2656 = vrot.slane %v2636, 2
  %v2657 = vsel %vm2280, %v2656, %v2655
  %v2658 = vrot.slane %v2637, 1
  %v2659 = vsel %vm2283, %v2658, %v2657
  %v2661 = vrot.slane %v2659, 4
  %v2662 = vadd.f32 %v2659, %v2661
  %v2663 = vrot.slane %v2662, 2
  %v2664 = vadd.f32 %v2662, %v2663
  %v2665 = vrot.slane %v2664, 1
  %v2666 = vadd.f32 %v2664, %v2665
  %v2667 = vmul.f32 %v2573, %v1692
  %v2668 = vmul.f32 %v2580, %v2293
  %v2669 = vmul.f32 %v2587, %v2294
  %v2670 = vmul.f32 %v2594, %v2295
  %v2671 = vmul.f32 %v2601, %v2296
  %v2672 = vmul.f32 %v2608, %v2297
  %v2673 = vmul.f32 %v2615, %v2298
  %v2674 = vmul.f32 %v2622, %v2299
  %v2683 = vrot.slane %v2668, 7
  %v2684 = vsel %vm529, %v2683, %v2667
  %v2685 = vrot.slane %v2669, 6
  %v2686 = vsel %vm532, %v2685, %v2684
  %v2687 = vrot.slane %v2670, 5
  %v2688 = vsel %vm535, %v2687, %v2686
  %v2689 = vrot.slane %v2671, 4
  %v2690 = vsel %vm2274, %v2689, %v2688
  %v2691 = vrot.slane %v2672, 3
  %v2692 = vsel %vm2277, %v2691, %v2690
  %v2693 = vrot.slane %v2673, 2
  %v2694 = vsel %vm2280, %v2693, %v2692
  %v2695 = vrot.slane %v2674, 1
  %v2696 = vsel %vm2283, %v2695, %v2694
  %v2698 = vrot.slane %v2696, 4
  %v2699 = vadd.f32 %v2696, %v2698
  %v2700 = vrot.slane %v2699, 2
  %v2701 = vadd.f32 %v2699, %v2700
  %v2702 = vrot.slane %v2701, 1
  %v2703 = vadd.f32 %v2701, %v2702
  %v2704 = vmul.f32 %v2573, %v1664
  %v2705 = vmul.f32 %v2580, %v2346
  %v2706 = vmul.f32 %v2587, %v2347
  %v2707 = vmul.f32 %v2594, %v2348
  %v2708 = vmul.f32 %v2601, %v2349
  %v2709 = vmul.f32 %v2608, %v2350
  %v2710 = vmul.f32 %v2615, %v2351
  %v2711 = vmul.f32 %v2622, %v2352
  %v2720 = vrot.slane %v2705, 7
  %v2721 = vsel %vm529, %v2720, %v2704
  %v2722 = vrot.slane %v2706, 6
  %v2723 = vsel %vm532, %v2722, %v2721
  %v2724 = vrot.slane %v2707, 5
  %v2725 = vsel %vm535, %v2724, %v2723
  %v2726 = vrot.slane %v2708, 4
  %v2727 = vsel %vm2274, %v2726, %v2725
  %v2728 = vrot.slane %v2709, 3
  %v2729 = vsel %vm2277, %v2728, %v2727
  %v2730 = vrot.slane %v2710, 2
  %v2731 = vsel %vm2280, %v2730, %v2729
  %v2732 = vrot.slane %v2711, 1
  %v2733 = vsel %vm2283, %v2732, %v2731
  %v2735 = vrot.slane %v2733, 4
  %v2736 = vadd.f32 %v2733, %v2735
  %v2737 = vrot.slane %v2736, 2
  %v2738 = vadd.f32 %v2736, %v2737
  %v2739 = vrot.slane %v2738, 1
  %v2740 = vadd.f32 %v2738, %v2739
  %v2741 = vmul.f32 %v2573, %v1699
  %v2742 = vmul.f32 %v2580, %v2399
  %v2743 = vmul.f32 %v2587, %v2400
  %v2744 = vmul.f32 %v2594, %v2401
  %v2745 = vmul.f32 %v2601, %v2402
  %v2746 = vmul.f32 %v2608, %v2403
  %v2747 = vmul.f32 %v2615, %v2404
  %v2748 = vmul.f32 %v2622, %v2405
  %v2757 = vrot.slane %v2742, 7
  %v2758 = vsel %vm529, %v2757, %v2741
  %v2759 = vrot.slane %v2743, 6
  %v2760 = vsel %vm532, %v2759, %v2758
  %v2761 = vrot.slane %v2744, 5
  %v2762 = vsel %vm535, %v2761, %v2760
  %v2763 = vrot.slane %v2745, 4
  %v2764 = vsel %vm2274, %v2763, %v2762
  %v2765 = vrot.slane %v2746, 3
  %v2766 = vsel %vm2277, %v2765, %v2764
  %v2767 = vrot.slane %v2747, 2
  %v2768 = vsel %vm2280, %v2767, %v2766
  %v2769 = vrot.slane %v2748, 1
  %v2770 = vsel %vm2283, %v2769, %v2768
  %v2772 = vrot.slane %v2770, 4
  %v2773 = vadd.f32 %v2770, %v2772
  %v2774 = vrot.slane %v2773, 2
  %v2775 = vadd.f32 %v2773, %v2774
  %v2776 = vrot.slane %v2775, 1
  %v2777 = vadd.f32 %v2775, %v2776
  %v2778 = vmul.f32 %v2629, %v27
  %v2779 = vsel %vm61, %v2778, 0.0
  %v2780 = vrot.slane %v2779, 4
  %v2781 = vadd.f32 %v2779, %v2780
  %v2782 = vrot.slane %v2781, 2
  %v2783 = vadd.f32 %v2781, %v2782
  %v2784 = vrot.slane %v2783, 1
  %v2785 = vadd.f32 %v2783, %v2784
  %v2786 = vmul.f32 %v2629, %v37
  %v2787 = vsel %vm61, %v2786, 0.0
  %v2788 = vrot.slane %v2787, 4
  %v2789 = vadd.f32 %v2787, %v2788
  %v2790 = vrot.slane %v2789, 2
  %v2791 = vadd.f32 %v2789, %v2790
  %v2792 = vrot.slane %v2791, 1
  %v2793 = vadd.f32 %v2791, %v2792
  %vm2794 = vcmp.gt.f32.partialorder %v2559, 0.0
  %vm2795 = vcmp.gt.f32.partialorder %v2560, 0.0
  %vm2796 = vcmp.gt.f32.partialorder %v2561, 0.0
  %vm2797 = vcmp.gt.f32.partialorder %v2562, 0.0
  %vm2798 = vcmp.gt.f32.partialorder %v2563, 0.0
  %vm2799 = vcmp.gt.f32.partialorder %v2564, 0.0
  %vm2800 = vcmp.gt.f32.partialorder %v2565, 0.0
  %vm2801 = vcmp.gt.f32.partialorder %v2566, 0.0
  %v2802 = vsel %vm2794, inf, %v2475
  %v2803 = vsel %vm2795, inf, %v2476
  %v2804 = vsel %vm2796, inf, %v2477
  %v2805 = vsel %vm2797, inf, %v2478
  %v2806 = vsel %vm2798, inf, %v2479
  %v2807 = vsel %vm2799, inf, %v2480
  %v2808 = vsel %vm2800, inf, %v2481
  %v2809 = vsel %vm2801, inf, %v2482
  %v2810 = vsel %vm61, %v2802, inf
  %v2811 = vsel %vm61, %v2803, inf
  %v2812 = vsel %vm61, %v2804, inf
  %v2813 = vsel %vm61, %v2805, inf
  %v2814 = vsel %vm61, %v2806, inf
  %v2815 = vmin.f32 %v2810, %v2814
  %v2816 = vsel %vm61, %v2807, inf
  %v2817 = vmin.f32 %v2811, %v2816
  %v2818 = vsel %vm61, %v2808, inf
  %v2819 = vmin.f32 %v2812, %v2818
  %v2820 = vsel %vm61, %v2809, inf
  %v2821 = vmin.f32 %v2813, %v2820
  %v2822 = vmin.f32 %v2815, %v2817
  %v2823 = vmin.f32 %v2819, %v2821
  %v2824 = vmin.f32 %v2822, %v2823
  %v2825 = vsel %vm61, %v2824, inf
  %v2826 = vrot.slane %v2825, 4
  %v2827 = vmin.f32 %v2825, %v2826
  %v2828 = vrot.slane %v2827, 2
  %v2829 = vmin.f32 %v2827, %v2828
  %v2830 = vrot.slane %v2829, 1
  %v2831 = vmin.f32 %v2829, %v2830
  %vm2832 = vcmp.eq.f32.partialorder %v2802, %v2831
  %vm2833 = vcmp.eq.f32.partialorder %v2803, %v2831
  %vm2834 = vcmp.eq.f32.partialorder %v2804, %v2831
  %vm2835 = vcmp.eq.f32.partialorder %v2805, %v2831
  %vm2836 = vcmp.eq.f32.partialorder %v2806, %v2831
  %vm2837 = vcmp.eq.f32.partialorder %v2807, %v2831
  %vm2838 = vcmp.eq.f32.partialorder %v2808, %v2831
  %vm2839 = vcmp.eq.f32.partialorder %v2809, %v2831
  %v2840 = vsel %vm2832, %v60, 32.0
  %v2841 = vsel %vm2833, %v430, 32.0
  %v2842 = vsel %vm2834, %v431, 32.0
  %v2843 = vsel %vm2835, %v432, 32.0
  %v2844 = vsel %vm2836, %v2084, 32.0
  %v2845 = vsel %vm2837, %v2085, 32.0
  %v2846 = vsel %vm2838, %v2086, 32.0
  %v2847 = vsel %vm2839, %v2087, 32.0
  %v2848 = vsel %vm61, %v2840, inf
  %v2849 = vsel %vm61, %v2841, inf
  %v2850 = vsel %vm61, %v2842, inf
  %v2851 = vsel %vm61, %v2843, inf
  %v2852 = vsel %vm61, %v2844, inf
  %v2853 = vmin.f32 %v2848, %v2852
  %v2854 = vsel %vm61, %v2845, inf
  %v2855 = vmin.f32 %v2849, %v2854
  %v2856 = vsel %vm61, %v2846, inf
  %v2857 = vmin.f32 %v2850, %v2856
  %v2858 = vsel %vm61, %v2847, inf
  %v2859 = vmin.f32 %v2851, %v2858
  %v2860 = vmin.f32 %v2853, %v2855
  %v2861 = vmin.f32 %v2857, %v2859
  %v2862 = vmin.f32 %v2860, %v2861
  %v2863 = vsel %vm61, %v2862, inf
  %v2864 = vrot.slane %v2863, 4
  %v2865 = vmin.f32 %v2863, %v2864
  %v2866 = vrot.slane %v2865, 2
  %v2867 = vmin.f32 %v2865, %v2866
  %v2868 = vrot.slane %v2867, 1
  %v2869 = vmin.f32 %v2867, %v2868
  %vm2870 = vcmp.eq.f32.partialorder %v60, %v2869
  %vm2871 = vcmp.eq.f32.partialorder %v430, %v2869
  %vm2872 = vcmp.eq.f32.partialorder %v431, %v2869
  %vm2873 = vcmp.eq.f32.partialorder %v432, %v2869
  %vm2874 = vcmp.eq.f32.partialorder %v2084, %v2869
  %vm2875 = vcmp.eq.f32.partialorder %v2085, %v2869
  %vm2876 = vcmp.eq.f32.partialorder %v2086, %v2869
  %vm2877 = vcmp.eq.f32.partialorder %v2087, %v2869
  %v2878 = vsel %vm2870, 1, 0
  %v2879 = vsel %vm2871, 1, 0
  %v2880 = vsel %vm2872, 1, 0
  %v2881 = vsel %vm2873, 1, 0
  %v2882 = vsel %vm2874, 1, 0
  %v2883 = vsel %vm2875, 1, 0
  %v2884 = vsel %vm2876, 1, 0
  %v2885 = vsel %vm2877, 1, 0
  %v2886 = vcvt.s32.f32 %v2878
  %v2887 = vcvt.s32.f32 %v2879
  %v2888 = vcvt.s32.f32 %v2880
  %v2889 = vcvt.s32.f32 %v2881
  %v2890 = vcvt.s32.f32 %v2882
  %v2891 = vcvt.s32.f32 %v2883
  %v2892 = vcvt.s32.f32 %v2884
  %v2893 = vcvt.s32.f32 %v2885
  %v2894 = vsel %vm61, %v2886, 0.0
  %v2895 = vrot.slane %v2894, 4
  %v2896 = vadd.f32 %v2894, %v2895
  %v2897 = vrot.slane %v2896, 2
  %v2898 = vadd.f32 %v2896, %v2897
  %v2899 = vrot.slane %v2898, 1
  %v2900 = vadd.f32 %v2898, %v2899
  %v2901 = vsel %vm61, %v2887, 0.0
  %v2902 = vrot.slane %v2901, 4
  %v2903 = vadd.f32 %v2901, %v2902
  %v2904 = vrot.slane %v2903, 2
  %v2905 = vadd.f32 %v2903, %v2904
  %v2906 = vrot.slane %v2905, 1
  %v2907 = vadd.f32 %v2905, %v2906
  %v2908 = vsel %vm61, %v2888, 0.0
  %v2909 = vrot.slane %v2908, 4
  %v2910 = vadd.f32 %v2908, %v2909
  %v2911 = vrot.slane %v2910, 2
  %v2912 = vadd.f32 %v2910, %v2911
  %v2913 = vrot.slane %v2912, 1
  %v2914 = vadd.f32 %v2912, %v2913
  %v2915 = vsel %vm61, %v2889, 0.0
  %v2916 = vrot.slane %v2915, 4
  %v2917 = vadd.f32 %v2915, %v2916
  %v2918 = vrot.slane %v2917, 2
  %v2919 = vadd.f32 %v2917, %v2918
  %v2920 = vrot.slane %v2919, 1
  %v2921 = vadd.f32 %v2919, %v2920
  %v2922 = vsel %vm61, %v2890, 0.0
  %v2923 = vrot.slane %v2922, 4
  %v2924 = vadd.f32 %v2922, %v2923
  %v2925 = vrot.slane %v2924, 2
  %v2926 = vadd.f32 %v2924, %v2925
  %v2927 = vrot.slane %v2926, 1
  %v2928 = vadd.f32 %v2926, %v2927
  %v2929 = vsel %vm61, %v2891, 0.0
  %v2930 = vrot.slane %v2929, 4
  %v2931 = vadd.f32 %v2929, %v2930
  %v2932 = vrot.slane %v2931, 2
  %v2933 = vadd.f32 %v2931, %v2932
  %v2934 = vrot.slane %v2933, 1
  %v2935 = vadd.f32 %v2933, %v2934
  %v2936 = vsel %vm61, %v2892, 0.0
  %v2937 = vrot.slane %v2936, 4
  %v2938 = vadd.f32 %v2936, %v2937
  %v2939 = vrot.slane %v2938, 2
  %v2940 = vadd.f32 %v2938, %v2939
  %v2941 = vrot.slane %v2940, 1
  %v2942 = vadd.f32 %v2940, %v2941
  %v2943 = vsel %vm61, %v2893, 0.0
  %v2944 = vrot.slane %v2943, 4
  %v2945 = vadd.f32 %v2943, %v2944
  %v2946 = vrot.slane %v2945, 2
  %v2947 = vadd.f32 %v2945, %v2946
  %v2948 = vrot.slane %v2947, 1
  %v2949 = vadd.f32 %v2947, %v2948
  %v2950 = vadd.f32 %v2894, %v2901
  %v2951 = vadd.f32 %v2950, %v2908
  %v2952 = vadd.f32 %v2951, %v2915
  %v2953 = vadd.f32 %v2952, %v2922
  %v2954 = vadd.f32 %v2953, %v2929
  %v2955 = vadd.f32 %v2954, %v2936
  %v2956 = vadd.f32 %v2955, %v2943
  %v2957 = vmul.f32 %v2900, %v1657
  %v2958 = vmul.f32 %v2907, %v2236
  %v2959 = vmul.f32 %v2914, %v2237
  %v2960 = vmul.f32 %v2921, %v2238
  %v2961 = vmul.f32 %v2928, %v2239
  %v2962 = vmul.f32 %v2935, %v2240
  %v2963 = vmul.f32 %v2942, %v2241
  %v2964 = vmul.f32 %v2949, %v2242
  %v2973 = vrot.slane %v2958, 7
  %v2974 = vsel %vm529, %v2973, %v2957
  %v2975 = vrot.slane %v2959, 6
  %v2976 = vsel %vm532, %v2975, %v2974
  %v2977 = vrot.slane %v2960, 5
  %v2978 = vsel %vm535, %v2977, %v2976
  %v2979 = vrot.slane %v2961, 4
  %v2980 = vsel %vm2274, %v2979, %v2978
  %v2981 = vrot.slane %v2962, 3
  %v2982 = vsel %vm2277, %v2981, %v2980
  %v2983 = vrot.slane %v2963, 2
  %v2984 = vsel %vm2280, %v2983, %v2982
  %v2985 = vrot.slane %v2964, 1
  %v2986 = vsel %vm2283, %v2985, %v2984
  %v2988 = vrot.slane %v2986, 4
  %v2989 = vadd.f32 %v2986, %v2988
  %v2990 = vrot.slane %v2989, 2
  %v2991 = vadd.f32 %v2989, %v2990
  %v2992 = vrot.slane %v2991, 1
  %v2993 = vadd.f32 %v2991, %v2992
  %v2994 = vmul.f32 %v2900, %v1692
  %v2995 = vmul.f32 %v2907, %v2293
  %v2996 = vmul.f32 %v2914, %v2294
  %v2997 = vmul.f32 %v2921, %v2295
  %v2998 = vmul.f32 %v2928, %v2296
  %v2999 = vmul.f32 %v2935, %v2297
  %v3000 = vmul.f32 %v2942, %v2298
  %v3001 = vmul.f32 %v2949, %v2299
  %v3010 = vrot.slane %v2995, 7
  %v3011 = vsel %vm529, %v3010, %v2994
  %v3012 = vrot.slane %v2996, 6
  %v3013 = vsel %vm532, %v3012, %v3011
  %v3014 = vrot.slane %v2997, 5
  %v3015 = vsel %vm535, %v3014, %v3013
  %v3016 = vrot.slane %v2998, 4
  %v3017 = vsel %vm2274, %v3016, %v3015
  %v3018 = vrot.slane %v2999, 3
  %v3019 = vsel %vm2277, %v3018, %v3017
  %v3020 = vrot.slane %v3000, 2
  %v3021 = vsel %vm2280, %v3020, %v3019
  %v3022 = vrot.slane %v3001, 1
  %v3023 = vsel %vm2283, %v3022, %v3021
  %v3025 = vrot.slane %v3023, 4
  %v3026 = vadd.f32 %v3023, %v3025
  %v3027 = vrot.slane %v3026, 2
  %v3028 = vadd.f32 %v3026, %v3027
  %v3029 = vrot.slane %v3028, 1
  %v3030 = vadd.f32 %v3028, %v3029
  %v3031 = vmul.f32 %v2900, %v1664
  %v3032 = vmul.f32 %v2907, %v2346
  %v3033 = vmul.f32 %v2914, %v2347
  %v3034 = vmul.f32 %v2921, %v2348
  %v3035 = vmul.f32 %v2928, %v2349
  %v3036 = vmul.f32 %v2935, %v2350
  %v3037 = vmul.f32 %v2942, %v2351
  %v3038 = vmul.f32 %v2949, %v2352
  %v3047 = vrot.slane %v3032, 7
  %v3048 = vsel %vm529, %v3047, %v3031
  %v3049 = vrot.slane %v3033, 6
  %v3050 = vsel %vm532, %v3049, %v3048
  %v3051 = vrot.slane %v3034, 5
  %v3052 = vsel %vm535, %v3051, %v3050
  %v3053 = vrot.slane %v3035, 4
  %v3054 = vsel %vm2274, %v3053, %v3052
  %v3055 = vrot.slane %v3036, 3
  %v3056 = vsel %vm2277, %v3055, %v3054
  %v3057 = vrot.slane %v3037, 2
  %v3058 = vsel %vm2280, %v3057, %v3056
  %v3059 = vrot.slane %v3038, 1
  %v3060 = vsel %vm2283, %v3059, %v3058
  %v3062 = vrot.slane %v3060, 4
  %v3063 = vadd.f32 %v3060, %v3062
  %v3064 = vrot.slane %v3063, 2
  %v3065 = vadd.f32 %v3063, %v3064
  %v3066 = vrot.slane %v3065, 1
  %v3067 = vadd.f32 %v3065, %v3066
  %v3068 = vmul.f32 %v2900, %v1699
  %v3069 = vmul.f32 %v2907, %v2399
  %v3070 = vmul.f32 %v2914, %v2400
  %v3071 = vmul.f32 %v2921, %v2401
  %v3072 = vmul.f32 %v2928, %v2402
  %v3073 = vmul.f32 %v2935, %v2403
  %v3074 = vmul.f32 %v2942, %v2404
  %v3075 = vmul.f32 %v2949, %v2405
  %v3084 = vrot.slane %v3069, 7
  %v3085 = vsel %vm529, %v3084, %v3068
  %v3086 = vrot.slane %v3070, 6
  %v3087 = vsel %vm532, %v3086, %v3085
  %v3088 = vrot.slane %v3071, 5
  %v3089 = vsel %vm535, %v3088, %v3087
  %v3090 = vrot.slane %v3072, 4
  %v3091 = vsel %vm2274, %v3090, %v3089
  %v3092 = vrot.slane %v3073, 3
  %v3093 = vsel %vm2277, %v3092, %v3091
  %v3094 = vrot.slane %v3074, 2
  %v3095 = vsel %vm2280, %v3094, %v3093
  %v3096 = vrot.slane %v3075, 1
  %v3097 = vsel %vm2283, %v3096, %v3095
  %v3099 = vrot.slane %v3097, 4
  %v3100 = vadd.f32 %v3097, %v3099
  %v3101 = vrot.slane %v3100, 2
  %v3102 = vadd.f32 %v3100, %v3101
  %v3103 = vrot.slane %v3102, 1
  %v3104 = vadd.f32 %v3102, %v3103
  %v3105 = vmul.f32 %v2956, %v27
  %v3106 = vsel %vm61, %v3105, 0.0
  %v3107 = vrot.slane %v3106, 4
  %v3108 = vadd.f32 %v3106, %v3107
  %v3109 = vrot.slane %v3108, 2
  %v3110 = vadd.f32 %v3108, %v3109
  %v3111 = vrot.slane %v3110, 1
  %v3112 = vadd.f32 %v3110, %v3111
  %v3113 = vmul.f32 %v2956, %v37
  %v3114 = vsel %vm61, %v3113, 0.0
  %v3115 = vrot.slane %v3114, 4
  %v3116 = vadd.f32 %v3114, %v3115
  %v3117 = vrot.slane %v3116, 2
  %v3118 = vadd.f32 %v3116, %v3117
  %v3119 = vrot.slane %v3118, 1
  %v3120 = vadd.f32 %v3118, %v3119
  %vm3121 = vcmp.gt.f32.partialorder %v2886, 0.0
  %vm3122 = vcmp.gt.f32.partialorder %v2887, 0.0
  %vm3123 = vcmp.gt.f32.partialorder %v2888, 0.0
  %vm3124 = vcmp.gt.f32.partialorder %v2889, 0.0
  %vm3125 = vcmp.gt.f32.partialorder %v2890, 0.0
  %vm3126 = vcmp.gt.f32.partialorder %v2891, 0.0
  %vm3127 = vcmp.gt.f32.partialorder %v2892, 0.0
  %vm3128 = vcmp.gt.f32.partialorder %v2893, 0.0
  %v3129 = vsel %vm3121, inf, %v2802
  %v3130 = vsel %vm3122, inf, %v2803
  %v3131 = vsel %vm3123, inf, %v2804
  %v3132 = vsel %vm3124, inf, %v2805
  %v3133 = vsel %vm3125, inf, %v2806
  %v3134 = vsel %vm3126, inf, %v2807
  %v3135 = vsel %vm3127, inf, %v2808
  %v3136 = vsel %vm3128, inf, %v2809
  %v3137 = vsel %vm61, %v3129, inf
  %v3138 = vsel %vm61, %v3130, inf
  %v3139 = vsel %vm61, %v3131, inf
  %v3140 = vsel %vm61, %v3132, inf
  %v3141 = vsel %vm61, %v3133, inf
  %v3142 = vmin.f32 %v3137, %v3141
  %v3143 = vsel %vm61, %v3134, inf
  %v3144 = vmin.f32 %v3138, %v3143
  %v3145 = vsel %vm61, %v3135, inf
  %v3146 = vmin.f32 %v3139, %v3145
  %v3147 = vsel %vm61, %v3136, inf
  %v3148 = vmin.f32 %v3140, %v3147
  %v3149 = vmin.f32 %v3142, %v3144
  %v3150 = vmin.f32 %v3146, %v3148
  %v3151 = vmin.f32 %v3149, %v3150
  %v3152 = vsel %vm61, %v3151, inf
  %v3153 = vrot.slane %v3152, 4
  %v3154 = vmin.f32 %v3152, %v3153
  %v3155 = vrot.slane %v3154, 2
  %v3156 = vmin.f32 %v3154, %v3155
  %v3157 = vrot.slane %v3156, 1
  %v3158 = vmin.f32 %v3156, %v3157
  %vm3159 = vcmp.eq.f32.partialorder %v3129, %v3158
  %vm3160 = vcmp.eq.f32.partialorder %v3130, %v3158
  %vm3161 = vcmp.eq.f32.partialorder %v3131, %v3158
  %vm3162 = vcmp.eq.f32.partialorder %v3132, %v3158
  %vm3163 = vcmp.eq.f32.partialorder %v3133, %v3158
  %vm3164 = vcmp.eq.f32.partialorder %v3134, %v3158
  %vm3165 = vcmp.eq.f32.partialorder %v3135, %v3158
  %vm3166 = vcmp.eq.f32.partialorder %v3136, %v3158
  %v3167 = vsel %vm3159, %v60, 32.0
  %v3168 = vsel %vm3160, %v430, 32.0
  %v3169 = vsel %vm3161, %v431, 32.0
  %v3170 = vsel %vm3162, %v432, 32.0
  %v3171 = vsel %vm3163, %v2084, 32.0
  %v3172 = vsel %vm3164, %v2085, 32.0
  %v3173 = vsel %vm3165, %v2086, 32.0
  %v3174 = vsel %vm3166, %v2087, 32.0
  %v3175 = vsel %vm61, %v3167, inf
  %v3176 = vsel %vm61, %v3168, inf
  %v3177 = vsel %vm61, %v3169, inf
  %v3178 = vsel %vm61, %v3170, inf
  %v3179 = vsel %vm61, %v3171, inf
  %v3180 = vmin.f32 %v3175, %v3179
  %v3181 = vsel %vm61, %v3172, inf
  %v3182 = vmin.f32 %v3176, %v3181
  %v3183 = vsel %vm61, %v3173, inf
  %v3184 = vmin.f32 %v3177, %v3183
  %v3185 = vsel %vm61, %v3174, inf
  %v3186 = vmin.f32 %v3178, %v3185
  %v3187 = vmin.f32 %v3180, %v3182
  %v3188 = vmin.f32 %v3184, %v3186
  %v3189 = vmin.f32 %v3187, %v3188
  %v3190 = vsel %vm61, %v3189, inf
  %v3191 = vrot.slane %v3190, 4
  %v3192 = vmin.f32 %v3190, %v3191
  %v3193 = vrot.slane %v3192, 2
  %v3194 = vmin.f32 %v3192, %v3193
  %v3195 = vrot.slane %v3194, 1
  %v3196 = vmin.f32 %v3194, %v3195
  %vm3197 = vcmp.eq.f32.partialorder %v60, %v3196
  %vm3198 = vcmp.eq.f32.partialorder %v430, %v3196
  %vm3199 = vcmp.eq.f32.partialorder %v431, %v3196
  %vm3200 = vcmp.eq.f32.partialorder %v432, %v3196
  %vm3201 = vcmp.eq.f32.partialorder %v2084, %v3196
  %vm3202 = vcmp.eq.f32.partialorder %v2085, %v3196
  %vm3203 = vcmp.eq.f32.partialorder %v2086, %v3196
  %vm3204 = vcmp.eq.f32.partialorder %v2087, %v3196
  %v3205 = vsel %vm3197, 1, 0
  %v3206 = vsel %vm3198, 1, 0
  %v3207 = vsel %vm3199, 1, 0
  %v3208 = vsel %vm3200, 1, 0
  %v3209 = vsel %vm3201, 1, 0
  %v3210 = vsel %vm3202, 1, 0
  %v3211 = vsel %vm3203, 1, 0
  %v3212 = vsel %vm3204, 1, 0
  %v3213 = vcvt.s32.f32 %v3205
  %v3214 = vcvt.s32.f32 %v3206
  %v3215 = vcvt.s32.f32 %v3207
  %v3216 = vcvt.s32.f32 %v3208
  %v3217 = vcvt.s32.f32 %v3209
  %v3218 = vcvt.s32.f32 %v3210
  %v3219 = vcvt.s32.f32 %v3211
  %v3220 = vcvt.s32.f32 %v3212
  %v3221 = vsel %vm61, %v3213, 0.0
  %v3222 = vrot.slane %v3221, 4
  %v3223 = vadd.f32 %v3221, %v3222
  %v3224 = vrot.slane %v3223, 2
  %v3225 = vadd.f32 %v3223, %v3224
  %v3226 = vrot.slane %v3225, 1
  %v3227 = vadd.f32 %v3225, %v3226
  %v3228 = vsel %vm61, %v3214, 0.0
  %v3229 = vrot.slane %v3228, 4
  %v3230 = vadd.f32 %v3228, %v3229
  %v3231 = vrot.slane %v3230, 2
  %v3232 = vadd.f32 %v3230, %v3231
  %v3233 = vrot.slane %v3232, 1
  %v3234 = vadd.f32 %v3232, %v3233
  %v3235 = vsel %vm61, %v3215, 0.0
  %v3236 = vrot.slane %v3235, 4
  %v3237 = vadd.f32 %v3235, %v3236
  %v3238 = vrot.slane %v3237, 2
  %v3239 = vadd.f32 %v3237, %v3238
  %v3240 = vrot.slane %v3239, 1
  %v3241 = vadd.f32 %v3239, %v3240
  %v3242 = vsel %vm61, %v3216, 0.0
  %v3243 = vrot.slane %v3242, 4
  %v3244 = vadd.f32 %v3242, %v3243
  %v3245 = vrot.slane %v3244, 2
  %v3246 = vadd.f32 %v3244, %v3245
  %v3247 = vrot.slane %v3246, 1
  %v3248 = vadd.f32 %v3246, %v3247
  %v3249 = vsel %vm61, %v3217, 0.0
  %v3250 = vrot.slane %v3249, 4
  %v3251 = vadd.f32 %v3249, %v3250
  %v3252 = vrot.slane %v3251, 2
  %v3253 = vadd.f32 %v3251, %v3252
  %v3254 = vrot.slane %v3253, 1
  %v3255 = vadd.f32 %v3253, %v3254
  %v3256 = vsel %vm61, %v3218, 0.0
  %v3257 = vrot.slane %v3256, 4
  %v3258 = vadd.f32 %v3256, %v3257
  %v3259 = vrot.slane %v3258, 2
  %v3260 = vadd.f32 %v3258, %v3259
  %v3261 = vrot.slane %v3260, 1
  %v3262 = vadd.f32 %v3260, %v3261
  %v3263 = vsel %vm61, %v3219, 0.0
  %v3264 = vrot.slane %v3263, 4
  %v3265 = vadd.f32 %v3263, %v3264
  %v3266 = vrot.slane %v3265, 2
  %v3267 = vadd.f32 %v3265, %v3266
  %v3268 = vrot.slane %v3267, 1
  %v3269 = vadd.f32 %v3267, %v3268
  %v3270 = vsel %vm61, %v3220, 0.0
  %v3271 = vrot.slane %v3270, 4
  %v3272 = vadd.f32 %v3270, %v3271
  %v3273 = vrot.slane %v3272, 2
  %v3274 = vadd.f32 %v3272, %v3273
  %v3275 = vrot.slane %v3274, 1
  %v3276 = vadd.f32 %v3274, %v3275
  %v3277 = vadd.f32 %v3221, %v3228
  %v3278 = vadd.f32 %v3277, %v3235
  %v3279 = vadd.f32 %v3278, %v3242
  %v3280 = vadd.f32 %v3279, %v3249
  %v3281 = vadd.f32 %v3280, %v3256
  %v3282 = vadd.f32 %v3281, %v3263
  %v3283 = vadd.f32 %v3282, %v3270
  %v3284 = vmul.f32 %v3227, %v1657
  %v3285 = vmul.f32 %v3234, %v2236
  %v3286 = vmul.f32 %v3241, %v2237
  %v3287 = vmul.f32 %v3248, %v2238
  %v3288 = vmul.f32 %v3255, %v2239
  %v3289 = vmul.f32 %v3262, %v2240
  %v3290 = vmul.f32 %v3269, %v2241
  %v3291 = vmul.f32 %v3276, %v2242
  %v3300 = vrot.slane %v3285, 7
  %v3301 = vsel %vm529, %v3300, %v3284
  %v3302 = vrot.slane %v3286, 6
  %v3303 = vsel %vm532, %v3302, %v3301
  %v3304 = vrot.slane %v3287, 5
  %v3305 = vsel %vm535, %v3304, %v3303
  %v3306 = vrot.slane %v3288, 4
  %v3307 = vsel %vm2274, %v3306, %v3305
  %v3308 = vrot.slane %v3289, 3
  %v3309 = vsel %vm2277, %v3308, %v3307
  %v3310 = vrot.slane %v3290, 2
  %v3311 = vsel %vm2280, %v3310, %v3309
  %v3312 = vrot.slane %v3291, 1
  %v3313 = vsel %vm2283, %v3312, %v3311
  %v3315 = vrot.slane %v3313, 4
  %v3316 = vadd.f32 %v3313, %v3315
  %v3317 = vrot.slane %v3316, 2
  %v3318 = vadd.f32 %v3316, %v3317
  %v3319 = vrot.slane %v3318, 1
  %v3320 = vadd.f32 %v3318, %v3319
  %v3321 = vmul.f32 %v3227, %v1692
  %v3322 = vmul.f32 %v3234, %v2293
  %v3323 = vmul.f32 %v3241, %v2294
  %v3324 = vmul.f32 %v3248, %v2295
  %v3325 = vmul.f32 %v3255, %v2296
  %v3326 = vmul.f32 %v3262, %v2297
  %v3327 = vmul.f32 %v3269, %v2298
  %v3328 = vmul.f32 %v3276, %v2299
  %v3337 = vrot.slane %v3322, 7
  %v3338 = vsel %vm529, %v3337, %v3321
  %v3339 = vrot.slane %v3323, 6
  %v3340 = vsel %vm532, %v3339, %v3338
  %v3341 = vrot.slane %v3324, 5
  %v3342 = vsel %vm535, %v3341, %v3340
  %v3343 = vrot.slane %v3325, 4
  %v3344 = vsel %vm2274, %v3343, %v3342
  %v3345 = vrot.slane %v3326, 3
  %v3346 = vsel %vm2277, %v3345, %v3344
  %v3347 = vrot.slane %v3327, 2
  %v3348 = vsel %vm2280, %v3347, %v3346
  %v3349 = vrot.slane %v3328, 1
  %v3350 = vsel %vm2283, %v3349, %v3348
  %v3352 = vrot.slane %v3350, 4
  %v3353 = vadd.f32 %v3350, %v3352
  %v3354 = vrot.slane %v3353, 2
  %v3355 = vadd.f32 %v3353, %v3354
  %v3356 = vrot.slane %v3355, 1
  %v3357 = vadd.f32 %v3355, %v3356
  %v3358 = vmul.f32 %v3227, %v1664
  %v3359 = vmul.f32 %v3234, %v2346
  %v3360 = vmul.f32 %v3241, %v2347
  %v3361 = vmul.f32 %v3248, %v2348
  %v3362 = vmul.f32 %v3255, %v2349
  %v3363 = vmul.f32 %v3262, %v2350
  %v3364 = vmul.f32 %v3269, %v2351
  %v3365 = vmul.f32 %v3276, %v2352
  %v3374 = vrot.slane %v3359, 7
  %v3375 = vsel %vm529, %v3374, %v3358
  %v3376 = vrot.slane %v3360, 6
  %v3377 = vsel %vm532, %v3376, %v3375
  %v3378 = vrot.slane %v3361, 5
  %v3379 = vsel %vm535, %v3378, %v3377
  %v3380 = vrot.slane %v3362, 4
  %v3381 = vsel %vm2274, %v3380, %v3379
  %v3382 = vrot.slane %v3363, 3
  %v3383 = vsel %vm2277, %v3382, %v3381
  %v3384 = vrot.slane %v3364, 2
  %v3385 = vsel %vm2280, %v3384, %v3383
  %v3386 = vrot.slane %v3365, 1
  %v3387 = vsel %vm2283, %v3386, %v3385
  %v3389 = vrot.slane %v3387, 4
  %v3390 = vadd.f32 %v3387, %v3389
  %v3391 = vrot.slane %v3390, 2
  %v3392 = vadd.f32 %v3390, %v3391
  %v3393 = vrot.slane %v3392, 1
  %v3394 = vadd.f32 %v3392, %v3393
  %v3395 = vmul.f32 %v3227, %v1699
  %v3396 = vmul.f32 %v3234, %v2399
  %v3397 = vmul.f32 %v3241, %v2400
  %v3398 = vmul.f32 %v3248, %v2401
  %v3399 = vmul.f32 %v3255, %v2402
  %v3400 = vmul.f32 %v3262, %v2403
  %v3401 = vmul.f32 %v3269, %v2404
  %v3402 = vmul.f32 %v3276, %v2405
  %v3411 = vrot.slane %v3396, 7
  %v3412 = vsel %vm529, %v3411, %v3395
  %v3413 = vrot.slane %v3397, 6
  %v3414 = vsel %vm532, %v3413, %v3412
  %v3415 = vrot.slane %v3398, 5
  %v3416 = vsel %vm535, %v3415, %v3414
  %v3417 = vrot.slane %v3399, 4
  %v3418 = vsel %vm2274, %v3417, %v3416
  %v3419 = vrot.slane %v3400, 3
  %v3420 = vsel %vm2277, %v3419, %v3418
  %v3421 = vrot.slane %v3401, 2
  %v3422 = vsel %vm2280, %v3421, %v3420
  %v3423 = vrot.slane %v3402, 1
  %v3424 = vsel %vm2283, %v3423, %v3422
  %v3426 = vrot.slane %v3424, 4
  %v3427 = vadd.f32 %v3424, %v3426
  %v3428 = vrot.slane %v3427, 2
  %v3429 = vadd.f32 %v3427, %v3428
  %v3430 = vrot.slane %v3429, 1
  %v3431 = vadd.f32 %v3429, %v3430
  %v3432 = vmul.f32 %v3283, %v27
  %v3433 = vsel %vm61, %v3432, 0.0
  %v3434 = vrot.slane %v3433, 4
  %v3435 = vadd.f32 %v3433, %v3434
  %v3436 = vrot.slane %v3435, 2
  %v3437 = vadd.f32 %v3435, %v3436
  %v3438 = vrot.slane %v3437, 1
  %v3439 = vadd.f32 %v3437, %v3438
  %v3440 = vmul.f32 %v3283, %v37
  %v3441 = vsel %vm61, %v3440, 0.0
  %v3442 = vrot.slane %v3441, 4
  %v3443 = vadd.f32 %v3441, %v3442
  %v3444 = vrot.slane %v3443, 2
  %v3445 = vadd.f32 %v3443, %v3444
  %v3446 = vrot.slane %v3445, 1
  %v3447 = vadd.f32 %v3445, %v3446
  %vm3448 = vcmp.gt.f32.partialorder %v3213, 0.0
  %vm3449 = vcmp.gt.f32.partialorder %v3214, 0.0
  %vm3450 = vcmp.gt.f32.partialorder %v3215, 0.0
  %vm3451 = vcmp.gt.f32.partialorder %v3216, 0.0
  %vm3452 = vcmp.gt.f32.partialorder %v3217, 0.0
  %vm3453 = vcmp.gt.f32.partialorder %v3218, 0.0
  %vm3454 = vcmp.gt.f32.partialorder %v3219, 0.0
  %vm3455 = vcmp.gt.f32.partialorder %v3220, 0.0
  %v3456 = vsel %vm3448, inf, %v3129
  %v3457 = vsel %vm3449, inf, %v3130
  %v3458 = vsel %vm3450, inf, %v3131
  %v3459 = vsel %vm3451, inf, %v3132
  %v3460 = vsel %vm3452, inf, %v3133
  %v3461 = vsel %vm3453, inf, %v3134
  %v3462 = vsel %vm3454, inf, %v3135
  %v3463 = vsel %vm3455, inf, %v3136
  %v3464 = vsel %vm61, %v3456, inf
  %v3465 = vsel %vm61, %v3457, inf
  %v3466 = vsel %vm61, %v3458, inf
  %v3467 = vsel %vm61, %v3459, inf
  %v3468 = vsel %vm61, %v3460, inf
  %v3469 = vmin.f32 %v3464, %v3468
  %v3470 = vsel %vm61, %v3461, inf
  %v3471 = vmin.f32 %v3465, %v3470
  %v3472 = vsel %vm61, %v3462, inf
  %v3473 = vmin.f32 %v3466, %v3472
  %v3474 = vsel %vm61, %v3463, inf
  %v3475 = vmin.f32 %v3467, %v3474
  %v3476 = vmin.f32 %v3469, %v3471
  %v3477 = vmin.f32 %v3473, %v3475
  %v3478 = vmin.f32 %v3476, %v3477
  %v3479 = vsel %vm61, %v3478, inf
  %v3480 = vrot.slane %v3479, 4
  %v3481 = vmin.f32 %v3479, %v3480
  %v3482 = vrot.slane %v3481, 2
  %v3483 = vmin.f32 %v3481, %v3482
  %v3484 = vrot.slane %v3483, 1
  %v3485 = vmin.f32 %v3483, %v3484
  %vm3486 = vcmp.eq.f32.partialorder %v3456, %v3485
  %vm3487 = vcmp.eq.f32.partialorder %v3457, %v3485
  %vm3488 = vcmp.eq.f32.partialorder %v3458, %v3485
  %vm3489 = vcmp.eq.f32.partialorder %v3459, %v3485
  %vm3490 = vcmp.eq.f32.partialorder %v3460, %v3485
  %vm3491 = vcmp.eq.f32.partialorder %v3461, %v3485
  %vm3492 = vcmp.eq.f32.partialorder %v3462, %v3485
  %vm3493 = vcmp.eq.f32.partialorder %v3463, %v3485
  %v3494 = vsel %vm3486, %v60, 32.0
  %v3495 = vsel %vm3487, %v430, 32.0
  %v3496 = vsel %vm3488, %v431, 32.0
  %v3497 = vsel %vm3489, %v432, 32.0
  %v3498 = vsel %vm3490, %v2084, 32.0
  %v3499 = vsel %vm3491, %v2085, 32.0
  %v3500 = vsel %vm3492, %v2086, 32.0
  %v3501 = vsel %vm3493, %v2087, 32.0
  %v3502 = vsel %vm61, %v3494, inf
  %v3503 = vsel %vm61, %v3495, inf
  %v3504 = vsel %vm61, %v3496, inf
  %v3505 = vsel %vm61, %v3497, inf
  %v3506 = vsel %vm61, %v3498, inf
  %v3507 = vmin.f32 %v3502, %v3506
  %v3508 = vsel %vm61, %v3499, inf
  %v3509 = vmin.f32 %v3503, %v3508
  %v3510 = vsel %vm61, %v3500, inf
  %v3511 = vmin.f32 %v3504, %v3510
  %v3512 = vsel %vm61, %v3501, inf
  %v3513 = vmin.f32 %v3505, %v3512
  %v3514 = vmin.f32 %v3507, %v3509
  %v3515 = vmin.f32 %v3511, %v3513
  %v3516 = vmin.f32 %v3514, %v3515
  %v3517 = vsel %vm61, %v3516, inf
  %v3518 = vrot.slane %v3517, 4
  %v3519 = vmin.f32 %v3517, %v3518
  %v3520 = vrot.slane %v3519, 2
  %v3521 = vmin.f32 %v3519, %v3520
  %v3522 = vrot.slane %v3521, 1
  %v3523 = vmin.f32 %v3521, %v3522
  %vm3524 = vcmp.eq.f32.partialorder %v60, %v3523
  %vm3525 = vcmp.eq.f32.partialorder %v430, %v3523
  %vm3526 = vcmp.eq.f32.partialorder %v431, %v3523
  %vm3527 = vcmp.eq.f32.partialorder %v432, %v3523
  %vm3528 = vcmp.eq.f32.partialorder %v2084, %v3523
  %vm3529 = vcmp.eq.f32.partialorder %v2085, %v3523
  %vm3530 = vcmp.eq.f32.partialorder %v2086, %v3523
  %vm3531 = vcmp.eq.f32.partialorder %v2087, %v3523
  %v3532 = vsel %vm3524, 1, 0
  %v3533 = vsel %vm3525, 1, 0
  %v3534 = vsel %vm3526, 1, 0
  %v3535 = vsel %vm3527, 1, 0
  %v3536 = vsel %vm3528, 1, 0
  %v3537 = vsel %vm3529, 1, 0
  %v3538 = vsel %vm3530, 1, 0
  %v3539 = vsel %vm3531, 1, 0
  %v3540 = vcvt.s32.f32 %v3532
  %v3541 = vcvt.s32.f32 %v3533
  %v3542 = vcvt.s32.f32 %v3534
  %v3543 = vcvt.s32.f32 %v3535
  %v3544 = vcvt.s32.f32 %v3536
  %v3545 = vcvt.s32.f32 %v3537
  %v3546 = vcvt.s32.f32 %v3538
  %v3547 = vcvt.s32.f32 %v3539
  %v3548 = vsel %vm61, %v3540, 0.0
  %v3549 = vrot.slane %v3548, 4
  %v3550 = vadd.f32 %v3548, %v3549
  %v3551 = vrot.slane %v3550, 2
  %v3552 = vadd.f32 %v3550, %v3551
  %v3553 = vrot.slane %v3552, 1
  %v3554 = vadd.f32 %v3552, %v3553
  %v3555 = vsel %vm61, %v3541, 0.0
  %v3556 = vrot.slane %v3555, 4
  %v3557 = vadd.f32 %v3555, %v3556
  %v3558 = vrot.slane %v3557, 2
  %v3559 = vadd.f32 %v3557, %v3558
  %v3560 = vrot.slane %v3559, 1
  %v3561 = vadd.f32 %v3559, %v3560
  %v3562 = vsel %vm61, %v3542, 0.0
  %v3563 = vrot.slane %v3562, 4
  %v3564 = vadd.f32 %v3562, %v3563
  %v3565 = vrot.slane %v3564, 2
  %v3566 = vadd.f32 %v3564, %v3565
  %v3567 = vrot.slane %v3566, 1
  %v3568 = vadd.f32 %v3566, %v3567
  %v3569 = vsel %vm61, %v3543, 0.0
  %v3570 = vrot.slane %v3569, 4
  %v3571 = vadd.f32 %v3569, %v3570
  %v3572 = vrot.slane %v3571, 2
  %v3573 = vadd.f32 %v3571, %v3572
  %v3574 = vrot.slane %v3573, 1
  %v3575 = vadd.f32 %v3573, %v3574
  %v3576 = vsel %vm61, %v3544, 0.0
  %v3577 = vrot.slane %v3576, 4
  %v3578 = vadd.f32 %v3576, %v3577
  %v3579 = vrot.slane %v3578, 2
  %v3580 = vadd.f32 %v3578, %v3579
  %v3581 = vrot.slane %v3580, 1
  %v3582 = vadd.f32 %v3580, %v3581
  %v3583 = vsel %vm61, %v3545, 0.0
  %v3584 = vrot.slane %v3583, 4
  %v3585 = vadd.f32 %v3583, %v3584
  %v3586 = vrot.slane %v3585, 2
  %v3587 = vadd.f32 %v3585, %v3586
  %v3588 = vrot.slane %v3587, 1
  %v3589 = vadd.f32 %v3587, %v3588
  %v3590 = vsel %vm61, %v3546, 0.0
  %v3591 = vrot.slane %v3590, 4
  %v3592 = vadd.f32 %v3590, %v3591
  %v3593 = vrot.slane %v3592, 2
  %v3594 = vadd.f32 %v3592, %v3593
  %v3595 = vrot.slane %v3594, 1
  %v3596 = vadd.f32 %v3594, %v3595
  %v3597 = vsel %vm61, %v3547, 0.0
  %v3598 = vrot.slane %v3597, 4
  %v3599 = vadd.f32 %v3597, %v3598
  %v3600 = vrot.slane %v3599, 2
  %v3601 = vadd.f32 %v3599, %v3600
  %v3602 = vrot.slane %v3601, 1
  %v3603 = vadd.f32 %v3601, %v3602
  %v3604 = vadd.f32 %v3548, %v3555
  %v3605 = vadd.f32 %v3604, %v3562
  %v3606 = vadd.f32 %v3605, %v3569
  %v3607 = vadd.f32 %v3606, %v3576
  %v3608 = vadd.f32 %v3607, %v3583
  %v3609 = vadd.f32 %v3608, %v3590
  %v3610 = vadd.f32 %v3609, %v3597
  %v3611 = vmul.f32 %v3554, %v1657
  %v3612 = vmul.f32 %v3561, %v2236
  %v3613 = vmul.f32 %v3568, %v2237
  %v3614 = vmul.f32 %v3575, %v2238
  %v3615 = vmul.f32 %v3582, %v2239
  %v3616 = vmul.f32 %v3589, %v2240
  %v3617 = vmul.f32 %v3596, %v2241
  %v3618 = vmul.f32 %v3603, %v2242
  %v3627 = vrot.slane %v3612, 7
  %v3628 = vsel %vm529, %v3627, %v3611
  %v3629 = vrot.slane %v3613, 6
  %v3630 = vsel %vm532, %v3629, %v3628
  %v3631 = vrot.slane %v3614, 5
  %v3632 = vsel %vm535, %v3631, %v3630
  %v3633 = vrot.slane %v3615, 4
  %v3634 = vsel %vm2274, %v3633, %v3632
  %v3635 = vrot.slane %v3616, 3
  %v3636 = vsel %vm2277, %v3635, %v3634
  %v3637 = vrot.slane %v3617, 2
  %v3638 = vsel %vm2280, %v3637, %v3636
  %v3639 = vrot.slane %v3618, 1
  %v3640 = vsel %vm2283, %v3639, %v3638
  %v3642 = vrot.slane %v3640, 4
  %v3643 = vadd.f32 %v3640, %v3642
  %v3644 = vrot.slane %v3643, 2
  %v3645 = vadd.f32 %v3643, %v3644
  %v3646 = vrot.slane %v3645, 1
  %v3647 = vadd.f32 %v3645, %v3646
  %v3648 = vmul.f32 %v3554, %v1692
  %v3649 = vmul.f32 %v3561, %v2293
  %v3650 = vmul.f32 %v3568, %v2294
  %v3651 = vmul.f32 %v3575, %v2295
  %v3652 = vmul.f32 %v3582, %v2296
  %v3653 = vmul.f32 %v3589, %v2297
  %v3654 = vmul.f32 %v3596, %v2298
  %v3655 = vmul.f32 %v3603, %v2299
  %v3664 = vrot.slane %v3649, 7
  %v3665 = vsel %vm529, %v3664, %v3648
  %v3666 = vrot.slane %v3650, 6
  %v3667 = vsel %vm532, %v3666, %v3665
  %v3668 = vrot.slane %v3651, 5
  %v3669 = vsel %vm535, %v3668, %v3667
  %v3670 = vrot.slane %v3652, 4
  %v3671 = vsel %vm2274, %v3670, %v3669
  %v3672 = vrot.slane %v3653, 3
  %v3673 = vsel %vm2277, %v3672, %v3671
  %v3674 = vrot.slane %v3654, 2
  %v3675 = vsel %vm2280, %v3674, %v3673
  %v3676 = vrot.slane %v3655, 1
  %v3677 = vsel %vm2283, %v3676, %v3675
  %v3679 = vrot.slane %v3677, 4
  %v3680 = vadd.f32 %v3677, %v3679
  %v3681 = vrot.slane %v3680, 2
  %v3682 = vadd.f32 %v3680, %v3681
  %v3683 = vrot.slane %v3682, 1
  %v3684 = vadd.f32 %v3682, %v3683
  %v3685 = vmul.f32 %v3554, %v1664
  %v3686 = vmul.f32 %v3561, %v2346
  %v3687 = vmul.f32 %v3568, %v2347
  %v3688 = vmul.f32 %v3575, %v2348
  %v3689 = vmul.f32 %v3582, %v2349
  %v3690 = vmul.f32 %v3589, %v2350
  %v3691 = vmul.f32 %v3596, %v2351
  %v3692 = vmul.f32 %v3603, %v2352
  %v3701 = vrot.slane %v3686, 7
  %v3702 = vsel %vm529, %v3701, %v3685
  %v3703 = vrot.slane %v3687, 6
  %v3704 = vsel %vm532, %v3703, %v3702
  %v3705 = vrot.slane %v3688, 5
  %v3706 = vsel %vm535, %v3705, %v3704
  %v3707 = vrot.slane %v3689, 4
  %v3708 = vsel %vm2274, %v3707, %v3706
  %v3709 = vrot.slane %v3690, 3
  %v3710 = vsel %vm2277, %v3709, %v3708
  %v3711 = vrot.slane %v3691, 2
  %v3712 = vsel %vm2280, %v3711, %v3710
  %v3713 = vrot.slane %v3692, 1
  %v3714 = vsel %vm2283, %v3713, %v3712
  %v3716 = vrot.slane %v3714, 4
  %v3717 = vadd.f32 %v3714, %v3716
  %v3718 = vrot.slane %v3717, 2
  %v3719 = vadd.f32 %v3717, %v3718
  %v3720 = vrot.slane %v3719, 1
  %v3721 = vadd.f32 %v3719, %v3720
  %v3722 = vmul.f32 %v3554, %v1699
  %v3723 = vmul.f32 %v3561, %v2399
  %v3724 = vmul.f32 %v3568, %v2400
  %v3725 = vmul.f32 %v3575, %v2401
  %v3726 = vmul.f32 %v3582, %v2402
  %v3727 = vmul.f32 %v3589, %v2403
  %v3728 = vmul.f32 %v3596, %v2404
  %v3729 = vmul.f32 %v3603, %v2405
  %v3738 = vrot.slane %v3723, 7
  %v3739 = vsel %vm529, %v3738, %v3722
  %v3740 = vrot.slane %v3724, 6
  %v3741 = vsel %vm532, %v3740, %v3739
  %v3742 = vrot.slane %v3725, 5
  %v3743 = vsel %vm535, %v3742, %v3741
  %v3744 = vrot.slane %v3726, 4
  %v3745 = vsel %vm2274, %v3744, %v3743
  %v3746 = vrot.slane %v3727, 3
  %v3747 = vsel %vm2277, %v3746, %v3745
  %v3748 = vrot.slane %v3728, 2
  %v3749 = vsel %vm2280, %v3748, %v3747
  %v3750 = vrot.slane %v3729, 1
  %v3751 = vsel %vm2283, %v3750, %v3749
  %v3753 = vrot.slane %v3751, 4
  %v3754 = vadd.f32 %v3751, %v3753
  %v3755 = vrot.slane %v3754, 2
  %v3756 = vadd.f32 %v3754, %v3755
  %v3757 = vrot.slane %v3756, 1
  %v3758 = vadd.f32 %v3756, %v3757
  %v3759 = vmul.f32 %v3610, %v27
  %v3760 = vsel %vm61, %v3759, 0.0
  %v3761 = vrot.slane %v3760, 4
  %v3762 = vadd.f32 %v3760, %v3761
  %v3763 = vrot.slane %v3762, 2
  %v3764 = vadd.f32 %v3762, %v3763
  %v3765 = vrot.slane %v3764, 1
  %v3766 = vadd.f32 %v3764, %v3765
  %v3767 = vmul.f32 %v3610, %v37
  %v3768 = vsel %vm61, %v3767, 0.0
  %v3769 = vrot.slane %v3768, 4
  %v3770 = vadd.f32 %v3768, %v3769
  %v3771 = vrot.slane %v3770, 2
  %v3772 = vadd.f32 %v3770, %v3771
  %v3773 = vrot.slane %v3772, 1
  %v3774 = vadd.f32 %v3772, %v3773
  %vm3775 = vcmp.gt.f32.partialorder %v3540, 0.0
  %vm3776 = vcmp.gt.f32.partialorder %v3541, 0.0
  %vm3777 = vcmp.gt.f32.partialorder %v3542, 0.0
  %vm3778 = vcmp.gt.f32.partialorder %v3543, 0.0
  %vm3779 = vcmp.gt.f32.partialorder %v3544, 0.0
  %vm3780 = vcmp.gt.f32.partialorder %v3545, 0.0
  %vm3781 = vcmp.gt.f32.partialorder %v3546, 0.0
  %vm3782 = vcmp.gt.f32.partialorder %v3547, 0.0
  %v3783 = vsel %vm3775, inf, %v3456
  %v3784 = vsel %vm3776, inf, %v3457
  %v3785 = vsel %vm3777, inf, %v3458
  %v3786 = vsel %vm3778, inf, %v3459
  %v3787 = vsel %vm3779, inf, %v3460
  %v3788 = vsel %vm3780, inf, %v3461
  %v3789 = vsel %vm3781, inf, %v3462
  %v3790 = vsel %vm3782, inf, %v3463
  %v3791 = vsel %vm61, %v3783, inf
  %v3792 = vsel %vm61, %v3784, inf
  %v3793 = vsel %vm61, %v3785, inf
  %v3794 = vsel %vm61, %v3786, inf
  %v3795 = vsel %vm61, %v3787, inf
  %v3796 = vmin.f32 %v3791, %v3795
  %v3797 = vsel %vm61, %v3788, inf
  %v3798 = vmin.f32 %v3792, %v3797
  %v3799 = vsel %vm61, %v3789, inf
  %v3800 = vmin.f32 %v3793, %v3799
  %v3801 = vsel %vm61, %v3790, inf
  %v3802 = vmin.f32 %v3794, %v3801
  %v3803 = vmin.f32 %v3796, %v3798
  %v3804 = vmin.f32 %v3800, %v3802
  %v3805 = vmin.f32 %v3803, %v3804
  %v3806 = vsel %vm61, %v3805, inf
  %v3807 = vrot.slane %v3806, 4
  %v3808 = vmin.f32 %v3806, %v3807
  %v3809 = vrot.slane %v3808, 2
  %v3810 = vmin.f32 %v3808, %v3809
  %v3811 = vrot.slane %v3810, 1
  %v3812 = vmin.f32 %v3810, %v3811
  %vm3813 = vcmp.eq.f32.partialorder %v3783, %v3812
  %vm3814 = vcmp.eq.f32.partialorder %v3784, %v3812
  %vm3815 = vcmp.eq.f32.partialorder %v3785, %v3812
  %vm3816 = vcmp.eq.f32.partialorder %v3786, %v3812
  %vm3817 = vcmp.eq.f32.partialorder %v3787, %v3812
  %vm3818 = vcmp.eq.f32.partialorder %v3788, %v3812
  %vm3819 = vcmp.eq.f32.partialorder %v3789, %v3812
  %vm3820 = vcmp.eq.f32.partialorder %v3790, %v3812
  %v3821 = vsel %vm3813, %v60, 32.0
  %v3822 = vsel %vm3814, %v430, 32.0
  %v3823 = vsel %vm3815, %v431, 32.0
  %v3824 = vsel %vm3816, %v432, 32.0
  %v3825 = vsel %vm3817, %v2084, 32.0
  %v3826 = vsel %vm3818, %v2085, 32.0
  %v3827 = vsel %vm3819, %v2086, 32.0
  %v3828 = vsel %vm3820, %v2087, 32.0
  %v3829 = vsel %vm61, %v3821, inf
  %v3830 = vsel %vm61, %v3822, inf
  %v3831 = vsel %vm61, %v3823, inf
  %v3832 = vsel %vm61, %v3824, inf
  %v3833 = vsel %vm61, %v3825, inf
  %v3834 = vmin.f32 %v3829, %v3833
  %v3835 = vsel %vm61, %v3826, inf
  %v3836 = vmin.f32 %v3830, %v3835
  %v3837 = vsel %vm61, %v3827, inf
  %v3838 = vmin.f32 %v3831, %v3837
  %v3839 = vsel %vm61, %v3828, inf
  %v3840 = vmin.f32 %v3832, %v3839
  %v3841 = vmin.f32 %v3834, %v3836
  %v3842 = vmin.f32 %v3838, %v3840
  %v3843 = vmin.f32 %v3841, %v3842
  %v3844 = vsel %vm61, %v3843, inf
  %v3845 = vrot.slane %v3844, 4
  %v3846 = vmin.f32 %v3844, %v3845
  %v3847 = vrot.slane %v3846, 2
  %v3848 = vmin.f32 %v3846, %v3847
  %v3849 = vrot.slane %v3848, 1
  %v3850 = vmin.f32 %v3848, %v3849
  %vm3851 = vcmp.eq.f32.partialorder %v60, %v3850
  %vm3852 = vcmp.eq.f32.partialorder %v430, %v3850
  %vm3853 = vcmp.eq.f32.partialorder %v431, %v3850
  %vm3854 = vcmp.eq.f32.partialorder %v432, %v3850
  %vm3855 = vcmp.eq.f32.partialorder %v2084, %v3850
  %vm3856 = vcmp.eq.f32.partialorder %v2085, %v3850
  %vm3857 = vcmp.eq.f32.partialorder %v2086, %v3850
  %vm3858 = vcmp.eq.f32.partialorder %v2087, %v3850
  %v3859 = vsel %vm3851, 1, 0
  %v3860 = vsel %vm3852, 1, 0
  %v3861 = vsel %vm3853, 1, 0
  %v3862 = vsel %vm3854, 1, 0
  %v3863 = vsel %vm3855, 1, 0
  %v3864 = vsel %vm3856, 1, 0
  %v3865 = vsel %vm3857, 1, 0
  %v3866 = vsel %vm3858, 1, 0
  %v3867 = vcvt.s32.f32 %v3859
  %v3868 = vcvt.s32.f32 %v3860
  %v3869 = vcvt.s32.f32 %v3861
  %v3870 = vcvt.s32.f32 %v3862
  %v3871 = vcvt.s32.f32 %v3863
  %v3872 = vcvt.s32.f32 %v3864
  %v3873 = vcvt.s32.f32 %v3865
  %v3874 = vcvt.s32.f32 %v3866
  %v3875 = vsel %vm61, %v3867, 0.0
  %v3876 = vrot.slane %v3875, 4
  %v3877 = vadd.f32 %v3875, %v3876
  %v3878 = vrot.slane %v3877, 2
  %v3879 = vadd.f32 %v3877, %v3878
  %v3880 = vrot.slane %v3879, 1
  %v3881 = vadd.f32 %v3879, %v3880
  %v3882 = vsel %vm61, %v3868, 0.0
  %v3883 = vrot.slane %v3882, 4
  %v3884 = vadd.f32 %v3882, %v3883
  %v3885 = vrot.slane %v3884, 2
  %v3886 = vadd.f32 %v3884, %v3885
  %v3887 = vrot.slane %v3886, 1
  %v3888 = vadd.f32 %v3886, %v3887
  %v3889 = vsel %vm61, %v3869, 0.0
  %v3890 = vrot.slane %v3889, 4
  %v3891 = vadd.f32 %v3889, %v3890
  %v3892 = vrot.slane %v3891, 2
  %v3893 = vadd.f32 %v3891, %v3892
  %v3894 = vrot.slane %v3893, 1
  %v3895 = vadd.f32 %v3893, %v3894
  %v3896 = vsel %vm61, %v3870, 0.0
  %v3897 = vrot.slane %v3896, 4
  %v3898 = vadd.f32 %v3896, %v3897
  %v3899 = vrot.slane %v3898, 2
  %v3900 = vadd.f32 %v3898, %v3899
  %v3901 = vrot.slane %v3900, 1
  %v3902 = vadd.f32 %v3900, %v3901
  %v3903 = vsel %vm61, %v3871, 0.0
  %v3904 = vrot.slane %v3903, 4
  %v3905 = vadd.f32 %v3903, %v3904
  %v3906 = vrot.slane %v3905, 2
  %v3907 = vadd.f32 %v3905, %v3906
  %v3908 = vrot.slane %v3907, 1
  %v3909 = vadd.f32 %v3907, %v3908
  %v3910 = vsel %vm61, %v3872, 0.0
  %v3911 = vrot.slane %v3910, 4
  %v3912 = vadd.f32 %v3910, %v3911
  %v3913 = vrot.slane %v3912, 2
  %v3914 = vadd.f32 %v3912, %v3913
  %v3915 = vrot.slane %v3914, 1
  %v3916 = vadd.f32 %v3914, %v3915
  %v3917 = vsel %vm61, %v3873, 0.0
  %v3918 = vrot.slane %v3917, 4
  %v3919 = vadd.f32 %v3917, %v3918
  %v3920 = vrot.slane %v3919, 2
  %v3921 = vadd.f32 %v3919, %v3920
  %v3922 = vrot.slane %v3921, 1
  %v3923 = vadd.f32 %v3921, %v3922
  %v3924 = vsel %vm61, %v3874, 0.0
  %v3925 = vrot.slane %v3924, 4
  %v3926 = vadd.f32 %v3924, %v3925
  %v3927 = vrot.slane %v3926, 2
  %v3928 = vadd.f32 %v3926, %v3927
  %v3929 = vrot.slane %v3928, 1
  %v3930 = vadd.f32 %v3928, %v3929
  %v3931 = vadd.f32 %v3875, %v3882
  %v3932 = vadd.f32 %v3931, %v3889
  %v3933 = vadd.f32 %v3932, %v3896
  %v3934 = vadd.f32 %v3933, %v3903
  %v3935 = vadd.f32 %v3934, %v3910
  %v3936 = vadd.f32 %v3935, %v3917
  %v3937 = vadd.f32 %v3936, %v3924
  %v3938 = vmul.f32 %v3881, %v1657
  %v3939 = vmul.f32 %v3888, %v2236
  %v3940 = vmul.f32 %v3895, %v2237
  %v3941 = vmul.f32 %v3902, %v2238
  %v3942 = vmul.f32 %v3909, %v2239
  %v3943 = vmul.f32 %v3916, %v2240
  %v3944 = vmul.f32 %v3923, %v2241
  %v3945 = vmul.f32 %v3930, %v2242
  %v3954 = vrot.slane %v3939, 7
  %v3955 = vsel %vm529, %v3954, %v3938
  %v3956 = vrot.slane %v3940, 6
  %v3957 = vsel %vm532, %v3956, %v3955
  %v3958 = vrot.slane %v3941, 5
  %v3959 = vsel %vm535, %v3958, %v3957
  %v3960 = vrot.slane %v3942, 4
  %v3961 = vsel %vm2274, %v3960, %v3959
  %v3962 = vrot.slane %v3943, 3
  %v3963 = vsel %vm2277, %v3962, %v3961
  %v3964 = vrot.slane %v3944, 2
  %v3965 = vsel %vm2280, %v3964, %v3963
  %v3966 = vrot.slane %v3945, 1
  %v3967 = vsel %vm2283, %v3966, %v3965
  %v3969 = vrot.slane %v3967, 4
  %v3970 = vadd.f32 %v3967, %v3969
  %v3971 = vrot.slane %v3970, 2
  %v3972 = vadd.f32 %v3970, %v3971
  %v3973 = vrot.slane %v3972, 1
  %v3974 = vadd.f32 %v3972, %v3973
  %v3975 = vmul.f32 %v3881, %v1692
  %v3976 = vmul.f32 %v3888, %v2293
  %v3977 = vmul.f32 %v3895, %v2294
  %v3978 = vmul.f32 %v3902, %v2295
  %v3979 = vmul.f32 %v3909, %v2296
  %v3980 = vmul.f32 %v3916, %v2297
  %v3981 = vmul.f32 %v3923, %v2298
  %v3982 = vmul.f32 %v3930, %v2299
  %v3991 = vrot.slane %v3976, 7
  %v3992 = vsel %vm529, %v3991, %v3975
  %v3993 = vrot.slane %v3977, 6
  %v3994 = vsel %vm532, %v3993, %v3992
  %v3995 = vrot.slane %v3978, 5
  %v3996 = vsel %vm535, %v3995, %v3994
  %v3997 = vrot.slane %v3979, 4
  %v3998 = vsel %vm2274, %v3997, %v3996
  %v3999 = vrot.slane %v3980, 3
  %v4000 = vsel %vm2277, %v3999, %v3998
  %v4001 = vrot.slane %v3981, 2
  %v4002 = vsel %vm2280, %v4001, %v4000
  %v4003 = vrot.slane %v3982, 1
  %v4004 = vsel %vm2283, %v4003, %v4002
  %v4006 = vrot.slane %v4004, 4
  %v4007 = vadd.f32 %v4004, %v4006
  %v4008 = vrot.slane %v4007, 2
  %v4009 = vadd.f32 %v4007, %v4008
  %v4010 = vrot.slane %v4009, 1
  %v4011 = vadd.f32 %v4009, %v4010
  %v4012 = vmul.f32 %v3881, %v1664
  %v4013 = vmul.f32 %v3888, %v2346
  %v4014 = vmul.f32 %v3895, %v2347
  %v4015 = vmul.f32 %v3902, %v2348
  %v4016 = vmul.f32 %v3909, %v2349
  %v4017 = vmul.f32 %v3916, %v2350
  %v4018 = vmul.f32 %v3923, %v2351
  %v4019 = vmul.f32 %v3930, %v2352
  %v4028 = vrot.slane %v4013, 7
  %v4029 = vsel %vm529, %v4028, %v4012
  %v4030 = vrot.slane %v4014, 6
  %v4031 = vsel %vm532, %v4030, %v4029
  %v4032 = vrot.slane %v4015, 5
  %v4033 = vsel %vm535, %v4032, %v4031
  %v4034 = vrot.slane %v4016, 4
  %v4035 = vsel %vm2274, %v4034, %v4033
  %v4036 = vrot.slane %v4017, 3
  %v4037 = vsel %vm2277, %v4036, %v4035
  %v4038 = vrot.slane %v4018, 2
  %v4039 = vsel %vm2280, %v4038, %v4037
  %v4040 = vrot.slane %v4019, 1
  %v4041 = vsel %vm2283, %v4040, %v4039
  %v4043 = vrot.slane %v4041, 4
  %v4044 = vadd.f32 %v4041, %v4043
  %v4045 = vrot.slane %v4044, 2
  %v4046 = vadd.f32 %v4044, %v4045
  %v4047 = vrot.slane %v4046, 1
  %v4048 = vadd.f32 %v4046, %v4047
  %v4049 = vmul.f32 %v3881, %v1699
  %v4050 = vmul.f32 %v3888, %v2399
  %v4051 = vmul.f32 %v3895, %v2400
  %v4052 = vmul.f32 %v3902, %v2401
  %v4053 = vmul.f32 %v3909, %v2402
  %v4054 = vmul.f32 %v3916, %v2403
  %v4055 = vmul.f32 %v3923, %v2404
  %v4056 = vmul.f32 %v3930, %v2405
  %v4065 = vrot.slane %v4050, 7
  %v4066 = vsel %vm529, %v4065, %v4049
  %v4067 = vrot.slane %v4051, 6
  %v4068 = vsel %vm532, %v4067, %v4066
  %v4069 = vrot.slane %v4052, 5
  %v4070 = vsel %vm535, %v4069, %v4068
  %v4071 = vrot.slane %v4053, 4
  %v4072 = vsel %vm2274, %v4071, %v4070
  %v4073 = vrot.slane %v4054, 3
  %v4074 = vsel %vm2277, %v4073, %v4072
  %v4075 = vrot.slane %v4055, 2
  %v4076 = vsel %vm2280, %v4075, %v4074
  %v4077 = vrot.slane %v4056, 1
  %v4078 = vsel %vm2283, %v4077, %v4076
  %v4080 = vrot.slane %v4078, 4
  %v4081 = vadd.f32 %v4078, %v4080
  %v4082 = vrot.slane %v4081, 2
  %v4083 = vadd.f32 %v4081, %v4082
  %v4084 = vrot.slane %v4083, 1
  %v4085 = vadd.f32 %v4083, %v4084
  %v4086 = vmul.f32 %v3937, %v27
  %v4087 = vsel %vm61, %v4086, 0.0
  %v4088 = vrot.slane %v4087, 4
  %v4089 = vadd.f32 %v4087, %v4088
  %v4090 = vrot.slane %v4089, 2
  %v4091 = vadd.f32 %v4089, %v4090
  %v4092 = vrot.slane %v4091, 1
  %v4093 = vadd.f32 %v4091, %v4092
  %v4094 = vmul.f32 %v3937, %v37
  %v4095 = vsel %vm61, %v4094, 0.0
  %v4096 = vrot.slane %v4095, 4
  %v4097 = vadd.f32 %v4095, %v4096
  %v4098 = vrot.slane %v4097, 2
  %v4099 = vadd.f32 %v4097, %v4098
  %v4100 = vrot.slane %v4099, 1
  %v4101 = vadd.f32 %v4099, %v4100
  %vm4102 = vcmp.gt.f32.partialorder %v3867, 0.0
  %vm4103 = vcmp.gt.f32.partialorder %v3868, 0.0
  %vm4104 = vcmp.gt.f32.partialorder %v3869, 0.0
  %vm4105 = vcmp.gt.f32.partialorder %v3870, 0.0
  %vm4106 = vcmp.gt.f32.partialorder %v3871, 0.0
  %vm4107 = vcmp.gt.f32.partialorder %v3872, 0.0
  %vm4108 = vcmp.gt.f32.partialorder %v3873, 0.0
  %vm4109 = vcmp.gt.f32.partialorder %v3874, 0.0
  %v4110 = vsel %vm4102, inf, %v3783
  %v4111 = vsel %vm4103, inf, %v3784
  %v4112 = vsel %vm4104, inf, %v3785
  %v4113 = vsel %vm4105, inf, %v3786
  %v4114 = vsel %vm4106, inf, %v3787
  %v4115 = vsel %vm4107, inf, %v3788
  %v4116 = vsel %vm4108, inf, %v3789
  %v4117 = vsel %vm4109, inf, %v3790
  %v4118 = vsel %vm61, %v4110, inf
  %v4119 = vsel %vm61, %v4111, inf
  %v4120 = vsel %vm61, %v4112, inf
  %v4121 = vsel %vm61, %v4113, inf
  %v4122 = vsel %vm61, %v4114, inf
  %v4123 = vmin.f32 %v4118, %v4122
  %v4124 = vsel %vm61, %v4115, inf
  %v4125 = vmin.f32 %v4119, %v4124
  %v4126 = vsel %vm61, %v4116, inf
  %v4127 = vmin.f32 %v4120, %v4126
  %v4128 = vsel %vm61, %v4117, inf
  %v4129 = vmin.f32 %v4121, %v4128
  %v4130 = vmin.f32 %v4123, %v4125
  %v4131 = vmin.f32 %v4127, %v4129
  %v4132 = vmin.f32 %v4130, %v4131
  %v4133 = vsel %vm61, %v4132, inf
  %v4134 = vrot.slane %v4133, 4
  %v4135 = vmin.f32 %v4133, %v4134
  %v4136 = vrot.slane %v4135, 2
  %v4137 = vmin.f32 %v4135, %v4136
  %v4138 = vrot.slane %v4137, 1
  %v4139 = vmin.f32 %v4137, %v4138
  %vm4140 = vcmp.eq.f32.partialorder %v4110, %v4139
  %vm4141 = vcmp.eq.f32.partialorder %v4111, %v4139
  %vm4142 = vcmp.eq.f32.partialorder %v4112, %v4139
  %vm4143 = vcmp.eq.f32.partialorder %v4113, %v4139
  %vm4144 = vcmp.eq.f32.partialorder %v4114, %v4139
  %vm4145 = vcmp.eq.f32.partialorder %v4115, %v4139
  %vm4146 = vcmp.eq.f32.partialorder %v4116, %v4139
  %vm4147 = vcmp.eq.f32.partialorder %v4117, %v4139
  %v4148 = vsel %vm4140, %v60, 32.0
  %v4149 = vsel %vm4141, %v430, 32.0
  %v4150 = vsel %vm4142, %v431, 32.0
  %v4151 = vsel %vm4143, %v432, 32.0
  %v4152 = vsel %vm4144, %v2084, 32.0
  %v4153 = vsel %vm4145, %v2085, 32.0
  %v4154 = vsel %vm4146, %v2086, 32.0
  %v4155 = vsel %vm4147, %v2087, 32.0
  %v4156 = vsel %vm61, %v4148, inf
  %v4157 = vsel %vm61, %v4149, inf
  %v4158 = vsel %vm61, %v4150, inf
  %v4159 = vsel %vm61, %v4151, inf
  %v4160 = vsel %vm61, %v4152, inf
  %v4161 = vmin.f32 %v4156, %v4160
  %v4162 = vsel %vm61, %v4153, inf
  %v4163 = vmin.f32 %v4157, %v4162
  %v4164 = vsel %vm61, %v4154, inf
  %v4165 = vmin.f32 %v4158, %v4164
  %v4166 = vsel %vm61, %v4155, inf
  %v4167 = vmin.f32 %v4159, %v4166
  %v4168 = vmin.f32 %v4161, %v4163
  %v4169 = vmin.f32 %v4165, %v4167
  %v4170 = vmin.f32 %v4168, %v4169
  %v4171 = vsel %vm61, %v4170, inf
  %v4172 = vrot.slane %v4171, 4
  %v4173 = vmin.f32 %v4171, %v4172
  %v4174 = vrot.slane %v4173, 2
  %v4175 = vmin.f32 %v4173, %v4174
  %v4176 = vrot.slane %v4175, 1
  %v4177 = vmin.f32 %v4175, %v4176
  %vm4178 = vcmp.eq.f32.partialorder %v60, %v4177
  %vm4179 = vcmp.eq.f32.partialorder %v430, %v4177
  %vm4180 = vcmp.eq.f32.partialorder %v431, %v4177
  %vm4181 = vcmp.eq.f32.partialorder %v432, %v4177
  %vm4182 = vcmp.eq.f32.partialorder %v2084, %v4177
  %vm4183 = vcmp.eq.f32.partialorder %v2085, %v4177
  %vm4184 = vcmp.eq.f32.partialorder %v2086, %v4177
  %vm4185 = vcmp.eq.f32.partialorder %v2087, %v4177
  %v4186 = vsel %vm4178, 1, 0
  %v4187 = vsel %vm4179, 1, 0
  %v4188 = vsel %vm4180, 1, 0
  %v4189 = vsel %vm4181, 1, 0
  %v4190 = vsel %vm4182, 1, 0
  %v4191 = vsel %vm4183, 1, 0
  %v4192 = vsel %vm4184, 1, 0
  %v4193 = vsel %vm4185, 1, 0
  %v4194 = vcvt.s32.f32 %v4186
  %v4195 = vcvt.s32.f32 %v4187
  %v4196 = vcvt.s32.f32 %v4188
  %v4197 = vcvt.s32.f32 %v4189
  %v4198 = vcvt.s32.f32 %v4190
  %v4199 = vcvt.s32.f32 %v4191
  %v4200 = vcvt.s32.f32 %v4192
  %v4201 = vcvt.s32.f32 %v4193
  %v4202 = vsel %vm61, %v4194, 0.0
  %v4203 = vrot.slane %v4202, 4
  %v4204 = vadd.f32 %v4202, %v4203
  %v4205 = vrot.slane %v4204, 2
  %v4206 = vadd.f32 %v4204, %v4205
  %v4207 = vrot.slane %v4206, 1
  %v4208 = vadd.f32 %v4206, %v4207
  %v4209 = vsel %vm61, %v4195, 0.0
  %v4210 = vrot.slane %v4209, 4
  %v4211 = vadd.f32 %v4209, %v4210
  %v4212 = vrot.slane %v4211, 2
  %v4213 = vadd.f32 %v4211, %v4212
  %v4214 = vrot.slane %v4213, 1
  %v4215 = vadd.f32 %v4213, %v4214
  %v4216 = vsel %vm61, %v4196, 0.0
  %v4217 = vrot.slane %v4216, 4
  %v4218 = vadd.f32 %v4216, %v4217
  %v4219 = vrot.slane %v4218, 2
  %v4220 = vadd.f32 %v4218, %v4219
  %v4221 = vrot.slane %v4220, 1
  %v4222 = vadd.f32 %v4220, %v4221
  %v4223 = vsel %vm61, %v4197, 0.0
  %v4224 = vrot.slane %v4223, 4
  %v4225 = vadd.f32 %v4223, %v4224
  %v4226 = vrot.slane %v4225, 2
  %v4227 = vadd.f32 %v4225, %v4226
  %v4228 = vrot.slane %v4227, 1
  %v4229 = vadd.f32 %v4227, %v4228
  %v4230 = vsel %vm61, %v4198, 0.0
  %v4231 = vrot.slane %v4230, 4
  %v4232 = vadd.f32 %v4230, %v4231
  %v4233 = vrot.slane %v4232, 2
  %v4234 = vadd.f32 %v4232, %v4233
  %v4235 = vrot.slane %v4234, 1
  %v4236 = vadd.f32 %v4234, %v4235
  %v4237 = vsel %vm61, %v4199, 0.0
  %v4238 = vrot.slane %v4237, 4
  %v4239 = vadd.f32 %v4237, %v4238
  %v4240 = vrot.slane %v4239, 2
  %v4241 = vadd.f32 %v4239, %v4240
  %v4242 = vrot.slane %v4241, 1
  %v4243 = vadd.f32 %v4241, %v4242
  %v4244 = vsel %vm61, %v4200, 0.0
  %v4245 = vrot.slane %v4244, 4
  %v4246 = vadd.f32 %v4244, %v4245
  %v4247 = vrot.slane %v4246, 2
  %v4248 = vadd.f32 %v4246, %v4247
  %v4249 = vrot.slane %v4248, 1
  %v4250 = vadd.f32 %v4248, %v4249
  %v4251 = vsel %vm61, %v4201, 0.0
  %v4252 = vrot.slane %v4251, 4
  %v4253 = vadd.f32 %v4251, %v4252
  %v4254 = vrot.slane %v4253, 2
  %v4255 = vadd.f32 %v4253, %v4254
  %v4256 = vrot.slane %v4255, 1
  %v4257 = vadd.f32 %v4255, %v4256
  %v4258 = vadd.f32 %v4202, %v4209
  %v4259 = vadd.f32 %v4258, %v4216
  %v4260 = vadd.f32 %v4259, %v4223
  %v4261 = vadd.f32 %v4260, %v4230
  %v4262 = vadd.f32 %v4261, %v4237
  %v4263 = vadd.f32 %v4262, %v4244
  %v4264 = vadd.f32 %v4263, %v4251
  %v4265 = vmul.f32 %v4208, %v1657
  %v4266 = vmul.f32 %v4215, %v2236
  %v4267 = vmul.f32 %v4222, %v2237
  %v4268 = vmul.f32 %v4229, %v2238
  %v4269 = vmul.f32 %v4236, %v2239
  %v4270 = vmul.f32 %v4243, %v2240
  %v4271 = vmul.f32 %v4250, %v2241
  %v4272 = vmul.f32 %v4257, %v2242
  %v4281 = vrot.slane %v4266, 7
  %v4282 = vsel %vm529, %v4281, %v4265
  %v4283 = vrot.slane %v4267, 6
  %v4284 = vsel %vm532, %v4283, %v4282
  %v4285 = vrot.slane %v4268, 5
  %v4286 = vsel %vm535, %v4285, %v4284
  %v4287 = vrot.slane %v4269, 4
  %v4288 = vsel %vm2274, %v4287, %v4286
  %v4289 = vrot.slane %v4270, 3
  %v4290 = vsel %vm2277, %v4289, %v4288
  %v4291 = vrot.slane %v4271, 2
  %v4292 = vsel %vm2280, %v4291, %v4290
  %v4293 = vrot.slane %v4272, 1
  %v4294 = vsel %vm2283, %v4293, %v4292
  %v4296 = vrot.slane %v4294, 4
  %v4297 = vadd.f32 %v4294, %v4296
  %v4298 = vrot.slane %v4297, 2
  %v4299 = vadd.f32 %v4297, %v4298
  %v4300 = vrot.slane %v4299, 1
  %v4301 = vadd.f32 %v4299, %v4300
  %v4302 = vmul.f32 %v4208, %v1692
  %v4303 = vmul.f32 %v4215, %v2293
  %v4304 = vmul.f32 %v4222, %v2294
  %v4305 = vmul.f32 %v4229, %v2295
  %v4306 = vmul.f32 %v4236, %v2296
  %v4307 = vmul.f32 %v4243, %v2297
  %v4308 = vmul.f32 %v4250, %v2298
  %v4309 = vmul.f32 %v4257, %v2299
  %v4318 = vrot.slane %v4303, 7
  %v4319 = vsel %vm529, %v4318, %v4302
  %v4320 = vrot.slane %v4304, 6
  %v4321 = vsel %vm532, %v4320, %v4319
  %v4322 = vrot.slane %v4305, 5
  %v4323 = vsel %vm535, %v4322, %v4321
  %v4324 = vrot.slane %v4306, 4
  %v4325 = vsel %vm2274, %v4324, %v4323
  %v4326 = vrot.slane %v4307, 3
  %v4327 = vsel %vm2277, %v4326, %v4325
  %v4328 = vrot.slane %v4308, 2
  %v4329 = vsel %vm2280, %v4328, %v4327
  %v4330 = vrot.slane %v4309, 1
  %v4331 = vsel %vm2283, %v4330, %v4329
  %v4333 = vrot.slane %v4331, 4
  %v4334 = vadd.f32 %v4331, %v4333
  %v4335 = vrot.slane %v4334, 2
  %v4336 = vadd.f32 %v4334, %v4335
  %v4337 = vrot.slane %v4336, 1
  %v4338 = vadd.f32 %v4336, %v4337
  %v4339 = vmul.f32 %v4208, %v1664
  %v4340 = vmul.f32 %v4215, %v2346
  %v4341 = vmul.f32 %v4222, %v2347
  %v4342 = vmul.f32 %v4229, %v2348
  %v4343 = vmul.f32 %v4236, %v2349
  %v4344 = vmul.f32 %v4243, %v2350
  %v4345 = vmul.f32 %v4250, %v2351
  %v4346 = vmul.f32 %v4257, %v2352
  %v4355 = vrot.slane %v4340, 7
  %v4356 = vsel %vm529, %v4355, %v4339
  %v4357 = vrot.slane %v4341, 6
  %v4358 = vsel %vm532, %v4357, %v4356
  %v4359 = vrot.slane %v4342, 5
  %v4360 = vsel %vm535, %v4359, %v4358
  %v4361 = vrot.slane %v4343, 4
  %v4362 = vsel %vm2274, %v4361, %v4360
  %v4363 = vrot.slane %v4344, 3
  %v4364 = vsel %vm2277, %v4363, %v4362
  %v4365 = vrot.slane %v4345, 2
  %v4366 = vsel %vm2280, %v4365, %v4364
  %v4367 = vrot.slane %v4346, 1
  %v4368 = vsel %vm2283, %v4367, %v4366
  %v4370 = vrot.slane %v4368, 4
  %v4371 = vadd.f32 %v4368, %v4370
  %v4372 = vrot.slane %v4371, 2
  %v4373 = vadd.f32 %v4371, %v4372
  %v4374 = vrot.slane %v4373, 1
  %v4375 = vadd.f32 %v4373, %v4374
  %v4376 = vmul.f32 %v4208, %v1699
  %v4377 = vmul.f32 %v4215, %v2399
  %v4378 = vmul.f32 %v4222, %v2400
  %v4379 = vmul.f32 %v4229, %v2401
  %v4380 = vmul.f32 %v4236, %v2402
  %v4381 = vmul.f32 %v4243, %v2403
  %v4382 = vmul.f32 %v4250, %v2404
  %v4383 = vmul.f32 %v4257, %v2405
  %v4392 = vrot.slane %v4377, 7
  %v4393 = vsel %vm529, %v4392, %v4376
  %v4394 = vrot.slane %v4378, 6
  %v4395 = vsel %vm532, %v4394, %v4393
  %v4396 = vrot.slane %v4379, 5
  %v4397 = vsel %vm535, %v4396, %v4395
  %v4398 = vrot.slane %v4380, 4
  %v4399 = vsel %vm2274, %v4398, %v4397
  %v4400 = vrot.slane %v4381, 3
  %v4401 = vsel %vm2277, %v4400, %v4399
  %v4402 = vrot.slane %v4382, 2
  %v4403 = vsel %vm2280, %v4402, %v4401
  %v4404 = vrot.slane %v4383, 1
  %v4405 = vsel %vm2283, %v4404, %v4403
  %v4407 = vrot.slane %v4405, 4
  %v4408 = vadd.f32 %v4405, %v4407
  %v4409 = vrot.slane %v4408, 2
  %v4410 = vadd.f32 %v4408, %v4409
  %v4411 = vrot.slane %v4410, 1
  %v4412 = vadd.f32 %v4410, %v4411
  %v4413 = vmul.f32 %v4264, %v27
  %v4414 = vsel %vm61, %v4413, 0.0
  %v4415 = vrot.slane %v4414, 4
  %v4416 = vadd.f32 %v4414, %v4415
  %v4417 = vrot.slane %v4416, 2
  %v4418 = vadd.f32 %v4416, %v4417
  %v4419 = vrot.slane %v4418, 1
  %v4420 = vadd.f32 %v4418, %v4419
  %v4421 = vmul.f32 %v4264, %v37
  %v4422 = vsel %vm61, %v4421, 0.0
  %v4423 = vrot.slane %v4422, 4
  %v4424 = vadd.f32 %v4422, %v4423
  %v4425 = vrot.slane %v4424, 2
  %v4426 = vadd.f32 %v4424, %v4425
  %v4427 = vrot.slane %v4426, 1
  %v4428 = vadd.f32 %v4426, %v4427
  %vm4429 = vcmp.gt.f32.partialorder %v4194, 0.0
  %vm4430 = vcmp.gt.f32.partialorder %v4195, 0.0
  %vm4431 = vcmp.gt.f32.partialorder %v4196, 0.0
  %vm4432 = vcmp.gt.f32.partialorder %v4197, 0.0
  %vm4433 = vcmp.gt.f32.partialorder %v4198, 0.0
  %vm4434 = vcmp.gt.f32.partialorder %v4199, 0.0
  %vm4435 = vcmp.gt.f32.partialorder %v4200, 0.0
  %vm4436 = vcmp.gt.f32.partialorder %v4201, 0.0
  %v4437 = vsel %vm4429, inf, %v4110
  %v4438 = vsel %vm4430, inf, %v4111
  %v4439 = vsel %vm4431, inf, %v4112
  %v4440 = vsel %vm4432, inf, %v4113
  %v4441 = vsel %vm4433, inf, %v4114
  %v4442 = vsel %vm4434, inf, %v4115
  %v4443 = vsel %vm4435, inf, %v4116
  %v4444 = vsel %vm4436, inf, %v4117
  %v4445 = vsel %vm61, %v4437, inf
  %v4446 = vsel %vm61, %v4438, inf
  %v4447 = vsel %vm61, %v4439, inf
  %v4448 = vsel %vm61, %v4440, inf
  %v4449 = vsel %vm61, %v4441, inf
  %v4450 = vmin.f32 %v4445, %v4449
  %v4451 = vsel %vm61, %v4442, inf
  %v4452 = vmin.f32 %v4446, %v4451
  %v4453 = vsel %vm61, %v4443, inf
  %v4454 = vmin.f32 %v4447, %v4453
  %v4455 = vsel %vm61, %v4444, inf
  %v4456 = vmin.f32 %v4448, %v4455
  %v4457 = vmin.f32 %v4450, %v4452
  %v4458 = vmin.f32 %v4454, %v4456
  %v4459 = vmin.f32 %v4457, %v4458
  %v4460 = vsel %vm61, %v4459, inf
  %v4461 = vrot.slane %v4460, 4
  %v4462 = vmin.f32 %v4460, %v4461
  %v4463 = vrot.slane %v4462, 2
  %v4464 = vmin.f32 %v4462, %v4463
  %v4465 = vrot.slane %v4464, 1
  %v4466 = vmin.f32 %v4464, %v4465
  %vm4467 = vcmp.eq.f32.partialorder %v4437, %v4466
  %vm4468 = vcmp.eq.f32.partialorder %v4438, %v4466
  %vm4469 = vcmp.eq.f32.partialorder %v4439, %v4466
  %vm4470 = vcmp.eq.f32.partialorder %v4440, %v4466
  %vm4471 = vcmp.eq.f32.partialorder %v4441, %v4466
  %vm4472 = vcmp.eq.f32.partialorder %v4442, %v4466
  %vm4473 = vcmp.eq.f32.partialorder %v4443, %v4466
  %vm4474 = vcmp.eq.f32.partialorder %v4444, %v4466
  %v4475 = vsel %vm4467, %v60, 32.0
  %v4476 = vsel %vm4468, %v430, 32.0
  %v4477 = vsel %vm4469, %v431, 32.0
  %v4478 = vsel %vm4470, %v432, 32.0
  %v4479 = vsel %vm4471, %v2084, 32.0
  %v4480 = vsel %vm4472, %v2085, 32.0
  %v4481 = vsel %vm4473, %v2086, 32.0
  %v4482 = vsel %vm4474, %v2087, 32.0
  %v4483 = vsel %vm61, %v4475, inf
  %v4484 = vsel %vm61, %v4476, inf
  %v4485 = vsel %vm61, %v4477, inf
  %v4486 = vsel %vm61, %v4478, inf
  %v4487 = vsel %vm61, %v4479, inf
  %v4488 = vmin.f32 %v4483, %v4487
  %v4489 = vsel %vm61, %v4480, inf
  %v4490 = vmin.f32 %v4484, %v4489
  %v4491 = vsel %vm61, %v4481, inf
  %v4492 = vmin.f32 %v4485, %v4491
  %v4493 = vsel %vm61, %v4482, inf
  %v4494 = vmin.f32 %v4486, %v4493
  %v4495 = vmin.f32 %v4488, %v4490
  %v4496 = vmin.f32 %v4492, %v4494
  %v4497 = vmin.f32 %v4495, %v4496
  %v4498 = vsel %vm61, %v4497, inf
  %v4499 = vrot.slane %v4498, 4
  %v4500 = vmin.f32 %v4498, %v4499
  %v4501 = vrot.slane %v4500, 2
  %v4502 = vmin.f32 %v4500, %v4501
  %v4503 = vrot.slane %v4502, 1
  %v4504 = vmin.f32 %v4502, %v4503
  %vm4505 = vcmp.eq.f32.partialorder %v60, %v4504
  %vm4506 = vcmp.eq.f32.partialorder %v430, %v4504
  %vm4507 = vcmp.eq.f32.partialorder %v431, %v4504
  %vm4508 = vcmp.eq.f32.partialorder %v432, %v4504
  %vm4509 = vcmp.eq.f32.partialorder %v2084, %v4504
  %vm4510 = vcmp.eq.f32.partialorder %v2085, %v4504
  %vm4511 = vcmp.eq.f32.partialorder %v2086, %v4504
  %vm4512 = vcmp.eq.f32.partialorder %v2087, %v4504
  %v4513 = vsel %vm4505, 1, 0
  %v4514 = vsel %vm4506, 1, 0
  %v4515 = vsel %vm4507, 1, 0
  %v4516 = vsel %vm4508, 1, 0
  %v4517 = vsel %vm4509, 1, 0
  %v4518 = vsel %vm4510, 1, 0
  %v4519 = vsel %vm4511, 1, 0
  %v4520 = vsel %vm4512, 1, 0
  %v4521 = vcvt.s32.f32 %v4513
  %v4522 = vcvt.s32.f32 %v4514
  %v4523 = vcvt.s32.f32 %v4515
  %v4524 = vcvt.s32.f32 %v4516
  %v4525 = vcvt.s32.f32 %v4517
  %v4526 = vcvt.s32.f32 %v4518
  %v4527 = vcvt.s32.f32 %v4519
  %v4528 = vcvt.s32.f32 %v4520
  %v4529 = vsel %vm61, %v4521, 0.0
  %v4530 = vrot.slane %v4529, 4
  %v4531 = vadd.f32 %v4529, %v4530
  %v4532 = vrot.slane %v4531, 2
  %v4533 = vadd.f32 %v4531, %v4532
  %v4534 = vrot.slane %v4533, 1
  %v4535 = vadd.f32 %v4533, %v4534
  %v4536 = vsel %vm61, %v4522, 0.0
  %v4537 = vrot.slane %v4536, 4
  %v4538 = vadd.f32 %v4536, %v4537
  %v4539 = vrot.slane %v4538, 2
  %v4540 = vadd.f32 %v4538, %v4539
  %v4541 = vrot.slane %v4540, 1
  %v4542 = vadd.f32 %v4540, %v4541
  %v4543 = vsel %vm61, %v4523, 0.0
  %v4544 = vrot.slane %v4543, 4
  %v4545 = vadd.f32 %v4543, %v4544
  %v4546 = vrot.slane %v4545, 2
  %v4547 = vadd.f32 %v4545, %v4546
  %v4548 = vrot.slane %v4547, 1
  %v4549 = vadd.f32 %v4547, %v4548
  %v4550 = vsel %vm61, %v4524, 0.0
  %v4551 = vrot.slane %v4550, 4
  %v4552 = vadd.f32 %v4550, %v4551
  %v4553 = vrot.slane %v4552, 2
  %v4554 = vadd.f32 %v4552, %v4553
  %v4555 = vrot.slane %v4554, 1
  %v4556 = vadd.f32 %v4554, %v4555
  %v4557 = vsel %vm61, %v4525, 0.0
  %v4558 = vrot.slane %v4557, 4
  %v4559 = vadd.f32 %v4557, %v4558
  %v4560 = vrot.slane %v4559, 2
  %v4561 = vadd.f32 %v4559, %v4560
  %v4562 = vrot.slane %v4561, 1
  %v4563 = vadd.f32 %v4561, %v4562
  %v4564 = vsel %vm61, %v4526, 0.0
  %v4565 = vrot.slane %v4564, 4
  %v4566 = vadd.f32 %v4564, %v4565
  %v4567 = vrot.slane %v4566, 2
  %v4568 = vadd.f32 %v4566, %v4567
  %v4569 = vrot.slane %v4568, 1
  %v4570 = vadd.f32 %v4568, %v4569
  %v4571 = vsel %vm61, %v4527, 0.0
  %v4572 = vrot.slane %v4571, 4
  %v4573 = vadd.f32 %v4571, %v4572
  %v4574 = vrot.slane %v4573, 2
  %v4575 = vadd.f32 %v4573, %v4574
  %v4576 = vrot.slane %v4575, 1
  %v4577 = vadd.f32 %v4575, %v4576
  %v4578 = vsel %vm61, %v4528, 0.0
  %v4579 = vrot.slane %v4578, 4
  %v4580 = vadd.f32 %v4578, %v4579
  %v4581 = vrot.slane %v4580, 2
  %v4582 = vadd.f32 %v4580, %v4581
  %v4583 = vrot.slane %v4582, 1
  %v4584 = vadd.f32 %v4582, %v4583
  %v4585 = vadd.f32 %v4529, %v4536
  %v4586 = vadd.f32 %v4585, %v4543
  %v4587 = vadd.f32 %v4586, %v4550
  %v4588 = vadd.f32 %v4587, %v4557
  %v4589 = vadd.f32 %v4588, %v4564
  %v4590 = vadd.f32 %v4589, %v4571
  %v4591 = vadd.f32 %v4590, %v4578
  %v4592 = vmul.f32 %v4535, %v1657
  %v4593 = vmul.f32 %v4542, %v2236
  %v4594 = vmul.f32 %v4549, %v2237
  %v4595 = vmul.f32 %v4556, %v2238
  %v4596 = vmul.f32 %v4563, %v2239
  %v4597 = vmul.f32 %v4570, %v2240
  %v4598 = vmul.f32 %v4577, %v2241
  %v4599 = vmul.f32 %v4584, %v2242
  %v4608 = vrot.slane %v4593, 7
  %v4609 = vsel %vm529, %v4608, %v4592
  %v4610 = vrot.slane %v4594, 6
  %v4611 = vsel %vm532, %v4610, %v4609
  %v4612 = vrot.slane %v4595, 5
  %v4613 = vsel %vm535, %v4612, %v4611
  %v4614 = vrot.slane %v4596, 4
  %v4615 = vsel %vm2274, %v4614, %v4613
  %v4616 = vrot.slane %v4597, 3
  %v4617 = vsel %vm2277, %v4616, %v4615
  %v4618 = vrot.slane %v4598, 2
  %v4619 = vsel %vm2280, %v4618, %v4617
  %v4620 = vrot.slane %v4599, 1
  %v4621 = vsel %vm2283, %v4620, %v4619
  %v4623 = vrot.slane %v4621, 4
  %v4624 = vadd.f32 %v4621, %v4623
  %v4625 = vrot.slane %v4624, 2
  %v4626 = vadd.f32 %v4624, %v4625
  %v4627 = vrot.slane %v4626, 1
  %v4628 = vadd.f32 %v4626, %v4627
  %v4629 = vmul.f32 %v4535, %v1692
  %v4630 = vmul.f32 %v4542, %v2293
  %v4631 = vmul.f32 %v4549, %v2294
  %v4632 = vmul.f32 %v4556, %v2295
  %v4633 = vmul.f32 %v4563, %v2296
  %v4634 = vmul.f32 %v4570, %v2297
  %v4635 = vmul.f32 %v4577, %v2298
  %v4636 = vmul.f32 %v4584, %v2299
  %v4645 = vrot.slane %v4630, 7
  %v4646 = vsel %vm529, %v4645, %v4629
  %v4647 = vrot.slane %v4631, 6
  %v4648 = vsel %vm532, %v4647, %v4646
  %v4649 = vrot.slane %v4632, 5
  %v4650 = vsel %vm535, %v4649, %v4648
  %v4651 = vrot.slane %v4633, 4
  %v4652 = vsel %vm2274, %v4651, %v4650
  %v4653 = vrot.slane %v4634, 3
  %v4654 = vsel %vm2277, %v4653, %v4652
  %v4655 = vrot.slane %v4635, 2
  %v4656 = vsel %vm2280, %v4655, %v4654
  %v4657 = vrot.slane %v4636, 1
  %v4658 = vsel %vm2283, %v4657, %v4656
  %v4660 = vrot.slane %v4658, 4
  %v4661 = vadd.f32 %v4658, %v4660
  %v4662 = vrot.slane %v4661, 2
  %v4663 = vadd.f32 %v4661, %v4662
  %v4664 = vrot.slane %v4663, 1
  %v4665 = vadd.f32 %v4663, %v4664
  %v4666 = vmul.f32 %v4535, %v1664
  %v4667 = vmul.f32 %v4542, %v2346
  %v4668 = vmul.f32 %v4549, %v2347
  %v4669 = vmul.f32 %v4556, %v2348
  %v4670 = vmul.f32 %v4563, %v2349
  %v4671 = vmul.f32 %v4570, %v2350
  %v4672 = vmul.f32 %v4577, %v2351
  %v4673 = vmul.f32 %v4584, %v2352
  %v4682 = vrot.slane %v4667, 7
  %v4683 = vsel %vm529, %v4682, %v4666
  %v4684 = vrot.slane %v4668, 6
  %v4685 = vsel %vm532, %v4684, %v4683
  %v4686 = vrot.slane %v4669, 5
  %v4687 = vsel %vm535, %v4686, %v4685
  %v4688 = vrot.slane %v4670, 4
  %v4689 = vsel %vm2274, %v4688, %v4687
  %v4690 = vrot.slane %v4671, 3
  %v4691 = vsel %vm2277, %v4690, %v4689
  %v4692 = vrot.slane %v4672, 2
  %v4693 = vsel %vm2280, %v4692, %v4691
  %v4694 = vrot.slane %v4673, 1
  %v4695 = vsel %vm2283, %v4694, %v4693
  %v4697 = vrot.slane %v4695, 4
  %v4698 = vadd.f32 %v4695, %v4697
  %v4699 = vrot.slane %v4698, 2
  %v4700 = vadd.f32 %v4698, %v4699
  %v4701 = vrot.slane %v4700, 1
  %v4702 = vadd.f32 %v4700, %v4701
  %v4703 = vmul.f32 %v4535, %v1699
  %v4704 = vmul.f32 %v4542, %v2399
  %v4705 = vmul.f32 %v4549, %v2400
  %v4706 = vmul.f32 %v4556, %v2401
  %v4707 = vmul.f32 %v4563, %v2402
  %v4708 = vmul.f32 %v4570, %v2403
  %v4709 = vmul.f32 %v4577, %v2404
  %v4710 = vmul.f32 %v4584, %v2405
  %v4719 = vrot.slane %v4704, 7
  %v4720 = vsel %vm529, %v4719, %v4703
  %v4721 = vrot.slane %v4705, 6
  %v4722 = vsel %vm532, %v4721, %v4720
  %v4723 = vrot.slane %v4706, 5
  %v4724 = vsel %vm535, %v4723, %v4722
  %v4725 = vrot.slane %v4707, 4
  %v4726 = vsel %vm2274, %v4725, %v4724
  %v4727 = vrot.slane %v4708, 3
  %v4728 = vsel %vm2277, %v4727, %v4726
  %v4729 = vrot.slane %v4709, 2
  %v4730 = vsel %vm2280, %v4729, %v4728
  %v4731 = vrot.slane %v4710, 1
  %v4732 = vsel %vm2283, %v4731, %v4730
  %v4734 = vrot.slane %v4732, 4
  %v4735 = vadd.f32 %v4732, %v4734
  %v4736 = vrot.slane %v4735, 2
  %v4737 = vadd.f32 %v4735, %v4736
  %v4738 = vrot.slane %v4737, 1
  %v4739 = vadd.f32 %v4737, %v4738
  %v4740 = vmul.f32 %v4591, %v27
  %v4741 = vsel %vm61, %v4740, 0.0
  %v4742 = vrot.slane %v4741, 4
  %v4743 = vadd.f32 %v4741, %v4742
  %v4744 = vrot.slane %v4743, 2
  %v4745 = vadd.f32 %v4743, %v4744
  %v4746 = vrot.slane %v4745, 1
  %v4747 = vadd.f32 %v4745, %v4746
  %v4748 = vmul.f32 %v4591, %v37
  %v4749 = vsel %vm61, %v4748, 0.0
  %v4750 = vrot.slane %v4749, 4
  %v4751 = vadd.f32 %v4749, %v4750
  %v4752 = vrot.slane %v4751, 2
  %v4753 = vadd.f32 %v4751, %v4752
  %v4754 = vrot.slane %v4753, 1
  %v4755 = vadd.f32 %v4753, %v4754
  %v4756 = vsel %vm212, %v2109, %v2504
  %v4757 = vsel %vm214, %v4756, %v2831
  %v4758 = vsel %vm216, %v4757, %v3158
  %v4759 = vsel %vm61, %v4758, %v3485
  %v4760 = vsel %vm1624, %v4759, %v3812
  %v4761 = vsel %vm1626, %v4760, %v4139
  %v4762 = vsel %vm1628, %v4761, %v4466
  %v4764 = vrot.slane %v2666, 7
  %v4767 = vrot.slane %v2993, 6
  %v4770 = vrot.slane %v3320, 5
  %v4773 = vrot.slane %v3647, 4
  %v4776 = vrot.slane %v3974, 3
  %v4779 = vrot.slane %v4301, 2
  %v4782 = vrot.slane %v4628, 1
  %v4784 = vsel %vm212, %v2291, %v4764
  %v4785 = vsel %vm214, %v4784, %v4767
  %v4786 = vsel %vm216, %v4785, %v4770
  %v4787 = vsel %vm61, %v4786, %v4773
  %v4788 = vsel %vm1624, %v4787, %v4776
  %v4789 = vsel %vm1626, %v4788, %v4779
  %v4790 = vsel %vm1628, %v4789, %v4782
  %v4792 = vrot.slane %v2740, 7
  %v4795 = vrot.slane %v3067, 6
  %v4798 = vrot.slane %v3394, 5
  %v4801 = vrot.slane %v3721, 4
  %v4804 = vrot.slane %v4048, 3
  %v4807 = vrot.slane %v4375, 2
  %v4810 = vrot.slane %v4702, 1
  %v4812 = vsel %vm212, %v2397, %v4792
  %v4813 = vsel %vm214, %v4812, %v4795
  %v4814 = vsel %vm216, %v4813, %v4798
  %v4815 = vsel %vm61, %v4814, %v4801
  %v4816 = vsel %vm1624, %v4815, %v4804
  %v4817 = vsel %vm1626, %v4816, %v4807
  %v4818 = vsel %vm1628, %v4817, %v4810
  %v4819 = vsel %vm212, %v2458, %v2785
  %v4820 = vsel %vm214, %v4819, %v3112
  %v4821 = vsel %vm216, %v4820, %v3439
  %v4822 = vsel %vm61, %v4821, %v3766
  %v4823 = vsel %vm1624, %v4822, %v4093
  %v4824 = vsel %vm1626, %v4823, %v4420
  %v4825 = vsel %vm1628, %v4824, %v4747
  %v4827 = vrot.slane %v2703, 7
  %v4830 = vrot.slane %v3030, 6
  %v4833 = vrot.slane %v3357, 5
  %v4836 = vrot.slane %v3684, 4
  %v4839 = vrot.slane %v4011, 3
  %v4842 = vrot.slane %v4338, 2
  %v4845 = vrot.slane %v4665, 1
  %v4847 = vsel %vm212, %v2344, %v4827
  %v4848 = vsel %vm214, %v4847, %v4830
  %v4849 = vsel %vm216, %v4848, %v4833
  %v4850 = vsel %vm61, %v4849, %v4836
  %v4851 = vsel %vm1624, %v4850, %v4839
  %v4852 = vsel %vm1626, %v4851, %v4842
  %v4853 = vsel %vm1628, %v4852, %v4845
  %v4855 = vrot.slane %v2777, 7
  %v4858 = vrot.slane %v3104, 6
  %v4861 = vrot.slane %v3431, 5
  %v4864 = vrot.slane %v3758, 4
  %v4867 = vrot.slane %v4085, 3
  %v4870 = vrot.slane %v4412, 2
  %v4873 = vrot.slane %v4739, 1
  %v4875 = vsel %vm212, %v2450, %v4855
  %v4876 = vsel %vm214, %v4875, %v4858
  %v4877 = vsel %vm216, %v4876, %v4861
  %v4878 = vsel %vm61, %v4877, %v4864
  %v4879 = vsel %vm1624, %v4878, %v4867
  %v4880 = vsel %vm1626, %v4879, %v4870
  %v4881 = vsel %vm1628, %v4880, %v4873
  %v4882 = vsel %vm212, %v2466, %v2793
  %v4883 = vsel %vm214, %v4882, %v3120
  %v4884 = vsel %vm216, %v4883, %v3447
  %v4885 = vsel %vm61, %v4884, %v3774
  %v4886 = vsel %vm1624, %v4885, %v4101
  %v4887 = vsel %vm1626, %v4886, %v4428
  %v4888 = vsel %vm1628, %v4887, %v4755
  %v4889 = vld [vmem:[%s0] sm:$0x1]
  %v4890 = vlaneseq
  %v4891 = vshrl.u32 %v4890, 7
  %v4892 = vsub.s32 0, %v4891
  %v4893 = vrot.slane %v4889, %v4892
  %v4894 = vld [vmem:[%s0 + $0x4] sm:$0x1]
  %v4895 = vlaneseq
  %v4896 = vshrl.u32 %v4895, 7
  %v4897 = vsub.s32 0, %v4896
  %v4898 = vrot.slane %v4894, %v4897
  %v4899 = vld [vmem:[%s1 + $0x3] sm:$0x1]
  %v4900 = vld [vmem:[%s1 + $0x13] sm:$0x1]
  %v4901 = vlaneseq
  %v4902 = vshrl.u32 %v4901, 7
  %v4903 = vsub.s32 0, %v4902
  %v4904 = vrot.slane %v4899, %v4903
  %v4905 = vmul.f32 %v4904, %v4790
  %v4906 = vlaneseq
  %v4907 = vshrl.u32 %v4906, 7
  %v4908 = vsub.s32 0, %v4907
  %v4909 = vrot.slane %v4900, %v4908
  %v4910 = vmul.f32 %v4909, %v4853
  %v4911 = vsub.f32 %v4905, %v4910
  %v4912 = vsub.f32 %v4893, %v4911
  %v4913 = vmul.f32 %v4904, %v4853
  %v4914 = vmul.f32 %v4909, %v4790
  %v4915 = vadd.f32 %v4913, %v4914
  %v4916 = vsub.f32 %v4898, %v4915
  %v4917 = vld [vmem:[%s1 + $0x2] sm:$0x1]
  %v4918 = vld [vmem:[%s1 + $0x12] sm:$0x1]
  %v4919 = vlaneseq
  %v4920 = vshrl.u32 %v4919, 7
  %v4921 = vsub.s32 0, %v4920
  %v4922 = vrot.slane %v4917, %v4921
  %v4923 = vmul.f32 %v4922, %v4818
  %v4924 = vlaneseq
  %v4925 = vshrl.u32 %v4924, 7
  %v4926 = vsub.s32 0, %v4925
  %v4927 = vrot.slane %v4918, %v4926
  %v4928 = vmul.f32 %v4927, %v4881
  %v4929 = vsub.f32 %v4923, %v4928
  %v4930 = vsub.f32 %v4912, %v4929
  %v4931 = vmul.f32 %v4922, %v4881
  %v4932 = vmul.f32 %v4927, %v4818
  %v4933 = vadd.f32 %v4931, %v4932
  %v4934 = vsub.f32 %v4916, %v4933
  %v4935 = vld [vmem:[%s1 + $0x1] sm:$0x1]
  %v4936 = vld [vmem:[%s1 + $0x11] sm:$0x1]
  %v4937 = vlaneseq
  %v4938 = vshrl.u32 %v4937, 7
  %v4939 = vsub.s32 0, %v4938
  %v4940 = vrot.slane %v4935, %v4939
  %v4941 = vmul.f32 %v4940, %v4825
  %v4942 = vlaneseq
  %v4943 = vshrl.u32 %v4942, 7
  %v4944 = vsub.s32 0, %v4943
  %v4945 = vrot.slane %v4936, %v4944
  %v4946 = vmul.f32 %v4945, %v4888
  %v4947 = vsub.f32 %v4941, %v4946
  %v4948 = vsub.f32 %v4930, %v4947
  %v4949 = vmul.f32 %v4940, %v4888
  %v4950 = vmul.f32 %v4945, %v4825
  %v4951 = vadd.f32 %v4949, %v4950
  %v4952 = vsub.f32 %v4934, %v4951
  %v4953 = vld [vmem:[%s1] sm:$0x1]
  %v4954 = vld [vmem:[%s1 + $0x10] sm:$0x1]
  %v4955 = vlaneseq
  %v4956 = vshrl.u32 %v4955, 7
  %v4957 = vsub.s32 0, %v4956
  %v4958 = vrot.slane %v4953, %v4957
  %v4959 = vmul.f32 %v4958, %v27
  %v4960 = vlaneseq
  %v4961 = vshrl.u32 %v4960, 7
  %v4962 = vsub.s32 0, %v4961
  %v4963 = vrot.slane %v4954, %v4962
  %v4964 = vmul.f32 %v4963, %v37
  %v4965 = vsub.f32 %v4959, %v4964
  %v4966 = vmul.f32 %v4958, %v37
  %v4967 = vmul.f32 %v4963, %v27
  %v4968 = vadd.f32 %v4966, %v4967
  %v4970 = vcombine.high %v4948, %v4948
  %v4972 = vunpack.c.l.s4 1966171168
  %v4973 = vunpack.c.0.s8 %v4972
  %v4974 = vlaneseq
  %v4975 = vshrl.u32 %v4974, 7
  %v4976 = vsub.s32 %v4973, %v4975
  %v4977 = vrot.slane %v4948, %v4976
  %v4979 = vunpack.c.l.s4 1966171168
  %v4980 = vunpack.c.0.s8 %v4979
  %v4981 = vlaneseq
  %v4982 = vshrl.u32 %v4981, 7
  %v4983 = vsub.s32 %v4980, %v4982
  %v4984 = vrot.slane %v4970, %v4983
  %v4985 = vcombine.high %v4977, %v4977
  %v4986 = vcombine.high %v4984, %v4984
  %v4988 = vunpack.c.l.s4 1966171168
  %v4989 = vunpack.c.0.s8 %v4988
  %v4990 = vlaneseq
  %v4991 = vshrl.u32 %v4990, 7
  %v4992 = vsub.s32 %v4989, %v4991
  %v4993 = vrot.slane %v4977, %v4992
  %v4995 = vunpack.c.l.s4 1966171168
  %v4996 = vunpack.c.0.s8 %v4995
  %v4997 = vlaneseq
  %v4998 = vshrl.u32 %v4997, 7
  %v4999 = vsub.s32 %v4996, %v4998
  %v5000 = vrot.slane %v4984, %v4999
  %v5002 = vunpack.c.l.s4 1966171168
  %v5003 = vunpack.c.0.s8 %v5002
  %v5004 = vlaneseq
  %v5005 = vshrl.u32 %v5004, 7
  %v5006 = vsub.s32 %v5003, %v5005
  %v5007 = vrot.slane %v4985, %v5006
  %v5009 = vunpack.c.l.s4 1966171168
  %v5010 = vunpack.c.0.s8 %v5009
  %v5011 = vlaneseq
  %v5012 = vshrl.u32 %v5011, 7
  %v5013 = vsub.s32 %v5010, %v5012
  %v5014 = vrot.slane %v4986, %v5013
  %v5015 = vcombine.high %v4993, %v4993
  %v5016 = vcombine.high %v5000, %v5000
  %v5017 = vcombine.high %v5007, %v5007
  %v5018 = vcombine.high %v5014, %v5014
  %v5019 = vlaneseq
  %v5020 = vshrl.u32 %v5019, 7
  %v5021 = vsub.s32 0, %v5020
  %v5022 = vrot.slane %v4993, %v5021
  %v5023 = vlaneseq
  %v5024 = vshrl.u32 %v5023, 7
  %v5025 = vsub.s32 0, %v5024
  %v5026 = vrot.slane %v5007, %v5025
  %v5027 = vlaneseq
  %v5028 = vshrl.u32 %v5027, 7
  %v5029 = vsub.s32 0, %v5028
  %v5030 = vrot.slane %v5015, %v5029
  %v5031 = vlaneseq
  %v5032 = vshrl.u32 %v5031, 7
  %v5033 = vsub.s32 0, %v5032
  %v5034 = vrot.slane %v5017, %v5033
  %v5035 = vlaneseq
  %v5036 = vshrl.u32 %v5035, 7
  %v5037 = vsub.s32 0, %v5036
  %v5038 = vrot.slane %v5000, %v5037
  %v5039 = vlaneseq
  %v5040 = vshrl.u32 %v5039, 7
  %v5041 = vsub.s32 0, %v5040
  %v5042 = vrot.slane %v5014, %v5041
  %v5043 = vlaneseq
  %v5044 = vshrl.u32 %v5043, 7
  %v5045 = vsub.s32 0, %v5044
  %v5046 = vrot.slane %v5016, %v5045
  %v5047 = vlaneseq
  %v5048 = vshrl.u32 %v5047, 7
  %v5049 = vsub.s32 0, %v5048
  %v5050 = vrot.slane %v5018, %v5049
  %v5059 = vsub.f32 %v5022, %v4965
  %v5060 = vsub.f32 %v5026, %v4965
  %v5061 = vsub.f32 %v5030, %v4965
  %v5062 = vsub.f32 %v5034, %v4965
  %v5063 = vsub.f32 %v5038, %v4965
  %v5064 = vsub.f32 %v5042, %v4965
  %v5065 = vsub.f32 %v5046, %v4965
  %v5066 = vsub.f32 %v5050, %v4965
  %v5068 = vcombine.high %v4952, %v4952
  %v5070 = vunpack.c.l.s4 1966171168
  %v5071 = vunpack.c.0.s8 %v5070
  %v5072 = vlaneseq
  %v5073 = vshrl.u32 %v5072, 7
  %v5074 = vsub.s32 %v5071, %v5073
  %v5075 = vrot.slane %v4952, %v5074
  %v5077 = vunpack.c.l.s4 1966171168
  %v5078 = vunpack.c.0.s8 %v5077
  %v5079 = vlaneseq
  %v5080 = vshrl.u32 %v5079, 7
  %v5081 = vsub.s32 %v5078, %v5080
  %v5082 = vrot.slane %v5068, %v5081
  %v5083 = vcombine.high %v5075, %v5075
  %v5084 = vcombine.high %v5082, %v5082
  %v5086 = vunpack.c.l.s4 1966171168
  %v5087 = vunpack.c.0.s8 %v5086
  %v5088 = vlaneseq
  %v5089 = vshrl.u32 %v5088, 7
  %v5090 = vsub.s32 %v5087, %v5089
  %v5091 = vrot.slane %v5075, %v5090
  %v5093 = vunpack.c.l.s4 1966171168
  %v5094 = vunpack.c.0.s8 %v5093
  %v5095 = vlaneseq
  %v5096 = vshrl.u32 %v5095, 7
  %v5097 = vsub.s32 %v5094, %v5096
  %v5098 = vrot.slane %v5082, %v5097
  %v5100 = vunpack.c.l.s4 1966171168
  %v5101 = vunpack.c.0.s8 %v5100
  %v5102 = vlaneseq
  %v5103 = vshrl.u32 %v5102, 7
  %v5104 = vsub.s32 %v5101, %v5103
  %v5105 = vrot.slane %v5083, %v5104
  %v5107 = vunpack.c.l.s4 1966171168
  %v5108 = vunpack.c.0.s8 %v5107
  %v5109 = vlaneseq
  %v5110 = vshrl.u32 %v5109, 7
  %v5111 = vsub.s32 %v5108, %v5110
  %v5112 = vrot.slane %v5084, %v5111
  %v5113 = vcombine.high %v5091, %v5091
  %v5114 = vcombine.high %v5098, %v5098
  %v5115 = vcombine.high %v5105, %v5105
  %v5116 = vcombine.high %v5112, %v5112
  %v5117 = vlaneseq
  %v5118 = vshrl.u32 %v5117, 7
  %v5119 = vsub.s32 0, %v5118
  %v5120 = vrot.slane %v5091, %v5119
  %v5121 = vlaneseq
  %v5122 = vshrl.u32 %v5121, 7
  %v5123 = vsub.s32 0, %v5122
  %v5124 = vrot.slane %v5105, %v5123
  %v5125 = vlaneseq
  %v5126 = vshrl.u32 %v5125, 7
  %v5127 = vsub.s32 0, %v5126
  %v5128 = vrot.slane %v5113, %v5127
  %v5129 = vlaneseq
  %v5130 = vshrl.u32 %v5129, 7
  %v5131 = vsub.s32 0, %v5130
  %v5132 = vrot.slane %v5115, %v5131
  %v5133 = vlaneseq
  %v5134 = vshrl.u32 %v5133, 7
  %v5135 = vsub.s32 0, %v5134
  %v5136 = vrot.slane %v5098, %v5135
  %v5137 = vlaneseq
  %v5138 = vshrl.u32 %v5137, 7
  %v5139 = vsub.s32 0, %v5138
  %v5140 = vrot.slane %v5112, %v5139
  %v5141 = vlaneseq
  %v5142 = vshrl.u32 %v5141, 7
  %v5143 = vsub.s32 0, %v5142
  %v5144 = vrot.slane %v5114, %v5143
  %v5145 = vlaneseq
  %v5146 = vshrl.u32 %v5145, 7
  %v5147 = vsub.s32 0, %v5146
  %v5148 = vrot.slane %v5116, %v5147
  %v5157 = vsub.f32 %v5120, %v4968
  %v5158 = vsub.f32 %v5124, %v4968
  %v5159 = vsub.f32 %v5128, %v4968
  %v5160 = vsub.f32 %v5132, %v4968
  %v5161 = vsub.f32 %v5136, %v4968
  %v5162 = vsub.f32 %v5140, %v4968
  %v5163 = vsub.f32 %v5144, %v4968
  %v5164 = vsub.f32 %v5148, %v4968
  %v5166 = vcombine.high %v4762, %v4762
  %v5168 = vunpack.c.l.s4 1966171168
  %v5169 = vunpack.c.0.s8 %v5168
  %v5170 = vlaneseq
  %v5171 = vshrl.u32 %v5170, 7
  %v5172 = vsub.s32 %v5169, %v5171
  %v5173 = vrot.slane %v4762, %v5172
  %v5175 = vunpack.c.l.s4 1966171168
  %v5176 = vunpack.c.0.s8 %v5175
  %v5177 = vlaneseq
  %v5178 = vshrl.u32 %v5177, 7
  %v5179 = vsub.s32 %v5176, %v5178
  %v5180 = vrot.slane %v5166, %v5179
  %v5181 = vcombine.high %v5173, %v5173
  %v5182 = vcombine.high %v5180, %v5180
  %v5184 = vunpack.c.l.s4 1966171168
  %v5185 = vunpack.c.0.s8 %v5184
  %v5186 = vlaneseq
  %v5187 = vshrl.u32 %v5186, 7
  %v5188 = vsub.s32 %v5185, %v5187
  %v5189 = vrot.slane %v5173, %v5188
  %v5191 = vunpack.c.l.s4 1966171168
  %v5192 = vunpack.c.0.s8 %v5191
  %v5193 = vlaneseq
  %v5194 = vshrl.u32 %v5193, 7
  %v5195 = vsub.s32 %v5192, %v5194
  %v5196 = vrot.slane %v5180, %v5195
  %v5198 = vunpack.c.l.s4 1966171168
  %v5199 = vunpack.c.0.s8 %v5198
  %v5200 = vlaneseq
  %v5201 = vshrl.u32 %v5200, 7
  %v5202 = vsub.s32 %v5199, %v5201
  %v5203 = vrot.slane %v5181, %v5202
  %v5205 = vunpack.c.l.s4 1966171168
  %v5206 = vunpack.c.0.s8 %v5205
  %v5207 = vlaneseq
  %v5208 = vshrl.u32 %v5207, 7
  %v5209 = vsub.s32 %v5206, %v5208
  %v5210 = vrot.slane %v5182, %v5209
  %v5211 = vcombine.high %v5189, %v5189
  %v5212 = vcombine.high %v5196, %v5196
  %v5213 = vcombine.high %v5203, %v5203
  %v5214 = vcombine.high %v5210, %v5210
  %v5215 = vmul.f32 %v5059, %v5059
  %v5216 = vmul.f32 %v5060, %v5060
  %v5217 = vmul.f32 %v5061, %v5061
  %v5218 = vmul.f32 %v5062, %v5062
  %v5219 = vmul.f32 %v5063, %v5063
  %v5220 = vmul.f32 %v5064, %v5064
  %v5221 = vmul.f32 %v5065, %v5065
  %v5222 = vmul.f32 %v5066, %v5066
  %v5223 = vlaneseq
  %v5224 = vshrl.u32 %v5223, 7
  %v5225 = vsub.s32 0, %v5224
  %v5226 = vrot.slane %v5189, %v5225
  %v5227 = vlaneseq
  %v5228 = vshrl.u32 %v5227, 7
  %v5229 = vsub.s32 0, %v5228
  %v5230 = vrot.slane %v5203, %v5229
  %v5231 = vlaneseq
  %v5232 = vshrl.u32 %v5231, 7
  %v5233 = vsub.s32 0, %v5232
  %v5234 = vrot.slane %v5211, %v5233
  %v5235 = vlaneseq
  %v5236 = vshrl.u32 %v5235, 7
  %v5237 = vsub.s32 0, %v5236
  %v5238 = vrot.slane %v5213, %v5237
  %v5239 = vlaneseq
  %v5240 = vshrl.u32 %v5239, 7
  %v5241 = vsub.s32 0, %v5240
  %v5242 = vrot.slane %v5196, %v5241
  %v5243 = vlaneseq
  %v5244 = vshrl.u32 %v5243, 7
  %v5245 = vsub.s32 0, %v5244
  %v5246 = vrot.slane %v5210, %v5245
  %v5247 = vlaneseq
  %v5248 = vshrl.u32 %v5247, 7
  %v5249 = vsub.s32 0, %v5248
  %v5250 = vrot.slane %v5212, %v5249
  %v5251 = vlaneseq
  %v5252 = vshrl.u32 %v5251, 7
  %v5253 = vsub.s32 0, %v5252
  %v5254 = vrot.slane %v5214, %v5253
  %v5263 = vadd.f32 %v5226, %v5215
  %v5264 = vadd.f32 %v5230, %v5216
  %v5265 = vadd.f32 %v5234, %v5217
  %v5266 = vadd.f32 %v5238, %v5218
  %v5267 = vadd.f32 %v5242, %v5219
  %v5268 = vadd.f32 %v5246, %v5220
  %v5269 = vadd.f32 %v5250, %v5221
  %v5270 = vadd.f32 %v5254, %v5222
  %v5271 = vmul.f32 %v5157, %v5157
  %v5272 = vmul.f32 %v5158, %v5158
  %v5273 = vmul.f32 %v5159, %v5159
  %v5274 = vmul.f32 %v5160, %v5160
  %v5275 = vmul.f32 %v5161, %v5161
  %v5276 = vmul.f32 %v5162, %v5162
  %v5277 = vmul.f32 %v5163, %v5163
  %v5278 = vmul.f32 %v5164, %v5164
  %v5279 = vadd.f32 %v5263, %v5271
  %v5280 = vadd.f32 %v5264, %v5272
  %v5281 = vadd.f32 %v5265, %v5273
  %v5282 = vadd.f32 %v5266, %v5274
  %v5283 = vadd.f32 %v5267, %v5275
  %v5284 = vadd.f32 %v5268, %v5276
  %v5285 = vadd.f32 %v5269, %v5277
  %v5286 = vadd.f32 %v5270, %v5278
  %v5287 = vsel %vm61, %v5279, inf
  %v5288 = vsel %vm61, %v5280, inf
  %v5289 = vsel %vm61, %v5281, inf
  %v5290 = vsel %vm61, %v5282, inf
  %v5291 = vsel %vm61, %v5283, inf
  %v5292 = vmin.f32 %v5287, %v5291
  %v5293 = vsel %vm61, %v5284, inf
  %v5294 = vmin.f32 %v5288, %v5293
  %v5295 = vsel %vm61, %v5285, inf
  %v5296 = vmin.f32 %v5289, %v5295
  %v5297 = vsel %vm61, %v5286, inf
  %v5298 = vmin.f32 %v5290, %v5297
  %v5299 = vmin.f32 %v5292, %v5294
  %v5300 = vmin.f32 %v5296, %v5298
  %v5301 = vmin.f32 %v5299, %v5300
  %v5302 = vsel %vm61, %v5301, inf
  %v5303 = vrot.slane %v5302, 4
  %v5304 = vmin.f32 %v5302, %v5303
  %v5305 = vrot.slane %v5304, 2
  %v5306 = vmin.f32 %v5304, %v5305
  %v5307 = vrot.slane %v5306, 1
  %v5308 = vmin.f32 %v5306, %v5307
  %vm5309 = vcmp.eq.f32.partialorder %v5279, %v5308
  %vm5310 = vcmp.eq.f32.partialorder %v5280, %v5308
  %vm5311 = vcmp.eq.f32.partialorder %v5281, %v5308
  %vm5312 = vcmp.eq.f32.partialorder %v5282, %v5308
  %vm5313 = vcmp.eq.f32.partialorder %v5283, %v5308
  %vm5314 = vcmp.eq.f32.partialorder %v5284, %v5308
  %vm5315 = vcmp.eq.f32.partialorder %v5285, %v5308
  %vm5316 = vcmp.eq.f32.partialorder %v5286, %v5308
  %v5317 = vsel %vm5309, %v60, 32.0
  %v5318 = vsel %vm5310, %v430, 32.0
  %v5319 = vsel %vm5311, %v431, 32.0
  %v5320 = vsel %vm5312, %v432, 32.0
  %v5321 = vsel %vm5313, %v2084, 32.0
  %v5322 = vsel %vm5314, %v2085, 32.0
  %v5323 = vsel %vm5315, %v2086, 32.0
  %v5324 = vsel %vm5316, %v2087, 32.0
  %v5325 = vsel %vm61, %v5317, inf
  %v5326 = vsel %vm61, %v5318, inf
  %v5327 = vsel %vm61, %v5319, inf
  %v5328 = vsel %vm61, %v5320, inf
  %v5329 = vsel %vm61, %v5321, inf
  %v5330 = vmin.f32 %v5325, %v5329
  %v5331 = vsel %vm61, %v5322, inf
  %v5332 = vmin.f32 %v5326, %v5331
  %v5333 = vsel %vm61, %v5323, inf
  %v5334 = vmin.f32 %v5327, %v5333
  %v5335 = vsel %vm61, %v5324, inf
  %v5336 = vmin.f32 %v5328, %v5335
  %v5337 = vmin.f32 %v5330, %v5332
  %v5338 = vmin.f32 %v5334, %v5336
  %v5339 = vmin.f32 %v5337, %v5338
  %v5340 = vsel %vm61, %v5339, inf
  %v5341 = vrot.slane %v5340, 4
  %v5342 = vmin.f32 %v5340, %v5341
  %v5343 = vrot.slane %v5342, 2
  %v5344 = vmin.f32 %v5342, %v5343
  %v5345 = vrot.slane %v5344, 1
  %v5346 = vmin.f32 %v5344, %v5345
  %vm5347 = vcmp.eq.f32.partialorder %v60, %v5346
  %vm5348 = vcmp.eq.f32.partialorder %v430, %v5346
  %vm5349 = vcmp.eq.f32.partialorder %v431, %v5346
  %vm5350 = vcmp.eq.f32.partialorder %v432, %v5346
  %vm5351 = vcmp.eq.f32.partialorder %v2084, %v5346
  %vm5352 = vcmp.eq.f32.partialorder %v2085, %v5346
  %vm5353 = vcmp.eq.f32.partialorder %v2086, %v5346
  %vm5354 = vcmp.eq.f32.partialorder %v2087, %v5346
  %v5355 = vsel %vm5347, 1, 0
  %v5356 = vsel %vm5348, 1, 0
  %v5357 = vsel %vm5349, 1, 0
  %v5358 = vsel %vm5350, 1, 0
  %v5359 = vsel %vm5351, 1, 0
  %v5360 = vsel %vm5352, 1, 0
  %v5361 = vsel %vm5353, 1, 0
  %v5362 = vsel %vm5354, 1, 0
  %v5363 = vcvt.s32.f32 %v5355
  %v5364 = vcvt.s32.f32 %v5356
  %v5365 = vcvt.s32.f32 %v5357
  %v5366 = vcvt.s32.f32 %v5358
  %v5367 = vcvt.s32.f32 %v5359
  %v5368 = vcvt.s32.f32 %v5360
  %v5369 = vcvt.s32.f32 %v5361
  %v5370 = vcvt.s32.f32 %v5362
  %v5371 = vsel %vm61, %v5363, 0.0
  %v5372 = vrot.slane %v5371, 4
  %v5373 = vadd.f32 %v5371, %v5372
  %v5374 = vrot.slane %v5373, 2
  %v5375 = vadd.f32 %v5373, %v5374
  %v5376 = vrot.slane %v5375, 1
  %v5377 = vadd.f32 %v5375, %v5376
  %v5378 = vsel %vm61, %v5364, 0.0
  %v5379 = vrot.slane %v5378, 4
  %v5380 = vadd.f32 %v5378, %v5379
  %v5381 = vrot.slane %v5380, 2
  %v5382 = vadd.f32 %v5380, %v5381
  %v5383 = vrot.slane %v5382, 1
  %v5384 = vadd.f32 %v5382, %v5383
  %v5385 = vsel %vm61, %v5365, 0.0
  %v5386 = vrot.slane %v5385, 4
  %v5387 = vadd.f32 %v5385, %v5386
  %v5388 = vrot.slane %v5387, 2
  %v5389 = vadd.f32 %v5387, %v5388
  %v5390 = vrot.slane %v5389, 1
  %v5391 = vadd.f32 %v5389, %v5390
  %v5392 = vsel %vm61, %v5366, 0.0
  %v5393 = vrot.slane %v5392, 4
  %v5394 = vadd.f32 %v5392, %v5393
  %v5395 = vrot.slane %v5394, 2
  %v5396 = vadd.f32 %v5394, %v5395
  %v5397 = vrot.slane %v5396, 1
  %v5398 = vadd.f32 %v5396, %v5397
  %v5399 = vsel %vm61, %v5367, 0.0
  %v5400 = vrot.slane %v5399, 4
  %v5401 = vadd.f32 %v5399, %v5400
  %v5402 = vrot.slane %v5401, 2
  %v5403 = vadd.f32 %v5401, %v5402
  %v5404 = vrot.slane %v5403, 1
  %v5405 = vadd.f32 %v5403, %v5404
  %v5406 = vsel %vm61, %v5368, 0.0
  %v5407 = vrot.slane %v5406, 4
  %v5408 = vadd.f32 %v5406, %v5407
  %v5409 = vrot.slane %v5408, 2
  %v5410 = vadd.f32 %v5408, %v5409
  %v5411 = vrot.slane %v5410, 1
  %v5412 = vadd.f32 %v5410, %v5411
  %v5413 = vsel %vm61, %v5369, 0.0
  %v5414 = vrot.slane %v5413, 4
  %v5415 = vadd.f32 %v5413, %v5414
  %v5416 = vrot.slane %v5415, 2
  %v5417 = vadd.f32 %v5415, %v5416
  %v5418 = vrot.slane %v5417, 1
  %v5419 = vadd.f32 %v5417, %v5418
  %v5420 = vsel %vm61, %v5370, 0.0
  %v5421 = vrot.slane %v5420, 4
  %v5422 = vadd.f32 %v5420, %v5421
  %v5423 = vrot.slane %v5422, 2
  %v5424 = vadd.f32 %v5422, %v5423
  %v5425 = vrot.slane %v5424, 1
  %v5426 = vadd.f32 %v5424, %v5425
  %v5427 = vadd.f32 %v5371, %v5378
  %v5428 = vadd.f32 %v5427, %v5385
  %v5429 = vadd.f32 %v5428, %v5392
  %v5430 = vadd.f32 %v5429, %v5399
  %v5431 = vadd.f32 %v5430, %v5406
  %v5432 = vadd.f32 %v5431, %v5413
  %v5433 = vadd.f32 %v5432, %v5420
  %v5435 = vrot.slane %v4790, 1
  %v5436 = vrot.slane %v4790, 2
  %v5437 = vrot.slane %v4790, 3
  %v5438 = vrot.slane %v4790, 4
  %v5439 = vrot.slane %v4790, 5
  %v5440 = vrot.slane %v4790, 6
  %v5441 = vrot.slane %v4790, 7
  %v5450 = vmul.f32 %v5377, %v4790
  %v5451 = vmul.f32 %v5384, %v5435
  %v5452 = vmul.f32 %v5391, %v5436
  %v5453 = vmul.f32 %v5398, %v5437
  %v5454 = vmul.f32 %v5405, %v5438
  %v5455 = vmul.f32 %v5412, %v5439
  %v5456 = vmul.f32 %v5419, %v5440
  %v5457 = vmul.f32 %v5426, %v5441
  %v5466 = vrot.slane %v5451, 7
  %v5467 = vsel %vm529, %v5466, %v5450
  %v5468 = vrot.slane %v5452, 6
  %v5469 = vsel %vm532, %v5468, %v5467
  %v5470 = vrot.slane %v5453, 5
  %v5471 = vsel %vm535, %v5470, %v5469
  %v5472 = vrot.slane %v5454, 4
  %v5473 = vsel %vm2274, %v5472, %v5471
  %v5474 = vrot.slane %v5455, 3
  %v5475 = vsel %vm2277, %v5474, %v5473
  %v5476 = vrot.slane %v5456, 2
  %v5477 = vsel %vm2280, %v5476, %v5475
  %v5478 = vrot.slane %v5457, 1
  %v5479 = vsel %vm2283, %v5478, %v5477
  %v5481 = vrot.slane %v5479, 4
  %v5482 = vadd.f32 %v5479, %v5481
  %v5483 = vrot.slane %v5482, 2
  %v5484 = vadd.f32 %v5482, %v5483
  %v5485 = vrot.slane %v5484, 1
  %v5486 = vadd.f32 %v5484, %v5485
  %v5488 = vrot.slane %v4853, 1
  %v5489 = vrot.slane %v4853, 2
  %v5490 = vrot.slane %v4853, 3
  %v5491 = vrot.slane %v4853, 4
  %v5492 = vrot.slane %v4853, 5
  %v5493 = vrot.slane %v4853, 6
  %v5494 = vrot.slane %v4853, 7
  %v5503 = vmul.f32 %v5377, %v4853
  %v5504 = vmul.f32 %v5384, %v5488
  %v5505 = vmul.f32 %v5391, %v5489
  %v5506 = vmul.f32 %v5398, %v5490
  %v5507 = vmul.f32 %v5405, %v5491
  %v5508 = vmul.f32 %v5412, %v5492
  %v5509 = vmul.f32 %v5419, %v5493
  %v5510 = vmul.f32 %v5426, %v5494
  %v5519 = vrot.slane %v5504, 7
  %v5520 = vsel %vm529, %v5519, %v5503
  %v5521 = vrot.slane %v5505, 6
  %v5522 = vsel %vm532, %v5521, %v5520
  %v5523 = vrot.slane %v5506, 5
  %v5524 = vsel %vm535, %v5523, %v5522
  %v5525 = vrot.slane %v5507, 4
  %v5526 = vsel %vm2274, %v5525, %v5524
  %v5527 = vrot.slane %v5508, 3
  %v5528 = vsel %vm2277, %v5527, %v5526
  %v5529 = vrot.slane %v5509, 2
  %v5530 = vsel %vm2280, %v5529, %v5528
  %v5531 = vrot.slane %v5510, 1
  %v5532 = vsel %vm2283, %v5531, %v5530
  %v5534 = vrot.slane %v5532, 4
  %v5535 = vadd.f32 %v5532, %v5534
  %v5536 = vrot.slane %v5535, 2
  %v5537 = vadd.f32 %v5535, %v5536
  %v5538 = vrot.slane %v5537, 1
  %v5539 = vadd.f32 %v5537, %v5538
  %v5541 = vrot.slane %v4818, 1
  %v5542 = vrot.slane %v4818, 2
  %v5543 = vrot.slane %v4818, 3
  %v5544 = vrot.slane %v4818, 4
  %v5545 = vrot.slane %v4818, 5
  %v5546 = vrot.slane %v4818, 6
  %v5547 = vrot.slane %v4818, 7
  %v5556 = vmul.f32 %v5377, %v4818
  %v5557 = vmul.f32 %v5384, %v5541
  %v5558 = vmul.f32 %v5391, %v5542
  %v5559 = vmul.f32 %v5398, %v5543
  %v5560 = vmul.f32 %v5405, %v5544
  %v5561 = vmul.f32 %v5412, %v5545
  %v5562 = vmul.f32 %v5419, %v5546
  %v5563 = vmul.f32 %v5426, %v5547
  %v5572 = vrot.slane %v5557, 7
  %v5573 = vsel %vm529, %v5572, %v5556
  %v5574 = vrot.slane %v5558, 6
  %v5575 = vsel %vm532, %v5574, %v5573
  %v5576 = vrot.slane %v5559, 5
  %v5577 = vsel %vm535, %v5576, %v5575
  %v5578 = vrot.slane %v5560, 4
  %v5579 = vsel %vm2274, %v5578, %v5577
  %v5580 = vrot.slane %v5561, 3
  %v5581 = vsel %vm2277, %v5580, %v5579
  %v5582 = vrot.slane %v5562, 2
  %v5583 = vsel %vm2280, %v5582, %v5581
  %v5584 = vrot.slane %v5563, 1
  %v5585 = vsel %vm2283, %v5584, %v5583
  %v5587 = vrot.slane %v5585, 4
  %v5588 = vadd.f32 %v5585, %v5587
  %v5589 = vrot.slane %v5588, 2
  %v5590 = vadd.f32 %v5588, %v5589
  %v5591 = vrot.slane %v5590, 1
  %v5592 = vadd.f32 %v5590, %v5591
  %v5594 = vrot.slane %v4881, 1
  %v5595 = vrot.slane %v4881, 2
  %v5596 = vrot.slane %v4881, 3
  %v5597 = vrot.slane %v4881, 4
  %v5598 = vrot.slane %v4881, 5
  %v5599 = vrot.slane %v4881, 6
  %v5600 = vrot.slane %v4881, 7
  %v5609 = vmul.f32 %v5377, %v4881
  %v5610 = vmul.f32 %v5384, %v5594
  %v5611 = vmul.f32 %v5391, %v5595
  %v5612 = vmul.f32 %v5398, %v5596
  %v5613 = vmul.f32 %v5405, %v5597
  %v5614 = vmul.f32 %v5412, %v5598
  %v5615 = vmul.f32 %v5419, %v5599
  %v5616 = vmul.f32 %v5426, %v5600
  %v5625 = vrot.slane %v5610, 7
  %v5626 = vsel %vm529, %v5625, %v5609
  %v5627 = vrot.slane %v5611, 6
  %v5628 = vsel %vm532, %v5627, %v5626
  %v5629 = vrot.slane %v5612, 5
  %v5630 = vsel %vm535, %v5629, %v5628
  %v5631 = vrot.slane %v5613, 4
  %v5632 = vsel %vm2274, %v5631, %v5630
  %v5633 = vrot.slane %v5614, 3
  %v5634 = vsel %vm2277, %v5633, %v5632
  %v5635 = vrot.slane %v5615, 2
  %v5636 = vsel %vm2280, %v5635, %v5634
  %v5637 = vrot.slane %v5616, 1
  %v5638 = vsel %vm2283, %v5637, %v5636
  %v5640 = vrot.slane %v5638, 4
  %v5641 = vadd.f32 %v5638, %v5640
  %v5642 = vrot.slane %v5641, 2
  %v5643 = vadd.f32 %v5641, %v5642
  %v5644 = vrot.slane %v5643, 1
  %v5645 = vadd.f32 %v5643, %v5644
  %v5647 = vrot.slane %v4825, 1
  %v5648 = vrot.slane %v4825, 2
  %v5649 = vrot.slane %v4825, 3
  %v5650 = vrot.slane %v4825, 4
  %v5651 = vrot.slane %v4825, 5
  %v5652 = vrot.slane %v4825, 6
  %v5653 = vrot.slane %v4825, 7
  %v5662 = vmul.f32 %v5377, %v4825
  %v5663 = vmul.f32 %v5384, %v5647
  %v5664 = vmul.f32 %v5391, %v5648
  %v5665 = vmul.f32 %v5398, %v5649
  %v5666 = vmul.f32 %v5405, %v5650
  %v5667 = vmul.f32 %v5412, %v5651
  %v5668 = vmul.f32 %v5419, %v5652
  %v5669 = vmul.f32 %v5426, %v5653
  %v5678 = vrot.slane %v5663, 7
  %v5679 = vsel %vm529, %v5678, %v5662
  %v5680 = vrot.slane %v5664, 6
  %v5681 = vsel %vm532, %v5680, %v5679
  %v5682 = vrot.slane %v5665, 5
  %v5683 = vsel %vm535, %v5682, %v5681
  %v5684 = vrot.slane %v5666, 4
  %v5685 = vsel %vm2274, %v5684, %v5683
  %v5686 = vrot.slane %v5667, 3
  %v5687 = vsel %vm2277, %v5686, %v5685
  %v5688 = vrot.slane %v5668, 2
  %v5689 = vsel %vm2280, %v5688, %v5687
  %v5690 = vrot.slane %v5669, 1
  %v5691 = vsel %vm2283, %v5690, %v5689
  %v5693 = vrot.slane %v5691, 4
  %v5694 = vadd.f32 %v5691, %v5693
  %v5695 = vrot.slane %v5694, 2
  %v5696 = vadd.f32 %v5694, %v5695
  %v5697 = vrot.slane %v5696, 1
  %v5698 = vadd.f32 %v5696, %v5697
  %v5700 = vrot.slane %v4888, 1
  %v5701 = vrot.slane %v4888, 2
  %v5702 = vrot.slane %v4888, 3
  %v5703 = vrot.slane %v4888, 4
  %v5704 = vrot.slane %v4888, 5
  %v5705 = vrot.slane %v4888, 6
  %v5706 = vrot.slane %v4888, 7
  %v5715 = vmul.f32 %v5377, %v4888
  %v5716 = vmul.f32 %v5384, %v5700
  %v5717 = vmul.f32 %v5391, %v5701
  %v5718 = vmul.f32 %v5398, %v5702
  %v5719 = vmul.f32 %v5405, %v5703
  %v5720 = vmul.f32 %v5412, %v5704
  %v5721 = vmul.f32 %v5419, %v5705
  %v5722 = vmul.f32 %v5426, %v5706
  %v5731 = vrot.slane %v5716, 7
  %v5732 = vsel %vm529, %v5731, %v5715
  %v5733 = vrot.slane %v5717, 6
  %v5734 = vsel %vm532, %v5733, %v5732
  %v5735 = vrot.slane %v5718, 5
  %v5736 = vsel %vm535, %v5735, %v5734
  %v5737 = vrot.slane %v5719, 4
  %v5738 = vsel %vm2274, %v5737, %v5736
  %v5739 = vrot.slane %v5720, 3
  %v5740 = vsel %vm2277, %v5739, %v5738
  %v5741 = vrot.slane %v5721, 2
  %v5742 = vsel %vm2280, %v5741, %v5740
  %v5743 = vrot.slane %v5722, 1
  %v5744 = vsel %vm2283, %v5743, %v5742
  %v5746 = vrot.slane %v5744, 4
  %v5747 = vadd.f32 %v5744, %v5746
  %v5748 = vrot.slane %v5747, 2
  %v5749 = vadd.f32 %v5747, %v5748
  %v5750 = vrot.slane %v5749, 1
  %v5751 = vadd.f32 %v5749, %v5750
  %v5752 = vmul.f32 %v5433, %v27
  %v5753 = vsel %vm61, %v5752, 0.0
  %v5754 = vrot.slane %v5753, 4
  %v5755 = vadd.f32 %v5753, %v5754
  %v5756 = vrot.slane %v5755, 2
  %v5757 = vadd.f32 %v5755, %v5756
  %v5758 = vrot.slane %v5757, 1
  %v5759 = vadd.f32 %v5757, %v5758
  %v5760 = vmul.f32 %v5433, %v37
  %v5761 = vsel %vm61, %v5760, 0.0
  %v5762 = vrot.slane %v5761, 4
  %v5763 = vadd.f32 %v5761, %v5762
  %v5764 = vrot.slane %v5763, 2
  %v5765 = vadd.f32 %v5763, %v5764
  %v5766 = vrot.slane %v5765, 1
  %v5767 = vadd.f32 %v5765, %v5766
  %v5769 = vrot.slane %v5592, 7
  %v5772 = vrot.slane %v5698, 6
  %v5775 = vrot.slane %v5539, 4
  %v5778 = vrot.slane %v5645, 3
  %v5781 = vrot.slane %v5751, 2
  %v5783 = vsel %vm212, %v5486, %v5769
  %v5784 = vsel %vm214, %v5783, %v5772
  %v5785 = vsel %vm216, %v5784, %v5759
  %v5786 = vsel %vm61, %v5785, %v5775
  %v5787 = vsel %vm1624, %v5786, %v5778
  %v5788 = vsel %vm1626, %v5787, %v5781
  %v5789 = vsel %vm1628, %v5788, %v5767
  %5790 = vst [vmem:[%s3] sm:$0xff] %v5789
  // Predicated region
  $region14: #{kbest_detector_forward.1} parent=0 // pred_check
    _
  $region15: #{kbest_detector_forward.1} parent=0 // pred_check_branch
    %5792 = sbr.rel (0) target = $region17
  $region16: #{kbest_detector_forward.1} parent=0 // pred_region
    _
  $region17: #{kbest_detector_forward.1} parent=0 // pred_fallthru
    _
  // Predicated region
  $region18: #{kbest_detector_forward.1} parent=0 // pred_check
    _
  $region19: #{kbest_detector_forward.1} parent=0 // pred_check_branch
    %5794 = sbr.rel (0) target = $region21
  $region20: #{kbest_detector_forward.1} parent=0 // pred_region
    _
  $region21: #{kbest_detector_forward.1} parent=0 // pred_fallthru
    _

</llo_original>
